<compile_context>
chip_gen: v7x
topology: tpu7x:2x2x1
jax: 0.10.0
libtpu: 0.0.40
codegen_flags: <defaults>
</compile_context>

<pallas_src>
import functools

import numpy as np
import jax
import jax.numpy as jnp
from jax.experimental import pallas as pl
from jax.experimental.pallas import tpu as pltpu


# ---------------------------------------------------------------------------
# Single fused kernel: conv1 block + conv2 block + FC stack
# ---------------------------------------------------------------------------

def _lenet_kernel(*refs, training):
    if training:
        seed_ref = refs[27]
        refs = refs[:27] + refs[28:]
    else:
        seed_ref = None
    (x1_ref,
     wbig1_ref, bwide1_ref, g1_ref, be1_ref, sel1_ref, selT1_ref,
     ge1_ref, go1_ref, pe1_ref, po1_ref,
     wbig2_ref, bwide2_ref, g2_ref, be2_ref, sel2_ref, selT2_ref,
     ge2_ref, go2_ref, pe2_ref, po2_ref,
     w1_ref, b1_ref, w2_ref, b2_ref, w3_ref, b3_ref,
     o_ref, act_ref, x2_ref, p2_ref) = refs

    n_img = x1_ref.shape[0]
    eps = 1e-5
    f32, bf16 = jnp.float32, jnp.bfloat16

    # Zero the padded conv-2 input scratch once; block-1's pool writes fill
    # rows 1..16 / width groups 1..16, the border stays zero (= conv2 pad=1).
    x2_ref[...] = jnp.zeros_like(x2_ref)

    def conv_bn_relu_pool(x_ref, wbig_ref, bwide, gamma, beta, sel, selT,
                          ge, go, pe, po, store, *, oh, ow_valid):
        """conv(+bias) -> BN(batch stats) -> ReLU -> 2x2 maxpool, whole batch."""
        k_taps, _, ow_oc = wbig_ref.shape

        # ---- pass 1: banded conv matmuls (bf16 MXU operands, f32 accum) ----
        accs = [jnp.zeros((oh, ow_oc), f32) for _ in range(n_img)]
        for kh in range(k_taps):
            band = wbig_ref[kh]                       # hoisted: one load per tap
            for n in range(n_img):
                accs[n] = accs[n] + jnp.dot(
                    x_ref[n, kh:kh + oh, :].astype(bf16), band,
                    preferred_element_type=f32)
        s_rows, q_rows = [], []
        for n in range(n_img):
            acc = accs[n] + bwide
            act_ref[n, :oh, :] = acc
            s_rows.append(jnp.sum(acc, axis=0, keepdims=True))
            q_rows.append(jnp.sum(acc * acc, axis=0, keepdims=True))

        # ---- BN batch stats: one batched (2N, ow_oc) @ (ow_oc, OC) matmul ----
        stat = jnp.dot(jnp.concatenate(s_rows + q_rows, axis=0), sel,
                       preferred_element_type=f32)    # (2N, OC), f32 throughout
        inv_m = 1.0 / float(n_img * oh * ow_valid)
        mean = jnp.sum(stat[:n_img], axis=0, keepdims=True) * inv_m
        var = jnp.sum(stat[n_img:], axis=0, keepdims=True) * inv_m - mean * mean
        # TODO(synk): single-pass E[x^2]-mean^2; clamp guards cancellation.
        var = jnp.maximum(var, 0.0)
        scale_c = gamma * jax.lax.rsqrt(var + eps)            # (1, OC)
        shift_c = beta - mean * scale_c
        scale_w = jnp.dot(scale_c, selT, preferred_element_type=f32)  # (1, ow_oc)
        shift_w = jnp.dot(shift_c, selT, preferred_element_type=f32)

        # ---- pass 2: normalize + ReLU + exact 0/1-selector 2x2 maxpool ----
        for n in range(n_img):
            z = jnp.maximum(act_ref[n, :oh, :] * scale_w + shift_w, 0.0)
            zb = z.astype(bf16)
            zw = jnp.maximum(jnp.dot(zb, ge, preferred_element_type=f32),
                             jnp.dot(zb, go, preferred_element_type=f32))
            zwb = zw.astype(bf16)
            p = jnp.maximum(jnp.dot(pe, zwb, preferred_element_type=f32),
                            jnp.dot(po, zwb, preferred_element_type=f32))
            store(n, p)

    def store_block1(n, p):              # (16, 144) into padded conv-2 input
        x2_ref[n, 1:17, :] = p

    def store_block2(n, p):              # (7, 128) pooled FC input
        p2_ref[n] = p

    # block 1: x (36, 36*3) -> act (32, 32*8) -> pooled (16, 16*8), stored
    # directly in the zero-padded conv-2 input layout (18, 18*8).
    conv_bn_relu_pool(x1_ref, wbig1_ref, bwide1_ref[...], g1_ref[...], be1_ref[...],
                      sel1_ref[...], selT1_ref[...], ge1_ref[...], go1_ref[...],
                      pe1_ref[...], po1_ref[...], store_block1, oh=32, ow_valid=32)
    # block 2: x (18, 18*8) -> act (14, 16*16) (2 junk cols) -> pooled (7, 8*16).
    conv_bn_relu_pool(x2_ref, wbig2_ref, bwide2_ref[...], g2_ref[...], be2_ref[...],
                      sel2_ref[...], selT2_ref[...], ge2_ref[...], go2_ref[...],
                      pe2_ref[...], po2_ref[...], store_block2, oh=14, ow_valid=14)

    # ---- FC stack: fc1 + ReLU (+dropout) + fc2 + ReLU (+dropout) + fc3 ----
    p2 = p2_ref[...]                                          # (N, 7, 128) f32
    w1 = w1_ref[...]                                          # (7, 128, 128) bf16
    a1 = jnp.zeros((n_img, 128), f32)
    for h in range(7):         # PyTorch NCHW flatten order folded into w1 packing
        a1 = a1 + jnp.dot(p2[:, h, :].astype(bf16), w1[h],
                          preferred_element_type=f32)
    a1 = jnp.maximum(a1 + b1_ref[...], 0.0)
    if training:
        # nn.Dropout(p=0.5), inverted scaling.
        # TODO(synk): p fixed at 0.5; not bit-identical to torch RNG.
        pltpu.prng_seed(seed_ref[0])
        keep1 = (pltpu.prng_random_bits(a1.shape) & 1).astype(f32)
        a1 = a1 * keep1 * 2.0
    a2 = jnp.dot(a1.astype(bf16), w2_ref[...], preferred_element_type=f32) + b2_ref[...]
    a2 = jnp.maximum(a2, 0.0)
    if training:
        keep2 = (pltpu.prng_random_bits(a2.shape) & 1).astype(f32)
        a2 = a2 * keep2 * 2.0
    o_ref[...] = (jnp.dot(a2.astype(bf16), w3_ref[...], preferred_element_type=f32)
                  + b3_ref[...])


# ---------------------------------------------------------------------------
# One-time parameter repacking (hoisted out of the per-forward path)
# ---------------------------------------------------------------------------

def prepare_params(params):
    """Repack torch-layout parameters into kernel constants (call once)."""
    f32, bf16 = jnp.float32, jnp.bfloat16

    def banded(w_oihw, wp, ow_out):
        # wbig[kh, w*Cin + c, ow*OC + o] = W[o, c, kh, w - ow] (0 outside band)
        oc, cin, kh, kw = w_oihw.shape
        wt = jnp.transpose(w_oihw, (2, 3, 1, 0)).astype(f32)          # (KH,KW,Cin,OC)
        a = (np.arange(wp)[None, None, :] ==
             (np.arange(ow_out)[None, :, None] + np.arange(kw)[:, None, None])
             ).astype(np.float32)                                     # (KW,OW,Wp)
        wbig = jnp.einsum('xow,kxcu->kwcou', a, wt).reshape(kh, wp * cin, ow_out * oc)
        return wbig.astype(bf16)

    def stat_consts(ow_valid, ow_total, oc):
        eye = np.eye(oc, dtype=np.float32)
        sel = np.concatenate(
            [np.tile(eye, (ow_valid, 1)),
             np.zeros(((ow_total - ow_valid) * oc, oc), np.float32)], axis=0)
        selT = np.ascontiguousarray(np.tile(eye, (ow_total, 1)).T)
        return jnp.asarray(sel, dtype=f32), jnp.asarray(selT, dtype=f32)

    def pool_consts(ow, oc, n_groups_out, group_map, n_rows, n_rows_out):
        eye = np.eye(oc, dtype=np.float32)
        ew = np.zeros((ow, n_groups_out), np.float32)
        eo = np.zeros((ow, n_groups_out), np.float32)
        for j, dst in group_map:
            ew[2 * j, dst] = 1.0
            eo[2 * j + 1, dst] = 1.0
        ge = jnp.asarray(np.kron(ew, eye), dtype=bf16)
        go = jnp.asarray(np.kron(eo, eye), dtype=bf16)
        pe = jnp.asarray((np.arange(n_rows)[None, :] ==
                          2 * np.arange(n_rows_out)[:, None]).astype(np.float32),
                         dtype=bf16)
        po = jnp.asarray((np.arange(n_rows)[None, :] ==
                          2 * np.arange(n_rows_out)[:, None] + 1).astype(np.float32),
                         dtype=bf16)
        return ge, go, pe, po

    packed = {}
    # block 1: Hp=Wp=36, Cin=3, OC=8, OW=32 (all valid)
    packed["wbig1"] = banded(params["conv1_w"], 36, 32)                     # (5,108,256)
    packed["bwide1"] = jnp.tile(params["conv1_b"].astype(f32), 32).reshape(1, 256)
    packed["g1"] = params["bn1_g"].reshape(1, 8).astype(f32)
    packed["be1"] = params["bn1_b"].reshape(1, 8).astype(f32)
    packed["sel1"], packed["selT1"] = stat_consts(32, 32, 8)
    (packed["ge1"], packed["go1"], packed["pe1"], packed["po1"]) = pool_consts(
        32, 8, 18, [(j, j + 1) for j in range(16)], 32, 16)  # -> padded conv-2 layout
    # block 2: Hp=Wp=18, Cin=8, OC=16, OW=14 valid (padded to 16 lanes-wise)
    packed["wbig2"] = banded(params["conv2_w"], 18, 16)                     # (5,144,256)
    packed["bwide2"] = jnp.tile(params["conv2_b"].astype(f32), 16).reshape(1, 256)
    packed["g2"] = params["bn2_g"].reshape(1, 16).astype(f32)
    packed["be2"] = params["bn2_b"].reshape(1, 16).astype(f32)
    packed["sel2"], packed["selT2"] = stat_consts(14, 16, 16)
    (packed["ge2"], packed["go2"], packed["pe2"], packed["po2"]) = pool_consts(
        16, 16, 8, [(j, j) for j in range(7)], 14, 7)
    # FC stack: fold NCHW flatten order into w1; zero-pad hidden dims to 128.
    w1 = params["fc1_w"].reshape(120, 16, 7, 7)                             # (F,C,H,W)
    w1 = jnp.transpose(w1, (2, 3, 1, 0))                                    # (H,W,C,F)
    w1 = jnp.pad(w1, ((0, 0), (0, 1), (0, 0), (0, 8)))                      # W->8, F->128
    packed["w1"] = w1.reshape(7, 128, 128).astype(bf16)
    packed["b1"] = jnp.pad(params["fc1_b"], (0, 8)).reshape(1, 128).astype(f32)
    packed["w2"] = jnp.pad(params["fc2_w"].T, ((0, 8), (0, 44))).astype(bf16)   # (128,128)
    packed["b2"] = jnp.pad(params["fc2_b"], (0, 44)).reshape(1, 128).astype(f32)
    packed["w3"] = jnp.pad(params["fc3_w"].T, ((0, 44), (0, 0))).astype(bf16)   # (128,C)
    packed["b3"] = params["fc3_b"].reshape(1, -1).astype(f32)
    return packed


_CONST_ORDER = ("wbig1", "bwide1", "g1", "be1", "sel1", "selT1",
                "ge1", "go1", "pe1", "po1",
                "wbig2", "bwide2", "g2", "be2", "sel2", "selT2",
                "ge2", "go2", "pe2", "po2",
                "w1", "b1", "w2", "b2", "w3", "b3")


def _lenet_call(x1, packed, *, training, seed):
    n_img = x1.shape[0]
    n_classes = packed["w3"].shape[1]
    args = [x1] + [packed[k] for k in _CONST_ORDER]
    in_specs = [pl.BlockSpec(memory_space=pltpu.MemorySpace.VMEM)] * len(args)
    if training:
        args.append(jnp.asarray([seed], dtype=jnp.int32))
        in_specs.append(pl.BlockSpec(memory_space=pltpu.MemorySpace.SMEM))
    out_shape = jax.ShapeDtypeStruct((n_img, n_classes), jnp.float32)

    flops = 2 * n_img * (5 * 32 * 108 * 256 + 2 * 32 * 256 * 144 + 2 * 16 * 32 * 144
                         + 5 * 14 * 144 * 256 + 2 * 14 * 256 * 128 + 2 * 7 * 14 * 128
                         + 7 * 128 * 128 + 128 * 128 + 128 * n_classes)
    bytes_accessed = (sum(int(np.prod(a.shape)) * a.dtype.itemsize for a in args)
                      + n_img * n_classes * 4)

    return pl.pallas_call(
        functools.partial(_lenet_kernel, training=training),
        out_shape=out_shape,
        in_specs=in_specs,
        out_specs=pl.BlockSpec(memory_space=pltpu.MemorySpace.VMEM),
        scratch_shapes=[
            pltpu.VMEM((n_img, 32, 256), jnp.float32),   # conv act (shared, both blocks)
            pltpu.VMEM((n_img, 18, 144), jnp.float32),   # zero-padded conv-2 input
            pltpu.VMEM((n_img, 7, 128), jnp.float32),    # pooled block-2 output (FC input)
        ],
        cost_estimate=pl.CostEstimate(flops=int(flops), transcendentals=24,
                                      bytes_accessed=int(bytes_accessed)),
    )(*args)


# ---------------------------------------------------------------------------
# Model: parameter init + forward
# ---------------------------------------------------------------------------

def init_params(key, in_channels=3, n_classes=10):
    ks = jax.random.split(key, 8)
    s = 0.1
    return {
        "conv1_w": s * jax.random.normal(ks[0], (8, in_channels, 5, 5), jnp.float32),
        "conv1_b": s * jax.random.normal(ks[1], (8,), jnp.float32),
        "bn1_g": jnp.ones((8,), jnp.float32),
        "bn1_b": jnp.zeros((8,), jnp.float32),
        "conv2_w": s * jax.random.normal(ks[2], (16, 8, 5, 5), jnp.float32),
        "conv2_b": s * jax.random.normal(ks[3], (16,), jnp.float32),
        "bn2_g": jnp.ones((16,), jnp.float32),
        "bn2_b": jnp.zeros((16,), jnp.float32),
        "fc1_w": s * jax.random.normal(ks[4], (120, 16 * 7 * 7), jnp.float32),
        "fc1_b": jnp.zeros((120,), jnp.float32),
        "fc2_w": s * jax.random.normal(ks[5], (84, 120), jnp.float32),
        "fc2_b": jnp.zeros((84,), jnp.float32),
        "fc3_w": s * jax.random.normal(ks[6], (n_classes, 84), jnp.float32),
        "fc3_b": jnp.zeros((n_classes,), jnp.float32),
    }


def dropout_pad_bn_lenet5_forward(packed, x_nchw, *, training=False, dropout_seed=0):
    n_img, cin, hh, ww = x_nchw.shape
    assert (hh, ww) == (32, 32), "fc1 = Linear(16*7*7, .) implies 32x32 input"
    # NCHW -> NHWC, conv-1 spatial pad 2, fold (W, C) into lanes.  This is the
    # only XLA glue left per forward; everything else runs inside one kernel.
    x = jnp.transpose(x_nchw, (0, 2, 3, 1)).astype(jnp.float32)
    x = jnp.pad(x, ((0, 0), (2, 2), (2, 2), (0, 0)))
    x1 = x.reshape(n_img, hh + 4, (ww + 4) * cin)                      # (N, 36, 108)
    return _lenet_call(x1, packed, training=training, seed=dropout_seed)


if __name__ == "__main__":
    key = jax.random.PRNGKey(0)
    k_param, k_x = jax.random.split(key)
    params = init_params(k_param, in_channels=3, n_classes=10)
    packed = prepare_params(params)      # one-time repack, hoisted out of forward
    x = jax.random.normal(k_x, (2, 3, 32, 32), dtype=jnp.float32)
    fwd = jax.jit(functools.partial(dropout_pad_bn_lenet5_forward, training=False))
    out = jax.block_until_ready(fwd(packed, x))
    assert out.shape == (2, 10)
    print("KERNEL_OK")
</pallas_src>

<mosaic_0001>
module attributes {stable_mosaic.version = 11 : i64} {
  func.func @_lenet_kernel(%arg0: memref<2x36x108xf32, #tpu.memory_space<vmem>>, %arg1: memref<5x108x256xbf16, #tpu.memory_space<vmem>>, %arg2: memref<1x256xf32, #tpu.memory_space<vmem>>, %arg3: memref<1x8xf32, #tpu.memory_space<vmem>>, %arg4: memref<1x8xf32, #tpu.memory_space<vmem>>, %arg5: memref<256x8xf32, #tpu.memory_space<vmem>>, %arg6: memref<8x256xf32, #tpu.memory_space<vmem>>, %arg7: memref<256x144xbf16, #tpu.memory_space<vmem>>, %arg8: memref<256x144xbf16, #tpu.memory_space<vmem>>, %arg9: memref<16x32xbf16, #tpu.memory_space<vmem>>, %arg10: memref<16x32xbf16, #tpu.memory_space<vmem>>, %arg11: memref<5x144x256xbf16, #tpu.memory_space<vmem>>, %arg12: memref<1x256xf32, #tpu.memory_space<vmem>>, %arg13: memref<1x16xf32, #tpu.memory_space<vmem>>, %arg14: memref<1x16xf32, #tpu.memory_space<vmem>>, %arg15: memref<256x16xf32, #tpu.memory_space<vmem>>, %arg16: memref<16x256xf32, #tpu.memory_space<vmem>>, %arg17: memref<256x128xbf16, #tpu.memory_space<vmem>>, %arg18: memref<256x128xbf16, #tpu.memory_space<vmem>>, %arg19: memref<7x14xbf16, #tpu.memory_space<vmem>>, %arg20: memref<7x14xbf16, #tpu.memory_space<vmem>>, %arg21: memref<7x128x128xbf16, #tpu.memory_space<vmem>>, %arg22: memref<1x128xf32, #tpu.memory_space<vmem>>, %arg23: memref<128x128xbf16, #tpu.memory_space<vmem>>, %arg24: memref<1x128xf32, #tpu.memory_space<vmem>>, %arg25: memref<128x10xbf16, #tpu.memory_space<vmem>>, %arg26: memref<1x10xf32, #tpu.memory_space<vmem>>, %arg27: memref<2x10xf32, #tpu.memory_space<vmem>>, %arg28: memref<2x32x256xf32, #tpu.memory_space<vmem>>, %arg29: memref<2x18x144xf32, #tpu.memory_space<vmem>>, %arg30: memref<2x7x128xf32, #tpu.memory_space<vmem>>) attributes {dimension_semantics = [], scalar_prefetch = 0 : i64, scratch_operands = 3 : i64, tpu.core_type = #tpu.core_type<tc>} {
    %cst = arith.constant 0.000000e+00 : f32
    %0 = vector.broadcast %cst : f32 to vector<2x18x144xf32>
    %c0 = arith.constant 0 : index
    %c0_0 = arith.constant 0 : index
    %c0_1 = arith.constant 0 : index
    %1 = vector.load %arg29[%c0, %c0_0, %c0_1] : memref<2x18x144xf32, #tpu.memory_space<vmem>>, vector<2x18x144xf32>
    tpu.vector_store %arg29[%c0, %c0_0, %c0_1], %0 {strides = array<i32>} : memref<2x18x144xf32, #tpu.memory_space<vmem>>, vector<2x18x144xf32>,
    %c0_2 = arith.constant 0 : index
    %c0_3 = arith.constant 0 : index
    %2 = vector.load %arg2[%c0_2, %c0_3] : memref<1x256xf32, #tpu.memory_space<vmem>>, vector<1x256xf32>
    %c0_4 = arith.constant 0 : index
    %c0_5 = arith.constant 0 : index
    %3 = vector.load %arg3[%c0_4, %c0_5] : memref<1x8xf32, #tpu.memory_space<vmem>>, vector<1x8xf32>
    %c0_6 = arith.constant 0 : index
    %c0_7 = arith.constant 0 : index
    %4 = vector.load %arg4[%c0_6, %c0_7] : memref<1x8xf32, #tpu.memory_space<vmem>>, vector<1x8xf32>
    %c0_8 = arith.constant 0 : index
    %c0_9 = arith.constant 0 : index
    %5 = vector.load %arg5[%c0_8, %c0_9] : memref<256x8xf32, #tpu.memory_space<vmem>>, vector<256x8xf32>
    %c0_10 = arith.constant 0 : index
    %c0_11 = arith.constant 0 : index
    %6 = vector.load %arg6[%c0_10, %c0_11] : memref<8x256xf32, #tpu.memory_space<vmem>>, vector<8x256xf32>
    %c0_12 = arith.constant 0 : index
    %c0_13 = arith.constant 0 : index
    %7 = vector.load %arg7[%c0_12, %c0_13] : memref<256x144xbf16, #tpu.memory_space<vmem>>, vector<256x144xbf16>
    %c0_14 = arith.constant 0 : index
    %c0_15 = arith.constant 0 : index
    %8 = vector.load %arg8[%c0_14, %c0_15] : memref<256x144xbf16, #tpu.memory_space<vmem>>, vector<256x144xbf16>
    %c0_16 = arith.constant 0 : index
    %c0_17 = arith.constant 0 : index
    %9 = vector.load %arg9[%c0_16, %c0_17] : memref<16x32xbf16, #tpu.memory_space<vmem>>, vector<16x32xbf16>
    %c0_18 = arith.constant 0 : index
    %c0_19 = arith.constant 0 : index
    %10 = vector.load %arg10[%c0_18, %c0_19] : memref<16x32xbf16, #tpu.memory_space<vmem>>, vector<16x32xbf16>
    %cst_20 = arith.constant 0.000000e+00 : f32
    %11 = vector.broadcast %cst_20 : f32 to vector<32x256xf32>
    %cst_21 = arith.constant 0.000000e+00 : f32
    %12 = vector.broadcast %cst_21 : f32 to vector<32x256xf32>
    %c0_22 = arith.constant 0 : index
    %c0_23 = arith.constant 0 : index
    %c0_24 = arith.constant 0 : index
    %13 = vector.load %arg1[%c0_22, %c0_23, %c0_24] : memref<5x108x256xbf16, #tpu.memory_space<vmem>>, vector<1x108x256xbf16>
    %14 = vector.shape_cast %13 : vector<1x108x256xbf16> to vector<108x256xbf16>
    %c0_25 = arith.constant 0 : index
    %c0_26 = arith.constant 0 : index
    %c0_27 = arith.constant 0 : index
    %15 = vector.load %arg0[%c0_25, %c0_26, %c0_27] : memref<2x36x108xf32, #tpu.memory_space<vmem>>, vector<1x32x108xf32>
    %16 = vector.shape_cast %15 : vector<1x32x108xf32> to vector<32x108xf32>
    %17 = arith.truncf %16 : vector<32x108xf32> to vector<32x108xbf16>
    %cst_28 = arith.constant dense<0.000000e+00> : vector<32x256xf32>
    %18 = tpu.matmul %17, %14, %cst_28 {dimension_numbers = #tpu.dot_dimension_numbers<[1], [0], [0], [1], [0, 0, 1, 1], [], []>} : vector<32x108xbf16>, vector<108x256xbf16>, vector<32x256xf32> -> vector<32x256xf32>
    %19 = arith.addf %11, %18 : vector<32x256xf32>
    %c1 = arith.constant 1 : index
    %c0_29 = arith.constant 0 : index
    %c0_30 = arith.constant 0 : index
    %20 = vector.load %arg0[%c1, %c0_29, %c0_30] : memref<2x36x108xf32, #tpu.memory_space<vmem>>, vector<1x32x108xf32>
    %21 = vector.shape_cast %20 : vector<1x32x108xf32> to vector<32x108xf32>
    %22 = arith.truncf %21 : vector<32x108xf32> to vector<32x108xbf16>
    %cst_31 = arith.constant dense<0.000000e+00> : vector<32x256xf32>
    %23 = tpu.matmul %22, %14, %cst_31 {dimension_numbers = #tpu.dot_dimension_numbers<[1], [0], [0], [1], [0, 0, 1, 1], [], []>} : vector<32x108xbf16>, vector<108x256xbf16>, vector<32x256xf32> -> vector<32x256xf32>
    %24 = arith.addf %12, %23 : vector<32x256xf32>
    %c1_32 = arith.constant 1 : index
    %c0_33 = arith.constant 0 : index
    %c0_34 = arith.constant 0 : index
    %25 = vector.load %arg1[%c1_32, %c0_33, %c0_34] : memref<5x108x256xbf16, #tpu.memory_space<vmem>>, vector<1x108x256xbf16>
    %26 = vector.shape_cast %25 : vector<1x108x256xbf16> to vector<108x256xbf16>
    %c0_35 = arith.constant 0 : index
    %c1_36 = arith.constant 1 : index
    %c0_37 = arith.constant 0 : index
    %27 = vector.load %arg0[%c0_35, %c1_36, %c0_37] : memref<2x36x108xf32, #tpu.memory_space<vmem>>, vector<1x32x108xf32>
    %28 = vector.shape_cast %27 : vector<1x32x108xf32> to vector<32x108xf32>
    %29 = arith.truncf %28 : vector<32x108xf32> to vector<32x108xbf16>
    %cst_38 = arith.constant dense<0.000000e+00> : vector<32x256xf32>
    %30 = tpu.matmul %29, %26, %cst_38 {dimension_numbers = #tpu.dot_dimension_numbers<[1], [0], [0], [1], [0, 0, 1, 1], [], []>} : vector<32x108xbf16>, vector<108x256xbf16>, vector<32x256xf32> -> vector<32x256xf32>
    %31 = arith.addf %19, %30 : vector<32x256xf32>
    %c1_39 = arith.constant 1 : index
    %c1_40 = arith.constant 1 : index
    %c0_41 = arith.constant 0 : index
    %32 = vector.load %arg0[%c1_39, %c1_40, %c0_41] : memref<2x36x108xf32, #tpu.memory_space<vmem>>, vector<1x32x108xf32>
    %33 = vector.shape_cast %32 : vector<1x32x108xf32> to vector<32x108xf32>
    %34 = arith.truncf %33 : vector<32x108xf32> to vector<32x108xbf16>
    %cst_42 = arith.constant dense<0.000000e+00> : vector<32x256xf32>
    %35 = tpu.matmul %34, %26, %cst_42 {dimension_numbers = #tpu.dot_dimension_numbers<[1], [0], [0], [1], [0, 0, 1, 1], [], []>} : vector<32x108xbf16>, vector<108x256xbf16>, vector<32x256xf32> -> vector<32x256xf32>
    %36 = arith.addf %24, %35 : vector<32x256xf32>
    %c2 = arith.constant 2 : index
    %c0_43 = arith.constant 0 : index
    %c0_44 = arith.constant 0 : index
    %37 = vector.load %arg1[%c2, %c0_43, %c0_44] : memref<5x108x256xbf16, #tpu.memory_space<vmem>>, vector<1x108x256xbf16>
    %38 = vector.shape_cast %37 : vector<1x108x256xbf16> to vector<108x256xbf16>
    %c0_45 = arith.constant 0 : index
    %c2_46 = arith.constant 2 : index
    %c0_47 = arith.constant 0 : index
    %39 = vector.load %arg0[%c0_45, %c2_46, %c0_47] : memref<2x36x108xf32, #tpu.memory_space<vmem>>, vector<1x32x108xf32>
    %40 = vector.shape_cast %39 : vector<1x32x108xf32> to vector<32x108xf32>
    %41 = arith.truncf %40 : vector<32x108xf32> to vector<32x108xbf16>
    %cst_48 = arith.constant dense<0.000000e+00> : vector<32x256xf32>
    %42 = tpu.matmul %41, %38, %cst_48 {dimension_numbers = #tpu.dot_dimension_numbers<[1], [0], [0], [1], [0, 0, 1, 1], [], []>} : vector<32x108xbf16>, vector<108x256xbf16>, vector<32x256xf32> -> vector<32x256xf32>
    %43 = arith.addf %31, %42 : vector<32x256xf32>
    %c1_49 = arith.constant 1 : index
    %c2_50 = arith.constant 2 : index
    %c0_51 = arith.constant 0 : index
    %44 = vector.load %arg0[%c1_49, %c2_50, %c0_51] : memref<2x36x108xf32, #tpu.memory_space<vmem>>, vector<1x32x108xf32>
    %45 = vector.shape_cast %44 : vector<1x32x108xf32> to vector<32x108xf32>
    %46 = arith.truncf %45 : vector<32x108xf32> to vector<32x108xbf16>
    %cst_52 = arith.constant dense<0.000000e+00> : vector<32x256xf32>
    %47 = tpu.matmul %46, %38, %cst_52 {dimension_numbers = #tpu.dot_dimension_numbers<[1], [0], [0], [1], [0, 0, 1, 1], [], []>} : vector<32x108xbf16>, vector<108x256xbf16>, vector<32x256xf32> -> vector<32x256xf32>
    %48 = arith.addf %36, %47 : vector<32x256xf32>
    %c3 = arith.constant 3 : index
    %c0_53 = arith.constant 0 : index
    %c0_54 = arith.constant 0 : index
    %49 = vector.load %arg1[%c3, %c0_53, %c0_54] : memref<5x108x256xbf16, #tpu.memory_space<vmem>>, vector<1x108x256xbf16>
    %50 = vector.shape_cast %49 : vector<1x108x256xbf16> to vector<108x256xbf16>
    %c0_55 = arith.constant 0 : index
    %c3_56 = arith.constant 3 : index
    %c0_57 = arith.constant 0 : index
    %51 = vector.load %arg0[%c0_55, %c3_56, %c0_57] : memref<2x36x108xf32, #tpu.memory_space<vmem>>, vector<1x32x108xf32>
    %52 = vector.shape_cast %51 : vector<1x32x108xf32> to vector<32x108xf32>
    %53 = arith.truncf %52 : vector<32x108xf32> to vector<32x108xbf16>
    %cst_58 = arith.constant dense<0.000000e+00> : vector<32x256xf32>
    %54 = tpu.matmul %53, %50, %cst_58 {dimension_numbers = #tpu.dot_dimension_numbers<[1], [0], [0], [1], [0, 0, 1, 1], [], []>} : vector<32x108xbf16>, vector<108x256xbf16>, vector<32x256xf32> -> vector<32x256xf32>
    %55 = arith.addf %43, %54 : vector<32x256xf32>
    %c1_59 = arith.constant 1 : index
    %c3_60 = arith.constant 3 : index
    %c0_61 = arith.constant 0 : index
    %56 = vector.load %arg0[%c1_59, %c3_60, %c0_61] : memref<2x36x108xf32, #tpu.memory_space<vmem>>, vector<1x32x108xf32>
    %57 = vector.shape_cast %56 : vector<1x32x108xf32> to vector<32x108xf32>
    %58 = arith.truncf %57 : vector<32x108xf32> to vector<32x108xbf16>
    %cst_62 = arith.constant dense<0.000000e+00> : vector<32x256xf32>
    %59 = tpu.matmul %58, %50, %cst_62 {dimension_numbers = #tpu.dot_dimension_numbers<[1], [0], [0], [1], [0, 0, 1, 1], [], []>} : vector<32x108xbf16>, vector<108x256xbf16>, vector<32x256xf32> -> vector<32x256xf32>
    %60 = arith.addf %48, %59 : vector<32x256xf32>
    %c4 = arith.constant 4 : index
    %c0_63 = arith.constant 0 : index
    %c0_64 = arith.constant 0 : index
    %61 = vector.load %arg1[%c4, %c0_63, %c0_64] : memref<5x108x256xbf16, #tpu.memory_space<vmem>>, vector<1x108x256xbf16>
    %62 = vector.shape_cast %61 : vector<1x108x256xbf16> to vector<108x256xbf16>
    %c0_65 = arith.constant 0 : index
    %c4_66 = arith.constant 4 : index
    %c0_67 = arith.constant 0 : index
    %63 = vector.load %arg0[%c0_65, %c4_66, %c0_67] : memref<2x36x108xf32, #tpu.memory_space<vmem>>, vector<1x32x108xf32>
    %64 = vector.shape_cast %63 : vector<1x32x108xf32> to vector<32x108xf32>
    %65 = arith.truncf %64 : vector<32x108xf32> to vector<32x108xbf16>
    %cst_68 = arith.constant dense<0.000000e+00> : vector<32x256xf32>
    %66 = tpu.matmul %65, %62, %cst_68 {dimension_numbers = #tpu.dot_dimension_numbers<[1], [0], [0], [1], [0, 0, 1, 1], [], []>} : vector<32x108xbf16>, vector<108x256xbf16>, vector<32x256xf32> -> vector<32x256xf32>
    %67 = arith.addf %55, %66 : vector<32x256xf32>
    %c1_69 = arith.constant 1 : index
    %c4_70 = arith.constant 4 : index
    %c0_71 = arith.constant 0 : index
    %68 = vector.load %arg0[%c1_69, %c4_70, %c0_71] : memref<2x36x108xf32, #tpu.memory_space<vmem>>, vector<1x32x108xf32>
    %69 = vector.shape_cast %68 : vector<1x32x108xf32> to vector<32x108xf32>
    %70 = arith.truncf %69 : vector<32x108xf32> to vector<32x108xbf16>
    %cst_72 = arith.constant dense<0.000000e+00> : vector<32x256xf32>
    %71 = tpu.matmul %70, %62, %cst_72 {dimension_numbers = #tpu.dot_dimension_numbers<[1], [0], [0], [1], [0, 0, 1, 1], [], []>} : vector<32x108xbf16>, vector<108x256xbf16>, vector<32x256xf32> -> vector<32x256xf32>
    %72 = arith.addf %60, %71 : vector<32x256xf32>
    %73 = vector.broadcast %2 : vector<1x256xf32> to vector<32x256xf32>
    %74 = arith.addf %67, %73 : vector<32x256xf32>
    %c0_73 = arith.constant 0 : index
    %c0_74 = arith.constant 0 : index
    %c0_75 = arith.constant 0 : index
    %75 = vector.load %arg28[%c0_73, %c0_74, %c0_75] : memref<2x32x256xf32, #tpu.memory_space<vmem>>, vector<1x32x256xf32>
    %76 = vector.shape_cast %75 : vector<1x32x256xf32> to vector<32x256xf32>
    %77 = vector.shape_cast %74 : vector<32x256xf32> to vector<1x32x256xf32>
    tpu.vector_store %arg28[%c0_73, %c0_74, %c0_75], %77 {strides = array<i32>} : memref<2x32x256xf32, #tpu.memory_space<vmem>>, vector<1x32x256xf32>,
    %cst_76 = arith.constant dense<0.000000e+00> : vector<256xf32>
    %78 = vector.multi_reduction <add>, %74, %cst_76 [0] : vector<32x256xf32> to vector<256xf32>
    %79 = vector.shape_cast %78 : vector<256xf32> to vector<1x256xf32>
    %80 = arith.mulf %74, %74 : vector<32x256xf32>
    %cst_77 = arith.constant dense<0.000000e+00> : vector<256xf32>
    %81 = vector.multi_reduction <add>, %80, %cst_77 [0] : vector<32x256xf32> to vector<256xf32>
    %82 = vector.shape_cast %81 : vector<256xf32> to vector<1x256xf32>
    %83 = vector.broadcast %2 : vector<1x256xf32> to vector<32x256xf32>
    %84 = arith.addf %72, %83 : vector<32x256xf32>
    %c1_78 = arith.constant 1 : index
    %c0_79 = arith.constant 0 : index
    %c0_80 = arith.constant 0 : index
    %85 = vector.load %arg28[%c1_78, %c0_79, %c0_80] : memref<2x32x256xf32, #tpu.memory_space<vmem>>, vector<1x32x256xf32>
    %86 = vector.shape_cast %85 : vector<1x32x256xf32> to vector<32x256xf32>
    %87 = vector.shape_cast %84 : vector<32x256xf32> to vector<1x32x256xf32>
    tpu.vector_store %arg28[%c1_78, %c0_79, %c0_80], %87 {strides = array<i32>} : memref<2x32x256xf32, #tpu.memory_space<vmem>>, vector<1x32x256xf32>,
    %cst_81 = arith.constant dense<0.000000e+00> : vector<256xf32>
    %88 = vector.multi_reduction <add>, %84, %cst_81 [0] : vector<32x256xf32> to vector<256xf32>
    %89 = vector.shape_cast %88 : vector<256xf32> to vector<1x256xf32>
    %90 = arith.mulf %84, %84 : vector<32x256xf32>
    %cst_82 = arith.constant dense<0.000000e+00> : vector<256xf32>
    %91 = vector.multi_reduction <add>, %90, %cst_82 [0] : vector<32x256xf32> to vector<256xf32>
    %92 = vector.shape_cast %91 : vector<256xf32> to vector<1x256xf32>
    %93 = tpu.concatenate %79, %89, %82, %92 in 0 : vector<1x256xf32>, vector<1x256xf32>, vector<1x256xf32>, vector<1x256xf32> -> vector<4x256xf32>
    %cst_83 = arith.constant dense<0.000000e+00> : vector<4x8xf32>
    %94 = tpu.matmul %93, %5, %cst_83 {dimension_numbers = #tpu.dot_dimension_numbers<[1], [0], [0], [1], [0, 0, 1, 1], [], []>} : vector<4x256xf32>, vector<256x8xf32>, vector<4x8xf32> -> vector<4x8xf32>
    %95 = vector.extract_strided_slice %94 {offsets = [0, 0], sizes = [2, 8], strides = [1, 1]} : vector<4x8xf32> to vector<2x8xf32>
    %cst_84 = arith.constant dense<0.000000e+00> : vector<8xf32>
    %96 = vector.multi_reduction <add>, %95, %cst_84 [0] : vector<2x8xf32> to vector<8xf32>
    %97 = vector.shape_cast %96 : vector<8xf32> to vector<1x8xf32>
    %cst_85 = arith.constant 4.8828125E-4 : f32
    %98 = vector.broadcast %cst_85 : f32 to vector<1x8xf32>
    %99 = arith.mulf %97, %98 : vector<1x8xf32>
    %100 = vector.extract_strided_slice %94 {offsets = [2, 0], sizes = [2, 8], strides = [1, 1]} : vector<4x8xf32> to vector<2x8xf32>
    %cst_86 = arith.constant dense<0.000000e+00> : vector<8xf32>
    %101 = vector.multi_reduction <add>, %100, %cst_86 [0] : vector<2x8xf32> to vector<8xf32>
    %102 = vector.shape_cast %101 : vector<8xf32> to vector<1x8xf32>
    %cst_87 = arith.constant 4.8828125E-4 : f32
    %103 = vector.broadcast %cst_87 : f32 to vector<1x8xf32>
    %104 = arith.mulf %102, %103 : vector<1x8xf32>
    %105 = arith.mulf %99, %99 : vector<1x8xf32>
    %106 = arith.subf %104, %105 : vector<1x8xf32>
    %cst_88 = arith.constant 0.000000e+00 : f32
    %107 = vector.broadcast %cst_88 : f32 to vector<1x8xf32>
    %108 = arith.maximumf %106, %107 : vector<1x8xf32>
    %cst_89 = arith.constant 9.99999974E-6 : f32
    %109 = vector.broadcast %cst_89 : f32 to vector<1x8xf32>
    %110 = arith.addf %108, %109 : vector<1x8xf32>
    %111 = math.rsqrt %110 : vector<1x8xf32>
    %112 = arith.mulf %3, %111 : vector<1x8xf32>
    %113 = arith.mulf %99, %112 : vector<1x8xf32>
    %114 = arith.subf %4, %113 : vector<1x8xf32>
    %cst_90 = arith.constant dense<0.000000e+00> : vector<1x256xf32>
    %115 = tpu.matmul %112, %6, %cst_90 {dimension_numbers = #tpu.dot_dimension_numbers<[1], [0], [0], [1], [0, 0, 1, 1], [], []>} : vector<1x8xf32>, vector<8x256xf32>, vector<1x256xf32> -> vector<1x256xf32>
    %cst_91 = arith.constant dense<0.000000e+00> : vector<1x256xf32>
    %116 = tpu.matmul %114, %6, %cst_91 {dimension_numbers = #tpu.dot_dimension_numbers<[1], [0], [0], [1], [0, 0, 1, 1], [], []>} : vector<1x8xf32>, vector<8x256xf32>, vector<1x256xf32> -> vector<1x256xf32>
    %c0_92 = arith.constant 0 : index
    %c0_93 = arith.constant 0 : index
    %c0_94 = arith.constant 0 : index
    %117 = vector.load %arg28[%c0_92, %c0_93, %c0_94] : memref<2x32x256xf32, #tpu.memory_space<vmem>>, vector<1x32x256xf32>
    %118 = vector.shape_cast %117 : vector<1x32x256xf32> to vector<32x256xf32>
    %119 = vector.broadcast %115 : vector<1x256xf32> to vector<32x256xf32>
    %120 = arith.mulf %118, %119 : vector<32x256xf32>
    %121 = vector.broadcast %116 : vector<1x256xf32> to vector<32x256xf32>
    %122 = arith.addf %120, %121 : vector<32x256xf32>
    %cst_95 = arith.constant 0.000000e+00 : f32
    %123 = vector.broadcast %cst_95 : f32 to vector<32x256xf32>
    %124 = arith.maximumf %122, %123 : vector<32x256xf32>
    %125 = arith.truncf %124 : vector<32x256xf32> to vector<32x256xbf16>
    %cst_96 = arith.constant dense<0.000000e+00> : vector<32x144xf32>
    %126 = tpu.matmul %125, %7, %cst_96 {dimension_numbers = #tpu.dot_dimension_numbers<[1], [0], [0], [1], [0, 0, 1, 1], [], []>} : vector<32x256xbf16>, vector<256x144xbf16>, vector<32x144xf32> -> vector<32x144xf32>
    %cst_97 = arith.constant dense<0.000000e+00> : vector<32x144xf32>
    %127 = tpu.matmul %125, %8, %cst_97 {dimension_numbers = #tpu.dot_dimension_numbers<[1], [0], [0], [1], [0, 0, 1, 1], [], []>} : vector<32x256xbf16>, vector<256x144xbf16>, vector<32x144xf32> -> vector<32x144xf32>
    %128 = arith.maximumf %126, %127 : vector<32x144xf32>
    %129 = arith.truncf %128 : vector<32x144xf32> to vector<32x144xbf16>
    %cst_98 = arith.constant dense<0.000000e+00> : vector<16x144xf32>
    %130 = tpu.matmul %9, %129, %cst_98 {dimension_numbers = #tpu.dot_dimension_numbers<[1], [0], [0], [1], [0, 0, 1, 1], [], []>} : vector<16x32xbf16>, vector<32x144xbf16>, vector<16x144xf32> -> vector<16x144xf32>
    %cst_99 = arith.constant dense<0.000000e+00> : vector<16x144xf32>
    %131 = tpu.matmul %10, %129, %cst_99 {dimension_numbers = #tpu.dot_dimension_numbers<[1], [0], [0], [1], [0, 0, 1, 1], [], []>} : vector<16x32xbf16>, vector<32x144xbf16>, vector<16x144xf32> -> vector<16x144xf32>
    %132 = arith.maximumf %130, %131 : vector<16x144xf32>
    %c0_100 = arith.constant 0 : index
    %c1_101 = arith.constant 1 : index
    %c0_102 = arith.constant 0 : index
    %133 = vector.load %arg29[%c0_100, %c1_101, %c0_102] : memref<2x18x144xf32, #tpu.memory_space<vmem>>, vector<1x16x144xf32>
    %134 = vector.shape_cast %133 : vector<1x16x144xf32> to vector<16x144xf32>
    %135 = vector.shape_cast %132 : vector<16x144xf32> to vector<1x16x144xf32>
    tpu.vector_store %arg29[%c0_100, %c1_101, %c0_102], %135 {strides = array<i32>} : memref<2x18x144xf32, #tpu.memory_space<vmem>>, vector<1x16x144xf32>,
    %c1_103 = arith.constant 1 : index
    %c0_104 = arith.constant 0 : index
    %c0_105 = arith.constant 0 : index
    %136 = vector.load %arg28[%c1_103, %c0_104, %c0_105] : memref<2x32x256xf32, #tpu.memory_space<vmem>>, vector<1x32x256xf32>
    %137 = vector.shape_cast %136 : vector<1x32x256xf32> to vector<32x256xf32>
    %138 = vector.broadcast %115 : vector<1x256xf32> to vector<32x256xf32>
    %139 = arith.mulf %137, %138 : vector<32x256xf32>
    %140 = vector.broadcast %116 : vector<1x256xf32> to vector<32x256xf32>
    %141 = arith.addf %139, %140 : vector<32x256xf32>
    %cst_106 = arith.constant 0.000000e+00 : f32
    %142 = vector.broadcast %cst_106 : f32 to vector<32x256xf32>
    %143 = arith.maximumf %141, %142 : vector<32x256xf32>
    %144 = arith.truncf %143 : vector<32x256xf32> to vector<32x256xbf16>
    %cst_107 = arith.constant dense<0.000000e+00> : vector<32x144xf32>
    %145 = tpu.matmul %144, %7, %cst_107 {dimension_numbers = #tpu.dot_dimension_numbers<[1], [0], [0], [1], [0, 0, 1, 1], [], []>} : vector<32x256xbf16>, vector<256x144xbf16>, vector<32x144xf32> -> vector<32x144xf32>
    %cst_108 = arith.constant dense<0.000000e+00> : vector<32x144xf32>
    %146 = tpu.matmul %144, %8, %cst_108 {dimension_numbers = #tpu.dot_dimension_numbers<[1], [0], [0], [1], [0, 0, 1, 1], [], []>} : vector<32x256xbf16>, vector<256x144xbf16>, vector<32x144xf32> -> vector<32x144xf32>
    %147 = arith.maximumf %145, %146 : vector<32x144xf32>
    %148 = arith.truncf %147 : vector<32x144xf32> to vector<32x144xbf16>
    %cst_109 = arith.constant dense<0.000000e+00> : vector<16x144xf32>
    %149 = tpu.matmul %9, %148, %cst_109 {dimension_numbers = #tpu.dot_dimension_numbers<[1], [0], [0], [1], [0, 0, 1, 1], [], []>} : vector<16x32xbf16>, vector<32x144xbf16>, vector<16x144xf32> -> vector<16x144xf32>
    %cst_110 = arith.constant dense<0.000000e+00> : vector<16x144xf32>
    %150 = tpu.matmul %10, %148, %cst_110 {dimension_numbers = #tpu.dot_dimension_numbers<[1], [0], [0], [1], [0, 0, 1, 1], [], []>} : vector<16x32xbf16>, vector<32x144xbf16>, vector<16x144xf32> -> vector<16x144xf32>
    %151 = arith.maximumf %149, %150 : vector<16x144xf32>
    %c1_111 = arith.constant 1 : index
    %c1_112 = arith.constant 1 : index
    %c0_113 = arith.constant 0 : index
    %152 = vector.load %arg29[%c1_111, %c1_112, %c0_113] : memref<2x18x144xf32, #tpu.memory_space<vmem>>, vector<1x16x144xf32>
    %153 = vector.shape_cast %152 : vector<1x16x144xf32> to vector<16x144xf32>
    %154 = vector.shape_cast %151 : vector<16x144xf32> to vector<1x16x144xf32>
    tpu.vector_store %arg29[%c1_111, %c1_112, %c0_113], %154 {strides = array<i32>} : memref<2x18x144xf32, #tpu.memory_space<vmem>>, vector<1x16x144xf32>,
    %c0_114 = arith.constant 0 : index
    %c0_115 = arith.constant 0 : index
    %155 = vector.load %arg12[%c0_114, %c0_115] : memref<1x256xf32, #tpu.memory_space<vmem>>, vector<1x256xf32>
    %c0_116 = arith.constant 0 : index
    %c0_117 = arith.constant 0 : index
    %156 = vector.load %arg13[%c0_116, %c0_117] : memref<1x16xf32, #tpu.memory_space<vmem>>, vector<1x16xf32>
    %c0_118 = arith.constant 0 : index
    %c0_119 = arith.constant 0 : index
    %157 = vector.load %arg14[%c0_118, %c0_119] : memref<1x16xf32, #tpu.memory_space<vmem>>, vector<1x16xf32>
    %c0_120 = arith.constant 0 : index
    %c0_121 = arith.constant 0 : index
    %158 = vector.load %arg15[%c0_120, %c0_121] : memref<256x16xf32, #tpu.memory_space<vmem>>, vector<256x16xf32>
    %c0_122 = arith.constant 0 : index
    %c0_123 = arith.constant 0 : index
    %159 = vector.load %arg16[%c0_122, %c0_123] : memref<16x256xf32, #tpu.memory_space<vmem>>, vector<16x256xf32>
    %c0_124 = arith.constant 0 : index
    %c0_125 = arith.constant 0 : index
    %160 = vector.load %arg17[%c0_124, %c0_125] : memref<256x128xbf16, #tpu.memory_space<vmem>>, vector<256x128xbf16>
    %c0_126 = arith.constant 0 : index
    %c0_127 = arith.constant 0 : index
    %161 = vector.load %arg18[%c0_126, %c0_127] : memref<256x128xbf16, #tpu.memory_space<vmem>>, vector<256x128xbf16>
    %c0_128 = arith.constant 0 : index
    %c0_129 = arith.constant 0 : index
    %162 = vector.load %arg19[%c0_128, %c0_129] : memref<7x14xbf16, #tpu.memory_space<vmem>>, vector<7x14xbf16>
    %c0_130 = arith.constant 0 : index
    %c0_131 = arith.constant 0 : index
    %163 = vector.load %arg20[%c0_130, %c0_131] : memref<7x14xbf16, #tpu.memory_space<vmem>>, vector<7x14xbf16>
    %cst_132 = arith.constant 0.000000e+00 : f32
    %164 = vector.broadcast %cst_132 : f32 to vector<14x256xf32>
    %cst_133 = arith.constant 0.000000e+00 : f32
    %165 = vector.broadcast %cst_133 : f32 to vector<14x256xf32>
    %c0_134 = arith.constant 0 : index
    %c0_135 = arith.constant 0 : index
    %c0_136 = arith.constant 0 : index
    %166 = vector.load %arg11[%c0_134, %c0_135, %c0_136] : memref<5x144x256xbf16, #tpu.memory_space<vmem>>, vector<1x144x256xbf16>
    %167 = vector.shape_cast %166 : vector<1x144x256xbf16> to vector<144x256xbf16>
    %c0_137 = arith.constant 0 : index
    %c0_138 = arith.constant 0 : index
    %c0_139 = arith.constant 0 : index
    %168 = vector.load %arg29[%c0_137, %c0_138, %c0_139] : memref<2x18x144xf32, #tpu.memory_space<vmem>>, vector<1x14x144xf32>
    %169 = vector.shape_cast %168 : vector<1x14x144xf32> to vector<14x144xf32>
    %170 = arith.truncf %169 : vector<14x144xf32> to vector<14x144xbf16>
    %cst_140 = arith.constant dense<0.000000e+00> : vector<14x256xf32>
    %171 = tpu.matmul %170, %167, %cst_140 {dimension_numbers = #tpu.dot_dimension_numbers<[1], [0], [0], [1], [0, 0, 1, 1], [], []>} : vector<14x144xbf16>, vector<144x256xbf16>, vector<14x256xf32> -> vector<14x256xf32>
    %172 = arith.addf %164, %171 : vector<14x256xf32>
    %c1_141 = arith.constant 1 : index
    %c0_142 = arith.constant 0 : index
    %c0_143 = arith.constant 0 : index
    %173 = vector.load %arg29[%c1_141, %c0_142, %c0_143] : memref<2x18x144xf32, #tpu.memory_space<vmem>>, vector<1x14x144xf32>
    %174 = vector.shape_cast %173 : vector<1x14x144xf32> to vector<14x144xf32>
    %175 = arith.truncf %174 : vector<14x144xf32> to vector<14x144xbf16>
    %cst_144 = arith.constant dense<0.000000e+00> : vector<14x256xf32>
    %176 = tpu.matmul %175, %167, %cst_144 {dimension_numbers = #tpu.dot_dimension_numbers<[1], [0], [0], [1], [0, 0, 1, 1], [], []>} : vector<14x144xbf16>, vector<144x256xbf16>, vector<14x256xf32> -> vector<14x256xf32>
    %177 = arith.addf %165, %176 : vector<14x256xf32>
    %c1_145 = arith.constant 1 : index
    %c0_146 = arith.constant 0 : index
    %c0_147 = arith.constant 0 : index
    %178 = vector.load %arg11[%c1_145, %c0_146, %c0_147] : memref<5x144x256xbf16, #tpu.memory_space<vmem>>, vector<1x144x256xbf16>
    %179 = vector.shape_cast %178 : vector<1x144x256xbf16> to vector<144x256xbf16>
    %c0_148 = arith.constant 0 : index
    %c1_149 = arith.constant 1 : index
    %c0_150 = arith.constant 0 : index
    %180 = vector.load %arg29[%c0_148, %c1_149, %c0_150] : memref<2x18x144xf32, #tpu.memory_space<vmem>>, vector<1x14x144xf32>
    %181 = vector.shape_cast %180 : vector<1x14x144xf32> to vector<14x144xf32>
    %182 = arith.truncf %181 : vector<14x144xf32> to vector<14x144xbf16>
    %cst_151 = arith.constant dense<0.000000e+00> : vector<14x256xf32>
    %183 = tpu.matmul %182, %179, %cst_151 {dimension_numbers = #tpu.dot_dimension_numbers<[1], [0], [0], [1], [0, 0, 1, 1], [], []>} : vector<14x144xbf16>, vector<144x256xbf16>, vector<14x256xf32> -> vector<14x256xf32>
    %184 = arith.addf %172, %183 : vector<14x256xf32>
    %c1_152 = arith.constant 1 : index
    %c1_153 = arith.constant 1 : index
    %c0_154 = arith.constant 0 : index
    %185 = vector.load %arg29[%c1_152, %c1_153, %c0_154] : memref<2x18x144xf32, #tpu.memory_space<vmem>>, vector<1x14x144xf32>
    %186 = vector.shape_cast %185 : vector<1x14x144xf32> to vector<14x144xf32>
    %187 = arith.truncf %186 : vector<14x144xf32> to vector<14x144xbf16>
    %cst_155 = arith.constant dense<0.000000e+00> : vector<14x256xf32>
    %188 = tpu.matmul %187, %179, %cst_155 {dimension_numbers = #tpu.dot_dimension_numbers<[1], [0], [0], [1], [0, 0, 1, 1], [], []>} : vector<14x144xbf16>, vector<144x256xbf16>, vector<14x256xf32> -> vector<14x256xf32>
    %189 = arith.addf %177, %188 : vector<14x256xf32>
    %c2_156 = arith.constant 2 : index
    %c0_157 = arith.constant 0 : index
    %c0_158 = arith.constant 0 : index
    %190 = vector.load %arg11[%c2_156, %c0_157, %c0_158] : memref<5x144x256xbf16, #tpu.memory_space<vmem>>, vector<1x144x256xbf16>
    %191 = vector.shape_cast %190 : vector<1x144x256xbf16> to vector<144x256xbf16>
    %c0_159 = arith.constant 0 : index
    %c2_160 = arith.constant 2 : index
    %c0_161 = arith.constant 0 : index
    %192 = vector.load %arg29[%c0_159, %c2_160, %c0_161] : memref<2x18x144xf32, #tpu.memory_space<vmem>>, vector<1x14x144xf32>
    %193 = vector.shape_cast %192 : vector<1x14x144xf32> to vector<14x144xf32>
    %194 = arith.truncf %193 : vector<14x144xf32> to vector<14x144xbf16>
    %cst_162 = arith.constant dense<0.000000e+00> : vector<14x256xf32>
    %195 = tpu.matmul %194, %191, %cst_162 {dimension_numbers = #tpu.dot_dimension_numbers<[1], [0], [0], [1], [0, 0, 1, 1], [], []>} : vector<14x144xbf16>, vector<144x256xbf16>, vector<14x256xf32> -> vector<14x256xf32>
    %196 = arith.addf %184, %195 : vector<14x256xf32>
    %c1_163 = arith.constant 1 : index
    %c2_164 = arith.constant 2 : index
    %c0_165 = arith.constant 0 : index
    %197 = vector.load %arg29[%c1_163, %c2_164, %c0_165] : memref<2x18x144xf32, #tpu.memory_space<vmem>>, vector<1x14x144xf32>
    %198 = vector.shape_cast %197 : vector<1x14x144xf32> to vector<14x144xf32>
    %199 = arith.truncf %198 : vector<14x144xf32> to vector<14x144xbf16>
    %cst_166 = arith.constant dense<0.000000e+00> : vector<14x256xf32>
    %200 = tpu.matmul %199, %191, %cst_166 {dimension_numbers = #tpu.dot_dimension_numbers<[1], [0], [0], [1], [0, 0, 1, 1], [], []>} : vector<14x144xbf16>, vector<144x256xbf16>, vector<14x256xf32> -> vector<14x256xf32>
    %201 = arith.addf %189, %200 : vector<14x256xf32>
    %c3_167 = arith.constant 3 : index
    %c0_168 = arith.constant 0 : index
    %c0_169 = arith.constant 0 : index
    %202 = vector.load %arg11[%c3_167, %c0_168, %c0_169] : memref<5x144x256xbf16, #tpu.memory_space<vmem>>, vector<1x144x256xbf16>
    %203 = vector.shape_cast %202 : vector<1x144x256xbf16> to vector<144x256xbf16>
    %c0_170 = arith.constant 0 : index
    %c3_171 = arith.constant 3 : index
    %c0_172 = arith.constant 0 : index
    %204 = vector.load %arg29[%c0_170, %c3_171, %c0_172] : memref<2x18x144xf32, #tpu.memory_space<vmem>>, vector<1x14x144xf32>
    %205 = vector.shape_cast %204 : vector<1x14x144xf32> to vector<14x144xf32>
    %206 = arith.truncf %205 : vector<14x144xf32> to vector<14x144xbf16>
    %cst_173 = arith.constant dense<0.000000e+00> : vector<14x256xf32>
    %207 = tpu.matmul %206, %203, %cst_173 {dimension_numbers = #tpu.dot_dimension_numbers<[1], [0], [0], [1], [0, 0, 1, 1], [], []>} : vector<14x144xbf16>, vector<144x256xbf16>, vector<14x256xf32> -> vector<14x256xf32>
    %208 = arith.addf %196, %207 : vector<14x256xf32>
    %c1_174 = arith.constant 1 : index
    %c3_175 = arith.constant 3 : index
    %c0_176 = arith.constant 0 : index
    %209 = vector.load %arg29[%c1_174, %c3_175, %c0_176] : memref<2x18x144xf32, #tpu.memory_space<vmem>>, vector<1x14x144xf32>
    %210 = vector.shape_cast %209 : vector<1x14x144xf32> to vector<14x144xf32>
    %211 = arith.truncf %210 : vector<14x144xf32> to vector<14x144xbf16>
    %cst_177 = arith.constant dense<0.000000e+00> : vector<14x256xf32>
    %212 = tpu.matmul %211, %203, %cst_177 {dimension_numbers = #tpu.dot_dimension_numbers<[1], [0], [0], [1], [0, 0, 1, 1], [], []>} : vector<14x144xbf16>, vector<144x256xbf16>, vector<14x256xf32> -> vector<14x256xf32>
    %213 = arith.addf %201, %212 : vector<14x256xf32>
    %c4_178 = arith.constant 4 : index
    %c0_179 = arith.constant 0 : index
    %c0_180 = arith.constant 0 : index
    %214 = vector.load %arg11[%c4_178, %c0_179, %c0_180] : memref<5x144x256xbf16, #tpu.memory_space<vmem>>, vector<1x144x256xbf16>
    %215 = vector.shape_cast %214 : vector<1x144x256xbf16> to vector<144x256xbf16>
    %c0_181 = arith.constant 0 : index
    %c4_182 = arith.constant 4 : index
    %c0_183 = arith.constant 0 : index
    %216 = vector.load %arg29[%c0_181, %c4_182, %c0_183] : memref<2x18x144xf32, #tpu.memory_space<vmem>>, vector<1x14x144xf32>
    %217 = vector.shape_cast %216 : vector<1x14x144xf32> to vector<14x144xf32>
    %218 = arith.truncf %217 : vector<14x144xf32> to vector<14x144xbf16>
    %cst_184 = arith.constant dense<0.000000e+00> : vector<14x256xf32>
    %219 = tpu.matmul %218, %215, %cst_184 {dimension_numbers = #tpu.dot_dimension_numbers<[1], [0], [0], [1], [0, 0, 1, 1], [], []>} : vector<14x144xbf16>, vector<144x256xbf16>, vector<14x256xf32> -> vector<14x256xf32>
    %220 = arith.addf %208, %219 : vector<14x256xf32>
    %c1_185 = arith.constant 1 : index
    %c4_186 = arith.constant 4 : index
    %c0_187 = arith.constant 0 : index
    %221 = vector.load %arg29[%c1_185, %c4_186, %c0_187] : memref<2x18x144xf32, #tpu.memory_space<vmem>>, vector<1x14x144xf32>
    %222 = vector.shape_cast %221 : vector<1x14x144xf32> to vector<14x144xf32>
    %223 = arith.truncf %222 : vector<14x144xf32> to vector<14x144xbf16>
    %cst_188 = arith.constant dense<0.000000e+00> : vector<14x256xf32>
    %224 = tpu.matmul %223, %215, %cst_188 {dimension_numbers = #tpu.dot_dimension_numbers<[1], [0], [0], [1], [0, 0, 1, 1], [], []>} : vector<14x144xbf16>, vector<144x256xbf16>, vector<14x256xf32> -> vector<14x256xf32>
    %225 = arith.addf %213, %224 : vector<14x256xf32>
    %226 = vector.broadcast %155 : vector<1x256xf32> to vector<14x256xf32>
    %227 = arith.addf %220, %226 : vector<14x256xf32>
    %c0_189 = arith.constant 0 : index
    %c0_190 = arith.constant 0 : index
    %c0_191 = arith.constant 0 : index
    %228 = vector.load %arg28[%c0_189, %c0_190, %c0_191] : memref<2x32x256xf32, #tpu.memory_space<vmem>>, vector<1x14x256xf32>
    %229 = vector.shape_cast %228 : vector<1x14x256xf32> to vector<14x256xf32>
    %230 = vector.shape_cast %227 : vector<14x256xf32> to vector<1x14x256xf32>
    tpu.vector_store %arg28[%c0_189, %c0_190, %c0_191], %230 {strides = array<i32>} : memref<2x32x256xf32, #tpu.memory_space<vmem>>, vector<1x14x256xf32>,
    %cst_192 = arith.constant dense<0.000000e+00> : vector<256xf32>
    %231 = vector.multi_reduction <add>, %227, %cst_192 [0] : vector<14x256xf32> to vector<256xf32>
    %232 = vector.shape_cast %231 : vector<256xf32> to vector<1x256xf32>
    %233 = arith.mulf %227, %227 : vector<14x256xf32>
    %cst_193 = arith.constant dense<0.000000e+00> : vector<256xf32>
    %234 = vector.multi_reduction <add>, %233, %cst_193 [0] : vector<14x256xf32> to vector<256xf32>
    %235 = vector.shape_cast %234 : vector<256xf32> to vector<1x256xf32>
    %236 = vector.broadcast %155 : vector<1x256xf32> to vector<14x256xf32>
    %237 = arith.addf %225, %236 : vector<14x256xf32>
    %c1_194 = arith.constant 1 : index
    %c0_195 = arith.constant 0 : index
    %c0_196 = arith.constant 0 : index
    %238 = vector.load %arg28[%c1_194, %c0_195, %c0_196] : memref<2x32x256xf32, #tpu.memory_space<vmem>>, vector<1x14x256xf32>
    %239 = vector.shape_cast %238 : vector<1x14x256xf32> to vector<14x256xf32>
    %240 = vector.shape_cast %237 : vector<14x256xf32> to vector<1x14x256xf32>
    tpu.vector_store %arg28[%c1_194, %c0_195, %c0_196], %240 {strides = array<i32>} : memref<2x32x256xf32, #tpu.memory_space<vmem>>, vector<1x14x256xf32>,
    %cst_197 = arith.constant dense<0.000000e+00> : vector<256xf32>
    %241 = vector.multi_reduction <add>, %237, %cst_197 [0] : vector<14x256xf32> to vector<256xf32>
    %242 = vector.shape_cast %241 : vector<256xf32> to vector<1x256xf32>
    %243 = arith.mulf %237, %237 : vector<14x256xf32>
    %cst_198 = arith.constant dense<0.000000e+00> : vector<256xf32>
    %244 = vector.multi_reduction <add>, %243, %cst_198 [0] : vector<14x256xf32> to vector<256xf32>
    %245 = vector.shape_cast %244 : vector<256xf32> to vector<1x256xf32>
    %246 = tpu.concatenate %232, %242, %235, %245 in 0 : vector<1x256xf32>, vector<1x256xf32>, vector<1x256xf32>, vector<1x256xf32> -> vector<4x256xf32>
    %cst_199 = arith.constant dense<0.000000e+00> : vector<4x16xf32>
    %247 = tpu.matmul %246, %158, %cst_199 {dimension_numbers = #tpu.dot_dimension_numbers<[1], [0], [0], [1], [0, 0, 1, 1], [], []>} : vector<4x256xf32>, vector<256x16xf32>, vector<4x16xf32> -> vector<4x16xf32>
    %248 = vector.extract_strided_slice %247 {offsets = [0, 0], sizes = [2, 16], strides = [1, 1]} : vector<4x16xf32> to vector<2x16xf32>
    %cst_200 = arith.constant dense<0.000000e+00> : vector<16xf32>
    %249 = vector.multi_reduction <add>, %248, %cst_200 [0] : vector<2x16xf32> to vector<16xf32>
    %250 = vector.shape_cast %249 : vector<16xf32> to vector<1x16xf32>
    %cst_201 = arith.constant 0.00255102036 : f32
    %251 = vector.broadcast %cst_201 : f32 to vector<1x16xf32>
    %252 = arith.mulf %250, %251 : vector<1x16xf32>
    %253 = vector.extract_strided_slice %247 {offsets = [2, 0], sizes = [2, 16], strides = [1, 1]} : vector<4x16xf32> to vector<2x16xf32>
    %cst_202 = arith.constant dense<0.000000e+00> : vector<16xf32>
    %254 = vector.multi_reduction <add>, %253, %cst_202 [0] : vector<2x16xf32> to vector<16xf32>
    %255 = vector.shape_cast %254 : vector<16xf32> to vector<1x16xf32>
    %cst_203 = arith.constant 0.00255102036 : f32
    %256 = vector.broadcast %cst_203 : f32 to vector<1x16xf32>
    %257 = arith.mulf %255, %256 : vector<1x16xf32>
    %258 = arith.mulf %252, %252 : vector<1x16xf32>
    %259 = arith.subf %257, %258 : vector<1x16xf32>
    %cst_204 = arith.constant 0.000000e+00 : f32
    %260 = vector.broadcast %cst_204 : f32 to vector<1x16xf32>
    %261 = arith.maximumf %259, %260 : vector<1x16xf32>
    %cst_205 = arith.constant 9.99999974E-6 : f32
    %262 = vector.broadcast %cst_205 : f32 to vector<1x16xf32>
    %263 = arith.addf %261, %262 : vector<1x16xf32>
    %264 = math.rsqrt %263 : vector<1x16xf32>
    %265 = arith.mulf %156, %264 : vector<1x16xf32>
    %266 = arith.mulf %252, %265 : vector<1x16xf32>
    %267 = arith.subf %157, %266 : vector<1x16xf32>
    %cst_206 = arith.constant dense<0.000000e+00> : vector<1x256xf32>
    %268 = tpu.matmul %265, %159, %cst_206 {dimension_numbers = #tpu.dot_dimension_numbers<[1], [0], [0], [1], [0, 0, 1, 1], [], []>} : vector<1x16xf32>, vector<16x256xf32>, vector<1x256xf32> -> vector<1x256xf32>
    %cst_207 = arith.constant dense<0.000000e+00> : vector<1x256xf32>
    %269 = tpu.matmul %267, %159, %cst_207 {dimension_numbers = #tpu.dot_dimension_numbers<[1], [0], [0], [1], [0, 0, 1, 1], [], []>} : vector<1x16xf32>, vector<16x256xf32>, vector<1x256xf32> -> vector<1x256xf32>
    %c0_208 = arith.constant 0 : index
    %c0_209 = arith.constant 0 : index
    %c0_210 = arith.constant 0 : index
    %270 = vector.load %arg28[%c0_208, %c0_209, %c0_210] : memref<2x32x256xf32, #tpu.memory_space<vmem>>, vector<1x14x256xf32>
    %271 = vector.shape_cast %270 : vector<1x14x256xf32> to vector<14x256xf32>
    %272 = vector.broadcast %268 : vector<1x256xf32> to vector<14x256xf32>
    %273 = arith.mulf %271, %272 : vector<14x256xf32>
    %274 = vector.broadcast %269 : vector<1x256xf32> to vector<14x256xf32>
    %275 = arith.addf %273, %274 : vector<14x256xf32>
    %cst_211 = arith.constant 0.000000e+00 : f32
    %276 = vector.broadcast %cst_211 : f32 to vector<14x256xf32>
    %277 = arith.maximumf %275, %276 : vector<14x256xf32>
    %278 = arith.truncf %277 : vector<14x256xf32> to vector<14x256xbf16>
    %cst_212 = arith.constant dense<0.000000e+00> : vector<14x128xf32>
    %279 = tpu.matmul %278, %160, %cst_212 {dimension_numbers = #tpu.dot_dimension_numbers<[1], [0], [0], [1], [0, 0, 1, 1], [], []>} : vector<14x256xbf16>, vector<256x128xbf16>, vector<14x128xf32> -> vector<14x128xf32>
    %cst_213 = arith.constant dense<0.000000e+00> : vector<14x128xf32>
    %280 = tpu.matmul %278, %161, %cst_213 {dimension_numbers = #tpu.dot_dimension_numbers<[1], [0], [0], [1], [0, 0, 1, 1], [], []>} : vector<14x256xbf16>, vector<256x128xbf16>, vector<14x128xf32> -> vector<14x128xf32>
    %281 = arith.maximumf %279, %280 : vector<14x128xf32>
    %282 = arith.truncf %281 : vector<14x128xf32> to vector<14x128xbf16>
    %cst_214 = arith.constant dense<0.000000e+00> : vector<7x128xf32>
    %283 = tpu.matmul %162, %282, %cst_214 {dimension_numbers = #tpu.dot_dimension_numbers<[1], [0], [0], [1], [0, 0, 1, 1], [], []>} : vector<7x14xbf16>, vector<14x128xbf16>, vector<7x128xf32> -> vector<7x128xf32>
    %cst_215 = arith.constant dense<0.000000e+00> : vector<7x128xf32>
    %284 = tpu.matmul %163, %282, %cst_215 {dimension_numbers = #tpu.dot_dimension_numbers<[1], [0], [0], [1], [0, 0, 1, 1], [], []>} : vector<7x14xbf16>, vector<14x128xbf16>, vector<7x128xf32> -> vector<7x128xf32>
    %285 = arith.maximumf %283, %284 : vector<7x128xf32>
    %c0_216 = arith.constant 0 : index
    %c0_217 = arith.constant 0 : index
    %c0_218 = arith.constant 0 : index
    %286 = vector.load %arg30[%c0_216, %c0_217, %c0_218] : memref<2x7x128xf32, #tpu.memory_space<vmem>>, vector<1x7x128xf32>
    %287 = vector.shape_cast %286 : vector<1x7x128xf32> to vector<7x128xf32>
    %288 = vector.shape_cast %285 : vector<7x128xf32> to vector<1x7x128xf32>
    tpu.vector_store %arg30[%c0_216, %c0_217, %c0_218], %288 {strides = array<i32>} : memref<2x7x128xf32, #tpu.memory_space<vmem>>, vector<1x7x128xf32>,
    %c1_219 = arith.constant 1 : index
    %c0_220 = arith.constant 0 : index
    %c0_221 = arith.constant 0 : index
    %289 = vector.load %arg28[%c1_219, %c0_220, %c0_221] : memref<2x32x256xf32, #tpu.memory_space<vmem>>, vector<1x14x256xf32>
    %290 = vector.shape_cast %289 : vector<1x14x256xf32> to vector<14x256xf32>
    %291 = vector.broadcast %268 : vector<1x256xf32> to vector<14x256xf32>
    %292 = arith.mulf %290, %291 : vector<14x256xf32>
    %293 = vector.broadcast %269 : vector<1x256xf32> to vector<14x256xf32>
    %294 = arith.addf %292, %293 : vector<14x256xf32>
    %cst_222 = arith.constant 0.000000e+00 : f32
    %295 = vector.broadcast %cst_222 : f32 to vector<14x256xf32>
    %296 = arith.maximumf %294, %295 : vector<14x256xf32>
    %297 = arith.truncf %296 : vector<14x256xf32> to vector<14x256xbf16>
    %cst_223 = arith.constant dense<0.000000e+00> : vector<14x128xf32>
    %298 = tpu.matmul %297, %160, %cst_223 {dimension_numbers = #tpu.dot_dimension_numbers<[1], [0], [0], [1], [0, 0, 1, 1], [], []>} : vector<14x256xbf16>, vector<256x128xbf16>, vector<14x128xf32> -> vector<14x128xf32>
    %cst_224 = arith.constant dense<0.000000e+00> : vector<14x128xf32>
    %299 = tpu.matmul %297, %161, %cst_224 {dimension_numbers = #tpu.dot_dimension_numbers<[1], [0], [0], [1], [0, 0, 1, 1], [], []>} : vector<14x256xbf16>, vector<256x128xbf16>, vector<14x128xf32> -> vector<14x128xf32>
    %300 = arith.maximumf %298, %299 : vector<14x128xf32>
    %301 = arith.truncf %300 : vector<14x128xf32> to vector<14x128xbf16>
    %cst_225 = arith.constant dense<0.000000e+00> : vector<7x128xf32>
    %302 = tpu.matmul %162, %301, %cst_225 {dimension_numbers = #tpu.dot_dimension_numbers<[1], [0], [0], [1], [0, 0, 1, 1], [], []>} : vector<7x14xbf16>, vector<14x128xbf16>, vector<7x128xf32> -> vector<7x128xf32>
    %cst_226 = arith.constant dense<0.000000e+00> : vector<7x128xf32>
    %303 = tpu.matmul %163, %301, %cst_226 {dimension_numbers = #tpu.dot_dimension_numbers<[1], [0], [0], [1], [0, 0, 1, 1], [], []>} : vector<7x14xbf16>, vector<14x128xbf16>, vector<7x128xf32> -> vector<7x128xf32>
    %304 = arith.maximumf %302, %303 : vector<7x128xf32>
    %c1_227 = arith.constant 1 : index
    %c0_228 = arith.constant 0 : index
    %c0_229 = arith.constant 0 : index
    %305 = vector.load %arg30[%c1_227, %c0_228, %c0_229] : memref<2x7x128xf32, #tpu.memory_space<vmem>>, vector<1x7x128xf32>
    %306 = vector.shape_cast %305 : vector<1x7x128xf32> to vector<7x128xf32>
    %307 = vector.shape_cast %304 : vector<7x128xf32> to vector<1x7x128xf32>
    tpu.vector_store %arg30[%c1_227, %c0_228, %c0_229], %307 {strides = array<i32>} : memref<2x7x128xf32, #tpu.memory_space<vmem>>, vector<1x7x128xf32>,
    %c0_230 = arith.constant 0 : index
    %c0_231 = arith.constant 0 : index
    %c0_232 = arith.constant 0 : index
    %308 = vector.load %arg30[%c0_230, %c0_231, %c0_232] : memref<2x7x128xf32, #tpu.memory_space<vmem>>, vector<2x7x128xf32>
    %c0_233 = arith.constant 0 : index
    %c0_234 = arith.constant 0 : index
    %c0_235 = arith.constant 0 : index
    %309 = vector.load %arg21[%c0_233, %c0_234, %c0_235] : memref<7x128x128xbf16, #tpu.memory_space<vmem>>, vector<7x128x128xbf16>
    %cst_236 = arith.constant 0.000000e+00 : f32
    %310 = vector.broadcast %cst_236 : f32 to vector<2x128xf32>
    %311 = vector.extract_strided_slice %308 {offsets = [0, 0, 0], sizes = [2, 1, 128], strides = [1, 1, 1]} : vector<2x7x128xf32> to vector<2x1x128xf32>
    %312 = vector.shape_cast %311 : vector<2x1x128xf32> to vector<2x128xf32>
    %313 = arith.truncf %312 : vector<2x128xf32> to vector<2x128xbf16>
    %314 = vector.extract_strided_slice %309 {offsets = [0, 0, 0], sizes = [1, 128, 128], strides = [1, 1, 1]} : vector<7x128x128xbf16> to vector<1x128x128xbf16>
    %315 = vector.shape_cast %314 : vector<1x128x128xbf16> to vector<128x128xbf16>
    %cst_237 = arith.constant dense<0.000000e+00> : vector<2x128xf32>
    %316 = tpu.matmul %313, %315, %cst_237 {dimension_numbers = #tpu.dot_dimension_numbers<[1], [0], [0], [1], [0, 0, 1, 1], [], []>} : vector<2x128xbf16>, vector<128x128xbf16>, vector<2x128xf32> -> vector<2x128xf32>
    %317 = arith.addf %310, %316 : vector<2x128xf32>
    %318 = vector.extract_strided_slice %308 {offsets = [0, 1, 0], sizes = [2, 1, 128], strides = [1, 1, 1]} : vector<2x7x128xf32> to vector<2x1x128xf32>
    %319 = vector.shape_cast %318 : vector<2x1x128xf32> to vector<2x128xf32>
    %320 = arith.truncf %319 : vector<2x128xf32> to vector<2x128xbf16>
    %321 = vector.extract_strided_slice %309 {offsets = [1, 0, 0], sizes = [1, 128, 128], strides = [1, 1, 1]} : vector<7x128x128xbf16> to vector<1x128x128xbf16>
    %322 = vector.shape_cast %321 : vector<1x128x128xbf16> to vector<128x128xbf16>
    %cst_238 = arith.constant dense<0.000000e+00> : vector<2x128xf32>
    %323 = tpu.matmul %320, %322, %cst_238 {dimension_numbers = #tpu.dot_dimension_numbers<[1], [0], [0], [1], [0, 0, 1, 1], [], []>} : vector<2x128xbf16>, vector<128x128xbf16>, vector<2x128xf32> -> vector<2x128xf32>
    %324 = arith.addf %317, %323 : vector<2x128xf32>
    %325 = vector.extract_strided_slice %308 {offsets = [0, 2, 0], sizes = [2, 1, 128], strides = [1, 1, 1]} : vector<2x7x128xf32> to vector<2x1x128xf32>
    %326 = vector.shape_cast %325 : vector<2x1x128xf32> to vector<2x128xf32>
    %327 = arith.truncf %326 : vector<2x128xf32> to vector<2x128xbf16>
    %328 = vector.extract_strided_slice %309 {offsets = [2, 0, 0], sizes = [1, 128, 128], strides = [1, 1, 1]} : vector<7x128x128xbf16> to vector<1x128x128xbf16>
    %329 = vector.shape_cast %328 : vector<1x128x128xbf16> to vector<128x128xbf16>
    %cst_239 = arith.constant dense<0.000000e+00> : vector<2x128xf32>
    %330 = tpu.matmul %327, %329, %cst_239 {dimension_numbers = #tpu.dot_dimension_numbers<[1], [0], [0], [1], [0, 0, 1, 1], [], []>} : vector<2x128xbf16>, vector<128x128xbf16>, vector<2x128xf32> -> vector<2x128xf32>
    %331 = arith.addf %324, %330 : vector<2x128xf32>
    %332 = vector.extract_strided_slice %308 {offsets = [0, 3, 0], sizes = [2, 1, 128], strides = [1, 1, 1]} : vector<2x7x128xf32> to vector<2x1x128xf32>
    %333 = vector.shape_cast %332 : vector<2x1x128xf32> to vector<2x128xf32>
    %334 = arith.truncf %333 : vector<2x128xf32> to vector<2x128xbf16>
    %335 = vector.extract_strided_slice %309 {offsets = [3, 0, 0], sizes = [1, 128, 128], strides = [1, 1, 1]} : vector<7x128x128xbf16> to vector<1x128x128xbf16>
    %336 = vector.shape_cast %335 : vector<1x128x128xbf16> to vector<128x128xbf16>
    %cst_240 = arith.constant dense<0.000000e+00> : vector<2x128xf32>
    %337 = tpu.matmul %334, %336, %cst_240 {dimension_numbers = #tpu.dot_dimension_numbers<[1], [0], [0], [1], [0, 0, 1, 1], [], []>} : vector<2x128xbf16>, vector<128x128xbf16>, vector<2x128xf32> -> vector<2x128xf32>
    %338 = arith.addf %331, %337 : vector<2x128xf32>
    %339 = vector.extract_strided_slice %308 {offsets = [0, 4, 0], sizes = [2, 1, 128], strides = [1, 1, 1]} : vector<2x7x128xf32> to vector<2x1x128xf32>
    %340 = vector.shape_cast %339 : vector<2x1x128xf32> to vector<2x128xf32>
    %341 = arith.truncf %340 : vector<2x128xf32> to vector<2x128xbf16>
    %342 = vector.extract_strided_slice %309 {offsets = [4, 0, 0], sizes = [1, 128, 128], strides = [1, 1, 1]} : vector<7x128x128xbf16> to vector<1x128x128xbf16>
    %343 = vector.shape_cast %342 : vector<1x128x128xbf16> to vector<128x128xbf16>
    %cst_241 = arith.constant dense<0.000000e+00> : vector<2x128xf32>
    %344 = tpu.matmul %341, %343, %cst_241 {dimension_numbers = #tpu.dot_dimension_numbers<[1], [0], [0], [1], [0, 0, 1, 1], [], []>} : vector<2x128xbf16>, vector<128x128xbf16>, vector<2x128xf32> -> vector<2x128xf32>
    %345 = arith.addf %338, %344 : vector<2x128xf32>
    %346 = vector.extract_strided_slice %308 {offsets = [0, 5, 0], sizes = [2, 1, 128], strides = [1, 1, 1]} : vector<2x7x128xf32> to vector<2x1x128xf32>
    %347 = vector.shape_cast %346 : vector<2x1x128xf32> to vector<2x128xf32>
    %348 = arith.truncf %347 : vector<2x128xf32> to vector<2x128xbf16>
    %349 = vector.extract_strided_slice %309 {offsets = [5, 0, 0], sizes = [1, 128, 128], strides = [1, 1, 1]} : vector<7x128x128xbf16> to vector<1x128x128xbf16>
    %350 = vector.shape_cast %349 : vector<1x128x128xbf16> to vector<128x128xbf16>
    %cst_242 = arith.constant dense<0.000000e+00> : vector<2x128xf32>
    %351 = tpu.matmul %348, %350, %cst_242 {dimension_numbers = #tpu.dot_dimension_numbers<[1], [0], [0], [1], [0, 0, 1, 1], [], []>} : vector<2x128xbf16>, vector<128x128xbf16>, vector<2x128xf32> -> vector<2x128xf32>
    %352 = arith.addf %345, %351 : vector<2x128xf32>
    %353 = vector.extract_strided_slice %308 {offsets = [0, 6, 0], sizes = [2, 1, 128], strides = [1, 1, 1]} : vector<2x7x128xf32> to vector<2x1x128xf32>
    %354 = vector.shape_cast %353 : vector<2x1x128xf32> to vector<2x128xf32>
    %355 = arith.truncf %354 : vector<2x128xf32> to vector<2x128xbf16>
    %356 = vector.extract_strided_slice %309 {offsets = [6, 0, 0], sizes = [1, 128, 128], strides = [1, 1, 1]} : vector<7x128x128xbf16> to vector<1x128x128xbf16>
    %357 = vector.shape_cast %356 : vector<1x128x128xbf16> to vector<128x128xbf16>
    %cst_243 = arith.constant dense<0.000000e+00> : vector<2x128xf32>
    %358 = tpu.matmul %355, %357, %cst_243 {dimension_numbers = #tpu.dot_dimension_numbers<[1], [0], [0], [1], [0, 0, 1, 1], [], []>} : vector<2x128xbf16>, vector<128x128xbf16>, vector<2x128xf32> -> vector<2x128xf32>
    %359 = arith.addf %352, %358 : vector<2x128xf32>
    %c0_244 = arith.constant 0 : index
    %c0_245 = arith.constant 0 : index
    %360 = vector.load %arg22[%c0_244, %c0_245] : memref<1x128xf32, #tpu.memory_space<vmem>>, vector<1x128xf32>
    %361 = vector.broadcast %360 : vector<1x128xf32> to vector<2x128xf32>
    %362 = arith.addf %359, %361 : vector<2x128xf32>
    %cst_246 = arith.constant 0.000000e+00 : f32
    %363 = vector.broadcast %cst_246 : f32 to vector<2x128xf32>
    %364 = arith.maximumf %362, %363 : vector<2x128xf32>
    %365 = arith.truncf %364 : vector<2x128xf32> to vector<2x128xbf16>
    %c0_247 = arith.constant 0 : index
    %c0_248 = arith.constant 0 : index
    %366 = vector.load %arg23[%c0_247, %c0_248] : memref<128x128xbf16, #tpu.memory_space<vmem>>, vector<128x128xbf16>
    %cst_249 = arith.constant dense<0.000000e+00> : vector<2x128xf32>
    %367 = tpu.matmul %365, %366, %cst_249 {dimension_numbers = #tpu.dot_dimension_numbers<[1], [0], [0], [1], [0, 0, 1, 1], [], []>} : vector<2x128xbf16>, vector<128x128xbf16>, vector<2x128xf32> -> vector<2x128xf32>
    %c0_250 = arith.constant 0 : index
    %c0_251 = arith.constant 0 : index
    %368 = vector.load %arg24[%c0_250, %c0_251] : memref<1x128xf32, #tpu.memory_space<vmem>>, vector<1x128xf32>
    %369 = vector.broadcast %368 : vector<1x128xf32> to vector<2x128xf32>
    %370 = arith.addf %367, %369 : vector<2x128xf32>
    %cst_252 = arith.constant 0.000000e+00 : f32
    %371 = vector.broadcast %cst_252 : f32 to vector<2x128xf32>
    %372 = arith.maximumf %370, %371 : vector<2x128xf32>
    %373 = arith.truncf %372 : vector<2x128xf32> to vector<2x128xbf16>
    %c0_253 = arith.constant 0 : index
    %c0_254 = arith.constant 0 : index
    %374 = vector.load %arg25[%c0_253, %c0_254] : memref<128x10xbf16, #tpu.memory_space<vmem>>, vector<128x10xbf16>
    %cst_255 = arith.constant dense<0.000000e+00> : vector<2x10xf32>
    %375 = tpu.matmul %373, %374, %cst_255 {dimension_numbers = #tpu.dot_dimension_numbers<[1], [0], [0], [1], [0, 0, 1, 1], [], []>} : vector<2x128xbf16>, vector<128x10xbf16>, vector<2x10xf32> -> vector<2x10xf32>
    %c0_256 = arith.constant 0 : index
    %c0_257 = arith.constant 0 : index
    %376 = vector.load %arg26[%c0_256, %c0_257] : memref<1x10xf32, #tpu.memory_space<vmem>>, vector<1x10xf32>
    %377 = vector.broadcast %376 : vector<1x10xf32> to vector<2x10xf32>
    %378 = arith.addf %375, %377 : vector<2x10xf32>
    %c0_258 = arith.constant 0 : index
    %c0_259 = arith.constant 0 : index
    %379 = vector.load %arg27[%c0_258, %c0_259] : memref<2x10xf32, #tpu.memory_space<vmem>>, vector<2x10xf32>
    tpu.vector_store %arg27[%c0_258, %c0_259], %378 {strides = array<i32>} : memref<2x10xf32, #tpu.memory_space<vmem>>, vector<2x10xf32>,
    return
  }
}

</mosaic_0001>

<llo_original>
// kernel: dropout_pad_bn_lenet5_forward.1
$region0: #{dropout_pad_bn_lenet5_forward.1}
  #allocation0 [shape = 'u32[]', space=smem, size = 0x4, offset = 0x4, fixed_abs, tag = 'smem constant byte address 0x4 - core index']
  #allocation1 [shape = 'u32[144,128]{1,0:T(1,128)}', space=vmem, size = 0x12000, scoped, tag = 'internal scratch']
  #allocation2 [shape = 'f32[2,32,256]{2,1,0:T(8,128)}', space=vmem, size = 0x10000, scoped, tag = 'scratch operand']
  #allocation3 [shape = 'f32[2,18,144]{2,1,0:T(8,128)}', space=vmem, size = 0xc000, scoped, tag = 'scratch operand']
  #allocation4 [shape = 'f32[2,7,128]{2,1,0:T(8,128)}', space=vmem, size = 0x2000, scoped, tag = 'scratch operand']
  %s0 = inlined_call_operand.vmem [shape: f32[2,36,108], index: 0, kind: input, shape index: {}]
  %s1 = inlined_call_operand.vmem [shape: bf16[5,108,256], index: 1, kind: input, shape index: {}]
  %s2 = inlined_call_operand.vmem [shape: f32[1,256], index: 2, kind: input, shape index: {}]
  %s3 = inlined_call_operand.vmem [shape: f32[1,8], index: 3, kind: input, shape index: {}]
  %s4 = inlined_call_operand.vmem [shape: f32[1,8], index: 4, kind: input, shape index: {}]
  %s5 = inlined_call_operand.vmem [shape: f32[256,8], index: 5, kind: input, shape index: {}]
  %s6 = inlined_call_operand.vmem [shape: f32[8,256], index: 6, kind: input, shape index: {}]
  %s7 = inlined_call_operand.vmem [shape: bf16[256,144], index: 7, kind: input, shape index: {}]
  %s8 = inlined_call_operand.vmem [shape: bf16[256,144], index: 8, kind: input, shape index: {}]
  %s9 = inlined_call_operand.vmem [shape: bf16[16,32], index: 9, kind: input, shape index: {}]
  %s10 = inlined_call_operand.vmem [shape: bf16[16,32], index: 10, kind: input, shape index: {}]
  %s11 = inlined_call_operand.vmem [shape: bf16[5,144,256], index: 11, kind: input, shape index: {}]
  %s12 = inlined_call_operand.vmem [shape: f32[1,256], index: 12, kind: input, shape index: {}]
  %s13 = inlined_call_operand.vmem [shape: f32[1,16], index: 13, kind: input, shape index: {}]
  %s14 = inlined_call_operand.vmem [shape: f32[1,16], index: 14, kind: input, shape index: {}]
  %s15 = inlined_call_operand.vmem [shape: f32[256,16], index: 15, kind: input, shape index: {}]
  %s16 = inlined_call_operand.vmem [shape: f32[16,256], index: 16, kind: input, shape index: {}]
  %s17 = inlined_call_operand.vmem [shape: bf16[256,128], index: 17, kind: input, shape index: {}]
  %s18 = inlined_call_operand.vmem [shape: bf16[256,128], index: 18, kind: input, shape index: {}]
  %s19 = inlined_call_operand.vmem [shape: bf16[7,14], index: 19, kind: input, shape index: {}]
  %s20 = inlined_call_operand.vmem [shape: bf16[7,14], index: 20, kind: input, shape index: {}]
  %s21 = inlined_call_operand.vmem [shape: bf16[7,128,128], index: 21, kind: input, shape index: {}]
  %s22 = inlined_call_operand.vmem [shape: f32[1,128], index: 22, kind: input, shape index: {}]
  %s23 = inlined_call_operand.vmem [shape: bf16[128,128], index: 23, kind: input, shape index: {}]
  %s24 = inlined_call_operand.vmem [shape: f32[1,128], index: 24, kind: input, shape index: {}]
  %s25 = inlined_call_operand.vmem [shape: bf16[128,10], index: 25, kind: input, shape index: {}]
  %s26 = inlined_call_operand.vmem [shape: f32[1,10], index: 26, kind: input, shape index: {}]
  %s27 = inlined_call_operand.hbm [shape: f32[2,10], index: 27, kind: output, shape index: {}]
  %s28 = sld [smem:[#allocation0]]
  $region118: #{dropout_pad_bn_lenet5_forward.1} parent=0
    _
  %s30 = ssub.s32 1, %s28
  %s31 = scalar_select 0, %s30, %s28
  $region1: #{dropout_pad_bn_lenet5_forward.1} parent=0
    #allocation5 [shape = 'u8[1024]{0}', space=vmem, size = 0x400, scoped, tag = 'output window, operand 0, single buffered']
    #allocation6 [shape = 's32[1]{0}', space=sflag, size = 0x4, scoped, tag = 'scoped memory for dropout_pad_bn_lenet5_forward.1']
    %32 = vsyncpa [#allocation6], 0
    // Predicated region
    $region2: #{dropout_pad_bn_lenet5_forward.1} parent=1 // pred_check
      _
    $region3: #{dropout_pad_bn_lenet5_forward.1} parent=1 // pred_check_branch
      %34 = sbr.rel (0) target = $region5
    $region4: #{dropout_pad_bn_lenet5_forward.1} parent=1 // pred_region
      _
    $region5: #{dropout_pad_bn_lenet5_forward.1} parent=1 // pred_fallthru
      _
    // Predicated region
    $region6: #{dropout_pad_bn_lenet5_forward.1} parent=1 // pred_check
      _
    $region7: #{dropout_pad_bn_lenet5_forward.1} parent=1 // pred_check_branch
      %36 = sbr.rel (0) target = $region9
    $region8: #{dropout_pad_bn_lenet5_forward.1} parent=1 // pred_region
      _
    $region9: #{dropout_pad_bn_lenet5_forward.1} parent=1 // pred_fallthru
      _
    // Predicated region
    $region10: #{dropout_pad_bn_lenet5_forward.1} parent=1 // pred_check
      _
    $region11: #{dropout_pad_bn_lenet5_forward.1} parent=1 // pred_check_branch
      %38 = sbr.rel (0) target = $region13
    $region12: #{dropout_pad_bn_lenet5_forward.1} parent=1 // pred_region
      _
    $region13: #{dropout_pad_bn_lenet5_forward.1} parent=1 // pred_fallthru
      _
    // Predicated region
    $region14: #{dropout_pad_bn_lenet5_forward.1} parent=1 // pred_check
      _
    $region15: #{dropout_pad_bn_lenet5_forward.1} parent=1 // pred_check_branch
      %40 = sbr.rel (0) target = $region17
    $region16: #{dropout_pad_bn_lenet5_forward.1} parent=1 // pred_region
      _
    $region17: #{dropout_pad_bn_lenet5_forward.1} parent=1 // pred_fallthru
      _
    // Predicated region
    $region18: #{dropout_pad_bn_lenet5_forward.1} parent=1 // pred_check
      _
    $region19: #{dropout_pad_bn_lenet5_forward.1} parent=1 // pred_check_branch
      %42 = sbr.rel (0) target = $region21
    $region20: #{dropout_pad_bn_lenet5_forward.1} parent=1 // pred_region
      _
    $region21: #{dropout_pad_bn_lenet5_forward.1} parent=1 // pred_fallthru
      _
    // Predicated region
    $region22: #{dropout_pad_bn_lenet5_forward.1} parent=1 // pred_check
      _
    $region23: #{dropout_pad_bn_lenet5_forward.1} parent=1 // pred_check_branch
      %44 = sbr.rel (0) target = $region25
    $region24: #{dropout_pad_bn_lenet5_forward.1} parent=1 // pred_region
      _
    $region25: #{dropout_pad_bn_lenet5_forward.1} parent=1 // pred_fallthru
      _
    // Predicated region
    $region26: #{dropout_pad_bn_lenet5_forward.1} parent=1 // pred_check
      _
    $region27: #{dropout_pad_bn_lenet5_forward.1} parent=1 // pred_check_branch
      %46 = sbr.rel (0) target = $region29
    $region28: #{dropout_pad_bn_lenet5_forward.1} parent=1 // pred_region
      _
    $region29: #{dropout_pad_bn_lenet5_forward.1} parent=1 // pred_fallthru
      _
    // Predicated region
    $region30: #{dropout_pad_bn_lenet5_forward.1} parent=1 // pred_check
      _
    $region31: #{dropout_pad_bn_lenet5_forward.1} parent=1 // pred_check_branch
      %48 = sbr.rel (0) target = $region33
    $region32: #{dropout_pad_bn_lenet5_forward.1} parent=1 // pred_region
      _
    $region33: #{dropout_pad_bn_lenet5_forward.1} parent=1 // pred_fallthru
      _
    // Predicated region
    $region34: #{dropout_pad_bn_lenet5_forward.1} parent=1 // pred_check
      _
    $region35: #{dropout_pad_bn_lenet5_forward.1} parent=1 // pred_check_branch
      %50 = sbr.rel (0) target = $region37
    $region36: #{dropout_pad_bn_lenet5_forward.1} parent=1 // pred_region
      _
    $region37: #{dropout_pad_bn_lenet5_forward.1} parent=1 // pred_fallthru
      _
    // Predicated region
    $region38: #{dropout_pad_bn_lenet5_forward.1} parent=1 // pred_check
      _
    $region39: #{dropout_pad_bn_lenet5_forward.1} parent=1 // pred_check_branch
      %52 = sbr.rel (0) target = $region41
    $region40: #{dropout_pad_bn_lenet5_forward.1} parent=1 // pred_region
      _
    $region41: #{dropout_pad_bn_lenet5_forward.1} parent=1 // pred_fallthru
      _
    // Predicated region
    $region42: #{dropout_pad_bn_lenet5_forward.1} parent=1 // pred_check
      _
    $region43: #{dropout_pad_bn_lenet5_forward.1} parent=1 // pred_check_branch
      %54 = sbr.rel (0) target = $region45
    $region44: #{dropout_pad_bn_lenet5_forward.1} parent=1 // pred_region
      _
    $region45: #{dropout_pad_bn_lenet5_forward.1} parent=1 // pred_fallthru
      _
    // Predicated region
    $region46: #{dropout_pad_bn_lenet5_forward.1} parent=1 // pred_check
      _
    $region47: #{dropout_pad_bn_lenet5_forward.1} parent=1 // pred_check_branch
      %56 = sbr.rel (0) target = $region49
    $region48: #{dropout_pad_bn_lenet5_forward.1} parent=1 // pred_region
      _
    $region49: #{dropout_pad_bn_lenet5_forward.1} parent=1 // pred_fallthru
      _
    // Predicated region
    $region50: #{dropout_pad_bn_lenet5_forward.1} parent=1 // pred_check
      _
    $region51: #{dropout_pad_bn_lenet5_forward.1} parent=1 // pred_check_branch
      %58 = sbr.rel (0) target = $region53
    $region52: #{dropout_pad_bn_lenet5_forward.1} parent=1 // pred_region
      _
    $region53: #{dropout_pad_bn_lenet5_forward.1} parent=1 // pred_fallthru
      _
    // Predicated region
    $region54: #{dropout_pad_bn_lenet5_forward.1} parent=1 // pred_check
      _
    $region55: #{dropout_pad_bn_lenet5_forward.1} parent=1 // pred_check_branch
      %60 = sbr.rel (0) target = $region57
    $region56: #{dropout_pad_bn_lenet5_forward.1} parent=1 // pred_region
      _
    $region57: #{dropout_pad_bn_lenet5_forward.1} parent=1 // pred_fallthru
      _
    // Predicated region
    $region58: #{dropout_pad_bn_lenet5_forward.1} parent=1 // pred_check
      _
    $region59: #{dropout_pad_bn_lenet5_forward.1} parent=1 // pred_check_branch
      %62 = sbr.rel (0) target = $region61
    $region60: #{dropout_pad_bn_lenet5_forward.1} parent=1 // pred_region
      _
    $region61: #{dropout_pad_bn_lenet5_forward.1} parent=1 // pred_fallthru
      _
    // Predicated region
    $region62: #{dropout_pad_bn_lenet5_forward.1} parent=1 // pred_check
      _
    $region63: #{dropout_pad_bn_lenet5_forward.1} parent=1 // pred_check_branch
      %64 = sbr.rel (0) target = $region65
    $region64: #{dropout_pad_bn_lenet5_forward.1} parent=1 // pred_region
      _
    $region65: #{dropout_pad_bn_lenet5_forward.1} parent=1 // pred_fallthru
      _
    // Predicated region
    $region66: #{dropout_pad_bn_lenet5_forward.1} parent=1 // pred_check
      _
    $region67: #{dropout_pad_bn_lenet5_forward.1} parent=1 // pred_check_branch
      %66 = sbr.rel (0) target = $region69
    $region68: #{dropout_pad_bn_lenet5_forward.1} parent=1 // pred_region
      _
    $region69: #{dropout_pad_bn_lenet5_forward.1} parent=1 // pred_fallthru
      _
    // Predicated region
    $region70: #{dropout_pad_bn_lenet5_forward.1} parent=1 // pred_check
      _
    $region71: #{dropout_pad_bn_lenet5_forward.1} parent=1 // pred_check_branch
      %68 = sbr.rel (0) target = $region73
    $region72: #{dropout_pad_bn_lenet5_forward.1} parent=1 // pred_region
      _
    $region73: #{dropout_pad_bn_lenet5_forward.1} parent=1 // pred_fallthru
      _
    // Predicated region
    $region74: #{dropout_pad_bn_lenet5_forward.1} parent=1 // pred_check
      _
    $region75: #{dropout_pad_bn_lenet5_forward.1} parent=1 // pred_check_branch
      %70 = sbr.rel (0) target = $region77
    $region76: #{dropout_pad_bn_lenet5_forward.1} parent=1 // pred_region
      _
    $region77: #{dropout_pad_bn_lenet5_forward.1} parent=1 // pred_fallthru
      _
    // Predicated region
    $region78: #{dropout_pad_bn_lenet5_forward.1} parent=1 // pred_check
      _
    $region79: #{dropout_pad_bn_lenet5_forward.1} parent=1 // pred_check_branch
      %72 = sbr.rel (0) target = $region81
    $region80: #{dropout_pad_bn_lenet5_forward.1} parent=1 // pred_region
      _
    $region81: #{dropout_pad_bn_lenet5_forward.1} parent=1 // pred_fallthru
      _
    // Predicated region
    $region82: #{dropout_pad_bn_lenet5_forward.1} parent=1 // pred_check
      _
    $region83: #{dropout_pad_bn_lenet5_forward.1} parent=1 // pred_check_branch
      %74 = sbr.rel (0) target = $region85
    $region84: #{dropout_pad_bn_lenet5_forward.1} parent=1 // pred_region
      _
    $region85: #{dropout_pad_bn_lenet5_forward.1} parent=1 // pred_fallthru
      _
    // Predicated region
    $region86: #{dropout_pad_bn_lenet5_forward.1} parent=1 // pred_check
      _
    $region87: #{dropout_pad_bn_lenet5_forward.1} parent=1 // pred_check_branch
      %76 = sbr.rel (0) target = $region89
    $region88: #{dropout_pad_bn_lenet5_forward.1} parent=1 // pred_region
      _
    $region89: #{dropout_pad_bn_lenet5_forward.1} parent=1 // pred_fallthru
      _
    // Predicated region
    $region90: #{dropout_pad_bn_lenet5_forward.1} parent=1 // pred_check
      _
    $region91: #{dropout_pad_bn_lenet5_forward.1} parent=1 // pred_check_branch
      %78 = sbr.rel (0) target = $region93
    $region92: #{dropout_pad_bn_lenet5_forward.1} parent=1 // pred_region
      _
    $region93: #{dropout_pad_bn_lenet5_forward.1} parent=1 // pred_fallthru
      _
    // Predicated region
    $region94: #{dropout_pad_bn_lenet5_forward.1} parent=1 // pred_check
      _
    $region95: #{dropout_pad_bn_lenet5_forward.1} parent=1 // pred_check_branch
      %80 = sbr.rel (0) target = $region97
    $region96: #{dropout_pad_bn_lenet5_forward.1} parent=1 // pred_region
      _
    $region97: #{dropout_pad_bn_lenet5_forward.1} parent=1 // pred_fallthru
      _
    // Predicated region
    $region98: #{dropout_pad_bn_lenet5_forward.1} parent=1 // pred_check
      _
    $region99: #{dropout_pad_bn_lenet5_forward.1} parent=1 // pred_check_branch
      %82 = sbr.rel (0) target = $region101
    $region100: #{dropout_pad_bn_lenet5_forward.1} parent=1 // pred_region
      _
    $region101: #{dropout_pad_bn_lenet5_forward.1} parent=1 // pred_fallthru
      _
    // Predicated region
    $region102: #{dropout_pad_bn_lenet5_forward.1} parent=1 // pred_check
      _
    $region103: #{dropout_pad_bn_lenet5_forward.1} parent=1 // pred_check_branch
      %84 = sbr.rel (0) target = $region105
    $region104: #{dropout_pad_bn_lenet5_forward.1} parent=1 // pred_region
      _
    $region105: #{dropout_pad_bn_lenet5_forward.1} parent=1 // pred_fallthru
      _
    // Predicated region
    $region106: #{dropout_pad_bn_lenet5_forward.1} parent=1 // pred_check
      _
    $region107: #{dropout_pad_bn_lenet5_forward.1} parent=1 // pred_check_branch
      %86 = sbr.rel (0) target = $region109
    $region108: #{dropout_pad_bn_lenet5_forward.1} parent=1 // pred_region
      _
    $region109: #{dropout_pad_bn_lenet5_forward.1} parent=1 // pred_fallthru
      _
    %88 = vst [vmem:[#allocation3] sm:$0xff] 0.0
    %vm89 = vcmask 130048
    %90 = vst.msk [vmem:[#allocation3 + $0x8] sm:$0xff] %vm89, 0.0
    %91 = vst [vmem:[#allocation3 + $0x10] sm:$0xff] 0.0
    %92 = vst.msk [vmem:[#allocation3 + $0x18] sm:$0xff] %vm89, 0.0
    %93 = vst [vmem:[#allocation3 + $0x20] sm:$0x3] 0.0
    %vm94 = vcmask 123904
    %95 = vst.msk [vmem:[#allocation3 + $0x28] sm:$0x3] %vm94, 0.0
    %96 = vst [vmem:[#allocation3 + $0x30] sm:$0xff] 0.0
    %97 = vst.msk [vmem:[#allocation3 + $0x38] sm:$0xff] %vm89, 0.0
    %98 = vst [vmem:[#allocation3 + $0x40] sm:$0xff] 0.0
    %99 = vst.msk [vmem:[#allocation3 + $0x48] sm:$0xff] %vm89, 0.0
    %100 = vst [vmem:[#allocation3 + $0x50] sm:$0x3] 0.0
    %101 = vst.msk [vmem:[#allocation3 + $0x58] sm:$0x3] %vm94, 0.0
    %v102 = vld [vmem:[%s2] sm:$0x3]
    %v103 = vld [vmem:[%s3] sm:$0x1]
    %v104 = vld [vmem:[%s4] sm:$0x1]
    %v105 = vld [vmem:[%s5] sm:$0xff]
    %v106 = vld [vmem:[%s5 + $0x8] sm:$0xff]
    %v107 = vld [vmem:[%s5 + $0x10] sm:$0xff]
    %v108 = vld [vmem:[%s5 + $0x18] sm:$0xff]
    %v109 = vld [vmem:[%s5 + $0x20] sm:$0xff]
    %v110 = vld [vmem:[%s5 + $0x28] sm:$0xff]
    %v111 = vld [vmem:[%s5 + $0x30] sm:$0xff]
    %v112 = vld [vmem:[%s5 + $0x38] sm:$0xff]
    %v113 = vld [vmem:[%s5 + $0x40] sm:$0xff]
    %v114 = vld [vmem:[%s5 + $0x48] sm:$0xff]
    %v115 = vld [vmem:[%s5 + $0x50] sm:$0xff]
    %v116 = vld [vmem:[%s5 + $0x58] sm:$0xff]
    %v117 = vld [vmem:[%s5 + $0x60] sm:$0xff]
    %v118 = vld [vmem:[%s5 + $0x68] sm:$0xff]
    %v119 = vld [vmem:[%s5 + $0x70] sm:$0xff]
    %v120 = vld [vmem:[%s5 + $0x78] sm:$0xff]
    %v121 = vld [vmem:[%s5 + $0x80] sm:$0xff]
    %v122 = vld [vmem:[%s5 + $0x88] sm:$0xff]
    %v123 = vld [vmem:[%s5 + $0x90] sm:$0xff]
    %v124 = vld [vmem:[%s5 + $0x98] sm:$0xff]
    %v125 = vld [vmem:[%s5 + $0xa0] sm:$0xff]
    %v126 = vld [vmem:[%s5 + $0xa8] sm:$0xff]
    %v127 = vld [vmem:[%s5 + $0xb0] sm:$0xff]
    %v128 = vld [vmem:[%s5 + $0xb8] sm:$0xff]
    %v129 = vld [vmem:[%s5 + $0xc0] sm:$0xff]
    %v130 = vld [vmem:[%s5 + $0xc8] sm:$0xff]
    %v131 = vld [vmem:[%s5 + $0xd0] sm:$0xff]
    %v132 = vld [vmem:[%s5 + $0xd8] sm:$0xff]
    %v133 = vld [vmem:[%s5 + $0xe0] sm:$0xff]
    %v134 = vld [vmem:[%s5 + $0xe8] sm:$0xff]
    %v135 = vld [vmem:[%s5 + $0xf0] sm:$0xff]
    %v136 = vld [vmem:[%s5 + $0xf8] sm:$0xff]
    %v137 = vld [vmem:[%s6] sm:$0xff]
    %v138 = vld [vmem:[%s6 + $0x8] sm:$0xff]
    %v139 = vld [vmem:[%s7] sm:$0xff]
    %v140 = vld [vmem:[%s7 + $0x8] sm:$0xff]
    %v141 = vld [vmem:[%s7 + $0x10] sm:$0xff]
    %v142 = vld [vmem:[%s7 + $0x18] sm:$0xff]
    %v143 = vld [vmem:[%s7 + $0x20] sm:$0xff]
    %v144 = vld [vmem:[%s7 + $0x28] sm:$0xff]
    %v145 = vld [vmem:[%s7 + $0x30] sm:$0xff]
    %v146 = vld [vmem:[%s7 + $0x38] sm:$0xff]
    %v147 = vld [vmem:[%s7 + $0x40] sm:$0xff]
    %v148 = vld [vmem:[%s7 + $0x48] sm:$0xff]
    %v149 = vld [vmem:[%s7 + $0x50] sm:$0xff]
    %v150 = vld [vmem:[%s7 + $0x58] sm:$0xff]
    %v151 = vld [vmem:[%s7 + $0x60] sm:$0xff]
    %v152 = vld [vmem:[%s7 + $0x68] sm:$0xff]
    %v153 = vld [vmem:[%s7 + $0x70] sm:$0xff]
    %v154 = vld [vmem:[%s7 + $0x78] sm:$0xff]
    %v155 = vld [vmem:[%s7 + $0x80] sm:$0xff]
    %v156 = vld [vmem:[%s7 + $0x88] sm:$0xff]
    %v157 = vld [vmem:[%s7 + $0x90] sm:$0xff]
    %v158 = vld [vmem:[%s7 + $0x98] sm:$0xff]
    %v159 = vld [vmem:[%s7 + $0xa0] sm:$0xff]
    %v160 = vld [vmem:[%s7 + $0xa8] sm:$0xff]
    %v161 = vld [vmem:[%s7 + $0xb0] sm:$0xff]
    %v162 = vld [vmem:[%s7 + $0xb8] sm:$0xff]
    %v163 = vld [vmem:[%s7 + $0xc0] sm:$0xff]
    %v164 = vld [vmem:[%s7 + $0xc8] sm:$0xff]
    %v165 = vld [vmem:[%s7 + $0xd0] sm:$0xff]
    %v166 = vld [vmem:[%s7 + $0xd8] sm:$0xff]
    %v167 = vld [vmem:[%s7 + $0xe0] sm:$0xff]
    %v168 = vld [vmem:[%s7 + $0xe8] sm:$0xff]
    %v169 = vld [vmem:[%s7 + $0xf0] sm:$0xff]
    %v170 = vld [vmem:[%s7 + $0xf8] sm:$0xff]
    %v171 = vld [vmem:[%s8] sm:$0xff]
    %v172 = vld [vmem:[%s8 + $0x8] sm:$0xff]
    %v173 = vld [vmem:[%s8 + $0x10] sm:$0xff]
    %v174 = vld [vmem:[%s8 + $0x18] sm:$0xff]
    %v175 = vld [vmem:[%s8 + $0x20] sm:$0xff]
    %v176 = vld [vmem:[%s8 + $0x28] sm:$0xff]
    %v177 = vld [vmem:[%s8 + $0x30] sm:$0xff]
    %v178 = vld [vmem:[%s8 + $0x38] sm:$0xff]
    %v179 = vld [vmem:[%s8 + $0x40] sm:$0xff]
    %v180 = vld [vmem:[%s8 + $0x48] sm:$0xff]
    %v181 = vld [vmem:[%s8 + $0x50] sm:$0xff]
    %v182 = vld [vmem:[%s8 + $0x58] sm:$0xff]
    %v183 = vld [vmem:[%s8 + $0x60] sm:$0xff]
    %v184 = vld [vmem:[%s8 + $0x68] sm:$0xff]
    %v185 = vld [vmem:[%s8 + $0x70] sm:$0xff]
    %v186 = vld [vmem:[%s8 + $0x78] sm:$0xff]
    %v187 = vld [vmem:[%s8 + $0x80] sm:$0xff]
    %v188 = vld [vmem:[%s8 + $0x88] sm:$0xff]
    %v189 = vld [vmem:[%s8 + $0x90] sm:$0xff]
    %v190 = vld [vmem:[%s8 + $0x98] sm:$0xff]
    %v191 = vld [vmem:[%s8 + $0xa0] sm:$0xff]
    %v192 = vld [vmem:[%s8 + $0xa8] sm:$0xff]
    %v193 = vld [vmem:[%s8 + $0xb0] sm:$0xff]
    %v194 = vld [vmem:[%s8 + $0xb8] sm:$0xff]
    %v195 = vld [vmem:[%s8 + $0xc0] sm:$0xff]
    %v196 = vld [vmem:[%s8 + $0xc8] sm:$0xff]
    %v197 = vld [vmem:[%s8 + $0xd0] sm:$0xff]
    %v198 = vld [vmem:[%s8 + $0xd8] sm:$0xff]
    %v199 = vld [vmem:[%s8 + $0xe0] sm:$0xff]
    %v200 = vld [vmem:[%s8 + $0xe8] sm:$0xff]
    %v201 = vld [vmem:[%s8 + $0xf0] sm:$0xff]
    %v202 = vld [vmem:[%s8 + $0xf8] sm:$0xff]
    %v203 = vld [vmem:[%s9] sm:$0xf]
    %v204 = vld [vmem:[%s9 + $0x4] sm:$0xf]
    %v205 = vld [vmem:[%s10] sm:$0xf]
    %v206 = vld [vmem:[%s10 + $0x4] sm:$0xf]
    %v207 = vld [vmem:[%s1] sm:$0xff]
    %v208 = vld [vmem:[%s1 + $0x8] sm:$0xff]
    %v209 = vld [vmem:[%s1 + $0x10] sm:$0xff]
    %v210 = vld [vmem:[%s1 + $0x18] sm:$0xff]
    %v211 = vld [vmem:[%s1 + $0x20] sm:$0xff]
    %v212 = vld [vmem:[%s1 + $0x28] sm:$0xff]
    %v213 = vld [vmem:[%s1 + $0x30] sm:$0xff]
    %v214 = vld [vmem:[%s1 + $0x38] sm:$0xff]
    %v215 = vld [vmem:[%s1 + $0x40] sm:$0xff]
    %v216 = vld [vmem:[%s1 + $0x48] sm:$0xff]
    %v217 = vld [vmem:[%s1 + $0x50] sm:$0xff]
    %v218 = vld [vmem:[%s1 + $0x58] sm:$0xff]
    %v219 = vld [vmem:[%s1 + $0x60] sm:$0xff]
    %v220 = vld [vmem:[%s1 + $0x68] sm:$0x33]
    %v221 = vld [vmem:[%s0] sm:$0xff]
    %v222 = vld [vmem:[%s0 + $0x8] sm:$0xff]
    %v223 = vld [vmem:[%s0 + $0x10] sm:$0xff]
    %v224 = vld [vmem:[%s0 + $0x18] sm:$0xff]
    %v225 = vpack.c.bf16 %v222, %v221
    %v226 = vpack.c.bf16 %v224, %v223
    %s227 = scalar_lea.vmem %s0, 40
    %v228 = vld [vmem:[%s227] sm:$0xff]
    %v229 = vld [vmem:[%s227 + $0x8] sm:$0xff]
    %v230 = vld [vmem:[%s227 + $0x10] sm:$0xff]
    %v231 = vld [vmem:[%s227 + $0x18] sm:$0xff]
    %v232 = vpack.c.bf16 %v229, %v228
    %v233 = vpack.c.bf16 %v231, %v230
    %s234 = scalar_lea.vmem %s1, 112
    %v235 = vld [vmem:[%s234] sm:$0xff]
    %v236 = vld [vmem:[%s234 + $0x8] sm:$0xff]
    %v237 = vld [vmem:[%s234 + $0x10] sm:$0xff]
    %v238 = vld [vmem:[%s234 + $0x18] sm:$0xff]
    %v239 = vld [vmem:[%s234 + $0x20] sm:$0xff]
    %v240 = vld [vmem:[%s234 + $0x28] sm:$0xff]
    %v241 = vld [vmem:[%s234 + $0x30] sm:$0xff]
    %v242 = vld [vmem:[%s234 + $0x38] sm:$0xff]
    %v243 = vld [vmem:[%s234 + $0x40] sm:$0xff]
    %v244 = vld [vmem:[%s234 + $0x48] sm:$0xff]
    %v245 = vld [vmem:[%s234 + $0x50] sm:$0xff]
    %v246 = vld [vmem:[%s234 + $0x58] sm:$0xff]
    %v247 = vld [vmem:[%s234 + $0x60] sm:$0xff]
    %v248 = vld [vmem:[%s234 + $0x68] sm:$0x33]
    %v249 = vld [vmem:[%s0 + $0x1] sm:$0xff]
    %v250 = vld [vmem:[%s0 + $0x9] sm:$0xff]
    %v251 = vld [vmem:[%s0 + $0x11] sm:$0xff]
    %v252 = vld [vmem:[%s0 + $0x19] sm:$0xff]
    %v253 = vpack.c.bf16 %v250, %v249
    %v254 = vpack.c.bf16 %v252, %v251
    %v269 = vunpack.c.l.b16 %v235
    %v270 = vunpack.c.h.b16 %v235
    %v271 = vunpack.c.l.b16 %v236
    %v272 = vunpack.c.h.b16 %v236
    %v273 = vunpack.c.l.b16 %v237
    %v274 = vunpack.c.h.b16 %v237
    %v275 = vunpack.c.l.b16 %v238
    %v276 = vunpack.c.h.b16 %v238
    %v277 = vunpack.c.l.b16 %v239
    %v278 = vunpack.c.h.b16 %v239
    %v279 = vunpack.c.l.b16 %v240
    %v280 = vunpack.c.h.b16 %v240
    %v281 = vunpack.c.l.b16 %v241
    %v282 = vunpack.c.h.b16 %v241
    %v283 = vunpack.c.l.b16 %v242
    %v284 = vunpack.c.h.b16 %v242
    %v285 = vunpack.c.l.b16 %v243
    %v286 = vunpack.c.h.b16 %v243
    %v287 = vunpack.c.l.b16 %v244
    %v288 = vunpack.c.h.b16 %v244
    %v289 = vunpack.c.l.b16 %v245
    %v290 = vunpack.c.h.b16 %v245
    %v291 = vunpack.c.l.b16 %v246
    %v292 = vunpack.c.h.b16 %v246
    %v293 = vunpack.c.l.b16 %v247
    %v294 = vunpack.c.h.b16 %v247
    %v295 = vunpack.c.l.b16 %v248
    %v296 = vunpack.c.h.b16 %v248
    %v297 = vpack.c.b16 %v271, %v269
    %v298 = vpack.c.b16 %v272, %v270
    %v299 = vpack.c.b16 %v275, %v273
    %v300 = vpack.c.b16 %v276, %v274
    %v301 = vpack.c.b16 %v279, %v277
    %v302 = vpack.c.b16 %v280, %v278
    %v303 = vpack.c.b16 %v283, %v281
    %v304 = vpack.c.b16 %v284, %v282
    %v305 = vpack.c.b16 %v287, %v285
    %v306 = vpack.c.b16 %v288, %v286
    %v307 = vpack.c.b16 %v291, %v289
    %v308 = vpack.c.b16 %v292, %v290
    %v309 = vpack.c.b16 %v295, %v293
    %v310 = vpack.c.b16 %v296, %v294
    %vm323 = vcmask 883712
    %v325 = vsel %vm323, %v253, 0
    %v328 = vsel %vm323, %v254, 0
    %vm330 = vcmask 1045504
    %v332 = vsel %vm330, %v309, 0
    %v335 = vsel %vm330, %v310, 0
    %337 = vmatprep.subr.bf16.mxu0 %v298
    %338 = vmatpush1.bf16.msra.mxu0 %v297
    %339 = vmatprep.subr.bf16.mxu0 %v300
    %340 = vmatpush1.bf16.msra.mxu0 %v299
    %341 = vmatprep.subr.bf16.mxu0 %v302
    %342 = vmatpush1.bf16.msra.mxu0 %v301
    %343 = vmatprep.subr.bf16.mxu0 %v304
    %344 = vmatpush1.bf16.msra.mxu0 %v303
    %345 = vmatprep.subr.bf16.mxu0 %v306
    %346 = vmatpush1.bf16.msra.mxu0 %v305
    %347 = vmatprep.subr.bf16.mxu0 %v308
    %348 = vmatpush1.bf16.msra.mxu0 %v307
    %349 = vmatprep.subr.bf16.mxu0 %v335
    %350 = vmatpush1.bf16.msra.mxu0 %v332
    %351 = vmatprep.subr.bf16.mxu0 0
    %352 = vmatpush1.bf16.msra.mxu0 0
    %353 = vmatprep.subr.bf16.mxu0 0
    %354 = vmatpush1.bf16.msra.mxu0 0
    %355 = vmatprep.subr.bf16.mxu0 0
    %356 = vmatpush1.bf16.msra.mxu0 0
    %357 = vmatprep.subr.bf16.mxu0 0
    %358 = vmatpush1.bf16.msra.mxu0 0
    %359 = vmatprep.subr.bf16.mxu0 0
    %360 = vmatpush1.bf16.msra.mxu0 0
    %361 = vmatprep.subr.bf16.mxu0 0
    %362 = vmatpush1.bf16.msra.mxu0 0
    %363 = vmatprep.subr.bf16.mxu0 0
    %364 = vmatpush1.bf16.msra.mxu0 0
    %365 = vmatprep.subr.bf16.mxu0 0
    %366 = vmatpush1.bf16.msra.mxu0 0
    %367 = vmatprep.subr.bf16.mxu0 0
    %368 = vmatpush1.bf16.msra.mxu0 0
    %369 = vmatprep.mubr.bf16.mxu0 0
    %370 = vmatmul.mubr.bf16.gmra.mrb[0].mxu0 %v325
    %v371 = vpop.f32.mrb[0].mxu0
    %v372 = vadd.f32 0.0, %v371
    %v373 = vpop.f32.mrb[0].mxu0
    %v374 = vadd.f32 0.0, %v373
    %v375 = vpop.f32.mrb[0].mxu0
    %v376 = vadd.f32 0.0, %v375
    %v377 = vpop.f32.mrb[0].mxu0
    %v378 = vadd.f32 0.0, %v377
    %379 = vmatprep.mubr.bf16.mxu0 0
    %380 = vmatmul.mubr.bf16.gmra.mrb[0].mxu0 %v328
    %v381 = vpop.f32.mrb[0].mxu0
    %v382 = vadd.f32 0.0, %v381
    %v383 = vpop.f32.mrb[0].mxu0
    %v384 = vadd.f32 0.0, %v383
    %v385 = vpop.f32.mrb[0].mxu0
    %v386 = vadd.f32 0.0, %v385
    %v387 = vpop.f32.mrb[0].mxu0
    %v388 = vadd.f32 0.0, %v387
    %389 = vdwg.mxu0
    %v404 = vunpack.c.l.b16 %v207
    %v405 = vunpack.c.h.b16 %v207
    %v406 = vunpack.c.l.b16 %v208
    %v407 = vunpack.c.h.b16 %v208
    %v408 = vunpack.c.l.b16 %v209
    %v409 = vunpack.c.h.b16 %v209
    %v410 = vunpack.c.l.b16 %v210
    %v411 = vunpack.c.h.b16 %v210
    %v412 = vunpack.c.l.b16 %v211
    %v413 = vunpack.c.h.b16 %v211
    %v414 = vunpack.c.l.b16 %v212
    %v415 = vunpack.c.h.b16 %v212
    %v416 = vunpack.c.l.b16 %v213
    %v417 = vunpack.c.h.b16 %v213
    %v418 = vunpack.c.l.b16 %v214
    %v419 = vunpack.c.h.b16 %v214
    %v420 = vunpack.c.l.b16 %v215
    %v421 = vunpack.c.h.b16 %v215
    %v422 = vunpack.c.l.b16 %v216
    %v423 = vunpack.c.h.b16 %v216
    %v424 = vunpack.c.l.b16 %v217
    %v425 = vunpack.c.h.b16 %v217
    %v426 = vunpack.c.l.b16 %v218
    %v427 = vunpack.c.h.b16 %v218
    %v428 = vunpack.c.l.b16 %v219
    %v429 = vunpack.c.h.b16 %v219
    %v430 = vunpack.c.l.b16 %v220
    %v431 = vunpack.c.h.b16 %v220
    %v432 = vpack.c.b16 %v406, %v404
    %v433 = vpack.c.b16 %v407, %v405
    %v434 = vpack.c.b16 %v410, %v408
    %v435 = vpack.c.b16 %v411, %v409
    %v436 = vpack.c.b16 %v414, %v412
    %v437 = vpack.c.b16 %v415, %v413
    %v438 = vpack.c.b16 %v418, %v416
    %v439 = vpack.c.b16 %v419, %v417
    %v440 = vpack.c.b16 %v422, %v420
    %v441 = vpack.c.b16 %v423, %v421
    %v442 = vpack.c.b16 %v426, %v424
    %v443 = vpack.c.b16 %v427, %v425
    %v444 = vpack.c.b16 %v430, %v428
    %v445 = vpack.c.b16 %v431, %v429
    %v459 = vsel %vm323, %v225, 0
    %v462 = vsel %vm323, %v226, 0
    %v465 = vsel %vm330, %v444, 0
    %v468 = vsel %vm330, %v445, 0
    %470 = vmatprep.subr.bf16.mxu0 %v433
    %471 = vmatpush1.bf16.msra.mxu0 %v432
    %472 = vmatprep.subr.bf16.mxu0 %v435
    %473 = vmatpush1.bf16.msra.mxu0 %v434
    %474 = vmatprep.subr.bf16.mxu0 %v437
    %475 = vmatpush1.bf16.msra.mxu0 %v436
    %476 = vmatprep.subr.bf16.mxu0 %v439
    %477 = vmatpush1.bf16.msra.mxu0 %v438
    %478 = vmatprep.subr.bf16.mxu0 %v441
    %479 = vmatpush1.bf16.msra.mxu0 %v440
    %480 = vmatprep.subr.bf16.mxu0 %v443
    %481 = vmatpush1.bf16.msra.mxu0 %v442
    %482 = vmatprep.subr.bf16.mxu0 %v468
    %483 = vmatpush1.bf16.msra.mxu0 %v465
    %484 = vmatprep.subr.bf16.mxu0 0
    %485 = vmatpush1.bf16.msra.mxu0 0
    %486 = vmatprep.subr.bf16.mxu0 0
    %487 = vmatpush1.bf16.msra.mxu0 0
    %488 = vmatprep.subr.bf16.mxu0 0
    %489 = vmatpush1.bf16.msra.mxu0 0
    %490 = vmatprep.subr.bf16.mxu0 0
    %491 = vmatpush1.bf16.msra.mxu0 0
    %492 = vmatprep.subr.bf16.mxu0 0
    %493 = vmatpush1.bf16.msra.mxu0 0
    %494 = vmatprep.subr.bf16.mxu0 0
    %495 = vmatpush1.bf16.msra.mxu0 0
    %496 = vmatprep.subr.bf16.mxu0 0
    %497 = vmatpush1.bf16.msra.mxu0 0
    %498 = vmatprep.subr.bf16.mxu0 0
    %499 = vmatpush1.bf16.msra.mxu0 0
    %500 = vmatprep.subr.bf16.mxu0 0
    %501 = vmatpush1.bf16.msra.mxu0 0
    %502 = vmatprep.mubr.bf16.mxu0 0
    %503 = vmatmul.mubr.bf16.gmra.mrb[0].mxu0 %v459
    %v504 = vpop.f32.mrb[0].mxu0
    %v505 = vadd.f32 %v372, %v504
    %v506 = vpop.f32.mrb[0].mxu0
    %v507 = vadd.f32 %v374, %v506
    %v508 = vpop.f32.mrb[0].mxu0
    %v509 = vadd.f32 %v376, %v508
    %v510 = vpop.f32.mrb[0].mxu0
    %v511 = vadd.f32 %v378, %v510
    %512 = vmatprep.mubr.bf16.mxu0 0
    %513 = vmatmul.mubr.bf16.gmra.mrb[0].mxu0 %v462
    %v514 = vpop.f32.mrb[0].mxu0
    %v515 = vadd.f32 %v382, %v514
    %v516 = vpop.f32.mrb[0].mxu0
    %v517 = vadd.f32 %v384, %v516
    %v518 = vpop.f32.mrb[0].mxu0
    %v519 = vadd.f32 %v386, %v518
    %v520 = vpop.f32.mrb[0].mxu0
    %v521 = vadd.f32 %v388, %v520
    %522 = vdwg.mxu0
    %v523 = vld [vmem:[%s227 + $0x1] sm:$0xff]
    %v524 = vld [vmem:[%s227 + $0x9] sm:$0xff]
    %v525 = vld [vmem:[%s227 + $0x11] sm:$0xff]
    %v526 = vld [vmem:[%s227 + $0x19] sm:$0xff]
    %v527 = vpack.c.bf16 %v524, %v523
    %v528 = vpack.c.bf16 %v526, %v525
    %v530 = vsel %vm323, %v527, 0
    %v533 = vsel %vm323, %v528, 0
    %535 = vmatprep.subr.bf16.mxu0 %v298
    %536 = vmatpush1.bf16.msra.mxu0 %v297
    %537 = vmatprep.subr.bf16.mxu0 %v300
    %538 = vmatpush1.bf16.msra.mxu0 %v299
    %539 = vmatprep.subr.bf16.mxu0 %v302
    %540 = vmatpush1.bf16.msra.mxu0 %v301
    %541 = vmatprep.subr.bf16.mxu0 %v304
    %542 = vmatpush1.bf16.msra.mxu0 %v303
    %543 = vmatprep.subr.bf16.mxu0 %v306
    %544 = vmatpush1.bf16.msra.mxu0 %v305
    %545 = vmatprep.subr.bf16.mxu0 %v308
    %546 = vmatpush1.bf16.msra.mxu0 %v307
    %547 = vmatprep.subr.bf16.mxu0 %v335
    %548 = vmatpush1.bf16.msra.mxu0 %v332
    %549 = vmatprep.subr.bf16.mxu0 0
    %550 = vmatpush1.bf16.msra.mxu0 0
    %551 = vmatprep.subr.bf16.mxu0 0
    %552 = vmatpush1.bf16.msra.mxu0 0
    %553 = vmatprep.subr.bf16.mxu0 0
    %554 = vmatpush1.bf16.msra.mxu0 0
    %555 = vmatprep.subr.bf16.mxu0 0
    %556 = vmatpush1.bf16.msra.mxu0 0
    %557 = vmatprep.subr.bf16.mxu0 0
    %558 = vmatpush1.bf16.msra.mxu0 0
    %559 = vmatprep.subr.bf16.mxu0 0
    %560 = vmatpush1.bf16.msra.mxu0 0
    %561 = vmatprep.subr.bf16.mxu0 0
    %562 = vmatpush1.bf16.msra.mxu0 0
    %563 = vmatprep.subr.bf16.mxu0 0
    %564 = vmatpush1.bf16.msra.mxu0 0
    %565 = vmatprep.subr.bf16.mxu0 0
    %566 = vmatpush1.bf16.msra.mxu0 0
    %567 = vmatprep.mubr.bf16.mxu0 0
    %568 = vmatmul.mubr.bf16.gmra.mrb[0].mxu0 %v530
    %v569 = vpop.f32.mrb[0].mxu0
    %v570 = vadd.f32 0.0, %v569
    %v571 = vpop.f32.mrb[0].mxu0
    %v572 = vadd.f32 0.0, %v571
    %v573 = vpop.f32.mrb[0].mxu0
    %v574 = vadd.f32 0.0, %v573
    %v575 = vpop.f32.mrb[0].mxu0
    %v576 = vadd.f32 0.0, %v575
    %577 = vmatprep.mubr.bf16.mxu0 0
    %578 = vmatmul.mubr.bf16.gmra.mrb[0].mxu0 %v533
    %v579 = vpop.f32.mrb[0].mxu0
    %v580 = vadd.f32 0.0, %v579
    %v581 = vpop.f32.mrb[0].mxu0
    %v582 = vadd.f32 0.0, %v581
    %v583 = vpop.f32.mrb[0].mxu0
    %v584 = vadd.f32 0.0, %v583
    %v585 = vpop.f32.mrb[0].mxu0
    %v586 = vadd.f32 0.0, %v585
    %587 = vdwg.mxu0
    %v589 = vsel %vm323, %v232, 0
    %v592 = vsel %vm323, %v233, 0
    %594 = vmatprep.subr.bf16.mxu0 %v433
    %595 = vmatpush1.bf16.msra.mxu0 %v432
    %596 = vmatprep.subr.bf16.mxu0 %v435
    %597 = vmatpush1.bf16.msra.mxu0 %v434
    %598 = vmatprep.subr.bf16.mxu0 %v437
    %599 = vmatpush1.bf16.msra.mxu0 %v436
    %600 = vmatprep.subr.bf16.mxu0 %v439
    %601 = vmatpush1.bf16.msra.mxu0 %v438
    %602 = vmatprep.subr.bf16.mxu0 %v441
    %603 = vmatpush1.bf16.msra.mxu0 %v440
    %604 = vmatprep.subr.bf16.mxu0 %v443
    %605 = vmatpush1.bf16.msra.mxu0 %v442
    %606 = vmatprep.subr.bf16.mxu0 %v468
    %607 = vmatpush1.bf16.msra.mxu0 %v465
    %608 = vmatprep.subr.bf16.mxu0 0
    %609 = vmatpush1.bf16.msra.mxu0 0
    %610 = vmatprep.subr.bf16.mxu0 0
    %611 = vmatpush1.bf16.msra.mxu0 0
    %612 = vmatprep.subr.bf16.mxu0 0
    %613 = vmatpush1.bf16.msra.mxu0 0
    %614 = vmatprep.subr.bf16.mxu0 0
    %615 = vmatpush1.bf16.msra.mxu0 0
    %616 = vmatprep.subr.bf16.mxu0 0
    %617 = vmatpush1.bf16.msra.mxu0 0
    %618 = vmatprep.subr.bf16.mxu0 0
    %619 = vmatpush1.bf16.msra.mxu0 0
    %620 = vmatprep.subr.bf16.mxu0 0
    %621 = vmatpush1.bf16.msra.mxu0 0
    %622 = vmatprep.subr.bf16.mxu0 0
    %623 = vmatpush1.bf16.msra.mxu0 0
    %624 = vmatprep.subr.bf16.mxu0 0
    %625 = vmatpush1.bf16.msra.mxu0 0
    %626 = vmatprep.mubr.bf16.mxu0 0
    %627 = vmatmul.mubr.bf16.gmra.mrb[0].mxu0 %v589
    %v628 = vpop.f32.mrb[0].mxu0
    %v629 = vadd.f32 %v570, %v628
    %v630 = vpop.f32.mrb[0].mxu0
    %v631 = vadd.f32 %v572, %v630
    %v632 = vpop.f32.mrb[0].mxu0
    %v633 = vadd.f32 %v574, %v632
    %v634 = vpop.f32.mrb[0].mxu0
    %v635 = vadd.f32 %v576, %v634
    %636 = vmatprep.mubr.bf16.mxu0 0
    %637 = vmatmul.mubr.bf16.gmra.mrb[0].mxu0 %v592
    %v638 = vpop.f32.mrb[0].mxu0
    %v639 = vadd.f32 %v580, %v638
    %v640 = vpop.f32.mrb[0].mxu0
    %v641 = vadd.f32 %v582, %v640
    %v642 = vpop.f32.mrb[0].mxu0
    %v643 = vadd.f32 %v584, %v642
    %v644 = vpop.f32.mrb[0].mxu0
    %v645 = vadd.f32 %v586, %v644
    %646 = vdwg.mxu0
    %s647 = scalar_lea.vmem %s1, 224
    %v648 = vld [vmem:[%s647] sm:$0xff]
    %v649 = vld [vmem:[%s647 + $0x8] sm:$0xff]
    %v650 = vld [vmem:[%s647 + $0x10] sm:$0xff]
    %v651 = vld [vmem:[%s647 + $0x18] sm:$0xff]
    %v652 = vld [vmem:[%s647 + $0x20] sm:$0xff]
    %v653 = vld [vmem:[%s647 + $0x28] sm:$0xff]
    %v654 = vld [vmem:[%s647 + $0x30] sm:$0xff]
    %v655 = vld [vmem:[%s647 + $0x38] sm:$0xff]
    %v656 = vld [vmem:[%s647 + $0x40] sm:$0xff]
    %v657 = vld [vmem:[%s647 + $0x48] sm:$0xff]
    %v658 = vld [vmem:[%s647 + $0x50] sm:$0xff]
    %v659 = vld [vmem:[%s647 + $0x58] sm:$0xff]
    %v660 = vld [vmem:[%s647 + $0x60] sm:$0xff]
    %v661 = vld [vmem:[%s647 + $0x68] sm:$0x33]
    %v662 = vld [vmem:[%s0 + $0x2] sm:$0xff]
    %v663 = vld [vmem:[%s0 + $0xa] sm:$0xff]
    %v664 = vld [vmem:[%s0 + $0x12] sm:$0xff]
    %v665 = vld [vmem:[%s0 + $0x1a] sm:$0xff]
    %v666 = vpack.c.bf16 %v663, %v662
    %v667 = vpack.c.bf16 %v665, %v664
    %v682 = vunpack.c.l.b16 %v648
    %v683 = vunpack.c.h.b16 %v648
    %v684 = vunpack.c.l.b16 %v649
    %v685 = vunpack.c.h.b16 %v649
    %v686 = vunpack.c.l.b16 %v650
    %v687 = vunpack.c.h.b16 %v650
    %v688 = vunpack.c.l.b16 %v651
    %v689 = vunpack.c.h.b16 %v651
    %v690 = vunpack.c.l.b16 %v652
    %v691 = vunpack.c.h.b16 %v652
    %v692 = vunpack.c.l.b16 %v653
    %v693 = vunpack.c.h.b16 %v653
    %v694 = vunpack.c.l.b16 %v654
    %v695 = vunpack.c.h.b16 %v654
    %v696 = vunpack.c.l.b16 %v655
    %v697 = vunpack.c.h.b16 %v655
    %v698 = vunpack.c.l.b16 %v656
    %v699 = vunpack.c.h.b16 %v656
    %v700 = vunpack.c.l.b16 %v657
    %v701 = vunpack.c.h.b16 %v657
    %v702 = vunpack.c.l.b16 %v658
    %v703 = vunpack.c.h.b16 %v658
    %v704 = vunpack.c.l.b16 %v659
    %v705 = vunpack.c.h.b16 %v659
    %v706 = vunpack.c.l.b16 %v660
    %v707 = vunpack.c.h.b16 %v660
    %v708 = vunpack.c.l.b16 %v661
    %v709 = vunpack.c.h.b16 %v661
    %v710 = vpack.c.b16 %v684, %v682
    %v711 = vpack.c.b16 %v685, %v683
    %v712 = vpack.c.b16 %v688, %v686
    %v713 = vpack.c.b16 %v689, %v687
    %v714 = vpack.c.b16 %v692, %v690
    %v715 = vpack.c.b16 %v693, %v691
    %v716 = vpack.c.b16 %v696, %v694
    %v717 = vpack.c.b16 %v697, %v695
    %v718 = vpack.c.b16 %v700, %v698
    %v719 = vpack.c.b16 %v701, %v699
    %v720 = vpack.c.b16 %v704, %v702
    %v721 = vpack.c.b16 %v705, %v703
    %v722 = vpack.c.b16 %v708, %v706
    %v723 = vpack.c.b16 %v709, %v707
    %v737 = vsel %vm323, %v666, 0
    %v740 = vsel %vm323, %v667, 0
    %v743 = vsel %vm330, %v722, 0
    %v746 = vsel %vm330, %v723, 0
    %748 = vmatprep.subr.bf16.mxu0 %v711
    %749 = vmatpush1.bf16.msra.mxu0 %v710
    %750 = vmatprep.subr.bf16.mxu0 %v713
    %751 = vmatpush1.bf16.msra.mxu0 %v712
    %752 = vmatprep.subr.bf16.mxu0 %v715
    %753 = vmatpush1.bf16.msra.mxu0 %v714
    %754 = vmatprep.subr.bf16.mxu0 %v717
    %755 = vmatpush1.bf16.msra.mxu0 %v716
    %756 = vmatprep.subr.bf16.mxu0 %v719
    %757 = vmatpush1.bf16.msra.mxu0 %v718
    %758 = vmatprep.subr.bf16.mxu0 %v721
    %759 = vmatpush1.bf16.msra.mxu0 %v720
    %760 = vmatprep.subr.bf16.mxu0 %v746
    %761 = vmatpush1.bf16.msra.mxu0 %v743
    %762 = vmatprep.subr.bf16.mxu0 0
    %763 = vmatpush1.bf16.msra.mxu0 0
    %764 = vmatprep.subr.bf16.mxu0 0
    %765 = vmatpush1.bf16.msra.mxu0 0
    %766 = vmatprep.subr.bf16.mxu0 0
    %767 = vmatpush1.bf16.msra.mxu0 0
    %768 = vmatprep.subr.bf16.mxu0 0
    %769 = vmatpush1.bf16.msra.mxu0 0
    %770 = vmatprep.subr.bf16.mxu0 0
    %771 = vmatpush1.bf16.msra.mxu0 0
    %772 = vmatprep.subr.bf16.mxu0 0
    %773 = vmatpush1.bf16.msra.mxu0 0
    %774 = vmatprep.subr.bf16.mxu0 0
    %775 = vmatpush1.bf16.msra.mxu0 0
    %776 = vmatprep.subr.bf16.mxu0 0
    %777 = vmatpush1.bf16.msra.mxu0 0
    %778 = vmatprep.subr.bf16.mxu0 0
    %779 = vmatpush1.bf16.msra.mxu0 0
    %780 = vmatprep.mubr.bf16.mxu0 0
    %781 = vmatmul.mubr.bf16.gmra.mrb[0].mxu0 %v737
    %v782 = vpop.f32.mrb[0].mxu0
    %v783 = vadd.f32 0.0, %v782
    %v784 = vpop.f32.mrb[0].mxu0
    %v785 = vadd.f32 0.0, %v784
    %v786 = vpop.f32.mrb[0].mxu0
    %v787 = vadd.f32 0.0, %v786
    %v788 = vpop.f32.mrb[0].mxu0
    %v789 = vadd.f32 0.0, %v788
    %790 = vmatprep.mubr.bf16.mxu0 0
    %791 = vmatmul.mubr.bf16.gmra.mrb[0].mxu0 %v740
    %v792 = vpop.f32.mrb[0].mxu0
    %v793 = vadd.f32 0.0, %v792
    %v794 = vpop.f32.mrb[0].mxu0
    %v795 = vadd.f32 0.0, %v794
    %v796 = vpop.f32.mrb[0].mxu0
    %v797 = vadd.f32 0.0, %v796
    %v798 = vpop.f32.mrb[0].mxu0
    %v799 = vadd.f32 0.0, %v798
    %800 = vdwg.mxu0
    %v801 = vadd.f32 %v505, %v783
    %v802 = vadd.f32 %v507, %v785
    %v803 = vadd.f32 %v509, %v787
    %v804 = vadd.f32 %v511, %v789
    %v805 = vadd.f32 %v515, %v793
    %v806 = vadd.f32 %v517, %v795
    %v807 = vadd.f32 %v519, %v797
    %v808 = vadd.f32 %v521, %v799
    %v809 = vld [vmem:[%s227 + $0x2] sm:$0xff]
    %v810 = vld [vmem:[%s227 + $0xa] sm:$0xff]
    %v811 = vld [vmem:[%s227 + $0x12] sm:$0xff]
    %v812 = vld [vmem:[%s227 + $0x1a] sm:$0xff]
    %v813 = vpack.c.bf16 %v810, %v809
    %v814 = vpack.c.bf16 %v812, %v811
    %v816 = vsel %vm323, %v813, 0
    %v819 = vsel %vm323, %v814, 0
    %821 = vmatprep.subr.bf16.mxu0 %v711
    %822 = vmatpush1.bf16.msra.mxu0 %v710
    %823 = vmatprep.subr.bf16.mxu0 %v713
    %824 = vmatpush1.bf16.msra.mxu0 %v712
    %825 = vmatprep.subr.bf16.mxu0 %v715
    %826 = vmatpush1.bf16.msra.mxu0 %v714
    %827 = vmatprep.subr.bf16.mxu0 %v717
    %828 = vmatpush1.bf16.msra.mxu0 %v716
    %829 = vmatprep.subr.bf16.mxu0 %v719
    %830 = vmatpush1.bf16.msra.mxu0 %v718
    %831 = vmatprep.subr.bf16.mxu0 %v721
    %832 = vmatpush1.bf16.msra.mxu0 %v720
    %833 = vmatprep.subr.bf16.mxu0 %v746
    %834 = vmatpush1.bf16.msra.mxu0 %v743
    %835 = vmatprep.subr.bf16.mxu0 0
    %836 = vmatpush1.bf16.msra.mxu0 0
    %837 = vmatprep.subr.bf16.mxu0 0
    %838 = vmatpush1.bf16.msra.mxu0 0
    %839 = vmatprep.subr.bf16.mxu0 0
    %840 = vmatpush1.bf16.msra.mxu0 0
    %841 = vmatprep.subr.bf16.mxu0 0
    %842 = vmatpush1.bf16.msra.mxu0 0
    %843 = vmatprep.subr.bf16.mxu0 0
    %844 = vmatpush1.bf16.msra.mxu0 0
    %845 = vmatprep.subr.bf16.mxu0 0
    %846 = vmatpush1.bf16.msra.mxu0 0
    %847 = vmatprep.subr.bf16.mxu0 0
    %848 = vmatpush1.bf16.msra.mxu0 0
    %849 = vmatprep.subr.bf16.mxu0 0
    %850 = vmatpush1.bf16.msra.mxu0 0
    %851 = vmatprep.subr.bf16.mxu0 0
    %852 = vmatpush1.bf16.msra.mxu0 0
    %853 = vmatprep.mubr.bf16.mxu0 0
    %854 = vmatmul.mubr.bf16.gmra.mrb[0].mxu0 %v816
    %v855 = vpop.f32.mrb[0].mxu0
    %v856 = vadd.f32 0.0, %v855
    %v857 = vpop.f32.mrb[0].mxu0
    %v858 = vadd.f32 0.0, %v857
    %v859 = vpop.f32.mrb[0].mxu0
    %v860 = vadd.f32 0.0, %v859
    %v861 = vpop.f32.mrb[0].mxu0
    %v862 = vadd.f32 0.0, %v861
    %863 = vmatprep.mubr.bf16.mxu0 0
    %864 = vmatmul.mubr.bf16.gmra.mrb[0].mxu0 %v819
    %v865 = vpop.f32.mrb[0].mxu0
    %v866 = vadd.f32 0.0, %v865
    %v867 = vpop.f32.mrb[0].mxu0
    %v868 = vadd.f32 0.0, %v867
    %v869 = vpop.f32.mrb[0].mxu0
    %v870 = vadd.f32 0.0, %v869
    %v871 = vpop.f32.mrb[0].mxu0
    %v872 = vadd.f32 0.0, %v871
    %873 = vdwg.mxu0
    %v874 = vadd.f32 %v629, %v856
    %v875 = vadd.f32 %v631, %v858
    %v876 = vadd.f32 %v633, %v860
    %v877 = vadd.f32 %v635, %v862
    %v878 = vadd.f32 %v639, %v866
    %v879 = vadd.f32 %v641, %v868
    %v880 = vadd.f32 %v643, %v870
    %v881 = vadd.f32 %v645, %v872
    %s882 = scalar_lea.vmem %s1, 336
    %v883 = vld [vmem:[%s882] sm:$0xff]
    %v884 = vld [vmem:[%s882 + $0x8] sm:$0xff]
    %v885 = vld [vmem:[%s882 + $0x10] sm:$0xff]
    %v886 = vld [vmem:[%s882 + $0x18] sm:$0xff]
    %v887 = vld [vmem:[%s882 + $0x20] sm:$0xff]
    %v888 = vld [vmem:[%s882 + $0x28] sm:$0xff]
    %v889 = vld [vmem:[%s882 + $0x30] sm:$0xff]
    %v890 = vld [vmem:[%s882 + $0x38] sm:$0xff]
    %v891 = vld [vmem:[%s882 + $0x40] sm:$0xff]
    %v892 = vld [vmem:[%s882 + $0x48] sm:$0xff]
    %v893 = vld [vmem:[%s882 + $0x50] sm:$0xff]
    %v894 = vld [vmem:[%s882 + $0x58] sm:$0xff]
    %v895 = vld [vmem:[%s882 + $0x60] sm:$0xff]
    %v896 = vld [vmem:[%s882 + $0x68] sm:$0x33]
    %v897 = vld [vmem:[%s0 + $0x3] sm:$0xff]
    %v898 = vld [vmem:[%s0 + $0xb] sm:$0xff]
    %v899 = vld [vmem:[%s0 + $0x13] sm:$0xff]
    %v900 = vld [vmem:[%s0 + $0x1b] sm:$0xff]
    %v901 = vpack.c.bf16 %v898, %v897
    %v902 = vpack.c.bf16 %v900, %v899
    %v917 = vunpack.c.l.b16 %v883
    %v918 = vunpack.c.h.b16 %v883
    %v919 = vunpack.c.l.b16 %v884
    %v920 = vunpack.c.h.b16 %v884
    %v921 = vunpack.c.l.b16 %v885
    %v922 = vunpack.c.h.b16 %v885
    %v923 = vunpack.c.l.b16 %v886
    %v924 = vunpack.c.h.b16 %v886
    %v925 = vunpack.c.l.b16 %v887
    %v926 = vunpack.c.h.b16 %v887
    %v927 = vunpack.c.l.b16 %v888
    %v928 = vunpack.c.h.b16 %v888
    %v929 = vunpack.c.l.b16 %v889
    %v930 = vunpack.c.h.b16 %v889
    %v931 = vunpack.c.l.b16 %v890
    %v932 = vunpack.c.h.b16 %v890
    %v933 = vunpack.c.l.b16 %v891
    %v934 = vunpack.c.h.b16 %v891
    %v935 = vunpack.c.l.b16 %v892
    %v936 = vunpack.c.h.b16 %v892
    %v937 = vunpack.c.l.b16 %v893
    %v938 = vunpack.c.h.b16 %v893
    %v939 = vunpack.c.l.b16 %v894
    %v940 = vunpack.c.h.b16 %v894
    %v941 = vunpack.c.l.b16 %v895
    %v942 = vunpack.c.h.b16 %v895
    %v943 = vunpack.c.l.b16 %v896
    %v944 = vunpack.c.h.b16 %v896
    %v945 = vpack.c.b16 %v919, %v917
    %v946 = vpack.c.b16 %v920, %v918
    %v947 = vpack.c.b16 %v923, %v921
    %v948 = vpack.c.b16 %v924, %v922
    %v949 = vpack.c.b16 %v927, %v925
    %v950 = vpack.c.b16 %v928, %v926
    %v951 = vpack.c.b16 %v931, %v929
    %v952 = vpack.c.b16 %v932, %v930
    %v953 = vpack.c.b16 %v935, %v933
    %v954 = vpack.c.b16 %v936, %v934
    %v955 = vpack.c.b16 %v939, %v937
    %v956 = vpack.c.b16 %v940, %v938
    %v957 = vpack.c.b16 %v943, %v941
    %v958 = vpack.c.b16 %v944, %v942
    %v972 = vsel %vm323, %v901, 0
    %v975 = vsel %vm323, %v902, 0
    %v978 = vsel %vm330, %v957, 0
    %v981 = vsel %vm330, %v958, 0
    %983 = vmatprep.subr.bf16.mxu0 %v946
    %984 = vmatpush1.bf16.msra.mxu0 %v945
    %985 = vmatprep.subr.bf16.mxu0 %v948
    %986 = vmatpush1.bf16.msra.mxu0 %v947
    %987 = vmatprep.subr.bf16.mxu0 %v950
    %988 = vmatpush1.bf16.msra.mxu0 %v949
    %989 = vmatprep.subr.bf16.mxu0 %v952
    %990 = vmatpush1.bf16.msra.mxu0 %v951
    %991 = vmatprep.subr.bf16.mxu0 %v954
    %992 = vmatpush1.bf16.msra.mxu0 %v953
    %993 = vmatprep.subr.bf16.mxu0 %v956
    %994 = vmatpush1.bf16.msra.mxu0 %v955
    %995 = vmatprep.subr.bf16.mxu0 %v981
    %996 = vmatpush1.bf16.msra.mxu0 %v978
    %997 = vmatprep.subr.bf16.mxu0 0
    %998 = vmatpush1.bf16.msra.mxu0 0
    %999 = vmatprep.subr.bf16.mxu0 0
    %1000 = vmatpush1.bf16.msra.mxu0 0
    %1001 = vmatprep.subr.bf16.mxu0 0
    %1002 = vmatpush1.bf16.msra.mxu0 0
    %1003 = vmatprep.subr.bf16.mxu0 0
    %1004 = vmatpush1.bf16.msra.mxu0 0
    %1005 = vmatprep.subr.bf16.mxu0 0
    %1006 = vmatpush1.bf16.msra.mxu0 0
    %1007 = vmatprep.subr.bf16.mxu0 0
    %1008 = vmatpush1.bf16.msra.mxu0 0
    %1009 = vmatprep.subr.bf16.mxu0 0
    %1010 = vmatpush1.bf16.msra.mxu0 0
    %1011 = vmatprep.subr.bf16.mxu0 0
    %1012 = vmatpush1.bf16.msra.mxu0 0
    %1013 = vmatprep.subr.bf16.mxu0 0
    %1014 = vmatpush1.bf16.msra.mxu0 0
    %1015 = vmatprep.mubr.bf16.mxu0 0
    %1016 = vmatmul.mubr.bf16.gmra.mrb[0].mxu0 %v972
    %v1017 = vpop.f32.mrb[0].mxu0
    %v1018 = vadd.f32 0.0, %v1017
    %v1019 = vpop.f32.mrb[0].mxu0
    %v1020 = vadd.f32 0.0, %v1019
    %v1021 = vpop.f32.mrb[0].mxu0
    %v1022 = vadd.f32 0.0, %v1021
    %v1023 = vpop.f32.mrb[0].mxu0
    %v1024 = vadd.f32 0.0, %v1023
    %1025 = vmatprep.mubr.bf16.mxu0 0
    %1026 = vmatmul.mubr.bf16.gmra.mrb[0].mxu0 %v975
    %v1027 = vpop.f32.mrb[0].mxu0
    %v1028 = vadd.f32 0.0, %v1027
    %v1029 = vpop.f32.mrb[0].mxu0
    %v1030 = vadd.f32 0.0, %v1029
    %v1031 = vpop.f32.mrb[0].mxu0
    %v1032 = vadd.f32 0.0, %v1031
    %v1033 = vpop.f32.mrb[0].mxu0
    %v1034 = vadd.f32 0.0, %v1033
    %1035 = vdwg.mxu0
    %v1036 = vadd.f32 %v801, %v1018
    %v1037 = vadd.f32 %v802, %v1020
    %v1038 = vadd.f32 %v803, %v1022
    %v1039 = vadd.f32 %v804, %v1024
    %v1040 = vadd.f32 %v805, %v1028
    %v1041 = vadd.f32 %v806, %v1030
    %v1042 = vadd.f32 %v807, %v1032
    %v1043 = vadd.f32 %v808, %v1034
    %v1044 = vld [vmem:[%s227 + $0x3] sm:$0xff]
    %v1045 = vld [vmem:[%s227 + $0xb] sm:$0xff]
    %v1046 = vld [vmem:[%s227 + $0x13] sm:$0xff]
    %v1047 = vld [vmem:[%s227 + $0x1b] sm:$0xff]
    %v1048 = vpack.c.bf16 %v1045, %v1044
    %v1049 = vpack.c.bf16 %v1047, %v1046
    %v1051 = vsel %vm323, %v1048, 0
    %v1054 = vsel %vm323, %v1049, 0
    %1056 = vmatprep.subr.bf16.mxu0 %v946
    %1057 = vmatpush1.bf16.msra.mxu0 %v945
    %1058 = vmatprep.subr.bf16.mxu0 %v948
    %1059 = vmatpush1.bf16.msra.mxu0 %v947
    %1060 = vmatprep.subr.bf16.mxu0 %v950
    %1061 = vmatpush1.bf16.msra.mxu0 %v949
    %1062 = vmatprep.subr.bf16.mxu0 %v952
    %1063 = vmatpush1.bf16.msra.mxu0 %v951
    %1064 = vmatprep.subr.bf16.mxu0 %v954
    %1065 = vmatpush1.bf16.msra.mxu0 %v953
    %1066 = vmatprep.subr.bf16.mxu0 %v956
    %1067 = vmatpush1.bf16.msra.mxu0 %v955
    %1068 = vmatprep.subr.bf16.mxu0 %v981
    %1069 = vmatpush1.bf16.msra.mxu0 %v978
    %1070 = vmatprep.subr.bf16.mxu0 0
    %1071 = vmatpush1.bf16.msra.mxu0 0
    %1072 = vmatprep.subr.bf16.mxu0 0
    %1073 = vmatpush1.bf16.msra.mxu0 0
    %1074 = vmatprep.subr.bf16.mxu0 0
    %1075 = vmatpush1.bf16.msra.mxu0 0
    %1076 = vmatprep.subr.bf16.mxu0 0
    %1077 = vmatpush1.bf16.msra.mxu0 0
    %1078 = vmatprep.subr.bf16.mxu0 0
    %1079 = vmatpush1.bf16.msra.mxu0 0
    %1080 = vmatprep.subr.bf16.mxu0 0
    %1081 = vmatpush1.bf16.msra.mxu0 0
    %1082 = vmatprep.subr.bf16.mxu0 0
    %1083 = vmatpush1.bf16.msra.mxu0 0
    %1084 = vmatprep.subr.bf16.mxu0 0
    %1085 = vmatpush1.bf16.msra.mxu0 0
    %1086 = vmatprep.subr.bf16.mxu0 0
    %1087 = vmatpush1.bf16.msra.mxu0 0
    %1088 = vmatprep.mubr.bf16.mxu0 0
    %1089 = vmatmul.mubr.bf16.gmra.mrb[0].mxu0 %v1051
    %v1090 = vpop.f32.mrb[0].mxu0
    %v1091 = vadd.f32 0.0, %v1090
    %v1092 = vpop.f32.mrb[0].mxu0
    %v1093 = vadd.f32 0.0, %v1092
    %v1094 = vpop.f32.mrb[0].mxu0
    %v1095 = vadd.f32 0.0, %v1094
    %v1096 = vpop.f32.mrb[0].mxu0
    %v1097 = vadd.f32 0.0, %v1096
    %1098 = vmatprep.mubr.bf16.mxu0 0
    %1099 = vmatmul.mubr.bf16.gmra.mrb[0].mxu0 %v1054
    %v1100 = vpop.f32.mrb[0].mxu0
    %v1101 = vadd.f32 0.0, %v1100
    %v1102 = vpop.f32.mrb[0].mxu0
    %v1103 = vadd.f32 0.0, %v1102
    %v1104 = vpop.f32.mrb[0].mxu0
    %v1105 = vadd.f32 0.0, %v1104
    %v1106 = vpop.f32.mrb[0].mxu0
    %v1107 = vadd.f32 0.0, %v1106
    %1108 = vdwg.mxu0
    %v1109 = vadd.f32 %v874, %v1091
    %v1110 = vadd.f32 %v875, %v1093
    %v1111 = vadd.f32 %v876, %v1095
    %v1112 = vadd.f32 %v877, %v1097
    %v1113 = vadd.f32 %v878, %v1101
    %v1114 = vadd.f32 %v879, %v1103
    %v1115 = vadd.f32 %v880, %v1105
    %v1116 = vadd.f32 %v881, %v1107
    %s1117 = scalar_lea.vmem %s1, 448
    %v1118 = vld [vmem:[%s1117] sm:$0xff]
    %v1119 = vld [vmem:[%s1117 + $0x8] sm:$0xff]
    %v1120 = vld [vmem:[%s1117 + $0x10] sm:$0xff]
    %v1121 = vld [vmem:[%s1117 + $0x18] sm:$0xff]
    %v1122 = vld [vmem:[%s1117 + $0x20] sm:$0xff]
    %v1123 = vld [vmem:[%s1117 + $0x28] sm:$0xff]
    %v1124 = vld [vmem:[%s1117 + $0x30] sm:$0xff]
    %v1125 = vld [vmem:[%s1117 + $0x38] sm:$0xff]
    %v1126 = vld [vmem:[%s1117 + $0x40] sm:$0xff]
    %v1127 = vld [vmem:[%s1117 + $0x48] sm:$0xff]
    %v1128 = vld [vmem:[%s1117 + $0x50] sm:$0xff]
    %v1129 = vld [vmem:[%s1117 + $0x58] sm:$0xff]
    %v1130 = vld [vmem:[%s1117 + $0x60] sm:$0xff]
    %v1131 = vld [vmem:[%s1117 + $0x68] sm:$0x33]
    %v1132 = vld [vmem:[%s0 + $0x4] sm:$0xff]
    %v1133 = vld [vmem:[%s0 + $0xc] sm:$0xff]
    %v1134 = vld [vmem:[%s0 + $0x14] sm:$0xff]
    %v1135 = vld [vmem:[%s0 + $0x1c] sm:$0xff]
    %v1136 = vpack.c.bf16 %v1133, %v1132
    %v1137 = vpack.c.bf16 %v1135, %v1134
    %v1152 = vunpack.c.l.b16 %v1118
    %v1153 = vunpack.c.h.b16 %v1118
    %v1154 = vunpack.c.l.b16 %v1119
    %v1155 = vunpack.c.h.b16 %v1119
    %v1156 = vunpack.c.l.b16 %v1120
    %v1157 = vunpack.c.h.b16 %v1120
    %v1158 = vunpack.c.l.b16 %v1121
    %v1159 = vunpack.c.h.b16 %v1121
    %v1160 = vunpack.c.l.b16 %v1122
    %v1161 = vunpack.c.h.b16 %v1122
    %v1162 = vunpack.c.l.b16 %v1123
    %v1163 = vunpack.c.h.b16 %v1123
    %v1164 = vunpack.c.l.b16 %v1124
    %v1165 = vunpack.c.h.b16 %v1124
    %v1166 = vunpack.c.l.b16 %v1125
    %v1167 = vunpack.c.h.b16 %v1125
    %v1168 = vunpack.c.l.b16 %v1126
    %v1169 = vunpack.c.h.b16 %v1126
    %v1170 = vunpack.c.l.b16 %v1127
    %v1171 = vunpack.c.h.b16 %v1127
    %v1172 = vunpack.c.l.b16 %v1128
    %v1173 = vunpack.c.h.b16 %v1128
    %v1174 = vunpack.c.l.b16 %v1129
    %v1175 = vunpack.c.h.b16 %v1129
    %v1176 = vunpack.c.l.b16 %v1130
    %v1177 = vunpack.c.h.b16 %v1130
    %v1178 = vunpack.c.l.b16 %v1131
    %v1179 = vunpack.c.h.b16 %v1131
    %v1180 = vpack.c.b16 %v1154, %v1152
    %v1181 = vpack.c.b16 %v1155, %v1153
    %v1182 = vpack.c.b16 %v1158, %v1156
    %v1183 = vpack.c.b16 %v1159, %v1157
    %v1184 = vpack.c.b16 %v1162, %v1160
    %v1185 = vpack.c.b16 %v1163, %v1161
    %v1186 = vpack.c.b16 %v1166, %v1164
    %v1187 = vpack.c.b16 %v1167, %v1165
    %v1188 = vpack.c.b16 %v1170, %v1168
    %v1189 = vpack.c.b16 %v1171, %v1169
    %v1190 = vpack.c.b16 %v1174, %v1172
    %v1191 = vpack.c.b16 %v1175, %v1173
    %v1192 = vpack.c.b16 %v1178, %v1176
    %v1193 = vpack.c.b16 %v1179, %v1177
    %v1207 = vsel %vm323, %v1136, 0
    %v1210 = vsel %vm323, %v1137, 0
    %v1213 = vsel %vm330, %v1192, 0
    %v1216 = vsel %vm330, %v1193, 0
    %1218 = vmatprep.subr.bf16.mxu0 %v1181
    %1219 = vmatpush1.bf16.msra.mxu0 %v1180
    %1220 = vmatprep.subr.bf16.mxu0 %v1183
    %1221 = vmatpush1.bf16.msra.mxu0 %v1182
    %1222 = vmatprep.subr.bf16.mxu0 %v1185
    %1223 = vmatpush1.bf16.msra.mxu0 %v1184
    %1224 = vmatprep.subr.bf16.mxu0 %v1187
    %1225 = vmatpush1.bf16.msra.mxu0 %v1186
    %1226 = vmatprep.subr.bf16.mxu0 %v1189
    %1227 = vmatpush1.bf16.msra.mxu0 %v1188
    %1228 = vmatprep.subr.bf16.mxu0 %v1191
    %1229 = vmatpush1.bf16.msra.mxu0 %v1190
    %1230 = vmatprep.subr.bf16.mxu0 %v1216
    %1231 = vmatpush1.bf16.msra.mxu0 %v1213
    %1232 = vmatprep.subr.bf16.mxu0 0
    %1233 = vmatpush1.bf16.msra.mxu0 0
    %1234 = vmatprep.subr.bf16.mxu0 0
    %1235 = vmatpush1.bf16.msra.mxu0 0
    %1236 = vmatprep.subr.bf16.mxu0 0
    %1237 = vmatpush1.bf16.msra.mxu0 0
    %1238 = vmatprep.subr.bf16.mxu0 0
    %1239 = vmatpush1.bf16.msra.mxu0 0
    %1240 = vmatprep.subr.bf16.mxu0 0
    %1241 = vmatpush1.bf16.msra.mxu0 0
    %1242 = vmatprep.subr.bf16.mxu0 0
    %1243 = vmatpush1.bf16.msra.mxu0 0
    %1244 = vmatprep.subr.bf16.mxu0 0
    %1245 = vmatpush1.bf16.msra.mxu0 0
    %1246 = vmatprep.subr.bf16.mxu0 0
    %1247 = vmatpush1.bf16.msra.mxu0 0
    %1248 = vmatprep.subr.bf16.mxu0 0
    %1249 = vmatpush1.bf16.msra.mxu0 0
    %1250 = vmatprep.mubr.bf16.mxu0 0
    %1251 = vmatmul.mubr.bf16.gmra.mrb[0].mxu0 %v1207
    %v1252 = vpop.f32.mrb[0].mxu0
    %v1253 = vadd.f32 0.0, %v1252
    %v1254 = vpop.f32.mrb[0].mxu0
    %v1255 = vadd.f32 0.0, %v1254
    %v1256 = vpop.f32.mrb[0].mxu0
    %v1257 = vadd.f32 0.0, %v1256
    %v1258 = vpop.f32.mrb[0].mxu0
    %v1259 = vadd.f32 0.0, %v1258
    %1260 = vmatprep.mubr.bf16.mxu0 0
    %1261 = vmatmul.mubr.bf16.gmra.mrb[0].mxu0 %v1210
    %v1262 = vpop.f32.mrb[0].mxu0
    %v1263 = vadd.f32 0.0, %v1262
    %v1264 = vpop.f32.mrb[0].mxu0
    %v1265 = vadd.f32 0.0, %v1264
    %v1266 = vpop.f32.mrb[0].mxu0
    %v1267 = vadd.f32 0.0, %v1266
    %v1268 = vpop.f32.mrb[0].mxu0
    %v1269 = vadd.f32 0.0, %v1268
    %1270 = vdwg.mxu0
    %v1271 = vadd.f32 %v1036, %v1253
    %v1272 = vadd.f32 %v1037, %v1255
    %v1273 = vadd.f32 %v1038, %v1257
    %v1274 = vadd.f32 %v1039, %v1259
    %v1275 = vadd.f32 %v1040, %v1263
    %v1276 = vadd.f32 %v1041, %v1265
    %v1277 = vadd.f32 %v1042, %v1267
    %v1278 = vadd.f32 %v1043, %v1269
    %v1279 = vld [vmem:[%s227 + $0x4] sm:$0xff]
    %v1280 = vld [vmem:[%s227 + $0xc] sm:$0xff]
    %v1281 = vld [vmem:[%s227 + $0x14] sm:$0xff]
    %v1282 = vld [vmem:[%s227 + $0x1c] sm:$0xff]
    %v1283 = vpack.c.bf16 %v1280, %v1279
    %v1284 = vpack.c.bf16 %v1282, %v1281
    %v1286 = vsel %vm323, %v1283, 0
    %v1289 = vsel %vm323, %v1284, 0
    %1291 = vmatprep.subr.bf16.mxu0 %v1181
    %1292 = vmatpush1.bf16.msra.mxu0 %v1180
    %1293 = vmatprep.subr.bf16.mxu0 %v1183
    %1294 = vmatpush1.bf16.msra.mxu0 %v1182
    %1295 = vmatprep.subr.bf16.mxu0 %v1185
    %1296 = vmatpush1.bf16.msra.mxu0 %v1184
    %1297 = vmatprep.subr.bf16.mxu0 %v1187
    %1298 = vmatpush1.bf16.msra.mxu0 %v1186
    %1299 = vmatprep.subr.bf16.mxu0 %v1189
    %1300 = vmatpush1.bf16.msra.mxu0 %v1188
    %1301 = vmatprep.subr.bf16.mxu0 %v1191
    %1302 = vmatpush1.bf16.msra.mxu0 %v1190
    %1303 = vmatprep.subr.bf16.mxu0 %v1216
    %1304 = vmatpush1.bf16.msra.mxu0 %v1213
    %1305 = vmatprep.subr.bf16.mxu0 0
    %1306 = vmatpush1.bf16.msra.mxu0 0
    %1307 = vmatprep.subr.bf16.mxu0 0
    %1308 = vmatpush1.bf16.msra.mxu0 0
    %1309 = vmatprep.subr.bf16.mxu0 0
    %1310 = vmatpush1.bf16.msra.mxu0 0
    %1311 = vmatprep.subr.bf16.mxu0 0
    %1312 = vmatpush1.bf16.msra.mxu0 0
    %1313 = vmatprep.subr.bf16.mxu0 0
    %1314 = vmatpush1.bf16.msra.mxu0 0
    %1315 = vmatprep.subr.bf16.mxu0 0
    %1316 = vmatpush1.bf16.msra.mxu0 0
    %1317 = vmatprep.subr.bf16.mxu0 0
    %1318 = vmatpush1.bf16.msra.mxu0 0
    %1319 = vmatprep.subr.bf16.mxu0 0
    %1320 = vmatpush1.bf16.msra.mxu0 0
    %1321 = vmatprep.subr.bf16.mxu0 0
    %1322 = vmatpush1.bf16.msra.mxu0 0
    %1323 = vmatprep.mubr.bf16.mxu0 0
    %1324 = vmatmul.mubr.bf16.gmra.mrb[0].mxu0 %v1286
    %v1325 = vpop.f32.mrb[0].mxu0
    %v1326 = vadd.f32 0.0, %v1325
    %v1327 = vpop.f32.mrb[0].mxu0
    %v1328 = vadd.f32 0.0, %v1327
    %v1329 = vpop.f32.mrb[0].mxu0
    %v1330 = vadd.f32 0.0, %v1329
    %v1331 = vpop.f32.mrb[0].mxu0
    %v1332 = vadd.f32 0.0, %v1331
    %1333 = vmatprep.mubr.bf16.mxu0 0
    %1334 = vmatmul.mubr.bf16.gmra.mrb[0].mxu0 %v1289
    %v1335 = vpop.f32.mrb[0].mxu0
    %v1336 = vadd.f32 0.0, %v1335
    %v1337 = vpop.f32.mrb[0].mxu0
    %v1338 = vadd.f32 0.0, %v1337
    %v1339 = vpop.f32.mrb[0].mxu0
    %v1340 = vadd.f32 0.0, %v1339
    %v1341 = vpop.f32.mrb[0].mxu0
    %v1342 = vadd.f32 0.0, %v1341
    %1343 = vdwg.mxu0
    %v1344 = vadd.f32 %v1109, %v1326
    %v1345 = vadd.f32 %v1110, %v1328
    %v1346 = vadd.f32 %v1111, %v1330
    %v1347 = vadd.f32 %v1112, %v1332
    %v1348 = vadd.f32 %v1113, %v1336
    %v1349 = vadd.f32 %v1114, %v1338
    %v1350 = vadd.f32 %v1115, %v1340
    %v1351 = vadd.f32 %v1116, %v1342
    %v1353 = vlaneseq
    %v1354 = vshrl.u32 %v1353, 7
    %v1355 = vsub.s32 0, %v1354
    %v1356 = vrot.slane %v102, %v1355
    %v1357 = vlaneseq
    %v1358 = vshrl.u32 %v1357, 7
    %v1359 = vsub.s32 1, %v1358
    %v1360 = vrot.slane %v102, %v1359
    %v1363 = vadd.f32 %v1271, %v1356
    %v1364 = vadd.f32 %v1272, %v1360
    %v1365 = vadd.f32 %v1273, %v1356
    %v1366 = vadd.f32 %v1274, %v1360
    %v1367 = vadd.f32 %v1275, %v1356
    %v1368 = vadd.f32 %v1276, %v1360
    %v1369 = vadd.f32 %v1277, %v1356
    %v1370 = vadd.f32 %v1278, %v1360
    %1371 = vst [vmem:[#allocation2] sm:$0xff] %v1363
    %1372 = vst [vmem:[#allocation2 + $0x8] sm:$0xff] %v1364
    %1373 = vst [vmem:[#allocation2 + $0x10] sm:$0xff] %v1365
    %1374 = vst [vmem:[#allocation2 + $0x18] sm:$0xff] %v1366
    %1375 = vst [vmem:[#allocation2 + $0x20] sm:$0xff] %v1367
    %1376 = vst [vmem:[#allocation2 + $0x28] sm:$0xff] %v1368
    %1377 = vst [vmem:[#allocation2 + $0x30] sm:$0xff] %v1369
    %1378 = vst [vmem:[#allocation2 + $0x38] sm:$0xff] %v1370
    %v1379 = vadd.f32 %v1363, %v1365
    %v1380 = vadd.f32 %v1379, %v1367
    %v1381 = vadd.f32 %v1380, %v1369
    %v1382 = vrot.slane %v1381, 4
    %v1383 = vadd.f32 %v1381, %v1382
    %v1384 = vrot.slane %v1383, 2
    %v1385 = vadd.f32 %v1383, %v1384
    %v1386 = vrot.slane %v1385, 1
    %v1387 = vadd.f32 %v1385, %v1386
    %v1388 = vadd.f32 %v1364, %v1366
    %v1389 = vadd.f32 %v1388, %v1368
    %v1390 = vadd.f32 %v1389, %v1370
    %v1391 = vrot.slane %v1390, 4
    %v1392 = vadd.f32 %v1390, %v1391
    %v1393 = vrot.slane %v1392, 2
    %v1394 = vadd.f32 %v1392, %v1393
    %v1395 = vrot.slane %v1394, 1
    %v1396 = vadd.f32 %v1394, %v1395
    %v1397 = vmul.f32 %v1363, %v1363
    %v1398 = vmul.f32 %v1364, %v1364
    %v1399 = vmul.f32 %v1365, %v1365
    %v1400 = vmul.f32 %v1366, %v1366
    %v1401 = vmul.f32 %v1367, %v1367
    %v1402 = vmul.f32 %v1368, %v1368
    %v1403 = vmul.f32 %v1369, %v1369
    %v1404 = vmul.f32 %v1370, %v1370
    %v1405 = vadd.f32 %v1397, %v1399
    %v1406 = vadd.f32 %v1405, %v1401
    %v1407 = vadd.f32 %v1406, %v1403
    %v1408 = vrot.slane %v1407, 4
    %v1409 = vadd.f32 %v1407, %v1408
    %v1410 = vrot.slane %v1409, 2
    %v1411 = vadd.f32 %v1409, %v1410
    %v1412 = vrot.slane %v1411, 1
    %v1413 = vadd.f32 %v1411, %v1412
    %v1414 = vadd.f32 %v1398, %v1400
    %v1415 = vadd.f32 %v1414, %v1402
    %v1416 = vadd.f32 %v1415, %v1404
    %v1417 = vrot.slane %v1416, 4
    %v1418 = vadd.f32 %v1416, %v1417
    %v1419 = vrot.slane %v1418, 2
    %v1420 = vadd.f32 %v1418, %v1419
    %v1421 = vrot.slane %v1420, 1
    %v1422 = vadd.f32 %v1420, %v1421
    %v1423 = vadd.f32 %v1344, %v1356
    %v1424 = vadd.f32 %v1345, %v1360
    %v1425 = vadd.f32 %v1346, %v1356
    %v1426 = vadd.f32 %v1347, %v1360
    %v1427 = vadd.f32 %v1348, %v1356
    %v1428 = vadd.f32 %v1349, %v1360
    %v1429 = vadd.f32 %v1350, %v1356
    %v1430 = vadd.f32 %v1351, %v1360
    %s1431 = scalar_lea.vmem [#allocation2], 64
    %1432 = vst [vmem:[%s1431] sm:$0xff] %v1423
    %1433 = vst [vmem:[%s1431 + $0x8] sm:$0xff] %v1424
    %1434 = vst [vmem:[%s1431 + $0x10] sm:$0xff] %v1425
    %1435 = vst [vmem:[%s1431 + $0x18] sm:$0xff] %v1426
    %1436 = vst [vmem:[%s1431 + $0x20] sm:$0xff] %v1427
    %1437 = vst [vmem:[%s1431 + $0x28] sm:$0xff] %v1428
    %1438 = vst [vmem:[%s1431 + $0x30] sm:$0xff] %v1429
    %1439 = vst [vmem:[%s1431 + $0x38] sm:$0xff] %v1430
    %v1440 = vadd.f32 %v1423, %v1425
    %v1441 = vadd.f32 %v1440, %v1427
    %v1442 = vadd.f32 %v1441, %v1429
    %v1443 = vrot.slane %v1442, 4
    %v1444 = vadd.f32 %v1442, %v1443
    %v1445 = vrot.slane %v1444, 2
    %v1446 = vadd.f32 %v1444, %v1445
    %v1447 = vrot.slane %v1446, 1
    %v1448 = vadd.f32 %v1446, %v1447
    %v1449 = vadd.f32 %v1424, %v1426
    %v1450 = vadd.f32 %v1449, %v1428
    %v1451 = vadd.f32 %v1450, %v1430
    %v1452 = vrot.slane %v1451, 4
    %v1453 = vadd.f32 %v1451, %v1452
    %v1454 = vrot.slane %v1453, 2
    %v1455 = vadd.f32 %v1453, %v1454
    %v1456 = vrot.slane %v1455, 1
    %v1457 = vadd.f32 %v1455, %v1456
    %v1458 = vmul.f32 %v1423, %v1423
    %v1459 = vmul.f32 %v1424, %v1424
    %v1460 = vmul.f32 %v1425, %v1425
    %v1461 = vmul.f32 %v1426, %v1426
    %v1462 = vmul.f32 %v1427, %v1427
    %v1463 = vmul.f32 %v1428, %v1428
    %v1464 = vmul.f32 %v1429, %v1429
    %v1465 = vmul.f32 %v1430, %v1430
    %v1466 = vadd.f32 %v1458, %v1460
    %v1467 = vadd.f32 %v1466, %v1462
    %v1468 = vadd.f32 %v1467, %v1464
    %v1469 = vrot.slane %v1468, 4
    %v1470 = vadd.f32 %v1468, %v1469
    %v1471 = vrot.slane %v1470, 2
    %v1472 = vadd.f32 %v1470, %v1471
    %v1473 = vrot.slane %v1472, 1
    %v1474 = vadd.f32 %v1472, %v1473
    %v1475 = vadd.f32 %v1459, %v1461
    %v1476 = vadd.f32 %v1475, %v1463
    %v1477 = vadd.f32 %v1476, %v1465
    %v1478 = vrot.slane %v1477, 4
    %v1479 = vadd.f32 %v1477, %v1478
    %v1480 = vrot.slane %v1479, 2
    %v1481 = vadd.f32 %v1479, %v1480
    %v1482 = vrot.slane %v1481, 1
    %v1483 = vadd.f32 %v1481, %v1482
    %vm1484 = vcmask 1040384
    %v1485 = vsel %vm1484, %v1387, %v1448
    %v1486 = vsel %vm1484, %v1396, %v1457
    %vm1487 = vcmask 1041408
    %v1488 = vsel %vm1487, %v1485, %v1413
    %v1489 = vsel %vm1487, %v1486, %v1422
    %vm1490 = vcmask 1042432
    %v1491 = vsel %vm1490, %v1488, %v1474
    %v1492 = vsel %vm1490, %v1489, %v1483
    %1493 = vmatprep.subr.mxu0 0.0
    %1494 = vmatpush1.msra.mxu0 %v105
    %1495 = vmatprep.subr.mxu0 0.0
    %1496 = vmatpush1.msra.mxu0 %v106
    %1497 = vmatprep.subr.mxu0 0.0
    %1498 = vmatpush1.msra.mxu0 %v107
    %1499 = vmatprep.subr.mxu0 0.0
    %1500 = vmatpush1.msra.mxu0 %v108
    %1501 = vmatprep.subr.mxu0 0.0
    %1502 = vmatpush1.msra.mxu0 %v109
    %1503 = vmatprep.subr.mxu0 0.0
    %1504 = vmatpush1.msra.mxu0 %v110
    %1505 = vmatprep.subr.mxu0 0.0
    %1506 = vmatpush1.msra.mxu0 %v111
    %1507 = vmatprep.subr.mxu0 0.0
    %1508 = vmatpush1.msra.mxu0 %v112
    %1509 = vmatprep.subr.mxu0 0.0
    %1510 = vmatpush1.msra.mxu0 %v113
    %1511 = vmatprep.subr.mxu0 0.0
    %1512 = vmatpush1.msra.mxu0 %v114
    %1513 = vmatprep.subr.mxu0 0.0
    %1514 = vmatpush1.msra.mxu0 %v115
    %1515 = vmatprep.subr.mxu0 0.0
    %1516 = vmatpush1.msra.mxu0 %v116
    %1517 = vmatprep.subr.mxu0 0.0
    %1518 = vmatpush1.msra.mxu0 %v117
    %1519 = vmatprep.subr.mxu0 0.0
    %1520 = vmatpush1.msra.mxu0 %v118
    %1521 = vmatprep.subr.mxu0 0.0
    %1522 = vmatpush1.msra.mxu0 %v119
    %1523 = vmatprep.subr.mxu0 0.0
    %1524 = vmatpush1.msra.mxu0 %v120
    %1525 = vmatprep.subr.mxu0 0.0
    %1526 = vmatpush1.msra.mxu0 %v121
    %1527 = vmatprep.subr.mxu0 0.0
    %1528 = vmatpush1.msra.mxu0 %v122
    %1529 = vmatprep.subr.mxu0 0.0
    %1530 = vmatpush1.msra.mxu0 %v123
    %1531 = vmatprep.subr.mxu0 0.0
    %1532 = vmatpush1.msra.mxu0 %v124
    %1533 = vmatprep.subr.mxu0 0.0
    %1534 = vmatpush1.msra.mxu0 %v125
    %1535 = vmatprep.subr.mxu0 0.0
    %1536 = vmatpush1.msra.mxu0 %v126
    %1537 = vmatprep.subr.mxu0 0.0
    %1538 = vmatpush1.msra.mxu0 %v127
    %1539 = vmatprep.subr.mxu0 0.0
    %1540 = vmatpush1.msra.mxu0 %v128
    %1541 = vmatprep.subr.mxu0 0.0
    %1542 = vmatpush1.msra.mxu0 %v129
    %1543 = vmatprep.subr.mxu0 0.0
    %1544 = vmatpush1.msra.mxu0 %v130
    %1545 = vmatprep.subr.mxu0 0.0
    %1546 = vmatpush1.msra.mxu0 %v131
    %1547 = vmatprep.subr.mxu0 0.0
    %1548 = vmatpush1.msra.mxu0 %v132
    %1549 = vmatprep.subr.mxu0 0.0
    %1550 = vmatpush1.msra.mxu0 %v133
    %1551 = vmatprep.subr.mxu0 0.0
    %1552 = vmatpush1.msra.mxu0 %v134
    %1553 = vmatprep.subr.mxu0 0.0
    %1554 = vmatpush1.msra.mxu0 %v135
    %1555 = vmatprep.subr.mxu0 0.0
    %1556 = vmatpush1.msra.mxu0 %v136
    %1557 = vmatprep.mubr.f32.mxu0 %v1492
    %1558 = vmatmul.mubr.f32.gmra.mrb[0].mxu0 %v1491
    %v1559 = vpop.f32.mrb[0].mxu0
    %v1560 = vadd.f32 0.0, %v1559
    %v1561 = vpop.f32.mrb[0].mxu0
    %1562 = vdwg.mxu0
    %vm1563 = vcmask 58368
    %v1564 = vsel %vm1563, %v1560, 0.0
    %v1565 = vrot.slane %v1564, 4
    %v1566 = vadd.f32 %v1564, %v1565
    %v1567 = vrot.slane %v1566, 2
    %v1568 = vadd.f32 %v1566, %v1567
    %v1569 = vrot.slane %v1568, 1
    %v1570 = vadd.f32 %v1568, %v1569
    %v1571 = vmul.f32 %v1570, 0.00048828125
    %v1573 = vrot.slane %v1560, 2
    %v1575 = vsel %vm1563, %v1573, 0.0
    %v1576 = vrot.slane %v1575, 4
    %v1577 = vadd.f32 %v1575, %v1576
    %v1578 = vrot.slane %v1577, 2
    %v1579 = vadd.f32 %v1577, %v1578
    %v1580 = vrot.slane %v1579, 1
    %v1581 = vadd.f32 %v1579, %v1580
    %v1582 = vmul.f32 %v1581, 0.00048828125
    %v1583 = vmul.f32 %v1571, %v1571
    %v1584 = vsub.f32 %v1582, %v1583
    %v1585 = vmax.f32 %v1584, 0.0
    %v1586 = vadd.f32 %v1585, 1e-05
    %v1587 = vrsqrt.pop %v1586
    %v1588 = vmul.f32 %v103, %v1587
    %v1589 = vmul.f32 %v1571, %v1588
    %v1590 = vsub.f32 %v104, %v1589
    %vm1591 = vcmask 64512
    %v1593 = vsel %vm1591, %v1588, 0
    %1595 = vmatprep.subr.mxu0 %v138
    %1596 = vmatpush1.msra.mxu0 %v137
    %1597 = vmatprep.subr.mxu0 0.0
    %1598 = vmatpush1.msra.mxu0 0.0
    %1599 = vmatprep.subr.mxu0 0.0
    %1600 = vmatpush1.msra.mxu0 0.0
    %1601 = vmatprep.subr.mxu0 0.0
    %1602 = vmatpush1.msra.mxu0 0.0
    %1603 = vmatprep.subr.mxu0 0.0
    %1604 = vmatpush1.msra.mxu0 0.0
    %1605 = vmatprep.subr.mxu0 0.0
    %1606 = vmatpush1.msra.mxu0 0.0
    %1607 = vmatprep.subr.mxu0 0.0
    %1608 = vmatpush1.msra.mxu0 0.0
    %1609 = vmatprep.subr.mxu0 0.0
    %1610 = vmatpush1.msra.mxu0 0.0
    %1611 = vmatprep.subr.mxu0 0.0
    %1612 = vmatpush1.msra.mxu0 0.0
    %1613 = vmatprep.subr.mxu0 0.0
    %1614 = vmatpush1.msra.mxu0 0.0
    %1615 = vmatprep.subr.mxu0 0.0
    %1616 = vmatpush1.msra.mxu0 0.0
    %1617 = vmatprep.subr.mxu0 0.0
    %1618 = vmatpush1.msra.mxu0 0.0
    %1619 = vmatprep.subr.mxu0 0.0
    %1620 = vmatpush1.msra.mxu0 0.0
    %1621 = vmatprep.subr.mxu0 0.0
    %1622 = vmatpush1.msra.mxu0 0.0
    %1623 = vmatprep.subr.mxu0 0.0
    %1624 = vmatpush1.msra.mxu0 0.0
    %1625 = vmatprep.subr.mxu0 0.0
    %1626 = vmatpush1.msra.mxu0 0.0
    %1627 = vmatprep.subr.mxu0 0.0
    %1628 = vmatpush1.msra.mxu0 0.0
    %1629 = vmatprep.subr.mxu0 0.0
    %1630 = vmatpush1.msra.mxu0 0.0
    %1631 = vmatprep.subr.mxu0 0.0
    %1632 = vmatpush1.msra.mxu0 0.0
    %1633 = vmatprep.subr.mxu0 0.0
    %1634 = vmatpush1.msra.mxu0 0.0
    %1635 = vmatprep.subr.mxu0 0.0
    %1636 = vmatpush1.msra.mxu0 0.0
    %1637 = vmatprep.subr.mxu0 0.0
    %1638 = vmatpush1.msra.mxu0 0.0
    %1639 = vmatprep.subr.mxu0 0.0
    %1640 = vmatpush1.msra.mxu0 0.0
    %1641 = vmatprep.subr.mxu0 0.0
    %1642 = vmatpush1.msra.mxu0 0.0
    %1643 = vmatprep.subr.mxu0 0.0
    %1644 = vmatpush1.msra.mxu0 0.0
    %1645 = vmatprep.subr.mxu0 0.0
    %1646 = vmatpush1.msra.mxu0 0.0
    %1647 = vmatprep.subr.mxu0 0.0
    %1648 = vmatpush1.msra.mxu0 0.0
    %1649 = vmatprep.subr.mxu0 0.0
    %1650 = vmatpush1.msra.mxu0 0.0
    %1651 = vmatprep.subr.mxu0 0.0
    %1652 = vmatpush1.msra.mxu0 0.0
    %1653 = vmatprep.subr.mxu0 0.0
    %1654 = vmatpush1.msra.mxu0 0.0
    %1655 = vmatprep.subr.mxu0 0.0
    %1656 = vmatpush1.msra.mxu0 0.0
    %1657 = vmatprep.subr.mxu0 0.0
    %1658 = vmatpush1.msra.mxu0 0.0
    %1659 = vmatprep.mubr.f32.mxu0 0.0
    %1660 = vmatmul.mubr.f32.gmra.mrb[0].mxu0 %v1593
    %v1661 = vpop.f32.mrb[0].mxu0
    %v1662 = vadd.f32 0.0, %v1661
    %v1663 = vpop.f32.mrb[0].mxu0
    %v1664 = vadd.f32 0.0, %v1663
    %1665 = vdwg.mxu0
    %v1667 = vsel %vm1591, %v1590, 0
    %1669 = vmatprep.subr.mxu0 %v138
    %1670 = vmatpush1.msra.mxu0 %v137
    %1671 = vmatprep.subr.mxu0 0.0
    %1672 = vmatpush1.msra.mxu0 0.0
    %1673 = vmatprep.subr.mxu0 0.0
    %1674 = vmatpush1.msra.mxu0 0.0
    %1675 = vmatprep.subr.mxu0 0.0
    %1676 = vmatpush1.msra.mxu0 0.0
    %1677 = vmatprep.subr.mxu0 0.0
    %1678 = vmatpush1.msra.mxu0 0.0
    %1679 = vmatprep.subr.mxu0 0.0
    %1680 = vmatpush1.msra.mxu0 0.0
    %1681 = vmatprep.subr.mxu0 0.0
    %1682 = vmatpush1.msra.mxu0 0.0
    %1683 = vmatprep.subr.mxu0 0.0
    %1684 = vmatpush1.msra.mxu0 0.0
    %1685 = vmatprep.subr.mxu0 0.0
    %1686 = vmatpush1.msra.mxu0 0.0
    %1687 = vmatprep.subr.mxu0 0.0
    %1688 = vmatpush1.msra.mxu0 0.0
    %1689 = vmatprep.subr.mxu0 0.0
    %1690 = vmatpush1.msra.mxu0 0.0
    %1691 = vmatprep.subr.mxu0 0.0
    %1692 = vmatpush1.msra.mxu0 0.0
    %1693 = vmatprep.subr.mxu0 0.0
    %1694 = vmatpush1.msra.mxu0 0.0
    %1695 = vmatprep.subr.mxu0 0.0
    %1696 = vmatpush1.msra.mxu0 0.0
    %1697 = vmatprep.subr.mxu0 0.0
    %1698 = vmatpush1.msra.mxu0 0.0
    %1699 = vmatprep.subr.mxu0 0.0
    %1700 = vmatpush1.msra.mxu0 0.0
    %1701 = vmatprep.subr.mxu0 0.0
    %1702 = vmatpush1.msra.mxu0 0.0
    %1703 = vmatprep.subr.mxu0 0.0
    %1704 = vmatpush1.msra.mxu0 0.0
    %1705 = vmatprep.subr.mxu0 0.0
    %1706 = vmatpush1.msra.mxu0 0.0
    %1707 = vmatprep.subr.mxu0 0.0
    %1708 = vmatpush1.msra.mxu0 0.0
    %1709 = vmatprep.subr.mxu0 0.0
    %1710 = vmatpush1.msra.mxu0 0.0
    %1711 = vmatprep.subr.mxu0 0.0
    %1712 = vmatpush1.msra.mxu0 0.0
    %1713 = vmatprep.subr.mxu0 0.0
    %1714 = vmatpush1.msra.mxu0 0.0
    %1715 = vmatprep.subr.mxu0 0.0
    %1716 = vmatpush1.msra.mxu0 0.0
    %1717 = vmatprep.subr.mxu0 0.0
    %1718 = vmatpush1.msra.mxu0 0.0
    %1719 = vmatprep.subr.mxu0 0.0
    %1720 = vmatpush1.msra.mxu0 0.0
    %1721 = vmatprep.subr.mxu0 0.0
    %1722 = vmatpush1.msra.mxu0 0.0
    %1723 = vmatprep.subr.mxu0 0.0
    %1724 = vmatpush1.msra.mxu0 0.0
    %1725 = vmatprep.subr.mxu0 0.0
    %1726 = vmatpush1.msra.mxu0 0.0
    %1727 = vmatprep.subr.mxu0 0.0
    %1728 = vmatpush1.msra.mxu0 0.0
    %1729 = vmatprep.subr.mxu0 0.0
    %1730 = vmatpush1.msra.mxu0 0.0
    %1731 = vmatprep.subr.mxu0 0.0
    %1732 = vmatpush1.msra.mxu0 0.0
    %1733 = vmatprep.mubr.f32.mxu0 0.0
    %1734 = vmatmul.mubr.f32.gmra.mrb[0].mxu0 %v1667
    %v1735 = vpop.f32.mrb[0].mxu0
    %v1736 = vadd.f32 0.0, %v1735
    %v1737 = vpop.f32.mrb[0].mxu0
    %v1738 = vadd.f32 0.0, %v1737
    %1739 = vdwg.mxu0
    %v1740 = vld [vmem:[#allocation2] sm:$0xff]
    %v1741 = vld [vmem:[#allocation2 + $0x8] sm:$0xff]
    %v1742 = vld [vmem:[#allocation2 + $0x10] sm:$0xff]
    %v1743 = vld [vmem:[#allocation2 + $0x18] sm:$0xff]
    %v1744 = vld [vmem:[#allocation2 + $0x20] sm:$0xff]
    %v1745 = vld [vmem:[#allocation2 + $0x28] sm:$0xff]
    %v1746 = vld [vmem:[#allocation2 + $0x30] sm:$0xff]
    %v1747 = vld [vmem:[#allocation2 + $0x38] sm:$0xff]
    %v1748 = vlaneseq
    %v1749 = vshrl.u32 %v1748, 7
    %v1750 = vsub.s32 0, %v1749
    %v1751 = vrot.slane %v1662, %v1750
    %v1752 = vlaneseq
    %v1753 = vshrl.u32 %v1752, 7
    %v1754 = vsub.s32 0, %v1753
    %v1755 = vrot.slane %v1664, %v1754
    %v1756 = vmul.f32 %v1740, %v1751
    %v1757 = vmul.f32 %v1741, %v1755
    %v1758 = vmul.f32 %v1742, %v1751
    %v1759 = vmul.f32 %v1743, %v1755
    %v1760 = vmul.f32 %v1744, %v1751
    %v1761 = vmul.f32 %v1745, %v1755
    %v1762 = vmul.f32 %v1746, %v1751
    %v1763 = vmul.f32 %v1747, %v1755
    %v1764 = vlaneseq
    %v1765 = vshrl.u32 %v1764, 7
    %v1766 = vsub.s32 0, %v1765
    %v1767 = vrot.slane %v1736, %v1766
    %v1768 = vlaneseq
    %v1769 = vshrl.u32 %v1768, 7
    %v1770 = vsub.s32 0, %v1769
    %v1771 = vrot.slane %v1738, %v1770
    %v1772 = vadd.f32 %v1756, %v1767
    %v1773 = vadd.f32 %v1757, %v1771
    %v1774 = vadd.f32 %v1758, %v1767
    %v1775 = vadd.f32 %v1759, %v1771
    %v1776 = vadd.f32 %v1760, %v1767
    %v1777 = vadd.f32 %v1761, %v1771
    %v1778 = vadd.f32 %v1762, %v1767
    %v1779 = vadd.f32 %v1763, %v1771
    %v1780 = vmax.f32 %v1772, 0.0
    %v1781 = vmax.f32 %v1773, 0.0
    %v1782 = vmax.f32 %v1774, 0.0
    %v1783 = vmax.f32 %v1775, 0.0
    %v1784 = vmax.f32 %v1776, 0.0
    %v1785 = vmax.f32 %v1777, 0.0
    %v1786 = vmax.f32 %v1778, 0.0
    %v1787 = vmax.f32 %v1779, 0.0
    %v1788 = vpack.c.bf16 %v1782, %v1780
    %v1789 = vpack.c.bf16 %v1783, %v1781
    %v1790 = vpack.c.bf16 %v1786, %v1784
    %v1791 = vpack.c.bf16 %v1787, %v1785
    %v1824 = vunpack.c.l.b16 %v139
    %v1825 = vunpack.c.h.b16 %v139
    %v1826 = vunpack.c.l.b16 %v140
    %v1827 = vunpack.c.h.b16 %v140
    %v1828 = vunpack.c.l.b16 %v141
    %v1829 = vunpack.c.h.b16 %v141
    %v1830 = vunpack.c.l.b16 %v142
    %v1831 = vunpack.c.h.b16 %v142
    %v1832 = vunpack.c.l.b16 %v143
    %v1833 = vunpack.c.h.b16 %v143
    %v1834 = vunpack.c.l.b16 %v144
    %v1835 = vunpack.c.h.b16 %v144
    %v1836 = vunpack.c.l.b16 %v145
    %v1837 = vunpack.c.h.b16 %v145
    %v1838 = vunpack.c.l.b16 %v146
    %v1839 = vunpack.c.h.b16 %v146
    %v1840 = vunpack.c.l.b16 %v147
    %v1841 = vunpack.c.h.b16 %v147
    %v1842 = vunpack.c.l.b16 %v148
    %v1843 = vunpack.c.h.b16 %v148
    %v1844 = vunpack.c.l.b16 %v149
    %v1845 = vunpack.c.h.b16 %v149
    %v1846 = vunpack.c.l.b16 %v150
    %v1847 = vunpack.c.h.b16 %v150
    %v1848 = vunpack.c.l.b16 %v151
    %v1849 = vunpack.c.h.b16 %v151
    %v1850 = vunpack.c.l.b16 %v152
    %v1851 = vunpack.c.h.b16 %v152
    %v1852 = vunpack.c.l.b16 %v153
    %v1853 = vunpack.c.h.b16 %v153
    %v1854 = vunpack.c.l.b16 %v154
    %v1855 = vunpack.c.h.b16 %v154
    %v1856 = vunpack.c.l.b16 %v155
    %v1857 = vunpack.c.h.b16 %v155
    %v1858 = vunpack.c.l.b16 %v156
    %v1859 = vunpack.c.h.b16 %v156
    %v1860 = vunpack.c.l.b16 %v157
    %v1861 = vunpack.c.h.b16 %v157
    %v1862 = vunpack.c.l.b16 %v158
    %v1863 = vunpack.c.h.b16 %v158
    %v1864 = vunpack.c.l.b16 %v159
    %v1865 = vunpack.c.h.b16 %v159
    %v1866 = vunpack.c.l.b16 %v160
    %v1867 = vunpack.c.h.b16 %v160
    %v1868 = vunpack.c.l.b16 %v161
    %v1869 = vunpack.c.h.b16 %v161
    %v1870 = vunpack.c.l.b16 %v162
    %v1871 = vunpack.c.h.b16 %v162
    %v1872 = vunpack.c.l.b16 %v163
    %v1873 = vunpack.c.h.b16 %v163
    %v1874 = vunpack.c.l.b16 %v164
    %v1875 = vunpack.c.h.b16 %v164
    %v1876 = vunpack.c.l.b16 %v165
    %v1877 = vunpack.c.h.b16 %v165
    %v1878 = vunpack.c.l.b16 %v166
    %v1879 = vunpack.c.h.b16 %v166
    %v1880 = vunpack.c.l.b16 %v167
    %v1881 = vunpack.c.h.b16 %v167
    %v1882 = vunpack.c.l.b16 %v168
    %v1883 = vunpack.c.h.b16 %v168
    %v1884 = vunpack.c.l.b16 %v169
    %v1885 = vunpack.c.h.b16 %v169
    %v1886 = vunpack.c.l.b16 %v170
    %v1887 = vunpack.c.h.b16 %v170
    %v1888 = vpack.c.b16 %v1826, %v1824
    %v1889 = vpack.c.b16 %v1827, %v1825
    %v1890 = vpack.c.b16 %v1830, %v1828
    %v1891 = vpack.c.b16 %v1831, %v1829
    %v1892 = vpack.c.b16 %v1834, %v1832
    %v1893 = vpack.c.b16 %v1835, %v1833
    %v1894 = vpack.c.b16 %v1838, %v1836
    %v1895 = vpack.c.b16 %v1839, %v1837
    %v1896 = vpack.c.b16 %v1842, %v1840
    %v1897 = vpack.c.b16 %v1843, %v1841
    %v1898 = vpack.c.b16 %v1846, %v1844
    %v1899 = vpack.c.b16 %v1847, %v1845
    %v1900 = vpack.c.b16 %v1850, %v1848
    %v1901 = vpack.c.b16 %v1851, %v1849
    %v1902 = vpack.c.b16 %v1854, %v1852
    %v1903 = vpack.c.b16 %v1855, %v1853
    %v1904 = vpack.c.b16 %v1858, %v1856
    %v1905 = vpack.c.b16 %v1859, %v1857
    %v1906 = vpack.c.b16 %v1862, %v1860
    %v1907 = vpack.c.b16 %v1863, %v1861
    %v1908 = vpack.c.b16 %v1866, %v1864
    %v1909 = vpack.c.b16 %v1867, %v1865
    %v1910 = vpack.c.b16 %v1870, %v1868
    %v1911 = vpack.c.b16 %v1871, %v1869
    %v1912 = vpack.c.b16 %v1874, %v1872
    %v1913 = vpack.c.b16 %v1875, %v1873
    %v1914 = vpack.c.b16 %v1878, %v1876
    %v1915 = vpack.c.b16 %v1879, %v1877
    %v1916 = vpack.c.b16 %v1882, %v1880
    %v1917 = vpack.c.b16 %v1883, %v1881
    %v1918 = vpack.c.b16 %v1886, %v1884
    %v1919 = vpack.c.b16 %v1887, %v1885
    %1952 = vmatprep.subr.bf16.mxu0 %v1889
    %1953 = vmatpush1.bf16.msra.mxu0 %v1888
    %1954 = vmatprep.subr.bf16.mxu0 %v1891
    %1955 = vmatpush1.bf16.msra.mxu0 %v1890
    %1956 = vmatprep.subr.bf16.mxu0 %v1893
    %1957 = vmatpush1.bf16.msra.mxu0 %v1892
    %1958 = vmatprep.subr.bf16.mxu0 %v1895
    %1959 = vmatpush1.bf16.msra.mxu0 %v1894
    %1960 = vmatprep.subr.bf16.mxu0 %v1897
    %1961 = vmatpush1.bf16.msra.mxu0 %v1896
    %1962 = vmatprep.subr.bf16.mxu0 %v1899
    %1963 = vmatpush1.bf16.msra.mxu0 %v1898
    %1964 = vmatprep.subr.bf16.mxu0 %v1901
    %1965 = vmatpush1.bf16.msra.mxu0 %v1900
    %1966 = vmatprep.subr.bf16.mxu0 %v1903
    %1967 = vmatpush1.bf16.msra.mxu0 %v1902
    %1968 = vmatprep.subr.bf16.mxu0 %v1905
    %1969 = vmatpush1.bf16.msra.mxu0 %v1904
    %1970 = vmatprep.subr.bf16.mxu0 %v1907
    %1971 = vmatpush1.bf16.msra.mxu0 %v1906
    %1972 = vmatprep.subr.bf16.mxu0 %v1909
    %1973 = vmatpush1.bf16.msra.mxu0 %v1908
    %1974 = vmatprep.subr.bf16.mxu0 %v1911
    %1975 = vmatpush1.bf16.msra.mxu0 %v1910
    %1976 = vmatprep.subr.bf16.mxu0 %v1913
    %1977 = vmatpush1.bf16.msra.mxu0 %v1912
    %1978 = vmatprep.subr.bf16.mxu0 %v1915
    %1979 = vmatpush1.bf16.msra.mxu0 %v1914
    %1980 = vmatprep.subr.bf16.mxu0 %v1917
    %1981 = vmatpush1.bf16.msra.mxu0 %v1916
    %1982 = vmatprep.subr.bf16.mxu0 %v1919
    %1983 = vmatpush1.bf16.msra.mxu0 %v1918
    %1984 = vmatprep.mubr.bf16.mxu0 %v1789
    %1985 = vmatmul.mubr.bf16.gmra.mrb[0].mxu0 %v1788
    %v1986 = vpop.f32.mrb[0].mxu0
    %v1987 = vadd.f32 0.0, %v1986
    %v1988 = vpop.f32.mrb[0].mxu0
    %v1989 = vadd.f32 0.0, %v1988
    %v1990 = vpop.f32.mrb[0].mxu0
    %v1991 = vadd.f32 0.0, %v1990
    %v1992 = vpop.f32.mrb[0].mxu0
    %v1993 = vadd.f32 0.0, %v1992
    %1994 = vmatprep.mubr.bf16.mxu0 %v1791
    %1995 = vmatmul.mubr.bf16.gmra.mrb[0].mxu0 %v1790
    %v1996 = vpop.f32.mrb[0].mxu0
    %v1997 = vadd.f32 0.0, %v1996
    %v1998 = vpop.f32.mrb[0].mxu0
    %v1999 = vadd.f32 0.0, %v1998
    %v2000 = vpop.f32.mrb[0].mxu0
    %v2001 = vadd.f32 0.0, %v2000
    %v2002 = vpop.f32.mrb[0].mxu0
    %v2003 = vadd.f32 0.0, %v2002
    %2004 = vdwg.mxu0
    %v2037 = vunpack.c.l.b16 %v171
    %v2038 = vunpack.c.h.b16 %v171
    %v2039 = vunpack.c.l.b16 %v172
    %v2040 = vunpack.c.h.b16 %v172
    %v2041 = vunpack.c.l.b16 %v173
    %v2042 = vunpack.c.h.b16 %v173
    %v2043 = vunpack.c.l.b16 %v174
    %v2044 = vunpack.c.h.b16 %v174
    %v2045 = vunpack.c.l.b16 %v175
    %v2046 = vunpack.c.h.b16 %v175
    %v2047 = vunpack.c.l.b16 %v176
    %v2048 = vunpack.c.h.b16 %v176
    %v2049 = vunpack.c.l.b16 %v177
    %v2050 = vunpack.c.h.b16 %v177
    %v2051 = vunpack.c.l.b16 %v178
    %v2052 = vunpack.c.h.b16 %v178
    %v2053 = vunpack.c.l.b16 %v179
    %v2054 = vunpack.c.h.b16 %v179
    %v2055 = vunpack.c.l.b16 %v180
    %v2056 = vunpack.c.h.b16 %v180
    %v2057 = vunpack.c.l.b16 %v181
    %v2058 = vunpack.c.h.b16 %v181
    %v2059 = vunpack.c.l.b16 %v182
    %v2060 = vunpack.c.h.b16 %v182
    %v2061 = vunpack.c.l.b16 %v183
    %v2062 = vunpack.c.h.b16 %v183
    %v2063 = vunpack.c.l.b16 %v184
    %v2064 = vunpack.c.h.b16 %v184
    %v2065 = vunpack.c.l.b16 %v185
    %v2066 = vunpack.c.h.b16 %v185
    %v2067 = vunpack.c.l.b16 %v186
    %v2068 = vunpack.c.h.b16 %v186
    %v2069 = vunpack.c.l.b16 %v187
    %v2070 = vunpack.c.h.b16 %v187
    %v2071 = vunpack.c.l.b16 %v188
    %v2072 = vunpack.c.h.b16 %v188
    %v2073 = vunpack.c.l.b16 %v189
    %v2074 = vunpack.c.h.b16 %v189
    %v2075 = vunpack.c.l.b16 %v190
    %v2076 = vunpack.c.h.b16 %v190
    %v2077 = vunpack.c.l.b16 %v191
    %v2078 = vunpack.c.h.b16 %v191
    %v2079 = vunpack.c.l.b16 %v192
    %v2080 = vunpack.c.h.b16 %v192
    %v2081 = vunpack.c.l.b16 %v193
    %v2082 = vunpack.c.h.b16 %v193
    %v2083 = vunpack.c.l.b16 %v194
    %v2084 = vunpack.c.h.b16 %v194
    %v2085 = vunpack.c.l.b16 %v195
    %v2086 = vunpack.c.h.b16 %v195
    %v2087 = vunpack.c.l.b16 %v196
    %v2088 = vunpack.c.h.b16 %v196
    %v2089 = vunpack.c.l.b16 %v197
    %v2090 = vunpack.c.h.b16 %v197
    %v2091 = vunpack.c.l.b16 %v198
    %v2092 = vunpack.c.h.b16 %v198
    %v2093 = vunpack.c.l.b16 %v199
    %v2094 = vunpack.c.h.b16 %v199
    %v2095 = vunpack.c.l.b16 %v200
    %v2096 = vunpack.c.h.b16 %v200
    %v2097 = vunpack.c.l.b16 %v201
    %v2098 = vunpack.c.h.b16 %v201
    %v2099 = vunpack.c.l.b16 %v202
    %v2100 = vunpack.c.h.b16 %v202
    %v2101 = vpack.c.b16 %v2039, %v2037
    %v2102 = vpack.c.b16 %v2040, %v2038
    %v2103 = vpack.c.b16 %v2043, %v2041
    %v2104 = vpack.c.b16 %v2044, %v2042
    %v2105 = vpack.c.b16 %v2047, %v2045
    %v2106 = vpack.c.b16 %v2048, %v2046
    %v2107 = vpack.c.b16 %v2051, %v2049
    %v2108 = vpack.c.b16 %v2052, %v2050
    %v2109 = vpack.c.b16 %v2055, %v2053
    %v2110 = vpack.c.b16 %v2056, %v2054
    %v2111 = vpack.c.b16 %v2059, %v2057
    %v2112 = vpack.c.b16 %v2060, %v2058
    %v2113 = vpack.c.b16 %v2063, %v2061
    %v2114 = vpack.c.b16 %v2064, %v2062
    %v2115 = vpack.c.b16 %v2067, %v2065
    %v2116 = vpack.c.b16 %v2068, %v2066
    %v2117 = vpack.c.b16 %v2071, %v2069
    %v2118 = vpack.c.b16 %v2072, %v2070
    %v2119 = vpack.c.b16 %v2075, %v2073
    %v2120 = vpack.c.b16 %v2076, %v2074
    %v2121 = vpack.c.b16 %v2079, %v2077
    %v2122 = vpack.c.b16 %v2080, %v2078
    %v2123 = vpack.c.b16 %v2083, %v2081
    %v2124 = vpack.c.b16 %v2084, %v2082
    %v2125 = vpack.c.b16 %v2087, %v2085
    %v2126 = vpack.c.b16 %v2088, %v2086
    %v2127 = vpack.c.b16 %v2091, %v2089
    %v2128 = vpack.c.b16 %v2092, %v2090
    %v2129 = vpack.c.b16 %v2095, %v2093
    %v2130 = vpack.c.b16 %v2096, %v2094
    %v2131 = vpack.c.b16 %v2099, %v2097
    %v2132 = vpack.c.b16 %v2100, %v2098
    %2165 = vmatprep.subr.bf16.mxu0 %v2102
    %2166 = vmatpush1.bf16.msra.mxu0 %v2101
    %2167 = vmatprep.subr.bf16.mxu0 %v2104
    %2168 = vmatpush1.bf16.msra.mxu0 %v2103
    %2169 = vmatprep.subr.bf16.mxu0 %v2106
    %2170 = vmatpush1.bf16.msra.mxu0 %v2105
    %2171 = vmatprep.subr.bf16.mxu0 %v2108
    %2172 = vmatpush1.bf16.msra.mxu0 %v2107
    %2173 = vmatprep.subr.bf16.mxu0 %v2110
    %2174 = vmatpush1.bf16.msra.mxu0 %v2109
    %2175 = vmatprep.subr.bf16.mxu0 %v2112
    %2176 = vmatpush1.bf16.msra.mxu0 %v2111
    %2177 = vmatprep.subr.bf16.mxu0 %v2114
    %2178 = vmatpush1.bf16.msra.mxu0 %v2113
    %2179 = vmatprep.subr.bf16.mxu0 %v2116
    %2180 = vmatpush1.bf16.msra.mxu0 %v2115
    %2181 = vmatprep.subr.bf16.mxu0 %v2118
    %2182 = vmatpush1.bf16.msra.mxu0 %v2117
    %2183 = vmatprep.subr.bf16.mxu0 %v2120
    %2184 = vmatpush1.bf16.msra.mxu0 %v2119
    %2185 = vmatprep.subr.bf16.mxu0 %v2122
    %2186 = vmatpush1.bf16.msra.mxu0 %v2121
    %2187 = vmatprep.subr.bf16.mxu0 %v2124
    %2188 = vmatpush1.bf16.msra.mxu0 %v2123
    %2189 = vmatprep.subr.bf16.mxu0 %v2126
    %2190 = vmatpush1.bf16.msra.mxu0 %v2125
    %2191 = vmatprep.subr.bf16.mxu0 %v2128
    %2192 = vmatpush1.bf16.msra.mxu0 %v2127
    %2193 = vmatprep.subr.bf16.mxu0 %v2130
    %2194 = vmatpush1.bf16.msra.mxu0 %v2129
    %2195 = vmatprep.subr.bf16.mxu0 %v2132
    %2196 = vmatpush1.bf16.msra.mxu0 %v2131
    %2197 = vmatprep.mubr.bf16.mxu0 %v1789
    %2198 = vmatmul.mubr.bf16.gmra.mrb[0].mxu0 %v1788
    %v2199 = vpop.f32.mrb[0].mxu0
    %v2200 = vadd.f32 0.0, %v2199
    %v2201 = vpop.f32.mrb[0].mxu0
    %v2202 = vadd.f32 0.0, %v2201
    %v2203 = vpop.f32.mrb[0].mxu0
    %v2204 = vadd.f32 0.0, %v2203
    %v2205 = vpop.f32.mrb[0].mxu0
    %v2206 = vadd.f32 0.0, %v2205
    %2207 = vmatprep.mubr.bf16.mxu0 %v1791
    %2208 = vmatmul.mubr.bf16.gmra.mrb[0].mxu0 %v1790
    %v2209 = vpop.f32.mrb[0].mxu0
    %v2210 = vadd.f32 0.0, %v2209
    %v2211 = vpop.f32.mrb[0].mxu0
    %v2212 = vadd.f32 0.0, %v2211
    %v2213 = vpop.f32.mrb[0].mxu0
    %v2214 = vadd.f32 0.0, %v2213
    %v2215 = vpop.f32.mrb[0].mxu0
    %v2216 = vadd.f32 0.0, %v2215
    %2217 = vdwg.mxu0
    %v2218 = vmax.f32 %v1987, %v2200
    %v2219 = vmax.f32 %v1989, %v2202
    %v2220 = vmax.f32 %v1991, %v2204
    %v2221 = vmax.f32 %v1993, %v2206
    %v2222 = vmax.f32 %v1997, %v2210
    %v2223 = vmax.f32 %v1999, %v2212
    %v2224 = vmax.f32 %v2001, %v2214
    %v2225 = vmax.f32 %v2003, %v2216
    %v2226 = vpack.c.bf16 %v2220, %v2218
    %v2227 = vpack.c.bf16 %v2221, %v2219
    %v2228 = vpack.c.bf16 %v2224, %v2222
    %v2229 = vpack.c.bf16 %v2225, %v2223
    %v2232 = vunpack.c.l.b16 %v203
    %v2233 = vunpack.c.l.b16 %v204
    %v2234 = vpack.c.b16 %v2233, %v2232
    %vm2235 = vcmask 261120
    %v2237 = vsel %vm2235, %v2234, 0
    %2239 = vmatprep.subr.bf16.mxu0 %v2227
    %2240 = vmatpush1.bf16.msra.mxu0 %v2226
    %2241 = vmatprep.subr.bf16.mxu0 %v2229
    %2242 = vmatpush1.bf16.msra.mxu0 %v2228
    %2243 = vmatprep.subr.bf16.mxu0 0
    %2244 = vmatpush1.bf16.msra.mxu0 0
    %2245 = vmatprep.subr.bf16.mxu0 0
    %2246 = vmatpush1.bf16.msra.mxu0 0
    %2247 = vmatprep.subr.bf16.mxu0 0
    %2248 = vmatpush1.bf16.msra.mxu0 0
    %2249 = vmatprep.subr.bf16.mxu0 0
    %2250 = vmatpush1.bf16.msra.mxu0 0
    %2251 = vmatprep.subr.bf16.mxu0 0
    %2252 = vmatpush1.bf16.msra.mxu0 0
    %2253 = vmatprep.subr.bf16.mxu0 0
    %2254 = vmatpush1.bf16.msra.mxu0 0
    %2255 = vmatprep.subr.bf16.mxu0 0
    %2256 = vmatpush1.bf16.msra.mxu0 0
    %2257 = vmatprep.subr.bf16.mxu0 0
    %2258 = vmatpush1.bf16.msra.mxu0 0
    %2259 = vmatprep.subr.bf16.mxu0 0
    %2260 = vmatpush1.bf16.msra.mxu0 0
    %2261 = vmatprep.subr.bf16.mxu0 0
    %2262 = vmatpush1.bf16.msra.mxu0 0
    %2263 = vmatprep.subr.bf16.mxu0 0
    %2264 = vmatpush1.bf16.msra.mxu0 0
    %2265 = vmatprep.subr.bf16.mxu0 0
    %2266 = vmatpush1.bf16.msra.mxu0 0
    %2267 = vmatprep.subr.bf16.mxu0 0
    %2268 = vmatpush1.bf16.msra.mxu0 0
    %2269 = vmatprep.subr.bf16.mxu0 0
    %2270 = vmatpush1.bf16.msra.mxu0 0
    %2271 = vmatprep.mubr.bf16.mxu0 0
    %2272 = vmatmul.mubr.bf16.gmra.mrb[0].mxu0 %v2237
    %v2273 = vpop.f32.mrb[0].mxu0
    %v2274 = vadd.f32 0.0, %v2273
    %v2275 = vpop.f32.mrb[0].mxu0
    %v2276 = vadd.f32 0.0, %v2275
    %v2277 = vpop.f32.mrb[0].mxu0
    %v2278 = vadd.f32 0.0, %v2277
    %v2279 = vpop.f32.mrb[0].mxu0
    %v2280 = vadd.f32 0.0, %v2279
    %2281 = vdwg.mxu0
    %v2284 = vunpack.c.l.b16 %v205
    %v2285 = vunpack.c.l.b16 %v206
    %v2286 = vpack.c.b16 %v2285, %v2284
    %v2288 = vsel %vm2235, %v2286, 0
    %2290 = vmatprep.subr.bf16.mxu0 %v2227
    %2291 = vmatpush1.bf16.msra.mxu0 %v2226
    %2292 = vmatprep.subr.bf16.mxu0 %v2229
    %2293 = vmatpush1.bf16.msra.mxu0 %v2228
    %2294 = vmatprep.subr.bf16.mxu0 0
    %2295 = vmatpush1.bf16.msra.mxu0 0
    %2296 = vmatprep.subr.bf16.mxu0 0
    %2297 = vmatpush1.bf16.msra.mxu0 0
    %2298 = vmatprep.subr.bf16.mxu0 0
    %2299 = vmatpush1.bf16.msra.mxu0 0
    %2300 = vmatprep.subr.bf16.mxu0 0
    %2301 = vmatpush1.bf16.msra.mxu0 0
    %2302 = vmatprep.subr.bf16.mxu0 0
    %2303 = vmatpush1.bf16.msra.mxu0 0
    %2304 = vmatprep.subr.bf16.mxu0 0
    %2305 = vmatpush1.bf16.msra.mxu0 0
    %2306 = vmatprep.subr.bf16.mxu0 0
    %2307 = vmatpush1.bf16.msra.mxu0 0
    %2308 = vmatprep.subr.bf16.mxu0 0
    %2309 = vmatpush1.bf16.msra.mxu0 0
    %2310 = vmatprep.subr.bf16.mxu0 0
    %2311 = vmatpush1.bf16.msra.mxu0 0
    %2312 = vmatprep.subr.bf16.mxu0 0
    %2313 = vmatpush1.bf16.msra.mxu0 0
    %2314 = vmatprep.subr.bf16.mxu0 0
    %2315 = vmatpush1.bf16.msra.mxu0 0
    %2316 = vmatprep.subr.bf16.mxu0 0
    %2317 = vmatpush1.bf16.msra.mxu0 0
    %2318 = vmatprep.subr.bf16.mxu0 0
    %2319 = vmatpush1.bf16.msra.mxu0 0
    %2320 = vmatprep.subr.bf16.mxu0 0
    %2321 = vmatpush1.bf16.msra.mxu0 0
    %2322 = vmatprep.mubr.bf16.mxu0 0
    %2323 = vmatmul.mubr.bf16.gmra.mrb[0].mxu0 %v2288
    %v2324 = vpop.f32.mrb[0].mxu0
    %v2325 = vadd.f32 0.0, %v2324
    %v2326 = vpop.f32.mrb[0].mxu0
    %v2327 = vadd.f32 0.0, %v2326
    %v2328 = vpop.f32.mrb[0].mxu0
    %v2329 = vadd.f32 0.0, %v2328
    %v2330 = vpop.f32.mrb[0].mxu0
    %v2331 = vadd.f32 0.0, %v2330
    %2332 = vdwg.mxu0
    %v2333 = vmax.f32 %v2274, %v2325
    %v2334 = vmax.f32 %v2276, %v2327
    %v2335 = vmax.f32 %v2278, %v2329
    %v2336 = vmax.f32 %v2280, %v2331
    %v2341 = vrot.slane %v2333, 7
    %v2342 = vrot.slane %v2334, 7
    %v2343 = vrot.slane %v2335, 7
    %v2344 = vsel %vm1484, %v2341, %v2343
    %v2345 = vrot.slane %v2336, 7
    %v2346 = vsel %vm1484, %v2342, %v2345
    %2353 = vst [vmem:[#allocation3] sm:$0xfe] %v2341
    %vm2354 = vcmask 130049
    %2355 = vst.msk [vmem:[#allocation3 + $0x8] sm:$0xfe] %vm2354, %v2342
    %2356 = vst [vmem:[#allocation3 + $0x10] sm:$0xff] %v2344
    %2357 = vst.msk [vmem:[#allocation3 + $0x18] sm:$0xff] %vm89, %v2346
    %2358 = vst [vmem:[#allocation3 + $0x20] sm:$0x1] %v2343
    %vm2359 = vcmask 122880
    %2360 = vst.msk [vmem:[#allocation3 + $0x28] sm:$0x1] %vm2359, %v2345
    %v2361 = vld [vmem:[%s1431] sm:$0xff]
    %v2362 = vld [vmem:[%s1431 + $0x8] sm:$0xff]
    %v2363 = vld [vmem:[%s1431 + $0x10] sm:$0xff]
    %v2364 = vld [vmem:[%s1431 + $0x18] sm:$0xff]
    %v2365 = vld [vmem:[%s1431 + $0x20] sm:$0xff]
    %v2366 = vld [vmem:[%s1431 + $0x28] sm:$0xff]
    %v2367 = vld [vmem:[%s1431 + $0x30] sm:$0xff]
    %v2368 = vld [vmem:[%s1431 + $0x38] sm:$0xff]
    %v2369 = vmul.f32 %v2361, %v1751
    %v2370 = vmul.f32 %v2362, %v1755
    %v2371 = vmul.f32 %v2363, %v1751
    %v2372 = vmul.f32 %v2364, %v1755
    %v2373 = vmul.f32 %v2365, %v1751
    %v2374 = vmul.f32 %v2366, %v1755
    %v2375 = vmul.f32 %v2367, %v1751
    %v2376 = vmul.f32 %v2368, %v1755
    %v2377 = vadd.f32 %v2369, %v1767
    %v2378 = vadd.f32 %v2370, %v1771
    %v2379 = vadd.f32 %v2371, %v1767
    %v2380 = vadd.f32 %v2372, %v1771
    %v2381 = vadd.f32 %v2373, %v1767
    %v2382 = vadd.f32 %v2374, %v1771
    %v2383 = vadd.f32 %v2375, %v1767
    %v2384 = vadd.f32 %v2376, %v1771
    %v2385 = vmax.f32 %v2377, 0.0
    %v2386 = vmax.f32 %v2378, 0.0
    %v2387 = vmax.f32 %v2379, 0.0
    %v2388 = vmax.f32 %v2380, 0.0
    %v2389 = vmax.f32 %v2381, 0.0
    %v2390 = vmax.f32 %v2382, 0.0
    %v2391 = vmax.f32 %v2383, 0.0
    %v2392 = vmax.f32 %v2384, 0.0
    %v2393 = vpack.c.bf16 %v2387, %v2385
    %v2394 = vpack.c.bf16 %v2388, %v2386
    %v2395 = vpack.c.bf16 %v2391, %v2389
    %v2396 = vpack.c.bf16 %v2392, %v2390
    %2397 = vmatprep.subr.bf16.mxu0 %v1889
    %2398 = vmatpush1.bf16.msra.mxu0 %v1888
    %2399 = vmatprep.subr.bf16.mxu0 %v1891
    %2400 = vmatpush1.bf16.msra.mxu0 %v1890
    %2401 = vmatprep.subr.bf16.mxu0 %v1893
    %2402 = vmatpush1.bf16.msra.mxu0 %v1892
    %2403 = vmatprep.subr.bf16.mxu0 %v1895
    %2404 = vmatpush1.bf16.msra.mxu0 %v1894
    %2405 = vmatprep.subr.bf16.mxu0 %v1897
    %2406 = vmatpush1.bf16.msra.mxu0 %v1896
    %2407 = vmatprep.subr.bf16.mxu0 %v1899
    %2408 = vmatpush1.bf16.msra.mxu0 %v1898
    %2409 = vmatprep.subr.bf16.mxu0 %v1901
    %2410 = vmatpush1.bf16.msra.mxu0 %v1900
    %2411 = vmatprep.subr.bf16.mxu0 %v1903
    %2412 = vmatpush1.bf16.msra.mxu0 %v1902
    %2413 = vmatprep.subr.bf16.mxu0 %v1905
    %2414 = vmatpush1.bf16.msra.mxu0 %v1904
    %2415 = vmatprep.subr.bf16.mxu0 %v1907
    %2416 = vmatpush1.bf16.msra.mxu0 %v1906
    %2417 = vmatprep.subr.bf16.mxu0 %v1909
    %2418 = vmatpush1.bf16.msra.mxu0 %v1908
    %2419 = vmatprep.subr.bf16.mxu0 %v1911
    %2420 = vmatpush1.bf16.msra.mxu0 %v1910
    %2421 = vmatprep.subr.bf16.mxu0 %v1913
    %2422 = vmatpush1.bf16.msra.mxu0 %v1912
    %2423 = vmatprep.subr.bf16.mxu0 %v1915
    %2424 = vmatpush1.bf16.msra.mxu0 %v1914
    %2425 = vmatprep.subr.bf16.mxu0 %v1917
    %2426 = vmatpush1.bf16.msra.mxu0 %v1916
    %2427 = vmatprep.subr.bf16.mxu0 %v1919
    %2428 = vmatpush1.bf16.msra.mxu0 %v1918
    %2429 = vmatprep.mubr.bf16.mxu0 %v2394
    %2430 = vmatmul.mubr.bf16.gmra.mrb[0].mxu0 %v2393
    %v2431 = vpop.f32.mrb[0].mxu0
    %v2432 = vadd.f32 0.0, %v2431
    %v2433 = vpop.f32.mrb[0].mxu0
    %v2434 = vadd.f32 0.0, %v2433
    %v2435 = vpop.f32.mrb[0].mxu0
    %v2436 = vadd.f32 0.0, %v2435
    %v2437 = vpop.f32.mrb[0].mxu0
    %v2438 = vadd.f32 0.0, %v2437
    %2439 = vmatprep.mubr.bf16.mxu0 %v2396
    %2440 = vmatmul.mubr.bf16.gmra.mrb[0].mxu0 %v2395
    %v2441 = vpop.f32.mrb[0].mxu0
    %v2442 = vadd.f32 0.0, %v2441
    %v2443 = vpop.f32.mrb[0].mxu0
    %v2444 = vadd.f32 0.0, %v2443
    %v2445 = vpop.f32.mrb[0].mxu0
    %v2446 = vadd.f32 0.0, %v2445
    %v2447 = vpop.f32.mrb[0].mxu0
    %v2448 = vadd.f32 0.0, %v2447
    %2449 = vdwg.mxu0
    %2450 = vmatprep.subr.bf16.mxu0 %v2102
    %2451 = vmatpush1.bf16.msra.mxu0 %v2101
    %2452 = vmatprep.subr.bf16.mxu0 %v2104
    %2453 = vmatpush1.bf16.msra.mxu0 %v2103
    %2454 = vmatprep.subr.bf16.mxu0 %v2106
    %2455 = vmatpush1.bf16.msra.mxu0 %v2105
    %2456 = vmatprep.subr.bf16.mxu0 %v2108
    %2457 = vmatpush1.bf16.msra.mxu0 %v2107
    %2458 = vmatprep.subr.bf16.mxu0 %v2110
    %2459 = vmatpush1.bf16.msra.mxu0 %v2109
    %2460 = vmatprep.subr.bf16.mxu0 %v2112
    %2461 = vmatpush1.bf16.msra.mxu0 %v2111
    %2462 = vmatprep.subr.bf16.mxu0 %v2114
    %2463 = vmatpush1.bf16.msra.mxu0 %v2113
    %2464 = vmatprep.subr.bf16.mxu0 %v2116
    %2465 = vmatpush1.bf16.msra.mxu0 %v2115
    %2466 = vmatprep.subr.bf16.mxu0 %v2118
    %2467 = vmatpush1.bf16.msra.mxu0 %v2117
    %2468 = vmatprep.subr.bf16.mxu0 %v2120
    %2469 = vmatpush1.bf16.msra.mxu0 %v2119
    %2470 = vmatprep.subr.bf16.mxu0 %v2122
    %2471 = vmatpush1.bf16.msra.mxu0 %v2121
    %2472 = vmatprep.subr.bf16.mxu0 %v2124
    %2473 = vmatpush1.bf16.msra.mxu0 %v2123
    %2474 = vmatprep.subr.bf16.mxu0 %v2126
    %2475 = vmatpush1.bf16.msra.mxu0 %v2125
    %2476 = vmatprep.subr.bf16.mxu0 %v2128
    %2477 = vmatpush1.bf16.msra.mxu0 %v2127
    %2478 = vmatprep.subr.bf16.mxu0 %v2130
    %2479 = vmatpush1.bf16.msra.mxu0 %v2129
    %2480 = vmatprep.subr.bf16.mxu0 %v2132
    %2481 = vmatpush1.bf16.msra.mxu0 %v2131
    %2482 = vmatprep.mubr.bf16.mxu0 %v2394
    %2483 = vmatmul.mubr.bf16.gmra.mrb[0].mxu0 %v2393
    %v2484 = vpop.f32.mrb[0].mxu0
    %v2485 = vadd.f32 0.0, %v2484
    %v2486 = vpop.f32.mrb[0].mxu0
    %v2487 = vadd.f32 0.0, %v2486
    %v2488 = vpop.f32.mrb[0].mxu0
    %v2489 = vadd.f32 0.0, %v2488
    %v2490 = vpop.f32.mrb[0].mxu0
    %v2491 = vadd.f32 0.0, %v2490
    %2492 = vmatprep.mubr.bf16.mxu0 %v2396
    %2493 = vmatmul.mubr.bf16.gmra.mrb[0].mxu0 %v2395
    %v2494 = vpop.f32.mrb[0].mxu0
    %v2495 = vadd.f32 0.0, %v2494
    %v2496 = vpop.f32.mrb[0].mxu0
    %v2497 = vadd.f32 0.0, %v2496
    %v2498 = vpop.f32.mrb[0].mxu0
    %v2499 = vadd.f32 0.0, %v2498
    %v2500 = vpop.f32.mrb[0].mxu0
    %v2501 = vadd.f32 0.0, %v2500
    %2502 = vdwg.mxu0
    %v2503 = vmax.f32 %v2432, %v2485
    %v2504 = vmax.f32 %v2434, %v2487
    %v2505 = vmax.f32 %v2436, %v2489
    %v2506 = vmax.f32 %v2438, %v2491
    %v2507 = vmax.f32 %v2442, %v2495
    %v2508 = vmax.f32 %v2444, %v2497
    %v2509 = vmax.f32 %v2446, %v2499
    %v2510 = vmax.f32 %v2448, %v2501
    %v2511 = vpack.c.bf16 %v2505, %v2503
    %v2512 = vpack.c.bf16 %v2506, %v2504
    %v2513 = vpack.c.bf16 %v2509, %v2507
    %v2514 = vpack.c.bf16 %v2510, %v2508
    %2515 = vmatprep.subr.bf16.mxu0 %v2512
    %2516 = vmatpush1.bf16.msra.mxu0 %v2511
    %2517 = vmatprep.subr.bf16.mxu0 %v2514
    %2518 = vmatpush1.bf16.msra.mxu0 %v2513
    %2519 = vmatprep.subr.bf16.mxu0 0
    %2520 = vmatpush1.bf16.msra.mxu0 0
    %2521 = vmatprep.subr.bf16.mxu0 0
    %2522 = vmatpush1.bf16.msra.mxu0 0
    %2523 = vmatprep.subr.bf16.mxu0 0
    %2524 = vmatpush1.bf16.msra.mxu0 0
    %2525 = vmatprep.subr.bf16.mxu0 0
    %2526 = vmatpush1.bf16.msra.mxu0 0
    %2527 = vmatprep.subr.bf16.mxu0 0
    %2528 = vmatpush1.bf16.msra.mxu0 0
    %2529 = vmatprep.subr.bf16.mxu0 0
    %2530 = vmatpush1.bf16.msra.mxu0 0
    %2531 = vmatprep.subr.bf16.mxu0 0
    %2532 = vmatpush1.bf16.msra.mxu0 0
    %2533 = vmatprep.subr.bf16.mxu0 0
    %2534 = vmatpush1.bf16.msra.mxu0 0
    %2535 = vmatprep.subr.bf16.mxu0 0
    %2536 = vmatpush1.bf16.msra.mxu0 0
    %2537 = vmatprep.subr.bf16.mxu0 0
    %2538 = vmatpush1.bf16.msra.mxu0 0
    %2539 = vmatprep.subr.bf16.mxu0 0
    %2540 = vmatpush1.bf16.msra.mxu0 0
    %2541 = vmatprep.subr.bf16.mxu0 0
    %2542 = vmatpush1.bf16.msra.mxu0 0
    %2543 = vmatprep.subr.bf16.mxu0 0
    %2544 = vmatpush1.bf16.msra.mxu0 0
    %2545 = vmatprep.subr.bf16.mxu0 0
    %2546 = vmatpush1.bf16.msra.mxu0 0
    %2547 = vmatprep.mubr.bf16.mxu0 0
    %2548 = vmatmul.mubr.bf16.gmra.mrb[0].mxu0 %v2237
    %v2549 = vpop.f32.mrb[0].mxu0
    %v2550 = vadd.f32 0.0, %v2549
    %v2551 = vpop.f32.mrb[0].mxu0
    %v2552 = vadd.f32 0.0, %v2551
    %v2553 = vpop.f32.mrb[0].mxu0
    %v2554 = vadd.f32 0.0, %v2553
    %v2555 = vpop.f32.mrb[0].mxu0
    %v2556 = vadd.f32 0.0, %v2555
    %2557 = vdwg.mxu0
    %2558 = vmatprep.subr.bf16.mxu0 %v2512
    %2559 = vmatpush1.bf16.msra.mxu0 %v2511
    %2560 = vmatprep.subr.bf16.mxu0 %v2514
    %2561 = vmatpush1.bf16.msra.mxu0 %v2513
    %2562 = vmatprep.subr.bf16.mxu0 0
    %2563 = vmatpush1.bf16.msra.mxu0 0
    %2564 = vmatprep.subr.bf16.mxu0 0
    %2565 = vmatpush1.bf16.msra.mxu0 0
    %2566 = vmatprep.subr.bf16.mxu0 0
    %2567 = vmatpush1.bf16.msra.mxu0 0
    %2568 = vmatprep.subr.bf16.mxu0 0
    %2569 = vmatpush1.bf16.msra.mxu0 0
    %2570 = vmatprep.subr.bf16.mxu0 0
    %2571 = vmatpush1.bf16.msra.mxu0 0
    %2572 = vmatprep.subr.bf16.mxu0 0
    %2573 = vmatpush1.bf16.msra.mxu0 0
    %2574 = vmatprep.subr.bf16.mxu0 0
    %2575 = vmatpush1.bf16.msra.mxu0 0
    %2576 = vmatprep.subr.bf16.mxu0 0
    %2577 = vmatpush1.bf16.msra.mxu0 0
    %2578 = vmatprep.subr.bf16.mxu0 0
    %2579 = vmatpush1.bf16.msra.mxu0 0
    %2580 = vmatprep.subr.bf16.mxu0 0
    %2581 = vmatpush1.bf16.msra.mxu0 0
    %2582 = vmatprep.subr.bf16.mxu0 0
    %2583 = vmatpush1.bf16.msra.mxu0 0
    %2584 = vmatprep.subr.bf16.mxu0 0
    %2585 = vmatpush1.bf16.msra.mxu0 0
    %2586 = vmatprep.subr.bf16.mxu0 0
    %2587 = vmatpush1.bf16.msra.mxu0 0
    %2588 = vmatprep.subr.bf16.mxu0 0
    %2589 = vmatpush1.bf16.msra.mxu0 0
    %2590 = vmatprep.mubr.bf16.mxu0 0
    %2591 = vmatmul.mubr.bf16.gmra.mrb[0].mxu0 %v2288
    %v2592 = vpop.f32.mrb[0].mxu0
    %v2593 = vadd.f32 0.0, %v2592
    %v2594 = vpop.f32.mrb[0].mxu0
    %v2595 = vadd.f32 0.0, %v2594
    %v2596 = vpop.f32.mrb[0].mxu0
    %v2597 = vadd.f32 0.0, %v2596
    %v2598 = vpop.f32.mrb[0].mxu0
    %v2599 = vadd.f32 0.0, %v2598
    %2600 = vdwg.mxu0
    %v2601 = vmax.f32 %v2550, %v2593
    %v2602 = vmax.f32 %v2552, %v2595
    %v2603 = vmax.f32 %v2554, %v2597
    %v2604 = vmax.f32 %v2556, %v2599
    %v2609 = vrot.slane %v2601, 7
    %v2610 = vrot.slane %v2602, 7
    %v2611 = vrot.slane %v2603, 7
    %v2612 = vsel %vm1484, %v2609, %v2611
    %v2613 = vrot.slane %v2604, 7
    %v2614 = vsel %vm1484, %v2610, %v2613
    %s2621 = scalar_lea.vmem [#allocation3], 48
    %2622 = vst [vmem:[%s2621] sm:$0xfe] %v2609
    %2623 = vst.msk [vmem:[%s2621 + $0x8] sm:$0xfe] %vm2354, %v2610
    %2624 = vst [vmem:[%s2621 + $0x10] sm:$0xff] %v2612
    %2625 = vst.msk [vmem:[%s2621 + $0x18] sm:$0xff] %vm89, %v2614
    %2626 = vst [vmem:[%s2621 + $0x20] sm:$0x1] %v2611
    %2627 = vst.msk [vmem:[%s2621 + $0x28] sm:$0x1] %vm2359, %v2613
    %v2628 = vld [vmem:[%s12] sm:$0x3]
    %v2629 = vld [vmem:[%s13] sm:$0x1]
    %v2630 = vld [vmem:[%s14] sm:$0x1]
    %v2631 = vld [vmem:[%s15] sm:$0xff]
    %v2632 = vld [vmem:[%s15 + $0x8] sm:$0xff]
    %v2633 = vld [vmem:[%s15 + $0x10] sm:$0xff]
    %v2634 = vld [vmem:[%s15 + $0x18] sm:$0xff]
    %v2635 = vld [vmem:[%s15 + $0x20] sm:$0xff]
    %v2636 = vld [vmem:[%s15 + $0x28] sm:$0xff]
    %v2637 = vld [vmem:[%s15 + $0x30] sm:$0xff]
    %v2638 = vld [vmem:[%s15 + $0x38] sm:$0xff]
    %v2639 = vld [vmem:[%s15 + $0x40] sm:$0xff]
    %v2640 = vld [vmem:[%s15 + $0x48] sm:$0xff]
    %v2641 = vld [vmem:[%s15 + $0x50] sm:$0xff]
    %v2642 = vld [vmem:[%s15 + $0x58] sm:$0xff]
    %v2643 = vld [vmem:[%s15 + $0x60] sm:$0xff]
    %v2644 = vld [vmem:[%s15 + $0x68] sm:$0xff]
    %v2645 = vld [vmem:[%s15 + $0x70] sm:$0xff]
    %v2646 = vld [vmem:[%s15 + $0x78] sm:$0xff]
    %v2647 = vld [vmem:[%s15 + $0x80] sm:$0xff]
    %v2648 = vld [vmem:[%s15 + $0x88] sm:$0xff]
    %v2649 = vld [vmem:[%s15 + $0x90] sm:$0xff]
    %v2650 = vld [vmem:[%s15 + $0x98] sm:$0xff]
    %v2651 = vld [vmem:[%s15 + $0xa0] sm:$0xff]
    %v2652 = vld [vmem:[%s15 + $0xa8] sm:$0xff]
    %v2653 = vld [vmem:[%s15 + $0xb0] sm:$0xff]
    %v2654 = vld [vmem:[%s15 + $0xb8] sm:$0xff]
    %v2655 = vld [vmem:[%s15 + $0xc0] sm:$0xff]
    %v2656 = vld [vmem:[%s15 + $0xc8] sm:$0xff]
    %v2657 = vld [vmem:[%s15 + $0xd0] sm:$0xff]
    %v2658 = vld [vmem:[%s15 + $0xd8] sm:$0xff]
    %v2659 = vld [vmem:[%s15 + $0xe0] sm:$0xff]
    %v2660 = vld [vmem:[%s15 + $0xe8] sm:$0xff]
    %v2661 = vld [vmem:[%s15 + $0xf0] sm:$0xff]
    %v2662 = vld [vmem:[%s15 + $0xf8] sm:$0xff]
    %v2663 = vld [vmem:[%s16] sm:$0xff]
    %v2664 = vld [vmem:[%s16 + $0x8] sm:$0xff]
    %v2665 = vld [vmem:[%s16 + $0x10] sm:$0xff]
    %v2666 = vld [vmem:[%s16 + $0x18] sm:$0xff]
    %v2667 = vld [vmem:[%s17] sm:$0xf]
    %v2668 = vld [vmem:[%s17 + $0x4] sm:$0xf]
    %v2669 = vld [vmem:[%s17 + $0x8] sm:$0xf]
    %v2670 = vld [vmem:[%s17 + $0xc] sm:$0xf]
    %v2671 = vld [vmem:[%s17 + $0x10] sm:$0xf]
    %v2672 = vld [vmem:[%s17 + $0x14] sm:$0xf]
    %v2673 = vld [vmem:[%s17 + $0x18] sm:$0xf]
    %v2674 = vld [vmem:[%s17 + $0x1c] sm:$0xf]
    %v2675 = vld [vmem:[%s17 + $0x20] sm:$0xf]
    %v2676 = vld [vmem:[%s17 + $0x24] sm:$0xf]
    %v2677 = vld [vmem:[%s17 + $0x28] sm:$0xf]
    %v2678 = vld [vmem:[%s17 + $0x2c] sm:$0xf]
    %v2679 = vld [vmem:[%s17 + $0x30] sm:$0xf]
    %v2680 = vld [vmem:[%s17 + $0x34] sm:$0xf]
    %v2681 = vld [vmem:[%s17 + $0x38] sm:$0xf]
    %v2682 = vld [vmem:[%s17 + $0x3c] sm:$0xf]
    %v2683 = vld [vmem:[%s17 + $0x40] sm:$0xf]
    %v2684 = vld [vmem:[%s17 + $0x44] sm:$0xf]
    %v2685 = vld [vmem:[%s17 + $0x48] sm:$0xf]
    %v2686 = vld [vmem:[%s17 + $0x4c] sm:$0xf]
    %v2687 = vld [vmem:[%s17 + $0x50] sm:$0xf]
    %v2688 = vld [vmem:[%s17 + $0x54] sm:$0xf]
    %v2689 = vld [vmem:[%s17 + $0x58] sm:$0xf]
    %v2690 = vld [vmem:[%s17 + $0x5c] sm:$0xf]
    %v2691 = vld [vmem:[%s17 + $0x60] sm:$0xf]
    %v2692 = vld [vmem:[%s17 + $0x64] sm:$0xf]
    %v2693 = vld [vmem:[%s17 + $0x68] sm:$0xf]
    %v2694 = vld [vmem:[%s17 + $0x6c] sm:$0xf]
    %v2695 = vld [vmem:[%s17 + $0x70] sm:$0xf]
    %v2696 = vld [vmem:[%s17 + $0x74] sm:$0xf]
    %v2697 = vld [vmem:[%s17 + $0x78] sm:$0xf]
    %v2698 = vld [vmem:[%s17 + $0x7c] sm:$0xf]
    %v2699 = vld [vmem:[%s18] sm:$0xf]
    %v2700 = vld [vmem:[%s18 + $0x4] sm:$0xf]
    %v2701 = vld [vmem:[%s18 + $0x8] sm:$0xf]
    %v2702 = vld [vmem:[%s18 + $0xc] sm:$0xf]
    %v2703 = vld [vmem:[%s18 + $0x10] sm:$0xf]
    %v2704 = vld [vmem:[%s18 + $0x14] sm:$0xf]
    %v2705 = vld [vmem:[%s18 + $0x18] sm:$0xf]
    %v2706 = vld [vmem:[%s18 + $0x1c] sm:$0xf]
    %v2707 = vld [vmem:[%s18 + $0x20] sm:$0xf]
    %v2708 = vld [vmem:[%s18 + $0x24] sm:$0xf]
    %v2709 = vld [vmem:[%s18 + $0x28] sm:$0xf]
    %v2710 = vld [vmem:[%s18 + $0x2c] sm:$0xf]
    %v2711 = vld [vmem:[%s18 + $0x30] sm:$0xf]
    %v2712 = vld [vmem:[%s18 + $0x34] sm:$0xf]
    %v2713 = vld [vmem:[%s18 + $0x38] sm:$0xf]
    %v2714 = vld [vmem:[%s18 + $0x3c] sm:$0xf]
    %v2715 = vld [vmem:[%s18 + $0x40] sm:$0xf]
    %v2716 = vld [vmem:[%s18 + $0x44] sm:$0xf]
    %v2717 = vld [vmem:[%s18 + $0x48] sm:$0xf]
    %v2718 = vld [vmem:[%s18 + $0x4c] sm:$0xf]
    %v2719 = vld [vmem:[%s18 + $0x50] sm:$0xf]
    %v2720 = vld [vmem:[%s18 + $0x54] sm:$0xf]
    %v2721 = vld [vmem:[%s18 + $0x58] sm:$0xf]
    %v2722 = vld [vmem:[%s18 + $0x5c] sm:$0xf]
    %v2723 = vld [vmem:[%s18 + $0x60] sm:$0xf]
    %v2724 = vld [vmem:[%s18 + $0x64] sm:$0xf]
    %v2725 = vld [vmem:[%s18 + $0x68] sm:$0xf]
    %v2726 = vld [vmem:[%s18 + $0x6c] sm:$0xf]
    %v2727 = vld [vmem:[%s18 + $0x70] sm:$0xf]
    %v2728 = vld [vmem:[%s18 + $0x74] sm:$0xf]
    %v2729 = vld [vmem:[%s18 + $0x78] sm:$0xf]
    %v2730 = vld [vmem:[%s18 + $0x7c] sm:$0xf]
    %v2731 = vld [vmem:[%s19] sm:$0xf]
    %v2732 = vld [vmem:[%s20] sm:$0xf]
    %v2733 = vld [vmem:[%s11] sm:$0xff]
    %v2734 = vld [vmem:[%s11 + $0x8] sm:$0xff]
    %v2735 = vld [vmem:[%s11 + $0x10] sm:$0xff]
    %v2736 = vld [vmem:[%s11 + $0x18] sm:$0xff]
    %v2737 = vld [vmem:[%s11 + $0x20] sm:$0xff]
    %v2738 = vld [vmem:[%s11 + $0x28] sm:$0xff]
    %v2739 = vld [vmem:[%s11 + $0x30] sm:$0xff]
    %v2740 = vld [vmem:[%s11 + $0x38] sm:$0xff]
    %v2741 = vld [vmem:[%s11 + $0x40] sm:$0xff]
    %v2742 = vld [vmem:[%s11 + $0x48] sm:$0xff]
    %v2743 = vld [vmem:[%s11 + $0x50] sm:$0xff]
    %v2744 = vld [vmem:[%s11 + $0x58] sm:$0xff]
    %v2745 = vld [vmem:[%s11 + $0x60] sm:$0xff]
    %v2746 = vld [vmem:[%s11 + $0x68] sm:$0xff]
    %v2747 = vld [vmem:[%s11 + $0x70] sm:$0xff]
    %v2748 = vld [vmem:[%s11 + $0x78] sm:$0xff]
    %v2749 = vld [vmem:[%s11 + $0x80] sm:$0xff]
    %v2750 = vld [vmem:[%s11 + $0x88] sm:$0xff]
    %v2751 = vld [vmem:[#allocation3] sm:$0xff]
    %v2752 = vld [vmem:[#allocation3 + $0x8] sm:$0xff]
    %v2753 = vld [vmem:[#allocation3 + $0x10] sm:$0x3f]
    %v2754 = vld [vmem:[#allocation3 + $0x18] sm:$0x3f]
    %v2755 = vpack.c.bf16 %v2753, %v2751
    %v2756 = vpack.c.bf16 %v2754, %v2752
    %v2757 = vld [vmem:[%s2621] sm:$0xff]
    %v2758 = vld [vmem:[%s2621 + $0x8] sm:$0xff]
    %v2759 = vld [vmem:[%s2621 + $0x10] sm:$0x3f]
    %v2760 = vld [vmem:[%s2621 + $0x18] sm:$0x3f]
    %v2761 = vpack.c.bf16 %v2759, %v2757
    %v2762 = vpack.c.bf16 %v2760, %v2758
    %s2763 = scalar_lea.vmem %s11, 144
    %v2764 = vld [vmem:[%s2763] sm:$0xff]
    %v2765 = vld [vmem:[%s2763 + $0x8] sm:$0xff]
    %v2766 = vld [vmem:[%s2763 + $0x10] sm:$0xff]
    %v2767 = vld [vmem:[%s2763 + $0x18] sm:$0xff]
    %v2768 = vld [vmem:[%s2763 + $0x20] sm:$0xff]
    %v2769 = vld [vmem:[%s2763 + $0x28] sm:$0xff]
    %v2770 = vld [vmem:[%s2763 + $0x30] sm:$0xff]
    %v2771 = vld [vmem:[%s2763 + $0x38] sm:$0xff]
    %v2772 = vld [vmem:[%s2763 + $0x40] sm:$0xff]
    %v2773 = vld [vmem:[%s2763 + $0x48] sm:$0xff]
    %v2774 = vld [vmem:[%s2763 + $0x50] sm:$0xff]
    %v2775 = vld [vmem:[%s2763 + $0x58] sm:$0xff]
    %v2776 = vld [vmem:[%s2763 + $0x60] sm:$0xff]
    %v2777 = vld [vmem:[%s2763 + $0x68] sm:$0xff]
    %v2778 = vld [vmem:[%s2763 + $0x70] sm:$0xff]
    %v2779 = vld [vmem:[%s2763 + $0x78] sm:$0xff]
    %v2780 = vld [vmem:[%s2763 + $0x80] sm:$0xff]
    %v2781 = vld [vmem:[%s2763 + $0x88] sm:$0xff]
    %v2782 = vld [vmem:[#allocation3] sm:$0xfe]
    %v2783 = vld [vmem:[#allocation3 + $0x8] sm:$0xfe]
    %v2784 = vld [vmem:[#allocation3 + $0x10] sm:$0x7f]
    %v2785 = vld [vmem:[#allocation3 + $0x18] sm:$0x7f]
    %v2786 = vpack.c.bf16 %v2784, %v2782
    %v2787 = vpack.c.bf16 %v2785, %v2783
    %v2789 = vshrl.u32 %v2786, 16
    %v2791 = vshll.u32 %v2786, 16
    %v2793 = vrot.slane %v2791, 1
    %v2794 = vor.u32 %v2789, %v2793
    %v2796 = vshrl.u32 %v2787, 16
    %v2798 = vshll.u32 %v2787, 16
    %v2800 = vrot.slane %v2798, 1
    %v2801 = vor.u32 %v2796, %v2800
    %v2821 = vunpack.c.l.b16 %v2764
    %v2822 = vunpack.c.h.b16 %v2764
    %v2823 = vunpack.c.l.b16 %v2765
    %v2824 = vunpack.c.h.b16 %v2765
    %v2825 = vunpack.c.l.b16 %v2766
    %v2826 = vunpack.c.h.b16 %v2766
    %v2827 = vunpack.c.l.b16 %v2767
    %v2828 = vunpack.c.h.b16 %v2767
    %v2829 = vunpack.c.l.b16 %v2768
    %v2830 = vunpack.c.h.b16 %v2768
    %v2831 = vunpack.c.l.b16 %v2769
    %v2832 = vunpack.c.h.b16 %v2769
    %v2833 = vunpack.c.l.b16 %v2770
    %v2834 = vunpack.c.h.b16 %v2770
    %v2835 = vunpack.c.l.b16 %v2771
    %v2836 = vunpack.c.h.b16 %v2771
    %v2837 = vunpack.c.l.b16 %v2772
    %v2838 = vunpack.c.h.b16 %v2772
    %v2839 = vunpack.c.l.b16 %v2773
    %v2840 = vunpack.c.h.b16 %v2773
    %v2841 = vunpack.c.l.b16 %v2774
    %v2842 = vunpack.c.h.b16 %v2774
    %v2843 = vunpack.c.l.b16 %v2775
    %v2844 = vunpack.c.h.b16 %v2775
    %v2845 = vunpack.c.l.b16 %v2776
    %v2846 = vunpack.c.h.b16 %v2776
    %v2847 = vunpack.c.l.b16 %v2777
    %v2848 = vunpack.c.h.b16 %v2777
    %v2849 = vunpack.c.l.b16 %v2778
    %v2850 = vunpack.c.h.b16 %v2778
    %v2851 = vunpack.c.l.b16 %v2779
    %v2852 = vunpack.c.h.b16 %v2779
    %v2853 = vunpack.c.l.b16 %v2780
    %v2854 = vunpack.c.h.b16 %v2780
    %v2855 = vunpack.c.l.b16 %v2781
    %v2856 = vunpack.c.h.b16 %v2781
    %v2857 = vpack.c.b16 %v2823, %v2821
    %v2858 = vpack.c.b16 %v2824, %v2822
    %v2859 = vpack.c.b16 %v2827, %v2825
    %v2860 = vpack.c.b16 %v2828, %v2826
    %v2861 = vpack.c.b16 %v2831, %v2829
    %v2862 = vpack.c.b16 %v2832, %v2830
    %v2863 = vpack.c.b16 %v2835, %v2833
    %v2864 = vpack.c.b16 %v2836, %v2834
    %v2865 = vpack.c.b16 %v2839, %v2837
    %v2866 = vpack.c.b16 %v2840, %v2838
    %v2867 = vpack.c.b16 %v2843, %v2841
    %v2868 = vpack.c.b16 %v2844, %v2842
    %v2869 = vpack.c.b16 %v2847, %v2845
    %v2870 = vpack.c.b16 %v2848, %v2846
    %v2871 = vpack.c.b16 %v2851, %v2849
    %v2872 = vpack.c.b16 %v2852, %v2850
    %v2873 = vpack.c.b16 %v2855, %v2853
    %v2874 = vpack.c.b16 %v2856, %v2854
    %v2894 = vsel %vm89, %v2801, 0
    %2896 = vmatprep.subr.bf16.mxu0 %v2858
    %2897 = vmatpush1.bf16.msra.mxu0 %v2857
    %2898 = vmatprep.subr.bf16.mxu0 %v2860
    %2899 = vmatpush1.bf16.msra.mxu0 %v2859
    %2900 = vmatprep.subr.bf16.mxu0 %v2862
    %2901 = vmatpush1.bf16.msra.mxu0 %v2861
    %2902 = vmatprep.subr.bf16.mxu0 %v2864
    %2903 = vmatpush1.bf16.msra.mxu0 %v2863
    %2904 = vmatprep.subr.bf16.mxu0 %v2866
    %2905 = vmatpush1.bf16.msra.mxu0 %v2865
    %2906 = vmatprep.subr.bf16.mxu0 %v2868
    %2907 = vmatpush1.bf16.msra.mxu0 %v2867
    %2908 = vmatprep.subr.bf16.mxu0 %v2870
    %2909 = vmatpush1.bf16.msra.mxu0 %v2869
    %2910 = vmatprep.subr.bf16.mxu0 %v2872
    %2911 = vmatpush1.bf16.msra.mxu0 %v2871
    %2912 = vmatprep.subr.bf16.mxu0 %v2874
    %2913 = vmatpush1.bf16.msra.mxu0 %v2873
    %2914 = vmatprep.subr.bf16.mxu0 0
    %2915 = vmatpush1.bf16.msra.mxu0 0
    %2916 = vmatprep.subr.bf16.mxu0 0
    %2917 = vmatpush1.bf16.msra.mxu0 0
    %2918 = vmatprep.subr.bf16.mxu0 0
    %2919 = vmatpush1.bf16.msra.mxu0 0
    %2920 = vmatprep.subr.bf16.mxu0 0
    %2921 = vmatpush1.bf16.msra.mxu0 0
    %2922 = vmatprep.subr.bf16.mxu0 0
    %2923 = vmatpush1.bf16.msra.mxu0 0
    %2924 = vmatprep.subr.bf16.mxu0 0
    %2925 = vmatpush1.bf16.msra.mxu0 0
    %2926 = vmatprep.subr.bf16.mxu0 0
    %2927 = vmatpush1.bf16.msra.mxu0 0
    %2928 = vmatprep.mubr.bf16.mxu0 %v2894
    %2929 = vmatmul.mubr.bf16.gmra.mrb[0].mxu0 %v2794
    %v2930 = vpop.f32.mrb[0].mxu0
    %v2931 = vadd.f32 0.0, %v2930
    %v2932 = vpop.f32.mrb[0].mxu0
    %v2933 = vadd.f32 0.0, %v2932
    %v2934 = vpop.f32.mrb[0].mxu0
    %v2935 = vadd.f32 0.0, %v2934
    %v2936 = vpop.f32.mrb[0].mxu0
    %v2937 = vadd.f32 0.0, %v2936
    %2938 = vdwg.mxu0
    %v2957 = vunpack.c.l.b16 %v2733
    %v2958 = vunpack.c.h.b16 %v2733
    %v2959 = vunpack.c.l.b16 %v2734
    %v2960 = vunpack.c.h.b16 %v2734
    %v2961 = vunpack.c.l.b16 %v2735
    %v2962 = vunpack.c.h.b16 %v2735
    %v2963 = vunpack.c.l.b16 %v2736
    %v2964 = vunpack.c.h.b16 %v2736
    %v2965 = vunpack.c.l.b16 %v2737
    %v2966 = vunpack.c.h.b16 %v2737
    %v2967 = vunpack.c.l.b16 %v2738
    %v2968 = vunpack.c.h.b16 %v2738
    %v2969 = vunpack.c.l.b16 %v2739
    %v2970 = vunpack.c.h.b16 %v2739
    %v2971 = vunpack.c.l.b16 %v2740
    %v2972 = vunpack.c.h.b16 %v2740
    %v2973 = vunpack.c.l.b16 %v2741
    %v2974 = vunpack.c.h.b16 %v2741
    %v2975 = vunpack.c.l.b16 %v2742
    %v2976 = vunpack.c.h.b16 %v2742
    %v2977 = vunpack.c.l.b16 %v2743
    %v2978 = vunpack.c.h.b16 %v2743
    %v2979 = vunpack.c.l.b16 %v2744
    %v2980 = vunpack.c.h.b16 %v2744
    %v2981 = vunpack.c.l.b16 %v2745
    %v2982 = vunpack.c.h.b16 %v2745
    %v2983 = vunpack.c.l.b16 %v2746
    %v2984 = vunpack.c.h.b16 %v2746
    %v2985 = vunpack.c.l.b16 %v2747
    %v2986 = vunpack.c.h.b16 %v2747
    %v2987 = vunpack.c.l.b16 %v2748
    %v2988 = vunpack.c.h.b16 %v2748
    %v2989 = vunpack.c.l.b16 %v2749
    %v2990 = vunpack.c.h.b16 %v2749
    %v2991 = vunpack.c.l.b16 %v2750
    %v2992 = vunpack.c.h.b16 %v2750
    %v2993 = vpack.c.b16 %v2959, %v2957
    %v2994 = vpack.c.b16 %v2960, %v2958
    %v2995 = vpack.c.b16 %v2963, %v2961
    %v2996 = vpack.c.b16 %v2964, %v2962
    %v2997 = vpack.c.b16 %v2967, %v2965
    %v2998 = vpack.c.b16 %v2968, %v2966
    %v2999 = vpack.c.b16 %v2971, %v2969
    %v3000 = vpack.c.b16 %v2972, %v2970
    %v3001 = vpack.c.b16 %v2975, %v2973
    %v3002 = vpack.c.b16 %v2976, %v2974
    %v3003 = vpack.c.b16 %v2979, %v2977
    %v3004 = vpack.c.b16 %v2980, %v2978
    %v3005 = vpack.c.b16 %v2983, %v2981
    %v3006 = vpack.c.b16 %v2984, %v2982
    %v3007 = vpack.c.b16 %v2987, %v2985
    %v3008 = vpack.c.b16 %v2988, %v2986
    %v3009 = vpack.c.b16 %v2991, %v2989
    %v3010 = vpack.c.b16 %v2992, %v2990
    %v3030 = vsel %vm89, %v2756, 0
    %3032 = vmatprep.subr.bf16.mxu0 %v2994
    %3033 = vmatpush1.bf16.msra.mxu0 %v2993
    %3034 = vmatprep.subr.bf16.mxu0 %v2996
    %3035 = vmatpush1.bf16.msra.mxu0 %v2995
    %3036 = vmatprep.subr.bf16.mxu0 %v2998
    %3037 = vmatpush1.bf16.msra.mxu0 %v2997
    %3038 = vmatprep.subr.bf16.mxu0 %v3000
    %3039 = vmatpush1.bf16.msra.mxu0 %v2999
    %3040 = vmatprep.subr.bf16.mxu0 %v3002
    %3041 = vmatpush1.bf16.msra.mxu0 %v3001
    %3042 = vmatprep.subr.bf16.mxu0 %v3004
    %3043 = vmatpush1.bf16.msra.mxu0 %v3003
    %3044 = vmatprep.subr.bf16.mxu0 %v3006
    %3045 = vmatpush1.bf16.msra.mxu0 %v3005
    %3046 = vmatprep.subr.bf16.mxu0 %v3008
    %3047 = vmatpush1.bf16.msra.mxu0 %v3007
    %3048 = vmatprep.subr.bf16.mxu0 %v3010
    %3049 = vmatpush1.bf16.msra.mxu0 %v3009
    %3050 = vmatprep.subr.bf16.mxu0 0
    %3051 = vmatpush1.bf16.msra.mxu0 0
    %3052 = vmatprep.subr.bf16.mxu0 0
    %3053 = vmatpush1.bf16.msra.mxu0 0
    %3054 = vmatprep.subr.bf16.mxu0 0
    %3055 = vmatpush1.bf16.msra.mxu0 0
    %3056 = vmatprep.subr.bf16.mxu0 0
    %3057 = vmatpush1.bf16.msra.mxu0 0
    %3058 = vmatprep.subr.bf16.mxu0 0
    %3059 = vmatpush1.bf16.msra.mxu0 0
    %3060 = vmatprep.subr.bf16.mxu0 0
    %3061 = vmatpush1.bf16.msra.mxu0 0
    %3062 = vmatprep.subr.bf16.mxu0 0
    %3063 = vmatpush1.bf16.msra.mxu0 0
    %3064 = vmatprep.mubr.bf16.mxu0 %v3030
    %3065 = vmatmul.mubr.bf16.gmra.mrb[0].mxu0 %v2755
    %v3066 = vpop.f32.mrb[0].mxu0
    %v3067 = vadd.f32 %v2931, %v3066
    %v3068 = vpop.f32.mrb[0].mxu0
    %v3069 = vadd.f32 %v2933, %v3068
    %v3070 = vpop.f32.mrb[0].mxu0
    %v3071 = vadd.f32 %v2935, %v3070
    %v3072 = vpop.f32.mrb[0].mxu0
    %v3073 = vadd.f32 %v2937, %v3072
    %3074 = vdwg.mxu0
    %v3075 = vld [vmem:[%s2621] sm:$0xfe]
    %v3076 = vld [vmem:[%s2621 + $0x8] sm:$0xfe]
    %v3077 = vld [vmem:[%s2621 + $0x10] sm:$0x7f]
    %v3078 = vld [vmem:[%s2621 + $0x18] sm:$0x7f]
    %v3079 = vpack.c.bf16 %v3077, %v3075
    %v3080 = vpack.c.bf16 %v3078, %v3076
    %v3082 = vshrl.u32 %v3079, 16
    %v3084 = vshll.u32 %v3079, 16
    %v3086 = vrot.slane %v3084, 1
    %v3087 = vor.u32 %v3082, %v3086
    %v3089 = vshrl.u32 %v3080, 16
    %v3091 = vshll.u32 %v3080, 16
    %v3093 = vrot.slane %v3091, 1
    %v3094 = vor.u32 %v3089, %v3093
    %v3097 = vsel %vm89, %v3094, 0
    %3099 = vmatprep.subr.bf16.mxu0 %v2858
    %3100 = vmatpush1.bf16.msra.mxu0 %v2857
    %3101 = vmatprep.subr.bf16.mxu0 %v2860
    %3102 = vmatpush1.bf16.msra.mxu0 %v2859
    %3103 = vmatprep.subr.bf16.mxu0 %v2862
    %3104 = vmatpush1.bf16.msra.mxu0 %v2861
    %3105 = vmatprep.subr.bf16.mxu0 %v2864
    %3106 = vmatpush1.bf16.msra.mxu0 %v2863
    %3107 = vmatprep.subr.bf16.mxu0 %v2866
    %3108 = vmatpush1.bf16.msra.mxu0 %v2865
    %3109 = vmatprep.subr.bf16.mxu0 %v2868
    %3110 = vmatpush1.bf16.msra.mxu0 %v2867
    %3111 = vmatprep.subr.bf16.mxu0 %v2870
    %3112 = vmatpush1.bf16.msra.mxu0 %v2869
    %3113 = vmatprep.subr.bf16.mxu0 %v2872
    %3114 = vmatpush1.bf16.msra.mxu0 %v2871
    %3115 = vmatprep.subr.bf16.mxu0 %v2874
    %3116 = vmatpush1.bf16.msra.mxu0 %v2873
    %3117 = vmatprep.subr.bf16.mxu0 0
    %3118 = vmatpush1.bf16.msra.mxu0 0
    %3119 = vmatprep.subr.bf16.mxu0 0
    %3120 = vmatpush1.bf16.msra.mxu0 0
    %3121 = vmatprep.subr.bf16.mxu0 0
    %3122 = vmatpush1.bf16.msra.mxu0 0
    %3123 = vmatprep.subr.bf16.mxu0 0
    %3124 = vmatpush1.bf16.msra.mxu0 0
    %3125 = vmatprep.subr.bf16.mxu0 0
    %3126 = vmatpush1.bf16.msra.mxu0 0
    %3127 = vmatprep.subr.bf16.mxu0 0
    %3128 = vmatpush1.bf16.msra.mxu0 0
    %3129 = vmatprep.subr.bf16.mxu0 0
    %3130 = vmatpush1.bf16.msra.mxu0 0
    %3131 = vmatprep.mubr.bf16.mxu0 %v3097
    %3132 = vmatmul.mubr.bf16.gmra.mrb[0].mxu0 %v3087
    %v3133 = vpop.f32.mrb[0].mxu0
    %v3134 = vadd.f32 0.0, %v3133
    %v3135 = vpop.f32.mrb[0].mxu0
    %v3136 = vadd.f32 0.0, %v3135
    %v3137 = vpop.f32.mrb[0].mxu0
    %v3138 = vadd.f32 0.0, %v3137
    %v3139 = vpop.f32.mrb[0].mxu0
    %v3140 = vadd.f32 0.0, %v3139
    %3141 = vdwg.mxu0
    %v3143 = vsel %vm89, %v2762, 0
    %3145 = vmatprep.subr.bf16.mxu0 %v2994
    %3146 = vmatpush1.bf16.msra.mxu0 %v2993
    %3147 = vmatprep.subr.bf16.mxu0 %v2996
    %3148 = vmatpush1.bf16.msra.mxu0 %v2995
    %3149 = vmatprep.subr.bf16.mxu0 %v2998
    %3150 = vmatpush1.bf16.msra.mxu0 %v2997
    %3151 = vmatprep.subr.bf16.mxu0 %v3000
    %3152 = vmatpush1.bf16.msra.mxu0 %v2999
    %3153 = vmatprep.subr.bf16.mxu0 %v3002
    %3154 = vmatpush1.bf16.msra.mxu0 %v3001
    %3155 = vmatprep.subr.bf16.mxu0 %v3004
    %3156 = vmatpush1.bf16.msra.mxu0 %v3003
    %3157 = vmatprep.subr.bf16.mxu0 %v3006
    %3158 = vmatpush1.bf16.msra.mxu0 %v3005
    %3159 = vmatprep.subr.bf16.mxu0 %v3008
    %3160 = vmatpush1.bf16.msra.mxu0 %v3007
    %3161 = vmatprep.subr.bf16.mxu0 %v3010
    %3162 = vmatpush1.bf16.msra.mxu0 %v3009
    %3163 = vmatprep.subr.bf16.mxu0 0
    %3164 = vmatpush1.bf16.msra.mxu0 0
    %3165 = vmatprep.subr.bf16.mxu0 0
    %3166 = vmatpush1.bf16.msra.mxu0 0
    %3167 = vmatprep.subr.bf16.mxu0 0
    %3168 = vmatpush1.bf16.msra.mxu0 0
    %3169 = vmatprep.subr.bf16.mxu0 0
    %3170 = vmatpush1.bf16.msra.mxu0 0
    %3171 = vmatprep.subr.bf16.mxu0 0
    %3172 = vmatpush1.bf16.msra.mxu0 0
    %3173 = vmatprep.subr.bf16.mxu0 0
    %3174 = vmatpush1.bf16.msra.mxu0 0
    %3175 = vmatprep.subr.bf16.mxu0 0
    %3176 = vmatpush1.bf16.msra.mxu0 0
    %3177 = vmatprep.mubr.bf16.mxu0 %v3143
    %3178 = vmatmul.mubr.bf16.gmra.mrb[0].mxu0 %v2761
    %v3179 = vpop.f32.mrb[0].mxu0
    %v3180 = vadd.f32 %v3134, %v3179
    %v3181 = vpop.f32.mrb[0].mxu0
    %v3182 = vadd.f32 %v3136, %v3181
    %v3183 = vpop.f32.mrb[0].mxu0
    %v3184 = vadd.f32 %v3138, %v3183
    %v3185 = vpop.f32.mrb[0].mxu0
    %v3186 = vadd.f32 %v3140, %v3185
    %3187 = vdwg.mxu0
    %s3188 = scalar_lea.vmem %s11, 288
    %v3189 = vld [vmem:[%s3188] sm:$0xff]
    %v3190 = vld [vmem:[%s3188 + $0x8] sm:$0xff]
    %v3191 = vld [vmem:[%s3188 + $0x10] sm:$0xff]
    %v3192 = vld [vmem:[%s3188 + $0x18] sm:$0xff]
    %v3193 = vld [vmem:[%s3188 + $0x20] sm:$0xff]
    %v3194 = vld [vmem:[%s3188 + $0x28] sm:$0xff]
    %v3195 = vld [vmem:[%s3188 + $0x30] sm:$0xff]
    %v3196 = vld [vmem:[%s3188 + $0x38] sm:$0xff]
    %v3197 = vld [vmem:[%s3188 + $0x40] sm:$0xff]
    %v3198 = vld [vmem:[%s3188 + $0x48] sm:$0xff]
    %v3199 = vld [vmem:[%s3188 + $0x50] sm:$0xff]
    %v3200 = vld [vmem:[%s3188 + $0x58] sm:$0xff]
    %v3201 = vld [vmem:[%s3188 + $0x60] sm:$0xff]
    %v3202 = vld [vmem:[%s3188 + $0x68] sm:$0xff]
    %v3203 = vld [vmem:[%s3188 + $0x70] sm:$0xff]
    %v3204 = vld [vmem:[%s3188 + $0x78] sm:$0xff]
    %v3205 = vld [vmem:[%s3188 + $0x80] sm:$0xff]
    %v3206 = vld [vmem:[%s3188 + $0x88] sm:$0xff]
    %v3207 = vld [vmem:[#allocation3] sm:$0xfc]
    %v3208 = vld [vmem:[#allocation3 + $0x8] sm:$0xfc]
    %v3209 = vld [vmem:[#allocation3 + $0x10] sm:$0xff]
    %v3210 = vld [vmem:[#allocation3 + $0x18] sm:$0xff]
    %v3211 = vpack.c.bf16 %v3209, %v3207
    %v3212 = vpack.c.bf16 %v3210, %v3208
    %v3215 = vrot.slane %v3211, 1
    %v3216 = vrot.slane %v3212, 1
    %v3236 = vunpack.c.l.b16 %v3189
    %v3237 = vunpack.c.h.b16 %v3189
    %v3238 = vunpack.c.l.b16 %v3190
    %v3239 = vunpack.c.h.b16 %v3190
    %v3240 = vunpack.c.l.b16 %v3191
    %v3241 = vunpack.c.h.b16 %v3191
    %v3242 = vunpack.c.l.b16 %v3192
    %v3243 = vunpack.c.h.b16 %v3192
    %v3244 = vunpack.c.l.b16 %v3193
    %v3245 = vunpack.c.h.b16 %v3193
    %v3246 = vunpack.c.l.b16 %v3194
    %v3247 = vunpack.c.h.b16 %v3194
    %v3248 = vunpack.c.l.b16 %v3195
    %v3249 = vunpack.c.h.b16 %v3195
    %v3250 = vunpack.c.l.b16 %v3196
    %v3251 = vunpack.c.h.b16 %v3196
    %v3252 = vunpack.c.l.b16 %v3197
    %v3253 = vunpack.c.h.b16 %v3197
    %v3254 = vunpack.c.l.b16 %v3198
    %v3255 = vunpack.c.h.b16 %v3198
    %v3256 = vunpack.c.l.b16 %v3199
    %v3257 = vunpack.c.h.b16 %v3199
    %v3258 = vunpack.c.l.b16 %v3200
    %v3259 = vunpack.c.h.b16 %v3200
    %v3260 = vunpack.c.l.b16 %v3201
    %v3261 = vunpack.c.h.b16 %v3201
    %v3262 = vunpack.c.l.b16 %v3202
    %v3263 = vunpack.c.h.b16 %v3202
    %v3264 = vunpack.c.l.b16 %v3203
    %v3265 = vunpack.c.h.b16 %v3203
    %v3266 = vunpack.c.l.b16 %v3204
    %v3267 = vunpack.c.h.b16 %v3204
    %v3268 = vunpack.c.l.b16 %v3205
    %v3269 = vunpack.c.h.b16 %v3205
    %v3270 = vunpack.c.l.b16 %v3206
    %v3271 = vunpack.c.h.b16 %v3206
    %v3272 = vpack.c.b16 %v3238, %v3236
    %v3273 = vpack.c.b16 %v3239, %v3237
    %v3274 = vpack.c.b16 %v3242, %v3240
    %v3275 = vpack.c.b16 %v3243, %v3241
    %v3276 = vpack.c.b16 %v3246, %v3244
    %v3277 = vpack.c.b16 %v3247, %v3245
    %v3278 = vpack.c.b16 %v3250, %v3248
    %v3279 = vpack.c.b16 %v3251, %v3249
    %v3280 = vpack.c.b16 %v3254, %v3252
    %v3281 = vpack.c.b16 %v3255, %v3253
    %v3282 = vpack.c.b16 %v3258, %v3256
    %v3283 = vpack.c.b16 %v3259, %v3257
    %v3284 = vpack.c.b16 %v3262, %v3260
    %v3285 = vpack.c.b16 %v3263, %v3261
    %v3286 = vpack.c.b16 %v3266, %v3264
    %v3287 = vpack.c.b16 %v3267, %v3265
    %v3288 = vpack.c.b16 %v3270, %v3268
    %v3289 = vpack.c.b16 %v3271, %v3269
    %v3309 = vsel %vm89, %v3216, 0
    %3311 = vmatprep.subr.bf16.mxu0 %v3273
    %3312 = vmatpush1.bf16.msra.mxu0 %v3272
    %3313 = vmatprep.subr.bf16.mxu0 %v3275
    %3314 = vmatpush1.bf16.msra.mxu0 %v3274
    %3315 = vmatprep.subr.bf16.mxu0 %v3277
    %3316 = vmatpush1.bf16.msra.mxu0 %v3276
    %3317 = vmatprep.subr.bf16.mxu0 %v3279
    %3318 = vmatpush1.bf16.msra.mxu0 %v3278
    %3319 = vmatprep.subr.bf16.mxu0 %v3281
    %3320 = vmatpush1.bf16.msra.mxu0 %v3280
    %3321 = vmatprep.subr.bf16.mxu0 %v3283
    %3322 = vmatpush1.bf16.msra.mxu0 %v3282
    %3323 = vmatprep.subr.bf16.mxu0 %v3285
    %3324 = vmatpush1.bf16.msra.mxu0 %v3284
    %3325 = vmatprep.subr.bf16.mxu0 %v3287
    %3326 = vmatpush1.bf16.msra.mxu0 %v3286
    %3327 = vmatprep.subr.bf16.mxu0 %v3289
    %3328 = vmatpush1.bf16.msra.mxu0 %v3288
    %3329 = vmatprep.subr.bf16.mxu0 0
    %3330 = vmatpush1.bf16.msra.mxu0 0
    %3331 = vmatprep.subr.bf16.mxu0 0
    %3332 = vmatpush1.bf16.msra.mxu0 0
    %3333 = vmatprep.subr.bf16.mxu0 0
    %3334 = vmatpush1.bf16.msra.mxu0 0
    %3335 = vmatprep.subr.bf16.mxu0 0
    %3336 = vmatpush1.bf16.msra.mxu0 0
    %3337 = vmatprep.subr.bf16.mxu0 0
    %3338 = vmatpush1.bf16.msra.mxu0 0
    %3339 = vmatprep.subr.bf16.mxu0 0
    %3340 = vmatpush1.bf16.msra.mxu0 0
    %3341 = vmatprep.subr.bf16.mxu0 0
    %3342 = vmatpush1.bf16.msra.mxu0 0
    %3343 = vmatprep.mubr.bf16.mxu0 %v3309
    %3344 = vmatmul.mubr.bf16.gmra.mrb[0].mxu0 %v3215
    %v3345 = vpop.f32.mrb[0].mxu0
    %v3346 = vadd.f32 0.0, %v3345
    %v3347 = vpop.f32.mrb[0].mxu0
    %v3348 = vadd.f32 0.0, %v3347
    %v3349 = vpop.f32.mrb[0].mxu0
    %v3350 = vadd.f32 0.0, %v3349
    %v3351 = vpop.f32.mrb[0].mxu0
    %v3352 = vadd.f32 0.0, %v3351
    %3353 = vdwg.mxu0
    %v3354 = vadd.f32 %v3067, %v3346
    %v3355 = vadd.f32 %v3069, %v3348
    %v3356 = vadd.f32 %v3071, %v3350
    %v3357 = vadd.f32 %v3073, %v3352
    %v3358 = vld [vmem:[%s2621] sm:$0xfc]
    %v3359 = vld [vmem:[%s2621 + $0x8] sm:$0xfc]
    %v3360 = vld [vmem:[%s2621 + $0x10] sm:$0xff]
    %v3361 = vld [vmem:[%s2621 + $0x18] sm:$0xff]
    %v3362 = vpack.c.bf16 %v3360, %v3358
    %v3363 = vpack.c.bf16 %v3361, %v3359
    %v3366 = vrot.slane %v3362, 1
    %v3367 = vrot.slane %v3363, 1
    %v3370 = vsel %vm89, %v3367, 0
    %3372 = vmatprep.subr.bf16.mxu0 %v3273
    %3373 = vmatpush1.bf16.msra.mxu0 %v3272
    %3374 = vmatprep.subr.bf16.mxu0 %v3275
    %3375 = vmatpush1.bf16.msra.mxu0 %v3274
    %3376 = vmatprep.subr.bf16.mxu0 %v3277
    %3377 = vmatpush1.bf16.msra.mxu0 %v3276
    %3378 = vmatprep.subr.bf16.mxu0 %v3279
    %3379 = vmatpush1.bf16.msra.mxu0 %v3278
    %3380 = vmatprep.subr.bf16.mxu0 %v3281
    %3381 = vmatpush1.bf16.msra.mxu0 %v3280
    %3382 = vmatprep.subr.bf16.mxu0 %v3283
    %3383 = vmatpush1.bf16.msra.mxu0 %v3282
    %3384 = vmatprep.subr.bf16.mxu0 %v3285
    %3385 = vmatpush1.bf16.msra.mxu0 %v3284
    %3386 = vmatprep.subr.bf16.mxu0 %v3287
    %3387 = vmatpush1.bf16.msra.mxu0 %v3286
    %3388 = vmatprep.subr.bf16.mxu0 %v3289
    %3389 = vmatpush1.bf16.msra.mxu0 %v3288
    %3390 = vmatprep.subr.bf16.mxu0 0
    %3391 = vmatpush1.bf16.msra.mxu0 0
    %3392 = vmatprep.subr.bf16.mxu0 0
    %3393 = vmatpush1.bf16.msra.mxu0 0
    %3394 = vmatprep.subr.bf16.mxu0 0
    %3395 = vmatpush1.bf16.msra.mxu0 0
    %3396 = vmatprep.subr.bf16.mxu0 0
    %3397 = vmatpush1.bf16.msra.mxu0 0
    %3398 = vmatprep.subr.bf16.mxu0 0
    %3399 = vmatpush1.bf16.msra.mxu0 0
    %3400 = vmatprep.subr.bf16.mxu0 0
    %3401 = vmatpush1.bf16.msra.mxu0 0
    %3402 = vmatprep.subr.bf16.mxu0 0
    %3403 = vmatpush1.bf16.msra.mxu0 0
    %3404 = vmatprep.mubr.bf16.mxu0 %v3370
    %3405 = vmatmul.mubr.bf16.gmra.mrb[0].mxu0 %v3366
    %v3406 = vpop.f32.mrb[0].mxu0
    %v3407 = vadd.f32 0.0, %v3406
    %v3408 = vpop.f32.mrb[0].mxu0
    %v3409 = vadd.f32 0.0, %v3408
    %v3410 = vpop.f32.mrb[0].mxu0
    %v3411 = vadd.f32 0.0, %v3410
    %v3412 = vpop.f32.mrb[0].mxu0
    %v3413 = vadd.f32 0.0, %v3412
    %3414 = vdwg.mxu0
    %v3415 = vadd.f32 %v3180, %v3407
    %v3416 = vadd.f32 %v3182, %v3409
    %v3417 = vadd.f32 %v3184, %v3411
    %v3418 = vadd.f32 %v3186, %v3413
    %s3419 = scalar_lea.vmem %s11, 432
    %v3420 = vld [vmem:[%s3419] sm:$0xff]
    %v3421 = vld [vmem:[%s3419 + $0x8] sm:$0xff]
    %v3422 = vld [vmem:[%s3419 + $0x10] sm:$0xff]
    %v3423 = vld [vmem:[%s3419 + $0x18] sm:$0xff]
    %v3424 = vld [vmem:[%s3419 + $0x20] sm:$0xff]
    %v3425 = vld [vmem:[%s3419 + $0x28] sm:$0xff]
    %v3426 = vld [vmem:[%s3419 + $0x30] sm:$0xff]
    %v3427 = vld [vmem:[%s3419 + $0x38] sm:$0xff]
    %v3428 = vld [vmem:[%s3419 + $0x40] sm:$0xff]
    %v3429 = vld [vmem:[%s3419 + $0x48] sm:$0xff]
    %v3430 = vld [vmem:[%s3419 + $0x50] sm:$0xff]
    %v3431 = vld [vmem:[%s3419 + $0x58] sm:$0xff]
    %v3432 = vld [vmem:[%s3419 + $0x60] sm:$0xff]
    %v3433 = vld [vmem:[%s3419 + $0x68] sm:$0xff]
    %v3434 = vld [vmem:[%s3419 + $0x70] sm:$0xff]
    %v3435 = vld [vmem:[%s3419 + $0x78] sm:$0xff]
    %v3436 = vld [vmem:[%s3419 + $0x80] sm:$0xff]
    %v3437 = vld [vmem:[%s3419 + $0x88] sm:$0xff]
    %v3438 = vld [vmem:[#allocation3] sm:$0xf8]
    %v3439 = vld [vmem:[#allocation3 + $0x8] sm:$0xf8]
    %v3440 = vld [vmem:[#allocation3 + $0x10] sm:$0xff]
    %v3441 = vld [vmem:[#allocation3 + $0x18] sm:$0xff]
    %v3442 = vld [vmem:[#allocation3 + $0x20] sm:$0x1]
    %v3443 = vld [vmem:[#allocation3 + $0x28] sm:$0x1]
    %v3444 = vpack.c.bf16 %v3440, %v3438
    %v3445 = vpack.c.bf16 %v3441, %v3439
    %v3446 = vpack.c.bf16 %v3442, %v3442
    %v3447 = vpack.c.bf16 %v3443, %v3443
    %vm3448 = vsmask.f32 6400
    %v3450 = vshrl.u32 %v3444, 16
    %v3452 = vrot.slane %v3450, 1
    %v3453 = vshll.u32 %v3444, 16
    %v3455 = vrot.slane %v3453, 2
    %v3456 = vor.u32 %v3452, %v3455
    %v3458 = vshll.u32 %v3446, 16
    %v3460 = vrot.slane %v3458, 2
    %v3461 = vsel %vm3448, %v3456, %v3460
    %v3463 = vshrl.u32 %v3445, 16
    %v3465 = vrot.slane %v3463, 1
    %v3466 = vshll.u32 %v3445, 16
    %v3468 = vrot.slane %v3466, 2
    %v3469 = vor.u32 %v3465, %v3468
    %v3471 = vshll.u32 %v3447, 16
    %v3473 = vrot.slane %v3471, 2
    %v3474 = vsel %vm3448, %v3469, %v3473
    %v3494 = vunpack.c.l.b16 %v3420
    %v3495 = vunpack.c.h.b16 %v3420
    %v3496 = vunpack.c.l.b16 %v3421
    %v3497 = vunpack.c.h.b16 %v3421
    %v3498 = vunpack.c.l.b16 %v3422
    %v3499 = vunpack.c.h.b16 %v3422
    %v3500 = vunpack.c.l.b16 %v3423
    %v3501 = vunpack.c.h.b16 %v3423
    %v3502 = vunpack.c.l.b16 %v3424
    %v3503 = vunpack.c.h.b16 %v3424
    %v3504 = vunpack.c.l.b16 %v3425
    %v3505 = vunpack.c.h.b16 %v3425
    %v3506 = vunpack.c.l.b16 %v3426
    %v3507 = vunpack.c.h.b16 %v3426
    %v3508 = vunpack.c.l.b16 %v3427
    %v3509 = vunpack.c.h.b16 %v3427
    %v3510 = vunpack.c.l.b16 %v3428
    %v3511 = vunpack.c.h.b16 %v3428
    %v3512 = vunpack.c.l.b16 %v3429
    %v3513 = vunpack.c.h.b16 %v3429
    %v3514 = vunpack.c.l.b16 %v3430
    %v3515 = vunpack.c.h.b16 %v3430
    %v3516 = vunpack.c.l.b16 %v3431
    %v3517 = vunpack.c.h.b16 %v3431
    %v3518 = vunpack.c.l.b16 %v3432
    %v3519 = vunpack.c.h.b16 %v3432
    %v3520 = vunpack.c.l.b16 %v3433
    %v3521 = vunpack.c.h.b16 %v3433
    %v3522 = vunpack.c.l.b16 %v3434
    %v3523 = vunpack.c.h.b16 %v3434
    %v3524 = vunpack.c.l.b16 %v3435
    %v3525 = vunpack.c.h.b16 %v3435
    %v3526 = vunpack.c.l.b16 %v3436
    %v3527 = vunpack.c.h.b16 %v3436
    %v3528 = vunpack.c.l.b16 %v3437
    %v3529 = vunpack.c.h.b16 %v3437
    %v3530 = vpack.c.b16 %v3496, %v3494
    %v3531 = vpack.c.b16 %v3497, %v3495
    %v3532 = vpack.c.b16 %v3500, %v3498
    %v3533 = vpack.c.b16 %v3501, %v3499
    %v3534 = vpack.c.b16 %v3504, %v3502
    %v3535 = vpack.c.b16 %v3505, %v3503
    %v3536 = vpack.c.b16 %v3508, %v3506
    %v3537 = vpack.c.b16 %v3509, %v3507
    %v3538 = vpack.c.b16 %v3512, %v3510
    %v3539 = vpack.c.b16 %v3513, %v3511
    %v3540 = vpack.c.b16 %v3516, %v3514
    %v3541 = vpack.c.b16 %v3517, %v3515
    %v3542 = vpack.c.b16 %v3520, %v3518
    %v3543 = vpack.c.b16 %v3521, %v3519
    %v3544 = vpack.c.b16 %v3524, %v3522
    %v3545 = vpack.c.b16 %v3525, %v3523
    %v3546 = vpack.c.b16 %v3528, %v3526
    %v3547 = vpack.c.b16 %v3529, %v3527
    %v3567 = vsel %vm89, %v3474, 0
    %3569 = vmatprep.subr.bf16.mxu0 %v3531
    %3570 = vmatpush1.bf16.msra.mxu0 %v3530
    %3571 = vmatprep.subr.bf16.mxu0 %v3533
    %3572 = vmatpush1.bf16.msra.mxu0 %v3532
    %3573 = vmatprep.subr.bf16.mxu0 %v3535
    %3574 = vmatpush1.bf16.msra.mxu0 %v3534
    %3575 = vmatprep.subr.bf16.mxu0 %v3537
    %3576 = vmatpush1.bf16.msra.mxu0 %v3536
    %3577 = vmatprep.subr.bf16.mxu0 %v3539
    %3578 = vmatpush1.bf16.msra.mxu0 %v3538
    %3579 = vmatprep.subr.bf16.mxu0 %v3541
    %3580 = vmatpush1.bf16.msra.mxu0 %v3540
    %3581 = vmatprep.subr.bf16.mxu0 %v3543
    %3582 = vmatpush1.bf16.msra.mxu0 %v3542
    %3583 = vmatprep.subr.bf16.mxu0 %v3545
    %3584 = vmatpush1.bf16.msra.mxu0 %v3544
    %3585 = vmatprep.subr.bf16.mxu0 %v3547
    %3586 = vmatpush1.bf16.msra.mxu0 %v3546
    %3587 = vmatprep.subr.bf16.mxu0 0
    %3588 = vmatpush1.bf16.msra.mxu0 0
    %3589 = vmatprep.subr.bf16.mxu0 0
    %3590 = vmatpush1.bf16.msra.mxu0 0
    %3591 = vmatprep.subr.bf16.mxu0 0
    %3592 = vmatpush1.bf16.msra.mxu0 0
    %3593 = vmatprep.subr.bf16.mxu0 0
    %3594 = vmatpush1.bf16.msra.mxu0 0
    %3595 = vmatprep.subr.bf16.mxu0 0
    %3596 = vmatpush1.bf16.msra.mxu0 0
    %3597 = vmatprep.subr.bf16.mxu0 0
    %3598 = vmatpush1.bf16.msra.mxu0 0
    %3599 = vmatprep.subr.bf16.mxu0 0
    %3600 = vmatpush1.bf16.msra.mxu0 0
    %3601 = vmatprep.mubr.bf16.mxu0 %v3567
    %3602 = vmatmul.mubr.bf16.gmra.mrb[0].mxu0 %v3461
    %v3603 = vpop.f32.mrb[0].mxu0
    %v3604 = vadd.f32 0.0, %v3603
    %v3605 = vpop.f32.mrb[0].mxu0
    %v3606 = vadd.f32 0.0, %v3605
    %v3607 = vpop.f32.mrb[0].mxu0
    %v3608 = vadd.f32 0.0, %v3607
    %v3609 = vpop.f32.mrb[0].mxu0
    %v3610 = vadd.f32 0.0, %v3609
    %3611 = vdwg.mxu0
    %v3612 = vadd.f32 %v3354, %v3604
    %v3613 = vadd.f32 %v3355, %v3606
    %v3614 = vadd.f32 %v3356, %v3608
    %v3615 = vadd.f32 %v3357, %v3610
    %v3616 = vld [vmem:[%s2621] sm:$0xf8]
    %v3617 = vld [vmem:[%s2621 + $0x8] sm:$0xf8]
    %v3618 = vld [vmem:[%s2621 + $0x10] sm:$0xff]
    %v3619 = vld [vmem:[%s2621 + $0x18] sm:$0xff]
    %v3620 = vld [vmem:[%s2621 + $0x20] sm:$0x1]
    %v3621 = vld [vmem:[%s2621 + $0x28] sm:$0x1]
    %v3622 = vpack.c.bf16 %v3618, %v3616
    %v3623 = vpack.c.bf16 %v3619, %v3617
    %v3624 = vpack.c.bf16 %v3620, %v3620
    %v3625 = vpack.c.bf16 %v3621, %v3621
    %v3627 = vshrl.u32 %v3622, 16
    %v3629 = vrot.slane %v3627, 1
    %v3630 = vshll.u32 %v3622, 16
    %v3632 = vrot.slane %v3630, 2
    %v3633 = vor.u32 %v3629, %v3632
    %v3635 = vshll.u32 %v3624, 16
    %v3637 = vrot.slane %v3635, 2
    %v3638 = vsel %vm3448, %v3633, %v3637
    %v3640 = vshrl.u32 %v3623, 16
    %v3642 = vrot.slane %v3640, 1
    %v3643 = vshll.u32 %v3623, 16
    %v3645 = vrot.slane %v3643, 2
    %v3646 = vor.u32 %v3642, %v3645
    %v3648 = vshll.u32 %v3625, 16
    %v3650 = vrot.slane %v3648, 2
    %v3651 = vsel %vm3448, %v3646, %v3650
    %v3654 = vsel %vm89, %v3651, 0
    %3656 = vmatprep.subr.bf16.mxu0 %v3531
    %3657 = vmatpush1.bf16.msra.mxu0 %v3530
    %3658 = vmatprep.subr.bf16.mxu0 %v3533
    %3659 = vmatpush1.bf16.msra.mxu0 %v3532
    %3660 = vmatprep.subr.bf16.mxu0 %v3535
    %3661 = vmatpush1.bf16.msra.mxu0 %v3534
    %3662 = vmatprep.subr.bf16.mxu0 %v3537
    %3663 = vmatpush1.bf16.msra.mxu0 %v3536
    %3664 = vmatprep.subr.bf16.mxu0 %v3539
    %3665 = vmatpush1.bf16.msra.mxu0 %v3538
    %3666 = vmatprep.subr.bf16.mxu0 %v3541
    %3667 = vmatpush1.bf16.msra.mxu0 %v3540
    %3668 = vmatprep.subr.bf16.mxu0 %v3543
    %3669 = vmatpush1.bf16.msra.mxu0 %v3542
    %3670 = vmatprep.subr.bf16.mxu0 %v3545
    %3671 = vmatpush1.bf16.msra.mxu0 %v3544
    %3672 = vmatprep.subr.bf16.mxu0 %v3547
    %3673 = vmatpush1.bf16.msra.mxu0 %v3546
    %3674 = vmatprep.subr.bf16.mxu0 0
    %3675 = vmatpush1.bf16.msra.mxu0 0
    %3676 = vmatprep.subr.bf16.mxu0 0
    %3677 = vmatpush1.bf16.msra.mxu0 0
    %3678 = vmatprep.subr.bf16.mxu0 0
    %3679 = vmatpush1.bf16.msra.mxu0 0
    %3680 = vmatprep.subr.bf16.mxu0 0
    %3681 = vmatpush1.bf16.msra.mxu0 0
    %3682 = vmatprep.subr.bf16.mxu0 0
    %3683 = vmatpush1.bf16.msra.mxu0 0
    %3684 = vmatprep.subr.bf16.mxu0 0
    %3685 = vmatpush1.bf16.msra.mxu0 0
    %3686 = vmatprep.subr.bf16.mxu0 0
    %3687 = vmatpush1.bf16.msra.mxu0 0
    %3688 = vmatprep.mubr.bf16.mxu0 %v3654
    %3689 = vmatmul.mubr.bf16.gmra.mrb[0].mxu0 %v3638
    %v3690 = vpop.f32.mrb[0].mxu0
    %v3691 = vadd.f32 0.0, %v3690
    %v3692 = vpop.f32.mrb[0].mxu0
    %v3693 = vadd.f32 0.0, %v3692
    %v3694 = vpop.f32.mrb[0].mxu0
    %v3695 = vadd.f32 0.0, %v3694
    %v3696 = vpop.f32.mrb[0].mxu0
    %v3697 = vadd.f32 0.0, %v3696
    %3698 = vdwg.mxu0
    %v3699 = vadd.f32 %v3415, %v3691
    %v3700 = vadd.f32 %v3416, %v3693
    %v3701 = vadd.f32 %v3417, %v3695
    %v3702 = vadd.f32 %v3418, %v3697
    %s3703 = scalar_lea.vmem %s11, 576
    %v3704 = vld [vmem:[%s3703] sm:$0xff]
    %v3705 = vld [vmem:[%s3703 + $0x8] sm:$0xff]
    %v3706 = vld [vmem:[%s3703 + $0x10] sm:$0xff]
    %v3707 = vld [vmem:[%s3703 + $0x18] sm:$0xff]
    %v3708 = vld [vmem:[%s3703 + $0x20] sm:$0xff]
    %v3709 = vld [vmem:[%s3703 + $0x28] sm:$0xff]
    %v3710 = vld [vmem:[%s3703 + $0x30] sm:$0xff]
    %v3711 = vld [vmem:[%s3703 + $0x38] sm:$0xff]
    %v3712 = vld [vmem:[%s3703 + $0x40] sm:$0xff]
    %v3713 = vld [vmem:[%s3703 + $0x48] sm:$0xff]
    %v3714 = vld [vmem:[%s3703 + $0x50] sm:$0xff]
    %v3715 = vld [vmem:[%s3703 + $0x58] sm:$0xff]
    %v3716 = vld [vmem:[%s3703 + $0x60] sm:$0xff]
    %v3717 = vld [vmem:[%s3703 + $0x68] sm:$0xff]
    %v3718 = vld [vmem:[%s3703 + $0x70] sm:$0xff]
    %v3719 = vld [vmem:[%s3703 + $0x78] sm:$0xff]
    %v3720 = vld [vmem:[%s3703 + $0x80] sm:$0xff]
    %v3721 = vld [vmem:[%s3703 + $0x88] sm:$0xff]
    %v3722 = vld [vmem:[#allocation3] sm:$0xf0]
    %v3723 = vld [vmem:[#allocation3 + $0x8] sm:$0xf0]
    %v3724 = vld [vmem:[#allocation3 + $0x20] sm:$0x3]
    %v3725 = vld [vmem:[#allocation3 + $0x28] sm:$0x3]
    %v3726 = vpack.c.bf16 %v3440, %v3722
    %v3727 = vpack.c.bf16 %v3441, %v3723
    %v3728 = vpack.c.bf16 %v3724, %v3724
    %v3729 = vpack.c.bf16 %v3725, %v3725
    %vm3734 = vcmask 1045504
    %v3735 = vrot.slane %v3726, 2
    %v3736 = vrot.slane %v3728, 2
    %v3737 = vsel %vm3734, %v3735, %v3736
    %v3738 = vrot.slane %v3727, 2
    %v3739 = vrot.slane %v3729, 2
    %v3740 = vsel %vm3734, %v3738, %v3739
    %v3760 = vunpack.c.l.b16 %v3704
    %v3761 = vunpack.c.h.b16 %v3704
    %v3762 = vunpack.c.l.b16 %v3705
    %v3763 = vunpack.c.h.b16 %v3705
    %v3764 = vunpack.c.l.b16 %v3706
    %v3765 = vunpack.c.h.b16 %v3706
    %v3766 = vunpack.c.l.b16 %v3707
    %v3767 = vunpack.c.h.b16 %v3707
    %v3768 = vunpack.c.l.b16 %v3708
    %v3769 = vunpack.c.h.b16 %v3708
    %v3770 = vunpack.c.l.b16 %v3709
    %v3771 = vunpack.c.h.b16 %v3709
    %v3772 = vunpack.c.l.b16 %v3710
    %v3773 = vunpack.c.h.b16 %v3710
    %v3774 = vunpack.c.l.b16 %v3711
    %v3775 = vunpack.c.h.b16 %v3711
    %v3776 = vunpack.c.l.b16 %v3712
    %v3777 = vunpack.c.h.b16 %v3712
    %v3778 = vunpack.c.l.b16 %v3713
    %v3779 = vunpack.c.h.b16 %v3713
    %v3780 = vunpack.c.l.b16 %v3714
    %v3781 = vunpack.c.h.b16 %v3714
    %v3782 = vunpack.c.l.b16 %v3715
    %v3783 = vunpack.c.h.b16 %v3715
    %v3784 = vunpack.c.l.b16 %v3716
    %v3785 = vunpack.c.h.b16 %v3716
    %v3786 = vunpack.c.l.b16 %v3717
    %v3787 = vunpack.c.h.b16 %v3717
    %v3788 = vunpack.c.l.b16 %v3718
    %v3789 = vunpack.c.h.b16 %v3718
    %v3790 = vunpack.c.l.b16 %v3719
    %v3791 = vunpack.c.h.b16 %v3719
    %v3792 = vunpack.c.l.b16 %v3720
    %v3793 = vunpack.c.h.b16 %v3720
    %v3794 = vunpack.c.l.b16 %v3721
    %v3795 = vunpack.c.h.b16 %v3721
    %v3796 = vpack.c.b16 %v3762, %v3760
    %v3797 = vpack.c.b16 %v3763, %v3761
    %v3798 = vpack.c.b16 %v3766, %v3764
    %v3799 = vpack.c.b16 %v3767, %v3765
    %v3800 = vpack.c.b16 %v3770, %v3768
    %v3801 = vpack.c.b16 %v3771, %v3769
    %v3802 = vpack.c.b16 %v3774, %v3772
    %v3803 = vpack.c.b16 %v3775, %v3773
    %v3804 = vpack.c.b16 %v3778, %v3776
    %v3805 = vpack.c.b16 %v3779, %v3777
    %v3806 = vpack.c.b16 %v3782, %v3780
    %v3807 = vpack.c.b16 %v3783, %v3781
    %v3808 = vpack.c.b16 %v3786, %v3784
    %v3809 = vpack.c.b16 %v3787, %v3785
    %v3810 = vpack.c.b16 %v3790, %v3788
    %v3811 = vpack.c.b16 %v3791, %v3789
    %v3812 = vpack.c.b16 %v3794, %v3792
    %v3813 = vpack.c.b16 %v3795, %v3793
    %v3833 = vsel %vm89, %v3740, 0
    %3835 = vmatprep.subr.bf16.mxu0 %v3797
    %3836 = vmatpush1.bf16.msra.mxu0 %v3796
    %3837 = vmatprep.subr.bf16.mxu0 %v3799
    %3838 = vmatpush1.bf16.msra.mxu0 %v3798
    %3839 = vmatprep.subr.bf16.mxu0 %v3801
    %3840 = vmatpush1.bf16.msra.mxu0 %v3800
    %3841 = vmatprep.subr.bf16.mxu0 %v3803
    %3842 = vmatpush1.bf16.msra.mxu0 %v3802
    %3843 = vmatprep.subr.bf16.mxu0 %v3805
    %3844 = vmatpush1.bf16.msra.mxu0 %v3804
    %3845 = vmatprep.subr.bf16.mxu0 %v3807
    %3846 = vmatpush1.bf16.msra.mxu0 %v3806
    %3847 = vmatprep.subr.bf16.mxu0 %v3809
    %3848 = vmatpush1.bf16.msra.mxu0 %v3808
    %3849 = vmatprep.subr.bf16.mxu0 %v3811
    %3850 = vmatpush1.bf16.msra.mxu0 %v3810
    %3851 = vmatprep.subr.bf16.mxu0 %v3813
    %3852 = vmatpush1.bf16.msra.mxu0 %v3812
    %3853 = vmatprep.subr.bf16.mxu0 0
    %3854 = vmatpush1.bf16.msra.mxu0 0
    %3855 = vmatprep.subr.bf16.mxu0 0
    %3856 = vmatpush1.bf16.msra.mxu0 0
    %3857 = vmatprep.subr.bf16.mxu0 0
    %3858 = vmatpush1.bf16.msra.mxu0 0
    %3859 = vmatprep.subr.bf16.mxu0 0
    %3860 = vmatpush1.bf16.msra.mxu0 0
    %3861 = vmatprep.subr.bf16.mxu0 0
    %3862 = vmatpush1.bf16.msra.mxu0 0
    %3863 = vmatprep.subr.bf16.mxu0 0
    %3864 = vmatpush1.bf16.msra.mxu0 0
    %3865 = vmatprep.subr.bf16.mxu0 0
    %3866 = vmatpush1.bf16.msra.mxu0 0
    %3867 = vmatprep.mubr.bf16.mxu0 %v3833
    %3868 = vmatmul.mubr.bf16.gmra.mrb[0].mxu0 %v3737
    %v3869 = vpop.f32.mrb[0].mxu0
    %v3870 = vadd.f32 0.0, %v3869
    %v3871 = vpop.f32.mrb[0].mxu0
    %v3872 = vadd.f32 0.0, %v3871
    %v3873 = vpop.f32.mrb[0].mxu0
    %v3874 = vadd.f32 0.0, %v3873
    %v3875 = vpop.f32.mrb[0].mxu0
    %v3876 = vadd.f32 0.0, %v3875
    %3877 = vdwg.mxu0
    %v3878 = vadd.f32 %v3612, %v3870
    %v3879 = vadd.f32 %v3613, %v3872
    %v3880 = vadd.f32 %v3614, %v3874
    %v3881 = vadd.f32 %v3615, %v3876
    %v3882 = vld [vmem:[%s2621] sm:$0xf0]
    %v3883 = vld [vmem:[%s2621 + $0x8] sm:$0xf0]
    %v3884 = vld [vmem:[%s2621 + $0x20] sm:$0x3]
    %v3885 = vld [vmem:[%s2621 + $0x28] sm:$0x3]
    %v3886 = vpack.c.bf16 %v3618, %v3882
    %v3887 = vpack.c.bf16 %v3619, %v3883
    %v3888 = vpack.c.bf16 %v3884, %v3884
    %v3889 = vpack.c.bf16 %v3885, %v3885
    %v3894 = vrot.slane %v3886, 2
    %v3895 = vrot.slane %v3888, 2
    %v3896 = vsel %vm3734, %v3894, %v3895
    %v3897 = vrot.slane %v3887, 2
    %v3898 = vrot.slane %v3889, 2
    %v3899 = vsel %vm3734, %v3897, %v3898
    %v3902 = vsel %vm89, %v3899, 0
    %3904 = vmatprep.subr.bf16.mxu0 %v3797
    %3905 = vmatpush1.bf16.msra.mxu0 %v3796
    %3906 = vmatprep.subr.bf16.mxu0 %v3799
    %3907 = vmatpush1.bf16.msra.mxu0 %v3798
    %3908 = vmatprep.subr.bf16.mxu0 %v3801
    %3909 = vmatpush1.bf16.msra.mxu0 %v3800
    %3910 = vmatprep.subr.bf16.mxu0 %v3803
    %3911 = vmatpush1.bf16.msra.mxu0 %v3802
    %3912 = vmatprep.subr.bf16.mxu0 %v3805
    %3913 = vmatpush1.bf16.msra.mxu0 %v3804
    %3914 = vmatprep.subr.bf16.mxu0 %v3807
    %3915 = vmatpush1.bf16.msra.mxu0 %v3806
    %3916 = vmatprep.subr.bf16.mxu0 %v3809
    %3917 = vmatpush1.bf16.msra.mxu0 %v3808
    %3918 = vmatprep.subr.bf16.mxu0 %v3811
    %3919 = vmatpush1.bf16.msra.mxu0 %v3810
    %3920 = vmatprep.subr.bf16.mxu0 %v3813
    %3921 = vmatpush1.bf16.msra.mxu0 %v3812
    %3922 = vmatprep.subr.bf16.mxu0 0
    %3923 = vmatpush1.bf16.msra.mxu0 0
    %3924 = vmatprep.subr.bf16.mxu0 0
    %3925 = vmatpush1.bf16.msra.mxu0 0
    %3926 = vmatprep.subr.bf16.mxu0 0
    %3927 = vmatpush1.bf16.msra.mxu0 0
    %3928 = vmatprep.subr.bf16.mxu0 0
    %3929 = vmatpush1.bf16.msra.mxu0 0
    %3930 = vmatprep.subr.bf16.mxu0 0
    %3931 = vmatpush1.bf16.msra.mxu0 0
    %3932 = vmatprep.subr.bf16.mxu0 0
    %3933 = vmatpush1.bf16.msra.mxu0 0
    %3934 = vmatprep.subr.bf16.mxu0 0
    %3935 = vmatpush1.bf16.msra.mxu0 0
    %3936 = vmatprep.mubr.bf16.mxu0 %v3902
    %3937 = vmatmul.mubr.bf16.gmra.mrb[0].mxu0 %v3896
    %v3938 = vpop.f32.mrb[0].mxu0
    %v3939 = vadd.f32 0.0, %v3938
    %v3940 = vpop.f32.mrb[0].mxu0
    %v3941 = vadd.f32 0.0, %v3940
    %v3942 = vpop.f32.mrb[0].mxu0
    %v3943 = vadd.f32 0.0, %v3942
    %v3944 = vpop.f32.mrb[0].mxu0
    %v3945 = vadd.f32 0.0, %v3944
    %3946 = vdwg.mxu0
    %v3947 = vadd.f32 %v3699, %v3939
    %v3948 = vadd.f32 %v3700, %v3941
    %v3949 = vadd.f32 %v3701, %v3943
    %v3950 = vadd.f32 %v3702, %v3945
    %v3952 = vlaneseq
    %v3953 = vshrl.u32 %v3952, 7
    %v3954 = vsub.s32 0, %v3953
    %v3955 = vrot.slane %v2628, %v3954
    %v3956 = vlaneseq
    %v3957 = vshrl.u32 %v3956, 7
    %v3958 = vsub.s32 1, %v3957
    %v3959 = vrot.slane %v2628, %v3958
    %v3962 = vadd.f32 %v3878, %v3955
    %v3963 = vadd.f32 %v3879, %v3959
    %v3964 = vadd.f32 %v3880, %v3955
    %v3965 = vadd.f32 %v3881, %v3959
    %3966 = vst [vmem:[#allocation2] sm:$0xff] %v3962
    %3967 = vst [vmem:[#allocation2 + $0x8] sm:$0xff] %v3963
    %3968 = vst [vmem:[#allocation2 + $0x10] sm:$0x3f] %v3964
    %3969 = vst [vmem:[#allocation2 + $0x18] sm:$0x3f] %v3965
    %v3970 = vsel %vm330, %v3964, 0.0
    %v3971 = vadd.f32 %v3962, %v3970
    %v3972 = vrot.slane %v3971, 4
    %v3973 = vadd.f32 %v3971, %v3972
    %v3974 = vrot.slane %v3973, 2
    %v3975 = vadd.f32 %v3973, %v3974
    %v3976 = vrot.slane %v3975, 1
    %v3977 = vadd.f32 %v3975, %v3976
    %v3978 = vsel %vm330, %v3965, 0.0
    %v3979 = vadd.f32 %v3963, %v3978
    %v3980 = vrot.slane %v3979, 4
    %v3981 = vadd.f32 %v3979, %v3980
    %v3982 = vrot.slane %v3981, 2
    %v3983 = vadd.f32 %v3981, %v3982
    %v3984 = vrot.slane %v3983, 1
    %v3985 = vadd.f32 %v3983, %v3984
    %v3986 = vmul.f32 %v3962, %v3962
    %v3987 = vmul.f32 %v3963, %v3963
    %v3988 = vmul.f32 %v3964, %v3964
    %v3989 = vmul.f32 %v3965, %v3965
    %v3990 = vsel %vm330, %v3988, 0.0
    %v3991 = vadd.f32 %v3986, %v3990
    %v3992 = vrot.slane %v3991, 4
    %v3993 = vadd.f32 %v3991, %v3992
    %v3994 = vrot.slane %v3993, 2
    %v3995 = vadd.f32 %v3993, %v3994
    %v3996 = vrot.slane %v3995, 1
    %v3997 = vadd.f32 %v3995, %v3996
    %v3998 = vsel %vm330, %v3989, 0.0
    %v3999 = vadd.f32 %v3987, %v3998
    %v4000 = vrot.slane %v3999, 4
    %v4001 = vadd.f32 %v3999, %v4000
    %v4002 = vrot.slane %v4001, 2
    %v4003 = vadd.f32 %v4001, %v4002
    %v4004 = vrot.slane %v4003, 1
    %v4005 = vadd.f32 %v4003, %v4004
    %v4006 = vadd.f32 %v3947, %v3955
    %v4007 = vadd.f32 %v3948, %v3959
    %v4008 = vadd.f32 %v3949, %v3955
    %v4009 = vadd.f32 %v3950, %v3959
    %4010 = vst [vmem:[%s1431] sm:$0xff] %v4006
    %4011 = vst [vmem:[%s1431 + $0x8] sm:$0xff] %v4007
    %4012 = vst [vmem:[%s1431 + $0x10] sm:$0x3f] %v4008
    %4013 = vst [vmem:[%s1431 + $0x18] sm:$0x3f] %v4009
    %v4014 = vsel %vm330, %v4008, 0.0
    %v4015 = vadd.f32 %v4006, %v4014
    %v4016 = vrot.slane %v4015, 4
    %v4017 = vadd.f32 %v4015, %v4016
    %v4018 = vrot.slane %v4017, 2
    %v4019 = vadd.f32 %v4017, %v4018
    %v4020 = vrot.slane %v4019, 1
    %v4021 = vadd.f32 %v4019, %v4020
    %v4022 = vsel %vm330, %v4009, 0.0
    %v4023 = vadd.f32 %v4007, %v4022
    %v4024 = vrot.slane %v4023, 4
    %v4025 = vadd.f32 %v4023, %v4024
    %v4026 = vrot.slane %v4025, 2
    %v4027 = vadd.f32 %v4025, %v4026
    %v4028 = vrot.slane %v4027, 1
    %v4029 = vadd.f32 %v4027, %v4028
    %v4030 = vmul.f32 %v4006, %v4006
    %v4031 = vmul.f32 %v4007, %v4007
    %v4032 = vmul.f32 %v4008, %v4008
    %v4033 = vmul.f32 %v4009, %v4009
    %v4034 = vsel %vm330, %v4032, 0.0
    %v4035 = vadd.f32 %v4030, %v4034
    %v4036 = vrot.slane %v4035, 4
    %v4037 = vadd.f32 %v4035, %v4036
    %v4038 = vrot.slane %v4037, 2
    %v4039 = vadd.f32 %v4037, %v4038
    %v4040 = vrot.slane %v4039, 1
    %v4041 = vadd.f32 %v4039, %v4040
    %v4042 = vsel %vm330, %v4033, 0.0
    %v4043 = vadd.f32 %v4031, %v4042
    %v4044 = vrot.slane %v4043, 4
    %v4045 = vadd.f32 %v4043, %v4044
    %v4046 = vrot.slane %v4045, 2
    %v4047 = vadd.f32 %v4045, %v4046
    %v4048 = vrot.slane %v4047, 1
    %v4049 = vadd.f32 %v4047, %v4048
    %v4050 = vsel %vm1484, %v3977, %v4021
    %v4051 = vsel %vm1484, %v3985, %v4029
    %v4052 = vsel %vm1487, %v4050, %v3997
    %v4053 = vsel %vm1487, %v4051, %v4005
    %v4054 = vsel %vm1490, %v4052, %v4041
    %v4055 = vsel %vm1490, %v4053, %v4049
    %4056 = vmatprep.subr.mxu0 0.0
    %4057 = vmatpush1.msra.mxu0 %v2631
    %4058 = vmatprep.subr.mxu0 0.0
    %4059 = vmatpush1.msra.mxu0 %v2632
    %4060 = vmatprep.subr.mxu0 0.0
    %4061 = vmatpush1.msra.mxu0 %v2633
    %4062 = vmatprep.subr.mxu0 0.0
    %4063 = vmatpush1.msra.mxu0 %v2634
    %4064 = vmatprep.subr.mxu0 0.0
    %4065 = vmatpush1.msra.mxu0 %v2635
    %4066 = vmatprep.subr.mxu0 0.0
    %4067 = vmatpush1.msra.mxu0 %v2636
    %4068 = vmatprep.subr.mxu0 0.0
    %4069 = vmatpush1.msra.mxu0 %v2637
    %4070 = vmatprep.subr.mxu0 0.0
    %4071 = vmatpush1.msra.mxu0 %v2638
    %4072 = vmatprep.subr.mxu0 0.0
    %4073 = vmatpush1.msra.mxu0 %v2639
    %4074 = vmatprep.subr.mxu0 0.0
    %4075 = vmatpush1.msra.mxu0 %v2640
    %4076 = vmatprep.subr.mxu0 0.0
    %4077 = vmatpush1.msra.mxu0 %v2641
    %4078 = vmatprep.subr.mxu0 0.0
    %4079 = vmatpush1.msra.mxu0 %v2642
    %4080 = vmatprep.subr.mxu0 0.0
    %4081 = vmatpush1.msra.mxu0 %v2643
    %4082 = vmatprep.subr.mxu0 0.0
    %4083 = vmatpush1.msra.mxu0 %v2644
    %4084 = vmatprep.subr.mxu0 0.0
    %4085 = vmatpush1.msra.mxu0 %v2645
    %4086 = vmatprep.subr.mxu0 0.0
    %4087 = vmatpush1.msra.mxu0 %v2646
    %4088 = vmatprep.subr.mxu0 0.0
    %4089 = vmatpush1.msra.mxu0 %v2647
    %4090 = vmatprep.subr.mxu0 0.0
    %4091 = vmatpush1.msra.mxu0 %v2648
    %4092 = vmatprep.subr.mxu0 0.0
    %4093 = vmatpush1.msra.mxu0 %v2649
    %4094 = vmatprep.subr.mxu0 0.0
    %4095 = vmatpush1.msra.mxu0 %v2650
    %4096 = vmatprep.subr.mxu0 0.0
    %4097 = vmatpush1.msra.mxu0 %v2651
    %4098 = vmatprep.subr.mxu0 0.0
    %4099 = vmatpush1.msra.mxu0 %v2652
    %4100 = vmatprep.subr.mxu0 0.0
    %4101 = vmatpush1.msra.mxu0 %v2653
    %4102 = vmatprep.subr.mxu0 0.0
    %4103 = vmatpush1.msra.mxu0 %v2654
    %4104 = vmatprep.subr.mxu0 0.0
    %4105 = vmatpush1.msra.mxu0 %v2655
    %4106 = vmatprep.subr.mxu0 0.0
    %4107 = vmatpush1.msra.mxu0 %v2656
    %4108 = vmatprep.subr.mxu0 0.0
    %4109 = vmatpush1.msra.mxu0 %v2657
    %4110 = vmatprep.subr.mxu0 0.0
    %4111 = vmatpush1.msra.mxu0 %v2658
    %4112 = vmatprep.subr.mxu0 0.0
    %4113 = vmatpush1.msra.mxu0 %v2659
    %4114 = vmatprep.subr.mxu0 0.0
    %4115 = vmatpush1.msra.mxu0 %v2660
    %4116 = vmatprep.subr.mxu0 0.0
    %4117 = vmatpush1.msra.mxu0 %v2661
    %4118 = vmatprep.subr.mxu0 0.0
    %4119 = vmatpush1.msra.mxu0 %v2662
    %4120 = vmatprep.mubr.f32.mxu0 %v4055
    %4121 = vmatmul.mubr.f32.gmra.mrb[0].mxu0 %v4054
    %v4122 = vpop.f32.mrb[0].mxu0
    %v4123 = vadd.f32 0.0, %v4122
    %v4124 = vpop.f32.mrb[0].mxu0
    %4125 = vdwg.mxu0
    %v4126 = vsel %vm94, %v4123, 0.0
    %v4127 = vrot.slane %v4126, 4
    %v4128 = vadd.f32 %v4126, %v4127
    %v4129 = vrot.slane %v4128, 2
    %v4130 = vadd.f32 %v4128, %v4129
    %v4131 = vrot.slane %v4130, 1
    %v4132 = vadd.f32 %v4130, %v4131
    %v4133 = vmul.f32 %v4132, 0.0025510204
    %v4135 = vrot.slane %v4123, 2
    %v4137 = vsel %vm94, %v4135, 0.0
    %v4138 = vrot.slane %v4137, 4
    %v4139 = vadd.f32 %v4137, %v4138
    %v4140 = vrot.slane %v4139, 2
    %v4141 = vadd.f32 %v4139, %v4140
    %v4142 = vrot.slane %v4141, 1
    %v4143 = vadd.f32 %v4141, %v4142
    %v4144 = vmul.f32 %v4143, 0.0025510204
    %v4145 = vmul.f32 %v4133, %v4133
    %v4146 = vsub.f32 %v4144, %v4145
    %v4147 = vmax.f32 %v4146, 0.0
    %v4148 = vadd.f32 %v4147, 1e-05
    %v4149 = vrsqrt.pop %v4148
    %v4150 = vmul.f32 %v2629, %v4149
    %v4151 = vmul.f32 %v4133, %v4150
    %v4152 = vsub.f32 %v2630, %v4151
    %v4154 = vsel %vm89, %v4150, 0
    %4156 = vmatprep.subr.mxu0 %v2664
    %4157 = vmatpush1.msra.mxu0 %v2663
    %4158 = vmatprep.subr.mxu0 %v2666
    %4159 = vmatpush1.msra.mxu0 %v2665
    %4160 = vmatprep.subr.mxu0 0.0
    %4161 = vmatpush1.msra.mxu0 0.0
    %4162 = vmatprep.subr.mxu0 0.0
    %4163 = vmatpush1.msra.mxu0 0.0
    %4164 = vmatprep.subr.mxu0 0.0
    %4165 = vmatpush1.msra.mxu0 0.0
    %4166 = vmatprep.subr.mxu0 0.0
    %4167 = vmatpush1.msra.mxu0 0.0
    %4168 = vmatprep.subr.mxu0 0.0
    %4169 = vmatpush1.msra.mxu0 0.0
    %4170 = vmatprep.subr.mxu0 0.0
    %4171 = vmatpush1.msra.mxu0 0.0
    %4172 = vmatprep.subr.mxu0 0.0
    %4173 = vmatpush1.msra.mxu0 0.0
    %4174 = vmatprep.subr.mxu0 0.0
    %4175 = vmatpush1.msra.mxu0 0.0
    %4176 = vmatprep.subr.mxu0 0.0
    %4177 = vmatpush1.msra.mxu0 0.0
    %4178 = vmatprep.subr.mxu0 0.0
    %4179 = vmatpush1.msra.mxu0 0.0
    %4180 = vmatprep.subr.mxu0 0.0
    %4181 = vmatpush1.msra.mxu0 0.0
    %4182 = vmatprep.subr.mxu0 0.0
    %4183 = vmatpush1.msra.mxu0 0.0
    %4184 = vmatprep.subr.mxu0 0.0
    %4185 = vmatpush1.msra.mxu0 0.0
    %4186 = vmatprep.subr.mxu0 0.0
    %4187 = vmatpush1.msra.mxu0 0.0
    %4188 = vmatprep.subr.mxu0 0.0
    %4189 = vmatpush1.msra.mxu0 0.0
    %4190 = vmatprep.subr.mxu0 0.0
    %4191 = vmatpush1.msra.mxu0 0.0
    %4192 = vmatprep.subr.mxu0 0.0
    %4193 = vmatpush1.msra.mxu0 0.0
    %4194 = vmatprep.subr.mxu0 0.0
    %4195 = vmatpush1.msra.mxu0 0.0
    %4196 = vmatprep.subr.mxu0 0.0
    %4197 = vmatpush1.msra.mxu0 0.0
    %4198 = vmatprep.subr.mxu0 0.0
    %4199 = vmatpush1.msra.mxu0 0.0
    %4200 = vmatprep.subr.mxu0 0.0
    %4201 = vmatpush1.msra.mxu0 0.0
    %4202 = vmatprep.subr.mxu0 0.0
    %4203 = vmatpush1.msra.mxu0 0.0
    %4204 = vmatprep.subr.mxu0 0.0
    %4205 = vmatpush1.msra.mxu0 0.0
    %4206 = vmatprep.subr.mxu0 0.0
    %4207 = vmatpush1.msra.mxu0 0.0
    %4208 = vmatprep.subr.mxu0 0.0
    %4209 = vmatpush1.msra.mxu0 0.0
    %4210 = vmatprep.subr.mxu0 0.0
    %4211 = vmatpush1.msra.mxu0 0.0
    %4212 = vmatprep.subr.mxu0 0.0
    %4213 = vmatpush1.msra.mxu0 0.0
    %4214 = vmatprep.subr.mxu0 0.0
    %4215 = vmatpush1.msra.mxu0 0.0
    %4216 = vmatprep.subr.mxu0 0.0
    %4217 = vmatpush1.msra.mxu0 0.0
    %4218 = vmatprep.subr.mxu0 0.0
    %4219 = vmatpush1.msra.mxu0 0.0
    %4220 = vmatprep.mubr.f32.mxu0 0.0
    %4221 = vmatmul.mubr.f32.gmra.mrb[0].mxu0 %v4154
    %v4222 = vpop.f32.mrb[0].mxu0
    %v4223 = vadd.f32 0.0, %v4222
    %v4224 = vpop.f32.mrb[0].mxu0
    %v4225 = vadd.f32 0.0, %v4224
    %4226 = vdwg.mxu0
    %v4228 = vsel %vm89, %v4152, 0
    %4230 = vmatprep.subr.mxu0 %v2664
    %4231 = vmatpush1.msra.mxu0 %v2663
    %4232 = vmatprep.subr.mxu0 %v2666
    %4233 = vmatpush1.msra.mxu0 %v2665
    %4234 = vmatprep.subr.mxu0 0.0
    %4235 = vmatpush1.msra.mxu0 0.0
    %4236 = vmatprep.subr.mxu0 0.0
    %4237 = vmatpush1.msra.mxu0 0.0
    %4238 = vmatprep.subr.mxu0 0.0
    %4239 = vmatpush1.msra.mxu0 0.0
    %4240 = vmatprep.subr.mxu0 0.0
    %4241 = vmatpush1.msra.mxu0 0.0
    %4242 = vmatprep.subr.mxu0 0.0
    %4243 = vmatpush1.msra.mxu0 0.0
    %4244 = vmatprep.subr.mxu0 0.0
    %4245 = vmatpush1.msra.mxu0 0.0
    %4246 = vmatprep.subr.mxu0 0.0
    %4247 = vmatpush1.msra.mxu0 0.0
    %4248 = vmatprep.subr.mxu0 0.0
    %4249 = vmatpush1.msra.mxu0 0.0
    %4250 = vmatprep.subr.mxu0 0.0
    %4251 = vmatpush1.msra.mxu0 0.0
    %4252 = vmatprep.subr.mxu0 0.0
    %4253 = vmatpush1.msra.mxu0 0.0
    %4254 = vmatprep.subr.mxu0 0.0
    %4255 = vmatpush1.msra.mxu0 0.0
    %4256 = vmatprep.subr.mxu0 0.0
    %4257 = vmatpush1.msra.mxu0 0.0
    %4258 = vmatprep.subr.mxu0 0.0
    %4259 = vmatpush1.msra.mxu0 0.0
    %4260 = vmatprep.subr.mxu0 0.0
    %4261 = vmatpush1.msra.mxu0 0.0
    %4262 = vmatprep.subr.mxu0 0.0
    %4263 = vmatpush1.msra.mxu0 0.0
    %4264 = vmatprep.subr.mxu0 0.0
    %4265 = vmatpush1.msra.mxu0 0.0
    %4266 = vmatprep.subr.mxu0 0.0
    %4267 = vmatpush1.msra.mxu0 0.0
    %4268 = vmatprep.subr.mxu0 0.0
    %4269 = vmatpush1.msra.mxu0 0.0
    %4270 = vmatprep.subr.mxu0 0.0
    %4271 = vmatpush1.msra.mxu0 0.0
    %4272 = vmatprep.subr.mxu0 0.0
    %4273 = vmatpush1.msra.mxu0 0.0
    %4274 = vmatprep.subr.mxu0 0.0
    %4275 = vmatpush1.msra.mxu0 0.0
    %4276 = vmatprep.subr.mxu0 0.0
    %4277 = vmatpush1.msra.mxu0 0.0
    %4278 = vmatprep.subr.mxu0 0.0
    %4279 = vmatpush1.msra.mxu0 0.0
    %4280 = vmatprep.subr.mxu0 0.0
    %4281 = vmatpush1.msra.mxu0 0.0
    %4282 = vmatprep.subr.mxu0 0.0
    %4283 = vmatpush1.msra.mxu0 0.0
    %4284 = vmatprep.subr.mxu0 0.0
    %4285 = vmatpush1.msra.mxu0 0.0
    %4286 = vmatprep.subr.mxu0 0.0
    %4287 = vmatpush1.msra.mxu0 0.0
    %4288 = vmatprep.subr.mxu0 0.0
    %4289 = vmatpush1.msra.mxu0 0.0
    %4290 = vmatprep.subr.mxu0 0.0
    %4291 = vmatpush1.msra.mxu0 0.0
    %4292 = vmatprep.subr.mxu0 0.0
    %4293 = vmatpush1.msra.mxu0 0.0
    %4294 = vmatprep.mubr.f32.mxu0 0.0
    %4295 = vmatmul.mubr.f32.gmra.mrb[0].mxu0 %v4228
    %v4296 = vpop.f32.mrb[0].mxu0
    %v4297 = vadd.f32 0.0, %v4296
    %v4298 = vpop.f32.mrb[0].mxu0
    %v4299 = vadd.f32 0.0, %v4298
    %4300 = vdwg.mxu0
    %v4301 = vld [vmem:[#allocation2] sm:$0xff]
    %v4302 = vld [vmem:[#allocation2 + $0x8] sm:$0xff]
    %v4303 = vld [vmem:[#allocation2 + $0x10] sm:$0x3f]
    %v4304 = vld [vmem:[#allocation2 + $0x18] sm:$0x3f]
    %v4305 = vlaneseq
    %v4306 = vshrl.u32 %v4305, 7
    %v4307 = vsub.s32 0, %v4306
    %v4308 = vrot.slane %v4223, %v4307
    %v4309 = vlaneseq
    %v4310 = vshrl.u32 %v4309, 7
    %v4311 = vsub.s32 0, %v4310
    %v4312 = vrot.slane %v4225, %v4311
    %v4313 = vmul.f32 %v4301, %v4308
    %v4314 = vmul.f32 %v4302, %v4312
    %v4315 = vmul.f32 %v4303, %v4308
    %v4316 = vmul.f32 %v4304, %v4312
    %v4317 = vlaneseq
    %v4318 = vshrl.u32 %v4317, 7
    %v4319 = vsub.s32 0, %v4318
    %v4320 = vrot.slane %v4297, %v4319
    %v4321 = vlaneseq
    %v4322 = vshrl.u32 %v4321, 7
    %v4323 = vsub.s32 0, %v4322
    %v4324 = vrot.slane %v4299, %v4323
    %v4325 = vadd.f32 %v4313, %v4320
    %v4326 = vadd.f32 %v4314, %v4324
    %v4327 = vadd.f32 %v4315, %v4320
    %v4328 = vadd.f32 %v4316, %v4324
    %v4329 = vmax.f32 %v4325, 0.0
    %v4330 = vmax.f32 %v4326, 0.0
    %v4331 = vmax.f32 %v4327, 0.0
    %v4332 = vmax.f32 %v4328, 0.0
    %v4333 = vpack.c.bf16 %v4331, %v4329
    %v4334 = vpack.c.bf16 %v4332, %v4330
    %v4367 = vunpack.c.l.b16 %v2667
    %v4368 = vunpack.c.l.b16 %v2668
    %v4369 = vunpack.c.l.b16 %v2669
    %v4370 = vunpack.c.l.b16 %v2670
    %v4371 = vunpack.c.l.b16 %v2671
    %v4372 = vunpack.c.l.b16 %v2672
    %v4373 = vunpack.c.l.b16 %v2673
    %v4374 = vunpack.c.l.b16 %v2674
    %v4375 = vunpack.c.l.b16 %v2675
    %v4376 = vunpack.c.l.b16 %v2676
    %v4377 = vunpack.c.l.b16 %v2677
    %v4378 = vunpack.c.l.b16 %v2678
    %v4379 = vunpack.c.l.b16 %v2679
    %v4380 = vunpack.c.l.b16 %v2680
    %v4381 = vunpack.c.l.b16 %v2681
    %v4382 = vunpack.c.l.b16 %v2682
    %v4383 = vunpack.c.l.b16 %v2683
    %v4384 = vunpack.c.l.b16 %v2684
    %v4385 = vunpack.c.l.b16 %v2685
    %v4386 = vunpack.c.l.b16 %v2686
    %v4387 = vunpack.c.l.b16 %v2687
    %v4388 = vunpack.c.l.b16 %v2688
    %v4389 = vunpack.c.l.b16 %v2689
    %v4390 = vunpack.c.l.b16 %v2690
    %v4391 = vunpack.c.l.b16 %v2691
    %v4392 = vunpack.c.l.b16 %v2692
    %v4393 = vunpack.c.l.b16 %v2693
    %v4394 = vunpack.c.l.b16 %v2694
    %v4395 = vunpack.c.l.b16 %v2695
    %v4396 = vunpack.c.l.b16 %v2696
    %v4397 = vunpack.c.l.b16 %v2697
    %v4398 = vunpack.c.l.b16 %v2698
    %v4399 = vpack.c.b16 %v4368, %v4367
    %v4400 = vpack.c.b16 %v4370, %v4369
    %v4401 = vpack.c.b16 %v4372, %v4371
    %v4402 = vpack.c.b16 %v4374, %v4373
    %v4403 = vpack.c.b16 %v4376, %v4375
    %v4404 = vpack.c.b16 %v4378, %v4377
    %v4405 = vpack.c.b16 %v4380, %v4379
    %v4406 = vpack.c.b16 %v4382, %v4381
    %v4407 = vpack.c.b16 %v4384, %v4383
    %v4408 = vpack.c.b16 %v4386, %v4385
    %v4409 = vpack.c.b16 %v4388, %v4387
    %v4410 = vpack.c.b16 %v4390, %v4389
    %v4411 = vpack.c.b16 %v4392, %v4391
    %v4412 = vpack.c.b16 %v4394, %v4393
    %v4413 = vpack.c.b16 %v4396, %v4395
    %v4414 = vpack.c.b16 %v4398, %v4397
    %4431 = vmatprep.subr.bf16.mxu0 0
    %4432 = vmatpush1.bf16.msra.mxu0 %v4399
    %4433 = vmatprep.subr.bf16.mxu0 0
    %4434 = vmatpush1.bf16.msra.mxu0 %v4400
    %4435 = vmatprep.subr.bf16.mxu0 0
    %4436 = vmatpush1.bf16.msra.mxu0 %v4401
    %4437 = vmatprep.subr.bf16.mxu0 0
    %4438 = vmatpush1.bf16.msra.mxu0 %v4402
    %4439 = vmatprep.subr.bf16.mxu0 0
    %4440 = vmatpush1.bf16.msra.mxu0 %v4403
    %4441 = vmatprep.subr.bf16.mxu0 0
    %4442 = vmatpush1.bf16.msra.mxu0 %v4404
    %4443 = vmatprep.subr.bf16.mxu0 0
    %4444 = vmatpush1.bf16.msra.mxu0 %v4405
    %4445 = vmatprep.subr.bf16.mxu0 0
    %4446 = vmatpush1.bf16.msra.mxu0 %v4406
    %4447 = vmatprep.subr.bf16.mxu0 0
    %4448 = vmatpush1.bf16.msra.mxu0 %v4407
    %4449 = vmatprep.subr.bf16.mxu0 0
    %4450 = vmatpush1.bf16.msra.mxu0 %v4408
    %4451 = vmatprep.subr.bf16.mxu0 0
    %4452 = vmatpush1.bf16.msra.mxu0 %v4409
    %4453 = vmatprep.subr.bf16.mxu0 0
    %4454 = vmatpush1.bf16.msra.mxu0 %v4410
    %4455 = vmatprep.subr.bf16.mxu0 0
    %4456 = vmatpush1.bf16.msra.mxu0 %v4411
    %4457 = vmatprep.subr.bf16.mxu0 0
    %4458 = vmatpush1.bf16.msra.mxu0 %v4412
    %4459 = vmatprep.subr.bf16.mxu0 0
    %4460 = vmatpush1.bf16.msra.mxu0 %v4413
    %4461 = vmatprep.subr.bf16.mxu0 0
    %4462 = vmatpush1.bf16.msra.mxu0 %v4414
    %4463 = vmatprep.mubr.bf16.mxu0 %v4334
    %4464 = vmatmul.mubr.bf16.gmra.mrb[0].mxu0 %v4333
    %v4465 = vpop.f32.mrb[0].mxu0
    %v4466 = vadd.f32 0.0, %v4465
    %v4467 = vpop.f32.mrb[0].mxu0
    %v4468 = vpop.f32.mrb[0].mxu0
    %v4469 = vadd.f32 0.0, %v4468
    %v4470 = vpop.f32.mrb[0].mxu0
    %4471 = vdwg.mxu0
    %v4504 = vunpack.c.l.b16 %v2699
    %v4505 = vunpack.c.l.b16 %v2700
    %v4506 = vunpack.c.l.b16 %v2701
    %v4507 = vunpack.c.l.b16 %v2702
    %v4508 = vunpack.c.l.b16 %v2703
    %v4509 = vunpack.c.l.b16 %v2704
    %v4510 = vunpack.c.l.b16 %v2705
    %v4511 = vunpack.c.l.b16 %v2706
    %v4512 = vunpack.c.l.b16 %v2707
    %v4513 = vunpack.c.l.b16 %v2708
    %v4514 = vunpack.c.l.b16 %v2709
    %v4515 = vunpack.c.l.b16 %v2710
    %v4516 = vunpack.c.l.b16 %v2711
    %v4517 = vunpack.c.l.b16 %v2712
    %v4518 = vunpack.c.l.b16 %v2713
    %v4519 = vunpack.c.l.b16 %v2714
    %v4520 = vunpack.c.l.b16 %v2715
    %v4521 = vunpack.c.l.b16 %v2716
    %v4522 = vunpack.c.l.b16 %v2717
    %v4523 = vunpack.c.l.b16 %v2718
    %v4524 = vunpack.c.l.b16 %v2719
    %v4525 = vunpack.c.l.b16 %v2720
    %v4526 = vunpack.c.l.b16 %v2721
    %v4527 = vunpack.c.l.b16 %v2722
    %v4528 = vunpack.c.l.b16 %v2723
    %v4529 = vunpack.c.l.b16 %v2724
    %v4530 = vunpack.c.l.b16 %v2725
    %v4531 = vunpack.c.l.b16 %v2726
    %v4532 = vunpack.c.l.b16 %v2727
    %v4533 = vunpack.c.l.b16 %v2728
    %v4534 = vunpack.c.l.b16 %v2729
    %v4535 = vunpack.c.l.b16 %v2730
    %v4536 = vpack.c.b16 %v4505, %v4504
    %v4537 = vpack.c.b16 %v4507, %v4506
    %v4538 = vpack.c.b16 %v4509, %v4508
    %v4539 = vpack.c.b16 %v4511, %v4510
    %v4540 = vpack.c.b16 %v4513, %v4512
    %v4541 = vpack.c.b16 %v4515, %v4514
    %v4542 = vpack.c.b16 %v4517, %v4516
    %v4543 = vpack.c.b16 %v4519, %v4518
    %v4544 = vpack.c.b16 %v4521, %v4520
    %v4545 = vpack.c.b16 %v4523, %v4522
    %v4546 = vpack.c.b16 %v4525, %v4524
    %v4547 = vpack.c.b16 %v4527, %v4526
    %v4548 = vpack.c.b16 %v4529, %v4528
    %v4549 = vpack.c.b16 %v4531, %v4530
    %v4550 = vpack.c.b16 %v4533, %v4532
    %v4551 = vpack.c.b16 %v4535, %v4534
    %4568 = vmatprep.subr.bf16.mxu0 0
    %4569 = vmatpush1.bf16.msra.mxu0 %v4536
    %4570 = vmatprep.subr.bf16.mxu0 0
    %4571 = vmatpush1.bf16.msra.mxu0 %v4537
    %4572 = vmatprep.subr.bf16.mxu0 0
    %4573 = vmatpush1.bf16.msra.mxu0 %v4538
    %4574 = vmatprep.subr.bf16.mxu0 0
    %4575 = vmatpush1.bf16.msra.mxu0 %v4539
    %4576 = vmatprep.subr.bf16.mxu0 0
    %4577 = vmatpush1.bf16.msra.mxu0 %v4540
    %4578 = vmatprep.subr.bf16.mxu0 0
    %4579 = vmatpush1.bf16.msra.mxu0 %v4541
    %4580 = vmatprep.subr.bf16.mxu0 0
    %4581 = vmatpush1.bf16.msra.mxu0 %v4542
    %4582 = vmatprep.subr.bf16.mxu0 0
    %4583 = vmatpush1.bf16.msra.mxu0 %v4543
    %4584 = vmatprep.subr.bf16.mxu0 0
    %4585 = vmatpush1.bf16.msra.mxu0 %v4544
    %4586 = vmatprep.subr.bf16.mxu0 0
    %4587 = vmatpush1.bf16.msra.mxu0 %v4545
    %4588 = vmatprep.subr.bf16.mxu0 0
    %4589 = vmatpush1.bf16.msra.mxu0 %v4546
    %4590 = vmatprep.subr.bf16.mxu0 0
    %4591 = vmatpush1.bf16.msra.mxu0 %v4547
    %4592 = vmatprep.subr.bf16.mxu0 0
    %4593 = vmatpush1.bf16.msra.mxu0 %v4548
    %4594 = vmatprep.subr.bf16.mxu0 0
    %4595 = vmatpush1.bf16.msra.mxu0 %v4549
    %4596 = vmatprep.subr.bf16.mxu0 0
    %4597 = vmatpush1.bf16.msra.mxu0 %v4550
    %4598 = vmatprep.subr.bf16.mxu0 0
    %4599 = vmatpush1.bf16.msra.mxu0 %v4551
    %4600 = vmatprep.mubr.bf16.mxu0 %v4334
    %4601 = vmatmul.mubr.bf16.gmra.mrb[0].mxu0 %v4333
    %v4602 = vpop.f32.mrb[0].mxu0
    %v4603 = vadd.f32 0.0, %v4602
    %v4604 = vpop.f32.mrb[0].mxu0
    %v4605 = vpop.f32.mrb[0].mxu0
    %v4606 = vadd.f32 0.0, %v4605
    %v4607 = vpop.f32.mrb[0].mxu0
    %4608 = vdwg.mxu0
    %v4609 = vmax.f32 %v4466, %v4603
    %v4610 = vmax.f32 %v4469, %v4606
    %v4611 = vpack.c.bf16 %v4610, %v4609
    %vm4612 = vcmask 113664
    %v4614 = vsel %vm4612, %v2731, 0
    %vm4616 = vcmask 1046528
    %v4618 = vsel %vm4616, %v4611, 0
    %4620 = vmatprep.subr.bf16.mxu0 0
    %4621 = vmatpush1.bf16.msra.mxu0 %v4618
    %4622 = vmatprep.subr.bf16.mxu0 0
    %4623 = vmatpush1.bf16.msra.mxu0 0
    %4624 = vmatprep.subr.bf16.mxu0 0
    %4625 = vmatpush1.bf16.msra.mxu0 0
    %4626 = vmatprep.subr.bf16.mxu0 0
    %4627 = vmatpush1.bf16.msra.mxu0 0
    %4628 = vmatprep.subr.bf16.mxu0 0
    %4629 = vmatpush1.bf16.msra.mxu0 0
    %4630 = vmatprep.subr.bf16.mxu0 0
    %4631 = vmatpush1.bf16.msra.mxu0 0
    %4632 = vmatprep.subr.bf16.mxu0 0
    %4633 = vmatpush1.bf16.msra.mxu0 0
    %4634 = vmatprep.subr.bf16.mxu0 0
    %4635 = vmatpush1.bf16.msra.mxu0 0
    %4636 = vmatprep.subr.bf16.mxu0 0
    %4637 = vmatpush1.bf16.msra.mxu0 0
    %4638 = vmatprep.subr.bf16.mxu0 0
    %4639 = vmatpush1.bf16.msra.mxu0 0
    %4640 = vmatprep.subr.bf16.mxu0 0
    %4641 = vmatpush1.bf16.msra.mxu0 0
    %4642 = vmatprep.subr.bf16.mxu0 0
    %4643 = vmatpush1.bf16.msra.mxu0 0
    %4644 = vmatprep.subr.bf16.mxu0 0
    %4645 = vmatpush1.bf16.msra.mxu0 0
    %4646 = vmatprep.subr.bf16.mxu0 0
    %4647 = vmatpush1.bf16.msra.mxu0 0
    %4648 = vmatprep.subr.bf16.mxu0 0
    %4649 = vmatpush1.bf16.msra.mxu0 0
    %4650 = vmatprep.subr.bf16.mxu0 0
    %4651 = vmatpush1.bf16.msra.mxu0 0
    %4652 = vmatprep.mubr.bf16.mxu0 0
    %4653 = vmatmul.mubr.bf16.gmra.mrb[0].mxu0 %v4614
    %v4654 = vpop.f32.mrb[0].mxu0
    %v4655 = vadd.f32 0.0, %v4654
    %v4656 = vpop.f32.mrb[0].mxu0
    %v4657 = vpop.f32.mrb[0].mxu0
    %v4658 = vpop.f32.mrb[0].mxu0
    %4659 = vdwg.mxu0
    %v4661 = vsel %vm4612, %v2732, 0
    %4663 = vmatprep.subr.bf16.mxu0 0
    %4664 = vmatpush1.bf16.msra.mxu0 %v4618
    %4665 = vmatprep.subr.bf16.mxu0 0
    %4666 = vmatpush1.bf16.msra.mxu0 0
    %4667 = vmatprep.subr.bf16.mxu0 0
    %4668 = vmatpush1.bf16.msra.mxu0 0
    %4669 = vmatprep.subr.bf16.mxu0 0
    %4670 = vmatpush1.bf16.msra.mxu0 0
    %4671 = vmatprep.subr.bf16.mxu0 0
    %4672 = vmatpush1.bf16.msra.mxu0 0
    %4673 = vmatprep.subr.bf16.mxu0 0
    %4674 = vmatpush1.bf16.msra.mxu0 0
    %4675 = vmatprep.subr.bf16.mxu0 0
    %4676 = vmatpush1.bf16.msra.mxu0 0
    %4677 = vmatprep.subr.bf16.mxu0 0
    %4678 = vmatpush1.bf16.msra.mxu0 0
    %4679 = vmatprep.subr.bf16.mxu0 0
    %4680 = vmatpush1.bf16.msra.mxu0 0
    %4681 = vmatprep.subr.bf16.mxu0 0
    %4682 = vmatpush1.bf16.msra.mxu0 0
    %4683 = vmatprep.subr.bf16.mxu0 0
    %4684 = vmatpush1.bf16.msra.mxu0 0
    %4685 = vmatprep.subr.bf16.mxu0 0
    %4686 = vmatpush1.bf16.msra.mxu0 0
    %4687 = vmatprep.subr.bf16.mxu0 0
    %4688 = vmatpush1.bf16.msra.mxu0 0
    %4689 = vmatprep.subr.bf16.mxu0 0
    %4690 = vmatpush1.bf16.msra.mxu0 0
    %4691 = vmatprep.subr.bf16.mxu0 0
    %4692 = vmatpush1.bf16.msra.mxu0 0
    %4693 = vmatprep.subr.bf16.mxu0 0
    %4694 = vmatpush1.bf16.msra.mxu0 0
    %4695 = vmatprep.mubr.bf16.mxu0 0
    %4696 = vmatmul.mubr.bf16.gmra.mrb[0].mxu0 %v4661
    %v4697 = vpop.f32.mrb[0].mxu0
    %v4698 = vadd.f32 0.0, %v4697
    %v4699 = vpop.f32.mrb[0].mxu0
    %v4700 = vpop.f32.mrb[0].mxu0
    %v4701 = vpop.f32.mrb[0].mxu0
    %4702 = vdwg.mxu0
    %v4703 = vmax.f32 %v4655, %v4698
    %4704 = vst [vmem:[#allocation4] sm:$0x7f] %v4703
    %v4705 = vld [vmem:[%s1431] sm:$0xff]
    %v4706 = vld [vmem:[%s1431 + $0x8] sm:$0xff]
    %v4707 = vld [vmem:[%s1431 + $0x10] sm:$0x3f]
    %v4708 = vld [vmem:[%s1431 + $0x18] sm:$0x3f]
    %v4709 = vmul.f32 %v4705, %v4308
    %v4710 = vmul.f32 %v4706, %v4312
    %v4711 = vmul.f32 %v4707, %v4308
    %v4712 = vmul.f32 %v4708, %v4312
    %v4713 = vadd.f32 %v4709, %v4320
    %v4714 = vadd.f32 %v4710, %v4324
    %v4715 = vadd.f32 %v4711, %v4320
    %v4716 = vadd.f32 %v4712, %v4324
    %v4717 = vmax.f32 %v4713, 0.0
    %v4718 = vmax.f32 %v4714, 0.0
    %v4719 = vmax.f32 %v4715, 0.0
    %v4720 = vmax.f32 %v4716, 0.0
    %v4721 = vpack.c.bf16 %v4719, %v4717
    %v4722 = vpack.c.bf16 %v4720, %v4718
    %4723 = vmatprep.subr.bf16.mxu0 0
    %4724 = vmatpush1.bf16.msra.mxu0 %v4399
    %4725 = vmatprep.subr.bf16.mxu0 0
    %4726 = vmatpush1.bf16.msra.mxu0 %v4400
    %4727 = vmatprep.subr.bf16.mxu0 0
    %4728 = vmatpush1.bf16.msra.mxu0 %v4401
    %4729 = vmatprep.subr.bf16.mxu0 0
    %4730 = vmatpush1.bf16.msra.mxu0 %v4402
    %4731 = vmatprep.subr.bf16.mxu0 0
    %4732 = vmatpush1.bf16.msra.mxu0 %v4403
    %4733 = vmatprep.subr.bf16.mxu0 0
    %4734 = vmatpush1.bf16.msra.mxu0 %v4404
    %4735 = vmatprep.subr.bf16.mxu0 0
    %4736 = vmatpush1.bf16.msra.mxu0 %v4405
    %4737 = vmatprep.subr.bf16.mxu0 0
    %4738 = vmatpush1.bf16.msra.mxu0 %v4406
    %4739 = vmatprep.subr.bf16.mxu0 0
    %4740 = vmatpush1.bf16.msra.mxu0 %v4407
    %4741 = vmatprep.subr.bf16.mxu0 0
    %4742 = vmatpush1.bf16.msra.mxu0 %v4408
    %4743 = vmatprep.subr.bf16.mxu0 0
    %4744 = vmatpush1.bf16.msra.mxu0 %v4409
    %4745 = vmatprep.subr.bf16.mxu0 0
    %4746 = vmatpush1.bf16.msra.mxu0 %v4410
    %4747 = vmatprep.subr.bf16.mxu0 0
    %4748 = vmatpush1.bf16.msra.mxu0 %v4411
    %4749 = vmatprep.subr.bf16.mxu0 0
    %4750 = vmatpush1.bf16.msra.mxu0 %v4412
    %4751 = vmatprep.subr.bf16.mxu0 0
    %4752 = vmatpush1.bf16.msra.mxu0 %v4413
    %4753 = vmatprep.subr.bf16.mxu0 0
    %4754 = vmatpush1.bf16.msra.mxu0 %v4414
    %4755 = vmatprep.mubr.bf16.mxu0 %v4722
    %4756 = vmatmul.mubr.bf16.gmra.mrb[0].mxu0 %v4721
    %v4757 = vpop.f32.mrb[0].mxu0
    %v4758 = vadd.f32 0.0, %v4757
    %v4759 = vpop.f32.mrb[0].mxu0
    %v4760 = vpop.f32.mrb[0].mxu0
    %v4761 = vadd.f32 0.0, %v4760
    %v4762 = vpop.f32.mrb[0].mxu0
    %4763 = vdwg.mxu0
    %4764 = vmatprep.subr.bf16.mxu0 0
    %4765 = vmatpush1.bf16.msra.mxu0 %v4536
    %4766 = vmatprep.subr.bf16.mxu0 0
    %4767 = vmatpush1.bf16.msra.mxu0 %v4537
    %4768 = vmatprep.subr.bf16.mxu0 0
    %4769 = vmatpush1.bf16.msra.mxu0 %v4538
    %4770 = vmatprep.subr.bf16.mxu0 0
    %4771 = vmatpush1.bf16.msra.mxu0 %v4539
    %4772 = vmatprep.subr.bf16.mxu0 0
    %4773 = vmatpush1.bf16.msra.mxu0 %v4540
    %4774 = vmatprep.subr.bf16.mxu0 0
    %4775 = vmatpush1.bf16.msra.mxu0 %v4541
    %4776 = vmatprep.subr.bf16.mxu0 0
    %4777 = vmatpush1.bf16.msra.mxu0 %v4542
    %4778 = vmatprep.subr.bf16.mxu0 0
    %4779 = vmatpush1.bf16.msra.mxu0 %v4543
    %4780 = vmatprep.subr.bf16.mxu0 0
    %4781 = vmatpush1.bf16.msra.mxu0 %v4544
    %4782 = vmatprep.subr.bf16.mxu0 0
    %4783 = vmatpush1.bf16.msra.mxu0 %v4545
    %4784 = vmatprep.subr.bf16.mxu0 0
    %4785 = vmatpush1.bf16.msra.mxu0 %v4546
    %4786 = vmatprep.subr.bf16.mxu0 0
    %4787 = vmatpush1.bf16.msra.mxu0 %v4547
    %4788 = vmatprep.subr.bf16.mxu0 0
    %4789 = vmatpush1.bf16.msra.mxu0 %v4548
    %4790 = vmatprep.subr.bf16.mxu0 0
    %4791 = vmatpush1.bf16.msra.mxu0 %v4549
    %4792 = vmatprep.subr.bf16.mxu0 0
    %4793 = vmatpush1.bf16.msra.mxu0 %v4550
    %4794 = vmatprep.subr.bf16.mxu0 0
    %4795 = vmatpush1.bf16.msra.mxu0 %v4551
    %4796 = vmatprep.mubr.bf16.mxu0 %v4722
    %4797 = vmatmul.mubr.bf16.gmra.mrb[0].mxu0 %v4721
    %v4798 = vpop.f32.mrb[0].mxu0
    %v4799 = vadd.f32 0.0, %v4798
    %v4800 = vpop.f32.mrb[0].mxu0
    %v4801 = vpop.f32.mrb[0].mxu0
    %v4802 = vadd.f32 0.0, %v4801
    %v4803 = vpop.f32.mrb[0].mxu0
    %4804 = vdwg.mxu0
    %v4805 = vmax.f32 %v4758, %v4799
    %v4806 = vmax.f32 %v4761, %v4802
    %v4807 = vpack.c.bf16 %v4806, %v4805
    %v4809 = vsel %vm4616, %v4807, 0
    %4811 = vmatprep.subr.bf16.mxu0 0
    %4812 = vmatpush1.bf16.msra.mxu0 %v4809
    %4813 = vmatprep.subr.bf16.mxu0 0
    %4814 = vmatpush1.bf16.msra.mxu0 0
    %4815 = vmatprep.subr.bf16.mxu0 0
    %4816 = vmatpush1.bf16.msra.mxu0 0
    %4817 = vmatprep.subr.bf16.mxu0 0
    %4818 = vmatpush1.bf16.msra.mxu0 0
    %4819 = vmatprep.subr.bf16.mxu0 0
    %4820 = vmatpush1.bf16.msra.mxu0 0
    %4821 = vmatprep.subr.bf16.mxu0 0
    %4822 = vmatpush1.bf16.msra.mxu0 0
    %4823 = vmatprep.subr.bf16.mxu0 0
    %4824 = vmatpush1.bf16.msra.mxu0 0
    %4825 = vmatprep.subr.bf16.mxu0 0
    %4826 = vmatpush1.bf16.msra.mxu0 0
    %4827 = vmatprep.subr.bf16.mxu0 0
    %4828 = vmatpush1.bf16.msra.mxu0 0
    %4829 = vmatprep.subr.bf16.mxu0 0
    %4830 = vmatpush1.bf16.msra.mxu0 0
    %4831 = vmatprep.subr.bf16.mxu0 0
    %4832 = vmatpush1.bf16.msra.mxu0 0
    %4833 = vmatprep.subr.bf16.mxu0 0
    %4834 = vmatpush1.bf16.msra.mxu0 0
    %4835 = vmatprep.subr.bf16.mxu0 0
    %4836 = vmatpush1.bf16.msra.mxu0 0
    %4837 = vmatprep.subr.bf16.mxu0 0
    %4838 = vmatpush1.bf16.msra.mxu0 0
    %4839 = vmatprep.subr.bf16.mxu0 0
    %4840 = vmatpush1.bf16.msra.mxu0 0
    %4841 = vmatprep.subr.bf16.mxu0 0
    %4842 = vmatpush1.bf16.msra.mxu0 0
    %4843 = vmatprep.mubr.bf16.mxu0 0
    %4844 = vmatmul.mubr.bf16.gmra.mrb[0].mxu0 %v4614
    %v4845 = vpop.f32.mrb[0].mxu0
    %v4846 = vadd.f32 0.0, %v4845
    %v4847 = vpop.f32.mrb[0].mxu0
    %v4848 = vpop.f32.mrb[0].mxu0
    %v4849 = vpop.f32.mrb[0].mxu0
    %4850 = vdwg.mxu0
    %4851 = vmatprep.subr.bf16.mxu0 0
    %4852 = vmatpush1.bf16.msra.mxu0 %v4809
    %4853 = vmatprep.subr.bf16.mxu0 0
    %4854 = vmatpush1.bf16.msra.mxu0 0
    %4855 = vmatprep.subr.bf16.mxu0 0
    %4856 = vmatpush1.bf16.msra.mxu0 0
    %4857 = vmatprep.subr.bf16.mxu0 0
    %4858 = vmatpush1.bf16.msra.mxu0 0
    %4859 = vmatprep.subr.bf16.mxu0 0
    %4860 = vmatpush1.bf16.msra.mxu0 0
    %4861 = vmatprep.subr.bf16.mxu0 0
    %4862 = vmatpush1.bf16.msra.mxu0 0
    %4863 = vmatprep.subr.bf16.mxu0 0
    %4864 = vmatpush1.bf16.msra.mxu0 0
    %4865 = vmatprep.subr.bf16.mxu0 0
    %4866 = vmatpush1.bf16.msra.mxu0 0
    %4867 = vmatprep.subr.bf16.mxu0 0
    %4868 = vmatpush1.bf16.msra.mxu0 0
    %4869 = vmatprep.subr.bf16.mxu0 0
    %4870 = vmatpush1.bf16.msra.mxu0 0
    %4871 = vmatprep.subr.bf16.mxu0 0
    %4872 = vmatpush1.bf16.msra.mxu0 0
    %4873 = vmatprep.subr.bf16.mxu0 0
    %4874 = vmatpush1.bf16.msra.mxu0 0
    %4875 = vmatprep.subr.bf16.mxu0 0
    %4876 = vmatpush1.bf16.msra.mxu0 0
    %4877 = vmatprep.subr.bf16.mxu0 0
    %4878 = vmatpush1.bf16.msra.mxu0 0
    %4879 = vmatprep.subr.bf16.mxu0 0
    %4880 = vmatpush1.bf16.msra.mxu0 0
    %4881 = vmatprep.subr.bf16.mxu0 0
    %4882 = vmatpush1.bf16.msra.mxu0 0
    %4883 = vmatprep.mubr.bf16.mxu0 0
    %4884 = vmatmul.mubr.bf16.gmra.mrb[0].mxu0 %v4661
    %v4885 = vpop.f32.mrb[0].mxu0
    %v4886 = vadd.f32 0.0, %v4885
    %v4887 = vpop.f32.mrb[0].mxu0
    %v4888 = vpop.f32.mrb[0].mxu0
    %v4889 = vpop.f32.mrb[0].mxu0
    %4890 = vdwg.mxu0
    %v4891 = vmax.f32 %v4846, %v4886
    %s4892 = scalar_lea.vmem [#allocation4], 8
    %4893 = vst [vmem:[%s4892] sm:$0x7f] %v4891
    %v4894 = vld [vmem:[#allocation4] sm:$0x7f]
    %v4895 = vld [vmem:[#allocation4 + $0x8] sm:$0x7f]
    %v4896 = vld [vmem:[%s21] sm:$0xf]
    %v4897 = vld [vmem:[%s21 + $0x4] sm:$0xf]
    %v4898 = vld [vmem:[%s21 + $0x8] sm:$0xf]
    %v4899 = vld [vmem:[%s21 + $0xc] sm:$0xf]
    %v4900 = vld [vmem:[%s21 + $0x10] sm:$0xf]
    %v4901 = vld [vmem:[%s21 + $0x14] sm:$0xf]
    %v4902 = vld [vmem:[%s21 + $0x18] sm:$0xf]
    %v4903 = vld [vmem:[%s21 + $0x1c] sm:$0xf]
    %v4904 = vld [vmem:[%s21 + $0x20] sm:$0xf]
    %v4905 = vld [vmem:[%s21 + $0x24] sm:$0xf]
    %v4906 = vld [vmem:[%s21 + $0x28] sm:$0xf]
    %v4907 = vld [vmem:[%s21 + $0x2c] sm:$0xf]
    %v4908 = vld [vmem:[%s21 + $0x30] sm:$0xf]
    %v4909 = vld [vmem:[%s21 + $0x34] sm:$0xf]
    %v4910 = vld [vmem:[%s21 + $0x38] sm:$0xf]
    %v4911 = vld [vmem:[%s21 + $0x3c] sm:$0xf]
    %v4912 = vld [vmem:[%s21 + $0x40] sm:$0xf]
    %v4913 = vld [vmem:[%s21 + $0x44] sm:$0xf]
    %v4914 = vld [vmem:[%s21 + $0x48] sm:$0xf]
    %v4915 = vld [vmem:[%s21 + $0x4c] sm:$0xf]
    %v4916 = vld [vmem:[%s21 + $0x50] sm:$0xf]
    %v4917 = vld [vmem:[%s21 + $0x54] sm:$0xf]
    %v4918 = vld [vmem:[%s21 + $0x58] sm:$0xf]
    %v4919 = vld [vmem:[%s21 + $0x5c] sm:$0xf]
    %v4920 = vld [vmem:[%s21 + $0x60] sm:$0xf]
    %v4921 = vld [vmem:[%s21 + $0x64] sm:$0xf]
    %v4922 = vld [vmem:[%s21 + $0x68] sm:$0xf]
    %v4923 = vld [vmem:[%s21 + $0x6c] sm:$0xf]
    %v4924 = vld [vmem:[%s21 + $0x70] sm:$0xf]
    %v4925 = vld [vmem:[%s21 + $0x74] sm:$0xf]
    %v4926 = vld [vmem:[%s21 + $0x78] sm:$0xf]
    %v4927 = vld [vmem:[%s21 + $0x7c] sm:$0xf]
    %v4928 = vld [vmem:[%s21 + $0x80] sm:$0xf]
    %v4929 = vld [vmem:[%s21 + $0x84] sm:$0xf]
    %v4930 = vld [vmem:[%s21 + $0x88] sm:$0xf]
    %v4931 = vld [vmem:[%s21 + $0x8c] sm:$0xf]
    %v4932 = vld [vmem:[%s21 + $0x90] sm:$0xf]
    %v4933 = vld [vmem:[%s21 + $0x94] sm:$0xf]
    %v4934 = vld [vmem:[%s21 + $0x98] sm:$0xf]
    %v4935 = vld [vmem:[%s21 + $0x9c] sm:$0xf]
    %v4936 = vld [vmem:[%s21 + $0xa0] sm:$0xf]
    %v4937 = vld [vmem:[%s21 + $0xa4] sm:$0xf]
    %v4938 = vld [vmem:[%s21 + $0xa8] sm:$0xf]
    %v4939 = vld [vmem:[%s21 + $0xac] sm:$0xf]
    %v4940 = vld [vmem:[%s21 + $0xb0] sm:$0xf]
    %v4941 = vld [vmem:[%s21 + $0xb4] sm:$0xf]
    %v4942 = vld [vmem:[%s21 + $0xb8] sm:$0xf]
    %v4943 = vld [vmem:[%s21 + $0xbc] sm:$0xf]
    %v4944 = vld [vmem:[%s21 + $0xc0] sm:$0xf]
    %v4945 = vld [vmem:[%s21 + $0xc4] sm:$0xf]
    %v4946 = vld [vmem:[%s21 + $0xc8] sm:$0xf]
    %v4947 = vld [vmem:[%s21 + $0xcc] sm:$0xf]
    %v4948 = vld [vmem:[%s21 + $0xd0] sm:$0xf]
    %v4949 = vld [vmem:[%s21 + $0xd4] sm:$0xf]
    %v4950 = vld [vmem:[%s21 + $0xd8] sm:$0xf]
    %v4951 = vld [vmem:[%s21 + $0xdc] sm:$0xf]
    %v4952 = vld [vmem:[%s21 + $0xe0] sm:$0xf]
    %v4953 = vld [vmem:[%s21 + $0xe4] sm:$0xf]
    %v4954 = vld [vmem:[%s21 + $0xe8] sm:$0xf]
    %v4955 = vld [vmem:[%s21 + $0xec] sm:$0xf]
    %v4956 = vld [vmem:[%s21 + $0xf0] sm:$0xf]
    %v4957 = vld [vmem:[%s21 + $0xf4] sm:$0xf]
    %v4958 = vld [vmem:[%s21 + $0xf8] sm:$0xf]
    %v4959 = vld [vmem:[%s21 + $0xfc] sm:$0xf]
    %v4960 = vld [vmem:[%s21 + $0x100] sm:$0xf]
    %v4961 = vld [vmem:[%s21 + $0x104] sm:$0xf]
    %v4962 = vld [vmem:[%s21 + $0x108] sm:$0xf]
    %v4963 = vld [vmem:[%s21 + $0x10c] sm:$0xf]
    %v4964 = vld [vmem:[%s21 + $0x110] sm:$0xf]
    %v4965 = vld [vmem:[%s21 + $0x114] sm:$0xf]
    %v4966 = vld [vmem:[%s21 + $0x118] sm:$0xf]
    %v4967 = vld [vmem:[%s21 + $0x11c] sm:$0xf]
    %v4968 = vld [vmem:[%s21 + $0x120] sm:$0xf]
    %v4969 = vld [vmem:[%s21 + $0x124] sm:$0xf]
    %v4970 = vld [vmem:[%s21 + $0x128] sm:$0xf]
    %v4971 = vld [vmem:[%s21 + $0x12c] sm:$0xf]
    %v4972 = vld [vmem:[%s21 + $0x130] sm:$0xf]
    %v4973 = vld [vmem:[%s21 + $0x134] sm:$0xf]
    %v4974 = vld [vmem:[%s21 + $0x138] sm:$0xf]
    %v4975 = vld [vmem:[%s21 + $0x13c] sm:$0xf]
    %v4976 = vld [vmem:[%s21 + $0x140] sm:$0xf]
    %v4977 = vld [vmem:[%s21 + $0x144] sm:$0xf]
    %v4978 = vld [vmem:[%s21 + $0x148] sm:$0xf]
    %v4979 = vld [vmem:[%s21 + $0x14c] sm:$0xf]
    %v4980 = vld [vmem:[%s21 + $0x150] sm:$0xf]
    %v4981 = vld [vmem:[%s21 + $0x154] sm:$0xf]
    %v4982 = vld [vmem:[%s21 + $0x158] sm:$0xf]
    %v4983 = vld [vmem:[%s21 + $0x15c] sm:$0xf]
    %v4984 = vld [vmem:[%s21 + $0x160] sm:$0xf]
    %v4985 = vld [vmem:[%s21 + $0x164] sm:$0xf]
    %v4986 = vld [vmem:[%s21 + $0x168] sm:$0xf]
    %v4987 = vld [vmem:[%s21 + $0x16c] sm:$0xf]
    %v4988 = vld [vmem:[%s21 + $0x170] sm:$0xf]
    %v4989 = vld [vmem:[%s21 + $0x174] sm:$0xf]
    %v4990 = vld [vmem:[%s21 + $0x178] sm:$0xf]
    %v4991 = vld [vmem:[%s21 + $0x17c] sm:$0xf]
    %v4992 = vld [vmem:[%s21 + $0x180] sm:$0xf]
    %v4993 = vld [vmem:[%s21 + $0x184] sm:$0xf]
    %v4994 = vld [vmem:[%s21 + $0x188] sm:$0xf]
    %v4995 = vld [vmem:[%s21 + $0x18c] sm:$0xf]
    %v4996 = vld [vmem:[%s21 + $0x190] sm:$0xf]
    %v4997 = vld [vmem:[%s21 + $0x194] sm:$0xf]
    %v4998 = vld [vmem:[%s21 + $0x198] sm:$0xf]
    %v4999 = vld [vmem:[%s21 + $0x19c] sm:$0xf]
    %v5000 = vld [vmem:[%s21 + $0x1a0] sm:$0xf]
    %v5001 = vld [vmem:[%s21 + $0x1a4] sm:$0xf]
    %v5002 = vld [vmem:[%s21 + $0x1a8] sm:$0xf]
    %v5003 = vld [vmem:[%s21 + $0x1ac] sm:$0xf]
    %v5004 = vld [vmem:[%s21 + $0x1b0] sm:$0xf]
    %v5005 = vld [vmem:[%s21 + $0x1b4] sm:$0xf]
    %v5006 = vld [vmem:[%s21 + $0x1b8] sm:$0xf]
    %v5007 = vld [vmem:[%s21 + $0x1bc] sm:$0xf]
    %v5008 = vpack.c.bf16 %v4894, %v4894
    %v5009 = vpack.c.bf16 %v4895, %v4895
    %v5012 = vunpack.c.l.b16 %v5008
    %v5013 = vunpack.c.l.b16 %v5009
    %v5014 = vrot.slane %v5012, 1
    %vm5015 = vcmask 1041409
    %v5016 = vsel %vm5015, %v5013, %v5014
    %v5017 = vpack.c.b16 %v5016, %v5016
    %v5035 = vunpack.c.l.b16 %v4912
    %v5036 = vunpack.c.l.b16 %v4913
    %v5037 = vunpack.c.l.b16 %v4914
    %v5038 = vunpack.c.l.b16 %v4915
    %v5039 = vunpack.c.l.b16 %v4916
    %v5040 = vunpack.c.l.b16 %v4917
    %v5041 = vunpack.c.l.b16 %v4918
    %v5042 = vunpack.c.l.b16 %v4919
    %v5043 = vunpack.c.l.b16 %v4920
    %v5044 = vunpack.c.l.b16 %v4921
    %v5045 = vunpack.c.l.b16 %v4922
    %v5046 = vunpack.c.l.b16 %v4923
    %v5047 = vunpack.c.l.b16 %v4924
    %v5048 = vunpack.c.l.b16 %v4925
    %v5049 = vunpack.c.l.b16 %v4926
    %v5050 = vunpack.c.l.b16 %v4927
    %v5051 = vpack.c.b16 %v5036, %v5035
    %v5052 = vpack.c.b16 %v5038, %v5037
    %v5053 = vpack.c.b16 %v5040, %v5039
    %v5054 = vpack.c.b16 %v5042, %v5041
    %v5055 = vpack.c.b16 %v5044, %v5043
    %v5056 = vpack.c.b16 %v5046, %v5045
    %v5057 = vpack.c.b16 %v5048, %v5047
    %v5058 = vpack.c.b16 %v5050, %v5049
    %5067 = vmatprep.subr.bf16.mxu0 0
    %5068 = vmatpush1.bf16.msra.mxu0 %v5051
    %5069 = vmatprep.subr.bf16.mxu0 0
    %5070 = vmatpush1.bf16.msra.mxu0 %v5052
    %5071 = vmatprep.subr.bf16.mxu0 0
    %5072 = vmatpush1.bf16.msra.mxu0 %v5053
    %5073 = vmatprep.subr.bf16.mxu0 0
    %5074 = vmatpush1.bf16.msra.mxu0 %v5054
    %5075 = vmatprep.subr.bf16.mxu0 0
    %5076 = vmatpush1.bf16.msra.mxu0 %v5055
    %5077 = vmatprep.subr.bf16.mxu0 0
    %5078 = vmatpush1.bf16.msra.mxu0 %v5056
    %5079 = vmatprep.subr.bf16.mxu0 0
    %5080 = vmatpush1.bf16.msra.mxu0 %v5057
    %5081 = vmatprep.subr.bf16.mxu0 0
    %5082 = vmatpush1.bf16.msra.mxu0 %v5058
    %5083 = vmatprep.subr.bf16.mxu0 0
    %5084 = vmatpush1.bf16.msra.mxu0 0
    %5085 = vmatprep.subr.bf16.mxu0 0
    %5086 = vmatpush1.bf16.msra.mxu0 0
    %5087 = vmatprep.subr.bf16.mxu0 0
    %5088 = vmatpush1.bf16.msra.mxu0 0
    %5089 = vmatprep.subr.bf16.mxu0 0
    %5090 = vmatpush1.bf16.msra.mxu0 0
    %5091 = vmatprep.subr.bf16.mxu0 0
    %5092 = vmatpush1.bf16.msra.mxu0 0
    %5093 = vmatprep.subr.bf16.mxu0 0
    %5094 = vmatpush1.bf16.msra.mxu0 0
    %5095 = vmatprep.subr.bf16.mxu0 0
    %5096 = vmatpush1.bf16.msra.mxu0 0
    %5097 = vmatprep.subr.bf16.mxu0 0
    %5098 = vmatpush1.bf16.msra.mxu0 0
    %5099 = vmatprep.mubr.bf16.mxu0 0
    %5100 = vmatmul.mubr.bf16.gmra.mrb[0].mxu0 %v5017
    %v5101 = vpop.f32.mrb[0].mxu0
    %v5102 = vadd.f32 0.0, %v5101
    %v5103 = vpop.f32.mrb[0].mxu0
    %v5104 = vpop.f32.mrb[0].mxu0
    %v5105 = vpop.f32.mrb[0].mxu0
    %5106 = vdwg.mxu0
    %v5107 = vrot.slane %v5013, 7
    %v5108 = vsel %vm5015, %v5107, %v5012
    %v5109 = vpack.c.b16 %v5108, %v5108
    %v5127 = vunpack.c.l.b16 %v4896
    %v5128 = vunpack.c.l.b16 %v4897
    %v5129 = vunpack.c.l.b16 %v4898
    %v5130 = vunpack.c.l.b16 %v4899
    %v5131 = vunpack.c.l.b16 %v4900
    %v5132 = vunpack.c.l.b16 %v4901
    %v5133 = vunpack.c.l.b16 %v4902
    %v5134 = vunpack.c.l.b16 %v4903
    %v5135 = vunpack.c.l.b16 %v4904
    %v5136 = vunpack.c.l.b16 %v4905
    %v5137 = vunpack.c.l.b16 %v4906
    %v5138 = vunpack.c.l.b16 %v4907
    %v5139 = vunpack.c.l.b16 %v4908
    %v5140 = vunpack.c.l.b16 %v4909
    %v5141 = vunpack.c.l.b16 %v4910
    %v5142 = vunpack.c.l.b16 %v4911
    %v5143 = vpack.c.b16 %v5128, %v5127
    %v5144 = vpack.c.b16 %v5130, %v5129
    %v5145 = vpack.c.b16 %v5132, %v5131
    %v5146 = vpack.c.b16 %v5134, %v5133
    %v5147 = vpack.c.b16 %v5136, %v5135
    %v5148 = vpack.c.b16 %v5138, %v5137
    %v5149 = vpack.c.b16 %v5140, %v5139
    %v5150 = vpack.c.b16 %v5142, %v5141
    %5159 = vmatprep.subr.bf16.mxu0 0
    %5160 = vmatpush1.bf16.msra.mxu0 %v5143
    %5161 = vmatprep.subr.bf16.mxu0 0
    %5162 = vmatpush1.bf16.msra.mxu0 %v5144
    %5163 = vmatprep.subr.bf16.mxu0 0
    %5164 = vmatpush1.bf16.msra.mxu0 %v5145
    %5165 = vmatprep.subr.bf16.mxu0 0
    %5166 = vmatpush1.bf16.msra.mxu0 %v5146
    %5167 = vmatprep.subr.bf16.mxu0 0
    %5168 = vmatpush1.bf16.msra.mxu0 %v5147
    %5169 = vmatprep.subr.bf16.mxu0 0
    %5170 = vmatpush1.bf16.msra.mxu0 %v5148
    %5171 = vmatprep.subr.bf16.mxu0 0
    %5172 = vmatpush1.bf16.msra.mxu0 %v5149
    %5173 = vmatprep.subr.bf16.mxu0 0
    %5174 = vmatpush1.bf16.msra.mxu0 %v5150
    %5175 = vmatprep.subr.bf16.mxu0 0
    %5176 = vmatpush1.bf16.msra.mxu0 0
    %5177 = vmatprep.subr.bf16.mxu0 0
    %5178 = vmatpush1.bf16.msra.mxu0 0
    %5179 = vmatprep.subr.bf16.mxu0 0
    %5180 = vmatpush1.bf16.msra.mxu0 0
    %5181 = vmatprep.subr.bf16.mxu0 0
    %5182 = vmatpush1.bf16.msra.mxu0 0
    %5183 = vmatprep.subr.bf16.mxu0 0
    %5184 = vmatpush1.bf16.msra.mxu0 0
    %5185 = vmatprep.subr.bf16.mxu0 0
    %5186 = vmatpush1.bf16.msra.mxu0 0
    %5187 = vmatprep.subr.bf16.mxu0 0
    %5188 = vmatpush1.bf16.msra.mxu0 0
    %5189 = vmatprep.subr.bf16.mxu0 0
    %5190 = vmatpush1.bf16.msra.mxu0 0
    %5191 = vmatprep.mubr.bf16.mxu0 0
    %5192 = vmatmul.mubr.bf16.gmra.mrb[0].mxu0 %v5109
    %v5193 = vpop.f32.mrb[0].mxu0
    %v5194 = vadd.f32 %v5102, %v5193
    %v5195 = vpop.f32.mrb[0].mxu0
    %v5196 = vpop.f32.mrb[0].mxu0
    %v5197 = vpop.f32.mrb[0].mxu0
    %5198 = vdwg.mxu0
    %v5199 = vrot.slane %v5012, 2
    %v5200 = vrot.slane %v5013, 1
    %v5201 = vsel %vm5015, %v5200, %v5199
    %v5202 = vpack.c.b16 %v5201, %v5201
    %v5220 = vunpack.c.l.b16 %v4928
    %v5221 = vunpack.c.l.b16 %v4929
    %v5222 = vunpack.c.l.b16 %v4930
    %v5223 = vunpack.c.l.b16 %v4931
    %v5224 = vunpack.c.l.b16 %v4932
    %v5225 = vunpack.c.l.b16 %v4933
    %v5226 = vunpack.c.l.b16 %v4934
    %v5227 = vunpack.c.l.b16 %v4935
    %v5228 = vunpack.c.l.b16 %v4936
    %v5229 = vunpack.c.l.b16 %v4937
    %v5230 = vunpack.c.l.b16 %v4938
    %v5231 = vunpack.c.l.b16 %v4939
    %v5232 = vunpack.c.l.b16 %v4940
    %v5233 = vunpack.c.l.b16 %v4941
    %v5234 = vunpack.c.l.b16 %v4942
    %v5235 = vunpack.c.l.b16 %v4943
    %v5236 = vpack.c.b16 %v5221, %v5220
    %v5237 = vpack.c.b16 %v5223, %v5222
    %v5238 = vpack.c.b16 %v5225, %v5224
    %v5239 = vpack.c.b16 %v5227, %v5226
    %v5240 = vpack.c.b16 %v5229, %v5228
    %v5241 = vpack.c.b16 %v5231, %v5230
    %v5242 = vpack.c.b16 %v5233, %v5232
    %v5243 = vpack.c.b16 %v5235, %v5234
    %5252 = vmatprep.subr.bf16.mxu0 0
    %5253 = vmatpush1.bf16.msra.mxu0 %v5236
    %5254 = vmatprep.subr.bf16.mxu0 0
    %5255 = vmatpush1.bf16.msra.mxu0 %v5237
    %5256 = vmatprep.subr.bf16.mxu0 0
    %5257 = vmatpush1.bf16.msra.mxu0 %v5238
    %5258 = vmatprep.subr.bf16.mxu0 0
    %5259 = vmatpush1.bf16.msra.mxu0 %v5239
    %5260 = vmatprep.subr.bf16.mxu0 0
    %5261 = vmatpush1.bf16.msra.mxu0 %v5240
    %5262 = vmatprep.subr.bf16.mxu0 0
    %5263 = vmatpush1.bf16.msra.mxu0 %v5241
    %5264 = vmatprep.subr.bf16.mxu0 0
    %5265 = vmatpush1.bf16.msra.mxu0 %v5242
    %5266 = vmatprep.subr.bf16.mxu0 0
    %5267 = vmatpush1.bf16.msra.mxu0 %v5243
    %5268 = vmatprep.subr.bf16.mxu0 0
    %5269 = vmatpush1.bf16.msra.mxu0 0
    %5270 = vmatprep.subr.bf16.mxu0 0
    %5271 = vmatpush1.bf16.msra.mxu0 0
    %5272 = vmatprep.subr.bf16.mxu0 0
    %5273 = vmatpush1.bf16.msra.mxu0 0
    %5274 = vmatprep.subr.bf16.mxu0 0
    %5275 = vmatpush1.bf16.msra.mxu0 0
    %5276 = vmatprep.subr.bf16.mxu0 0
    %5277 = vmatpush1.bf16.msra.mxu0 0
    %5278 = vmatprep.subr.bf16.mxu0 0
    %5279 = vmatpush1.bf16.msra.mxu0 0
    %5280 = vmatprep.subr.bf16.mxu0 0
    %5281 = vmatpush1.bf16.msra.mxu0 0
    %5282 = vmatprep.subr.bf16.mxu0 0
    %5283 = vmatpush1.bf16.msra.mxu0 0
    %5284 = vmatprep.mubr.bf16.mxu0 0
    %5285 = vmatmul.mubr.bf16.gmra.mrb[0].mxu0 %v5202
    %v5286 = vpop.f32.mrb[0].mxu0
    %v5287 = vadd.f32 0.0, %v5286
    %v5288 = vpop.f32.mrb[0].mxu0
    %v5289 = vpop.f32.mrb[0].mxu0
    %v5290 = vpop.f32.mrb[0].mxu0
    %5291 = vdwg.mxu0
    %v5292 = vadd.f32 %v5194, %v5287
    %v5293 = vrot.slane %v5012, 3
    %v5294 = vrot.slane %v5013, 2
    %v5295 = vsel %vm5015, %v5294, %v5293
    %v5296 = vpack.c.b16 %v5295, %v5295
    %v5314 = vunpack.c.l.b16 %v4944
    %v5315 = vunpack.c.l.b16 %v4945
    %v5316 = vunpack.c.l.b16 %v4946
    %v5317 = vunpack.c.l.b16 %v4947
    %v5318 = vunpack.c.l.b16 %v4948
    %v5319 = vunpack.c.l.b16 %v4949
    %v5320 = vunpack.c.l.b16 %v4950
    %v5321 = vunpack.c.l.b16 %v4951
    %v5322 = vunpack.c.l.b16 %v4952
    %v5323 = vunpack.c.l.b16 %v4953
    %v5324 = vunpack.c.l.b16 %v4954
    %v5325 = vunpack.c.l.b16 %v4955
    %v5326 = vunpack.c.l.b16 %v4956
    %v5327 = vunpack.c.l.b16 %v4957
    %v5328 = vunpack.c.l.b16 %v4958
    %v5329 = vunpack.c.l.b16 %v4959
    %v5330 = vpack.c.b16 %v5315, %v5314
    %v5331 = vpack.c.b16 %v5317, %v5316
    %v5332 = vpack.c.b16 %v5319, %v5318
    %v5333 = vpack.c.b16 %v5321, %v5320
    %v5334 = vpack.c.b16 %v5323, %v5322
    %v5335 = vpack.c.b16 %v5325, %v5324
    %v5336 = vpack.c.b16 %v5327, %v5326
    %v5337 = vpack.c.b16 %v5329, %v5328
    %5346 = vmatprep.subr.bf16.mxu0 0
    %5347 = vmatpush1.bf16.msra.mxu0 %v5330
    %5348 = vmatprep.subr.bf16.mxu0 0
    %5349 = vmatpush1.bf16.msra.mxu0 %v5331
    %5350 = vmatprep.subr.bf16.mxu0 0
    %5351 = vmatpush1.bf16.msra.mxu0 %v5332
    %5352 = vmatprep.subr.bf16.mxu0 0
    %5353 = vmatpush1.bf16.msra.mxu0 %v5333
    %5354 = vmatprep.subr.bf16.mxu0 0
    %5355 = vmatpush1.bf16.msra.mxu0 %v5334
    %5356 = vmatprep.subr.bf16.mxu0 0
    %5357 = vmatpush1.bf16.msra.mxu0 %v5335
    %5358 = vmatprep.subr.bf16.mxu0 0
    %5359 = vmatpush1.bf16.msra.mxu0 %v5336
    %5360 = vmatprep.subr.bf16.mxu0 0
    %5361 = vmatpush1.bf16.msra.mxu0 %v5337
    %5362 = vmatprep.subr.bf16.mxu0 0
    %5363 = vmatpush1.bf16.msra.mxu0 0
    %5364 = vmatprep.subr.bf16.mxu0 0
    %5365 = vmatpush1.bf16.msra.mxu0 0
    %5366 = vmatprep.subr.bf16.mxu0 0
    %5367 = vmatpush1.bf16.msra.mxu0 0
    %5368 = vmatprep.subr.bf16.mxu0 0
    %5369 = vmatpush1.bf16.msra.mxu0 0
    %5370 = vmatprep.subr.bf16.mxu0 0
    %5371 = vmatpush1.bf16.msra.mxu0 0
    %5372 = vmatprep.subr.bf16.mxu0 0
    %5373 = vmatpush1.bf16.msra.mxu0 0
    %5374 = vmatprep.subr.bf16.mxu0 0
    %5375 = vmatpush1.bf16.msra.mxu0 0
    %5376 = vmatprep.subr.bf16.mxu0 0
    %5377 = vmatpush1.bf16.msra.mxu0 0
    %5378 = vmatprep.mubr.bf16.mxu0 0
    %5379 = vmatmul.mubr.bf16.gmra.mrb[0].mxu0 %v5296
    %v5380 = vpop.f32.mrb[0].mxu0
    %v5381 = vadd.f32 0.0, %v5380
    %v5382 = vpop.f32.mrb[0].mxu0
    %v5383 = vpop.f32.mrb[0].mxu0
    %v5384 = vpop.f32.mrb[0].mxu0
    %5385 = vdwg.mxu0
    %v5386 = vadd.f32 %v5292, %v5381
    %v5387 = vrot.slane %v5012, 4
    %v5388 = vrot.slane %v5013, 3
    %v5389 = vsel %vm5015, %v5388, %v5387
    %v5390 = vpack.c.b16 %v5389, %v5389
    %v5408 = vunpack.c.l.b16 %v4960
    %v5409 = vunpack.c.l.b16 %v4961
    %v5410 = vunpack.c.l.b16 %v4962
    %v5411 = vunpack.c.l.b16 %v4963
    %v5412 = vunpack.c.l.b16 %v4964
    %v5413 = vunpack.c.l.b16 %v4965
    %v5414 = vunpack.c.l.b16 %v4966
    %v5415 = vunpack.c.l.b16 %v4967
    %v5416 = vunpack.c.l.b16 %v4968
    %v5417 = vunpack.c.l.b16 %v4969
    %v5418 = vunpack.c.l.b16 %v4970
    %v5419 = vunpack.c.l.b16 %v4971
    %v5420 = vunpack.c.l.b16 %v4972
    %v5421 = vunpack.c.l.b16 %v4973
    %v5422 = vunpack.c.l.b16 %v4974
    %v5423 = vunpack.c.l.b16 %v4975
    %v5424 = vpack.c.b16 %v5409, %v5408
    %v5425 = vpack.c.b16 %v5411, %v5410
    %v5426 = vpack.c.b16 %v5413, %v5412
    %v5427 = vpack.c.b16 %v5415, %v5414
    %v5428 = vpack.c.b16 %v5417, %v5416
    %v5429 = vpack.c.b16 %v5419, %v5418
    %v5430 = vpack.c.b16 %v5421, %v5420
    %v5431 = vpack.c.b16 %v5423, %v5422
    %5440 = vmatprep.subr.bf16.mxu0 0
    %5441 = vmatpush1.bf16.msra.mxu0 %v5424
    %5442 = vmatprep.subr.bf16.mxu0 0
    %5443 = vmatpush1.bf16.msra.mxu0 %v5425
    %5444 = vmatprep.subr.bf16.mxu0 0
    %5445 = vmatpush1.bf16.msra.mxu0 %v5426
    %5446 = vmatprep.subr.bf16.mxu0 0
    %5447 = vmatpush1.bf16.msra.mxu0 %v5427
    %5448 = vmatprep.subr.bf16.mxu0 0
    %5449 = vmatpush1.bf16.msra.mxu0 %v5428
    %5450 = vmatprep.subr.bf16.mxu0 0
    %5451 = vmatpush1.bf16.msra.mxu0 %v5429
    %5452 = vmatprep.subr.bf16.mxu0 0
    %5453 = vmatpush1.bf16.msra.mxu0 %v5430
    %5454 = vmatprep.subr.bf16.mxu0 0
    %5455 = vmatpush1.bf16.msra.mxu0 %v5431
    %5456 = vmatprep.subr.bf16.mxu0 0
    %5457 = vmatpush1.bf16.msra.mxu0 0
    %5458 = vmatprep.subr.bf16.mxu0 0
    %5459 = vmatpush1.bf16.msra.mxu0 0
    %5460 = vmatprep.subr.bf16.mxu0 0
    %5461 = vmatpush1.bf16.msra.mxu0 0
    %5462 = vmatprep.subr.bf16.mxu0 0
    %5463 = vmatpush1.bf16.msra.mxu0 0
    %5464 = vmatprep.subr.bf16.mxu0 0
    %5465 = vmatpush1.bf16.msra.mxu0 0
    %5466 = vmatprep.subr.bf16.mxu0 0
    %5467 = vmatpush1.bf16.msra.mxu0 0
    %5468 = vmatprep.subr.bf16.mxu0 0
    %5469 = vmatpush1.bf16.msra.mxu0 0
    %5470 = vmatprep.subr.bf16.mxu0 0
    %5471 = vmatpush1.bf16.msra.mxu0 0
    %5472 = vmatprep.mubr.bf16.mxu0 0
    %5473 = vmatmul.mubr.bf16.gmra.mrb[0].mxu0 %v5390
    %v5474 = vpop.f32.mrb[0].mxu0
    %v5475 = vadd.f32 0.0, %v5474
    %v5476 = vpop.f32.mrb[0].mxu0
    %v5477 = vpop.f32.mrb[0].mxu0
    %v5478 = vpop.f32.mrb[0].mxu0
    %5479 = vdwg.mxu0
    %v5480 = vadd.f32 %v5386, %v5475
    %v5481 = vrot.slane %v5012, 5
    %v5482 = vrot.slane %v5013, 4
    %v5483 = vsel %vm5015, %v5482, %v5481
    %v5484 = vpack.c.b16 %v5483, %v5483
    %v5502 = vunpack.c.l.b16 %v4976
    %v5503 = vunpack.c.l.b16 %v4977
    %v5504 = vunpack.c.l.b16 %v4978
    %v5505 = vunpack.c.l.b16 %v4979
    %v5506 = vunpack.c.l.b16 %v4980
    %v5507 = vunpack.c.l.b16 %v4981
    %v5508 = vunpack.c.l.b16 %v4982
    %v5509 = vunpack.c.l.b16 %v4983
    %v5510 = vunpack.c.l.b16 %v4984
    %v5511 = vunpack.c.l.b16 %v4985
    %v5512 = vunpack.c.l.b16 %v4986
    %v5513 = vunpack.c.l.b16 %v4987
    %v5514 = vunpack.c.l.b16 %v4988
    %v5515 = vunpack.c.l.b16 %v4989
    %v5516 = vunpack.c.l.b16 %v4990
    %v5517 = vunpack.c.l.b16 %v4991
    %v5518 = vpack.c.b16 %v5503, %v5502
    %v5519 = vpack.c.b16 %v5505, %v5504
    %v5520 = vpack.c.b16 %v5507, %v5506
    %v5521 = vpack.c.b16 %v5509, %v5508
    %v5522 = vpack.c.b16 %v5511, %v5510
    %v5523 = vpack.c.b16 %v5513, %v5512
    %v5524 = vpack.c.b16 %v5515, %v5514
    %v5525 = vpack.c.b16 %v5517, %v5516
    %5534 = vmatprep.subr.bf16.mxu0 0
    %5535 = vmatpush1.bf16.msra.mxu0 %v5518
    %5536 = vmatprep.subr.bf16.mxu0 0
    %5537 = vmatpush1.bf16.msra.mxu0 %v5519
    %5538 = vmatprep.subr.bf16.mxu0 0
    %5539 = vmatpush1.bf16.msra.mxu0 %v5520
    %5540 = vmatprep.subr.bf16.mxu0 0
    %5541 = vmatpush1.bf16.msra.mxu0 %v5521
    %5542 = vmatprep.subr.bf16.mxu0 0
    %5543 = vmatpush1.bf16.msra.mxu0 %v5522
    %5544 = vmatprep.subr.bf16.mxu0 0
    %5545 = vmatpush1.bf16.msra.mxu0 %v5523
    %5546 = vmatprep.subr.bf16.mxu0 0
    %5547 = vmatpush1.bf16.msra.mxu0 %v5524
    %5548 = vmatprep.subr.bf16.mxu0 0
    %5549 = vmatpush1.bf16.msra.mxu0 %v5525
    %5550 = vmatprep.subr.bf16.mxu0 0
    %5551 = vmatpush1.bf16.msra.mxu0 0
    %5552 = vmatprep.subr.bf16.mxu0 0
    %5553 = vmatpush1.bf16.msra.mxu0 0
    %5554 = vmatprep.subr.bf16.mxu0 0
    %5555 = vmatpush1.bf16.msra.mxu0 0
    %5556 = vmatprep.subr.bf16.mxu0 0
    %5557 = vmatpush1.bf16.msra.mxu0 0
    %5558 = vmatprep.subr.bf16.mxu0 0
    %5559 = vmatpush1.bf16.msra.mxu0 0
    %5560 = vmatprep.subr.bf16.mxu0 0
    %5561 = vmatpush1.bf16.msra.mxu0 0
    %5562 = vmatprep.subr.bf16.mxu0 0
    %5563 = vmatpush1.bf16.msra.mxu0 0
    %5564 = vmatprep.subr.bf16.mxu0 0
    %5565 = vmatpush1.bf16.msra.mxu0 0
    %5566 = vmatprep.mubr.bf16.mxu0 0
    %5567 = vmatmul.mubr.bf16.gmra.mrb[0].mxu0 %v5484
    %v5568 = vpop.f32.mrb[0].mxu0
    %v5569 = vadd.f32 0.0, %v5568
    %v5570 = vpop.f32.mrb[0].mxu0
    %v5571 = vpop.f32.mrb[0].mxu0
    %v5572 = vpop.f32.mrb[0].mxu0
    %5573 = vdwg.mxu0
    %v5574 = vadd.f32 %v5480, %v5569
    %v5575 = vrot.slane %v5012, 6
    %v5576 = vrot.slane %v5013, 5
    %v5577 = vsel %vm5015, %v5576, %v5575
    %v5578 = vpack.c.b16 %v5577, %v5577
    %v5596 = vunpack.c.l.b16 %v4992
    %v5597 = vunpack.c.l.b16 %v4993
    %v5598 = vunpack.c.l.b16 %v4994
    %v5599 = vunpack.c.l.b16 %v4995
    %v5600 = vunpack.c.l.b16 %v4996
    %v5601 = vunpack.c.l.b16 %v4997
    %v5602 = vunpack.c.l.b16 %v4998
    %v5603 = vunpack.c.l.b16 %v4999
    %v5604 = vunpack.c.l.b16 %v5000
    %v5605 = vunpack.c.l.b16 %v5001
    %v5606 = vunpack.c.l.b16 %v5002
    %v5607 = vunpack.c.l.b16 %v5003
    %v5608 = vunpack.c.l.b16 %v5004
    %v5609 = vunpack.c.l.b16 %v5005
    %v5610 = vunpack.c.l.b16 %v5006
    %v5611 = vunpack.c.l.b16 %v5007
    %v5612 = vpack.c.b16 %v5597, %v5596
    %v5613 = vpack.c.b16 %v5599, %v5598
    %v5614 = vpack.c.b16 %v5601, %v5600
    %v5615 = vpack.c.b16 %v5603, %v5602
    %v5616 = vpack.c.b16 %v5605, %v5604
    %v5617 = vpack.c.b16 %v5607, %v5606
    %v5618 = vpack.c.b16 %v5609, %v5608
    %v5619 = vpack.c.b16 %v5611, %v5610
    %5628 = vmatprep.subr.bf16.mxu0 0
    %5629 = vmatpush1.bf16.msra.mxu0 %v5612
    %5630 = vmatprep.subr.bf16.mxu0 0
    %5631 = vmatpush1.bf16.msra.mxu0 %v5613
    %5632 = vmatprep.subr.bf16.mxu0 0
    %5633 = vmatpush1.bf16.msra.mxu0 %v5614
    %5634 = vmatprep.subr.bf16.mxu0 0
    %5635 = vmatpush1.bf16.msra.mxu0 %v5615
    %5636 = vmatprep.subr.bf16.mxu0 0
    %5637 = vmatpush1.bf16.msra.mxu0 %v5616
    %5638 = vmatprep.subr.bf16.mxu0 0
    %5639 = vmatpush1.bf16.msra.mxu0 %v5617
    %5640 = vmatprep.subr.bf16.mxu0 0
    %5641 = vmatpush1.bf16.msra.mxu0 %v5618
    %5642 = vmatprep.subr.bf16.mxu0 0
    %5643 = vmatpush1.bf16.msra.mxu0 %v5619
    %5644 = vmatprep.subr.bf16.mxu0 0
    %5645 = vmatpush1.bf16.msra.mxu0 0
    %5646 = vmatprep.subr.bf16.mxu0 0
    %5647 = vmatpush1.bf16.msra.mxu0 0
    %5648 = vmatprep.subr.bf16.mxu0 0
    %5649 = vmatpush1.bf16.msra.mxu0 0
    %5650 = vmatprep.subr.bf16.mxu0 0
    %5651 = vmatpush1.bf16.msra.mxu0 0
    %5652 = vmatprep.subr.bf16.mxu0 0
    %5653 = vmatpush1.bf16.msra.mxu0 0
    %5654 = vmatprep.subr.bf16.mxu0 0
    %5655 = vmatpush1.bf16.msra.mxu0 0
    %5656 = vmatprep.subr.bf16.mxu0 0
    %5657 = vmatpush1.bf16.msra.mxu0 0
    %5658 = vmatprep.subr.bf16.mxu0 0
    %5659 = vmatpush1.bf16.msra.mxu0 0
    %5660 = vmatprep.mubr.bf16.mxu0 0
    %5661 = vmatmul.mubr.bf16.gmra.mrb[0].mxu0 %v5578
    %v5662 = vpop.f32.mrb[0].mxu0
    %v5663 = vadd.f32 0.0, %v5662
    %v5664 = vpop.f32.mrb[0].mxu0
    %v5665 = vpop.f32.mrb[0].mxu0
    %v5666 = vpop.f32.mrb[0].mxu0
    %5667 = vdwg.mxu0
    %v5668 = vadd.f32 %v5574, %v5663
    %v5669 = vld [vmem:[%s22] sm:$0x1]
    %v5671 = vlaneseq
    %v5672 = vshrl.u32 %v5671, 7
    %v5673 = vsub.s32 0, %v5672
    %v5674 = vrot.slane %v5669, %v5673
    %v5676 = vadd.f32 %v5668, %v5674
    %v5677 = vmax.f32 %v5676, 0.0
    %v5678 = vpack.c.bf16 %v5677, %v5677
    %v5679 = vld [vmem:[%s23] sm:$0xf]
    %v5680 = vld [vmem:[%s23 + $0x4] sm:$0xf]
    %v5681 = vld [vmem:[%s23 + $0x8] sm:$0xf]
    %v5682 = vld [vmem:[%s23 + $0xc] sm:$0xf]
    %v5683 = vld [vmem:[%s23 + $0x10] sm:$0xf]
    %v5684 = vld [vmem:[%s23 + $0x14] sm:$0xf]
    %v5685 = vld [vmem:[%s23 + $0x18] sm:$0xf]
    %v5686 = vld [vmem:[%s23 + $0x1c] sm:$0xf]
    %v5687 = vld [vmem:[%s23 + $0x20] sm:$0xf]
    %v5688 = vld [vmem:[%s23 + $0x24] sm:$0xf]
    %v5689 = vld [vmem:[%s23 + $0x28] sm:$0xf]
    %v5690 = vld [vmem:[%s23 + $0x2c] sm:$0xf]
    %v5691 = vld [vmem:[%s23 + $0x30] sm:$0xf]
    %v5692 = vld [vmem:[%s23 + $0x34] sm:$0xf]
    %v5693 = vld [vmem:[%s23 + $0x38] sm:$0xf]
    %v5694 = vld [vmem:[%s23 + $0x3c] sm:$0xf]
    %v5695 = vld [vmem:[%s24] sm:$0x1]
    %v5697 = vlaneseq
    %v5698 = vshrl.u32 %v5697, 7
    %v5699 = vsub.s32 0, %v5698
    %v5700 = vrot.slane %v5695, %v5699
    %v5718 = vunpack.c.l.b16 %v5679
    %v5719 = vunpack.c.l.b16 %v5680
    %v5720 = vunpack.c.l.b16 %v5681
    %v5721 = vunpack.c.l.b16 %v5682
    %v5722 = vunpack.c.l.b16 %v5683
    %v5723 = vunpack.c.l.b16 %v5684
    %v5724 = vunpack.c.l.b16 %v5685
    %v5725 = vunpack.c.l.b16 %v5686
    %v5726 = vunpack.c.l.b16 %v5687
    %v5727 = vunpack.c.l.b16 %v5688
    %v5728 = vunpack.c.l.b16 %v5689
    %v5729 = vunpack.c.l.b16 %v5690
    %v5730 = vunpack.c.l.b16 %v5691
    %v5731 = vunpack.c.l.b16 %v5692
    %v5732 = vunpack.c.l.b16 %v5693
    %v5733 = vunpack.c.l.b16 %v5694
    %v5734 = vpack.c.b16 %v5719, %v5718
    %v5735 = vpack.c.b16 %v5721, %v5720
    %v5736 = vpack.c.b16 %v5723, %v5722
    %v5737 = vpack.c.b16 %v5725, %v5724
    %v5738 = vpack.c.b16 %v5727, %v5726
    %v5739 = vpack.c.b16 %v5729, %v5728
    %v5740 = vpack.c.b16 %v5731, %v5730
    %v5741 = vpack.c.b16 %v5733, %v5732
    %5750 = vmatprep.subr.bf16.mxu0 0
    %5751 = vmatpush1.bf16.msra.mxu0 %v5734
    %5752 = vmatprep.subr.bf16.mxu0 0
    %5753 = vmatpush1.bf16.msra.mxu0 %v5735
    %5754 = vmatprep.subr.bf16.mxu0 0
    %5755 = vmatpush1.bf16.msra.mxu0 %v5736
    %5756 = vmatprep.subr.bf16.mxu0 0
    %5757 = vmatpush1.bf16.msra.mxu0 %v5737
    %5758 = vmatprep.subr.bf16.mxu0 0
    %5759 = vmatpush1.bf16.msra.mxu0 %v5738
    %5760 = vmatprep.subr.bf16.mxu0 0
    %5761 = vmatpush1.bf16.msra.mxu0 %v5739
    %5762 = vmatprep.subr.bf16.mxu0 0
    %5763 = vmatpush1.bf16.msra.mxu0 %v5740
    %5764 = vmatprep.subr.bf16.mxu0 0
    %5765 = vmatpush1.bf16.msra.mxu0 %v5741
    %5766 = vmatprep.subr.bf16.mxu0 0
    %5767 = vmatpush1.bf16.msra.mxu0 0
    %5768 = vmatprep.subr.bf16.mxu0 0
    %5769 = vmatpush1.bf16.msra.mxu0 0
    %5770 = vmatprep.subr.bf16.mxu0 0
    %5771 = vmatpush1.bf16.msra.mxu0 0
    %5772 = vmatprep.subr.bf16.mxu0 0
    %5773 = vmatpush1.bf16.msra.mxu0 0
    %5774 = vmatprep.subr.bf16.mxu0 0
    %5775 = vmatpush1.bf16.msra.mxu0 0
    %5776 = vmatprep.subr.bf16.mxu0 0
    %5777 = vmatpush1.bf16.msra.mxu0 0
    %5778 = vmatprep.subr.bf16.mxu0 0
    %5779 = vmatpush1.bf16.msra.mxu0 0
    %5780 = vmatprep.subr.bf16.mxu0 0
    %5781 = vmatpush1.bf16.msra.mxu0 0
    %5782 = vmatprep.mubr.bf16.mxu0 0
    %5783 = vmatmul.mubr.bf16.gmra.mrb[0].mxu0 %v5678
    %v5784 = vpop.f32.mrb[0].mxu0
    %v5785 = vadd.f32 %v5700, %v5784
    %v5786 = vpop.f32.mrb[0].mxu0
    %v5787 = vpop.f32.mrb[0].mxu0
    %v5788 = vpop.f32.mrb[0].mxu0
    %5789 = vdwg.mxu0
    %v5790 = vmax.f32 %v5785, 0.0
    %v5791 = vpack.c.bf16 %v5790, %v5790
    %v5792 = vld [vmem:[%s25] sm:$0xf]
    %v5793 = vld [vmem:[%s25 + $0x4] sm:$0xf]
    %v5794 = vld [vmem:[%s25 + $0x8] sm:$0xf]
    %v5795 = vld [vmem:[%s25 + $0xc] sm:$0xf]
    %v5796 = vld [vmem:[%s25 + $0x10] sm:$0xf]
    %v5797 = vld [vmem:[%s25 + $0x14] sm:$0xf]
    %v5798 = vld [vmem:[%s25 + $0x18] sm:$0xf]
    %v5799 = vld [vmem:[%s25 + $0x1c] sm:$0xf]
    %v5800 = vld [vmem:[%s25 + $0x20] sm:$0xf]
    %v5801 = vld [vmem:[%s25 + $0x24] sm:$0xf]
    %v5802 = vld [vmem:[%s25 + $0x28] sm:$0xf]
    %v5803 = vld [vmem:[%s25 + $0x2c] sm:$0xf]
    %v5804 = vld [vmem:[%s25 + $0x30] sm:$0xf]
    %v5805 = vld [vmem:[%s25 + $0x34] sm:$0xf]
    %v5806 = vld [vmem:[%s25 + $0x38] sm:$0xf]
    %v5807 = vld [vmem:[%s25 + $0x3c] sm:$0xf]
    %v5808 = vld [vmem:[%s26] sm:$0x1]
    %v5810 = vlaneseq
    %v5811 = vshrl.u32 %v5810, 7
    %v5812 = vsub.s32 0, %v5811
    %v5813 = vrot.slane %v5808, %v5812
    %v5831 = vunpack.c.l.b16 %v5792
    %v5832 = vunpack.c.l.b16 %v5793
    %v5833 = vunpack.c.l.b16 %v5794
    %v5834 = vunpack.c.l.b16 %v5795
    %v5835 = vunpack.c.l.b16 %v5796
    %v5836 = vunpack.c.l.b16 %v5797
    %v5837 = vunpack.c.l.b16 %v5798
    %v5838 = vunpack.c.l.b16 %v5799
    %v5839 = vunpack.c.l.b16 %v5800
    %v5840 = vunpack.c.l.b16 %v5801
    %v5841 = vunpack.c.l.b16 %v5802
    %v5842 = vunpack.c.l.b16 %v5803
    %v5843 = vunpack.c.l.b16 %v5804
    %v5844 = vunpack.c.l.b16 %v5805
    %v5845 = vunpack.c.l.b16 %v5806
    %v5846 = vunpack.c.l.b16 %v5807
    %v5847 = vpack.c.b16 %v5832, %v5831
    %v5848 = vpack.c.b16 %v5834, %v5833
    %v5849 = vpack.c.b16 %v5836, %v5835
    %v5850 = vpack.c.b16 %v5838, %v5837
    %v5851 = vpack.c.b16 %v5840, %v5839
    %v5852 = vpack.c.b16 %v5842, %v5841
    %v5853 = vpack.c.b16 %v5844, %v5843
    %v5854 = vpack.c.b16 %v5846, %v5845
    %5863 = vmatprep.subr.bf16.mxu0 0
    %5864 = vmatpush1.bf16.msra.mxu0 %v5847
    %5865 = vmatprep.subr.bf16.mxu0 0
    %5866 = vmatpush1.bf16.msra.mxu0 %v5848
    %5867 = vmatprep.subr.bf16.mxu0 0
    %5868 = vmatpush1.bf16.msra.mxu0 %v5849
    %5869 = vmatprep.subr.bf16.mxu0 0
    %5870 = vmatpush1.bf16.msra.mxu0 %v5850
    %5871 = vmatprep.subr.bf16.mxu0 0
    %5872 = vmatpush1.bf16.msra.mxu0 %v5851
    %5873 = vmatprep.subr.bf16.mxu0 0
    %5874 = vmatpush1.bf16.msra.mxu0 %v5852
    %5875 = vmatprep.subr.bf16.mxu0 0
    %5876 = vmatpush1.bf16.msra.mxu0 %v5853
    %5877 = vmatprep.subr.bf16.mxu0 0
    %5878 = vmatpush1.bf16.msra.mxu0 %v5854
    %5879 = vmatprep.subr.bf16.mxu0 0
    %5880 = vmatpush1.bf16.msra.mxu0 0
    %5881 = vmatprep.subr.bf16.mxu0 0
    %5882 = vmatpush1.bf16.msra.mxu0 0
    %5883 = vmatprep.subr.bf16.mxu0 0
    %5884 = vmatpush1.bf16.msra.mxu0 0
    %5885 = vmatprep.subr.bf16.mxu0 0
    %5886 = vmatpush1.bf16.msra.mxu0 0
    %5887 = vmatprep.subr.bf16.mxu0 0
    %5888 = vmatpush1.bf16.msra.mxu0 0
    %5889 = vmatprep.subr.bf16.mxu0 0
    %5890 = vmatpush1.bf16.msra.mxu0 0
    %5891 = vmatprep.subr.bf16.mxu0 0
    %5892 = vmatpush1.bf16.msra.mxu0 0
    %5893 = vmatprep.subr.bf16.mxu0 0
    %5894 = vmatpush1.bf16.msra.mxu0 0
    %5895 = vmatprep.mubr.bf16.mxu0 0
    %5896 = vmatmul.mubr.bf16.gmra.mrb[0].mxu0 %v5791
    %v5897 = vpop.f32.mrb[0].mxu0
    %v5898 = vadd.f32 %v5813, %v5897
    %v5899 = vpop.f32.mrb[0].mxu0
    %v5900 = vpop.f32.mrb[0].mxu0
    %v5901 = vpop.f32.mrb[0].mxu0
    %5902 = vdwg.mxu0
    %vm5903 = vcmask 74752
    %5904 = vst.msk [vmem:[#allocation5] sm:$0x3] %vm5903, %v5898
    // Predicated region
    $region110: #{dropout_pad_bn_lenet5_forward.1} parent=1 // pred_check
      _
    $region111: #{dropout_pad_bn_lenet5_forward.1} parent=1 // pred_check_branch
      %5906 = sbr.rel (0) target = $region113
    $region112: #{dropout_pad_bn_lenet5_forward.1} parent=1 // pred_region
      %s5908 = ssub.s32 32, 32
      %5909 = vsyncadd [#allocation6], %s5908
      %s5911 = sshll.u32 [#allocation5], 4
      %s5912 = int_to_ptr.vmem [resolvable:$true] %s5911
      %5914 = dma.vmem_to_hbm [thread:$0]  %s5912, 32, %s27, [#allocation6]
    $region113: #{dropout_pad_bn_lenet5_forward.1} parent=1 // pred_fallthru
      _
    // Predicated region
    $region114: #{dropout_pad_bn_lenet5_forward.1} parent=1 // pred_check
      _
    $region115: #{dropout_pad_bn_lenet5_forward.1} parent=1 // pred_check_branch
      %5916 = sbr.rel (0) target = $region117
    $region116: #{dropout_pad_bn_lenet5_forward.1} parent=1 // pred_region
      %5917 = dma.done [#allocation6], 32
    $region117: #{dropout_pad_bn_lenet5_forward.1} parent=1 // pred_fallthru
      _
    %5918 = vsyncpa [#allocation6], 1

</llo_original>
